<compile_context>
chip_gen: v5e
topology: v5e:2x2
jax: 0.10.0
libtpu: 0.0.40
codegen_flags: <defaults>
</compile_context>

<pallas_src>
import functools

import jax
import jax.numpy as jnp
from jax.experimental import pallas as pl
from jax.experimental.pallas import tpu as pltpu


DILATED = (6, 12, 18)          # dilations of the three 3x3 branches


# ---------------------------------------------------------------------------
# Fused + tiled Pallas kernel: all 5 ASPP branches, one (batch, row-block) tile,
# accumulated over Cin tiles.
# ---------------------------------------------------------------------------

def _aspp_fused_kernel(x_ref, w1_ref, w2_ref, w3_ref, w4_ref, w5_ref,
                       scale_ref, shift_ref, o_ref,
                       xpad_ref, acc_ref, gap_ref, *, P, dilations):
    """Refs (per grid step (n, h, c)):
       x_ref   : (1, H, W, TC)        full-spatial input, Cin tile c   (bf16/f32)
       w1_ref  : (TC, Cout)           1x1 conv weight tile
       w{2,3,4}: (9, TC, Cout)        3x3 dilated conv weight tiles (tap-major)
       w5_ref  : (TC, Cout)           GAP-branch 1x1 conv weight tile
       scale/shift_ref : (1, 5*Cout)  folded BatchNorm (f32) for all 5 branches
       o_ref   : (1, TH, W, 5*Cout)   fused NHWC output row-block
       xpad_ref: (H+2P, W+2P, TC)     shared zero-padded tile (input dtype)
       acc_ref : (TH*W, 4*Cout) f32   conv-branch accumulator across Cin tiles
       gap_ref : (1, Cout)      f32   GAP-branch accumulator across Cin tiles
    """
    H, W, TC = x_ref.shape[1], x_ref.shape[2], x_ref.shape[3]
    TH = o_ref.shape[1]
    Cout = w1_ref.shape[-1]
    THW = TH * W
    Hp, Wp = xpad_ref.shape[0], xpad_ref.shape[1]

    c_idx = pl.program_id(2)
    num_c = pl.num_programs(2)
    h0 = pl.multiple_of(pl.program_id(1) * TH, TH)

    # ---- once per (n, h) row-block group: zero accumulators and the halo border ----
    @pl.when(c_idx == 0)
    def _init():
        acc_ref[...] = jnp.zeros_like(acc_ref)
        gap_ref[...] = jnp.zeros_like(gap_ref)
        # Border-only zeroing (interior is overwritten every step below).
        zrow = jnp.zeros((P, Wp, TC), xpad_ref.dtype)
        xpad_ref[0:P, :, :] = zrow
        xpad_ref[Hp - P:, :, :] = zrow
        zcol = jnp.zeros((H, P, TC), xpad_ref.dtype)
        xpad_ref[P:P + H, 0:P, :] = zcol
        xpad_ref[P:P + H, Wp - P:, :] = zcol

    # ---- build the shared padded tile for this Cin tile (interior only) ----
    xin = x_ref[0]                                           # (H, W, TC), compute dtype
    xpad_ref[P:P + H, P:P + W, :] = xin

    # ---- GAP branch partial: full-image channel sums via an MXU ones-row dot ----
    ones_row = jnp.ones((1, H * W), xin.dtype)
    xsum = jax.lax.dot_general(ones_row, xin.reshape(H * W, TC),
                               (((1,), (0,)), ((), ())),
                               preferred_element_type=jnp.float32)       # (1, TC)
    gap_ref[...] += jax.lax.dot_general(
        xsum, w5_ref[...].astype(jnp.float32), (((1,), (0,)), ((), ())),
        preferred_element_type=jnp.float32)                              # (1, Cout)

    # Center-tap / 1x1 LHS for this row block (shared by branch 0 and the three
    # dilated branches' center taps) — no duplicate f32 copy of x.
    lhs_center = xpad_ref[pl.ds(h0 + P, TH), pl.ds(P, W), :].reshape(THW, TC)

    # ---- branch 0: 1x1 conv ----
    acc_ref[:, 0:Cout] += jax.lax.dot_general(
        lhs_center, w1_ref[...], (((1,), (0,)), ((), ())),
        preferred_element_type=jnp.float32)

    # ---- branches 1..3: 3x3 dilated convs, 9 accumulating K=TC dots each, windows
    #      sliced directly from the shared padded tile (no materialized im2col) ----
    for b, (w_ref, d) in enumerate(zip((w2_ref, w3_ref, w4_ref), dilations), start=1):
        yb = None
        for ki in range(3):
            for kj in range(3):
                if ki == 1 and kj == 1:
                    lhs = lhs_center
                else:
                    lhs = xpad_ref[pl.ds(h0 + P + (ki - 1) * d, TH),
                                   pl.ds(P + (kj - 1) * d, W), :].reshape(THW, TC)
                y = jax.lax.dot_general(lhs, w_ref[ki * 3 + kj],
                                        (((1,), (0,)), ((), ())),
                                        preferred_element_type=jnp.float32)
                yb = y if yb is None else yb + y
        acc_ref[:, b * Cout:(b + 1) * Cout] += yb

    # ---- epilogue on the last Cin tile: BN + ReLU + lane-dense store ----
    @pl.when(c_idx == num_c - 1)
    def _finalize():
        s = scale_ref[...]                                   # (1, 5*Cout) f32
        t = shift_ref[...]
        y = jnp.maximum(acc_ref[...] * s[:, :4 * Cout] + t[:, :4 * Cout], 0.0)
        o_ref[0, :, :, :4 * Cout] = y.reshape(TH, W, 4 * Cout).astype(o_ref.dtype)
        # GAP: mean -> 1x1 conv (already applied) -> BN -> ReLU -> broadcast
        mean = gap_ref[...] * (1.0 / float(H * W))           # (1, Cout)
        y5 = jnp.maximum(mean * s[:, 4 * Cout:] + t[:, 4 * Cout:], 0.0)
        o_ref[0, :, :, 4 * Cout:] = jnp.broadcast_to(
            y5.reshape(1, 1, Cout), (TH, W, Cout)).astype(o_ref.dtype)


# ---------------------------------------------------------------------------
# Wrapper
# ---------------------------------------------------------------------------

def aspp_forward(x_nchw, params, *, row_block=None, cin_block=None,
                 out_dtype=None, vmem_limit_bytes=64 * 1024 * 1024):
    """ASPP forward.  Input/output are NCHW (PyTorch convention).

    row_block : output row tile (multiple of 8; must divide H).  One block per TC on v7x.
    cin_block : Cin reduction tile (multiple of 128, or == Cin).
    """
    x = jnp.transpose(x_nchw, (0, 2, 3, 1))                  # NCHW -> NHWC (channels on lanes)
    N, H, W, Cin = x.shape
    Cout = params["w1"].shape[-1]
    TH = H if row_block is None else row_block
    TC = Cin if cin_block is None else cin_block
    if H % TH or Cin % TC:
        raise ValueError("row_block must divide H and cin_block must divide Cin")
    if TC != Cin and TC % 128:
        raise ValueError("cin_block must be a multiple of 128 (or == Cin)")
    out_dtype = x.dtype if out_dtype is None else out_dtype

    P = (max(DILATED) + 7) // 8 * 8                          # halo, sublane-aligned (=24)
    Hp, Wp = H + 2 * P, W + 2 * P
    HB, CB = H // TH, Cin // TC

    kern = functools.partial(_aspp_fused_kernel, P=P, dilations=DILATED)
    out_nhwc = pl.pallas_call(
        kern,
        out_shape=jax.ShapeDtypeStruct((N, H, W, 5 * Cout), out_dtype),
        grid=(N, HB, CB),
        in_specs=[
            # full-spatial input per Cin tile (the halo for every row block comes from here)
            pl.BlockSpec((1, H, W, TC), lambda n, h, c: (n, 0, 0, c)),
            # weights blocked along the Cin reduction axis -> small, usefully pipelined buffers
            pl.BlockSpec((TC, Cout), lambda n, h, c: (c, 0)),
            pl.BlockSpec((9, TC, Cout), lambda n, h, c: (0, c, 0)),
            pl.BlockSpec((9, TC, Cout), lambda n, h, c: (0, c, 0)),
            pl.BlockSpec((9, TC, Cout), lambda n, h, c: (0, c, 0)),
            pl.BlockSpec((TC, Cout), lambda n, h, c: (c, 0)),
            pl.BlockSpec((1, 5 * Cout), lambda n, h, c: (0, 0)),
            pl.BlockSpec((1, 5 * Cout), lambda n, h, c: (0, 0)),
        ],
        out_specs=pl.BlockSpec((1, TH, W, 5 * Cout), lambda n, h, c: (n, h, 0, 0)),
        scratch_shapes=[
            pltpu.VMEM((Hp, Wp, TC), x.dtype),               # shared padded tile (input dtype)
            pltpu.VMEM((TH * W, 4 * Cout), jnp.float32),     # conv-branch f32 accumulator
            pltpu.VMEM((1, Cout), jnp.float32),              # GAP-branch f32 accumulator
        ],
        compiler_params=pltpu.CompilerParams(
            dimension_semantics=("parallel", "parallel", "arbitrary"),
            vmem_limit_bytes=vmem_limit_bytes),
    )(x, params["w1"], params["w2"], params["w3"], params["w4"], params["w5"],
      params["scale"], params["shift"])

    # TODO(synk): fold this layout transpose into the consumer when ASPP is part of a
    # larger NHWC pipeline; kept only for PyTorch NCHW output parity.
    return jnp.transpose(out_nhwc, (0, 3, 1, 2))


# ---------------------------------------------------------------------------
# Deterministic parameter init + pure-JAX reference
# ---------------------------------------------------------------------------

def _fold_bn(key, cout, eps=1e-5):
    kg, kb = jax.random.split(key)
    gamma = 1.0 + 0.1 * jax.random.normal(kg, (cout,), jnp.float32)
    beta = 0.1 * jax.random.normal(kb, (cout,), jnp.float32)
    running_mean = jnp.zeros((cout,), jnp.float32)
    running_var = jnp.ones((cout,), jnp.float32)
    scale = gamma / jnp.sqrt(running_var + eps)
    shift = beta - running_mean * scale
    return scale, shift


def init_params(key, cin, cout, *, dtype=jnp.bfloat16):
    """Weights in `dtype` (bf16 for the MXU fast path); folded BN scale/shift in f32."""
    keys = jax.random.split(key, 10)
    scales, shifts = [], []

    # branch 0: 1x1 conv (PyTorch (Cout, Cin, 1, 1) -> (Cin, Cout))
    w1_t = 0.1 * jax.random.normal(keys[0], (cout, cin, 1, 1), jnp.float32)
    w1 = jnp.transpose(w1_t, (2, 3, 1, 0)).reshape(cin, cout)
    s, b = _fold_bn(keys[1], cout); scales.append(s); shifts.append(b)

    # branches 1..3: 3x3 convs -> (3, 3, Cin, Cout) -> tap-major (9, Cin, Cout)
    w3x3 = []
    for i, _d in enumerate(DILATED):
        wt = 0.1 * jax.random.normal(keys[2 + 2 * i], (cout, cin, 3, 3), jnp.float32)
        w3x3.append(jnp.transpose(wt, (2, 3, 1, 0)).reshape(9, cin, cout))
        s, b = _fold_bn(keys[3 + 2 * i], cout); scales.append(s); shifts.append(b)

    # branch 4: GAP 1x1 conv
    w5_t = 0.1 * jax.random.normal(keys[8], (cout, cin, 1, 1), jnp.float32)
    w5 = jnp.transpose(w5_t, (2, 3, 1, 0)).reshape(cin, cout)
    s, b = _fold_bn(keys[9], cout); scales.append(s); shifts.append(b)

    return {
        "w1": w1.astype(dtype), "w2": w3x3[0].astype(dtype),
        "w3": w3x3[1].astype(dtype), "w4": w3x3[2].astype(dtype),
        "w5": w5.astype(dtype),
        "scale": jnp.concatenate(scales, -1).reshape(1, 5 * cout),
        "shift": jnp.concatenate(shifts, -1).reshape(1, 5 * cout),
    }


def aspp_reference(x_nchw, params):
    """Pure-JAX (XLA conv) reference.  Upcasts the (bf16) inputs/weights to f32 so both
    paths see identical quantized values with f32 accumulation."""
    x = x_nchw.astype(jnp.float32)
    N, Cin, H, W = x.shape
    Cout = params["w1"].shape[-1]
    scale = params["scale"][0]
    shift = params["shift"][0]

    def bn_relu(y, b):
        s = scale[b * Cout:(b + 1) * Cout].reshape(1, -1, 1, 1)
        t = shift[b * Cout:(b + 1) * Cout].reshape(1, -1, 1, 1)
        return jnp.maximum(y * s + t, 0.0)

    outs = []
    outs.append(bn_relu(jnp.einsum("nchw,co->nohw", x,
                                   params["w1"].astype(jnp.float32)), 0))
    for b, (d, wk) in enumerate(zip(DILATED,
                                    (params["w2"], params["w3"], params["w4"])), start=1):
        w_oihw = jnp.transpose(wk.astype(jnp.float32).reshape(3, 3, Cin, Cout),
                               (3, 2, 0, 1))
        y = jax.lax.conv_general_dilated(
            x, w_oihw, (1, 1), ((d, d), (d, d)), rhs_dilation=(d, d),
            dimension_numbers=("NCHW", "OIHW", "NCHW"))
        outs.append(bn_relu(y, b))
    m = jnp.mean(x, axis=(2, 3))                             # (N, Cin)
    y5 = m @ params["w5"].astype(jnp.float32)                # (N, Cout)
    y5 = jnp.maximum(y5 * scale[4 * Cout:] + shift[4 * Cout:], 0.0)
    outs.append(jnp.broadcast_to(y5[:, :, None, None], (N, Cout, H, W)))
    return jnp.concatenate(outs, axis=1)


# ---------------------------------------------------------------------------

if __name__ == "__main__":
    # Small but tiling-exercising shapes: grid = (N=2, H-blocks=2, Cin-blocks=2),
    # Cout=128 so all per-branch lane slices are 128-aligned.
    N, Cin, Cout, H, W = 2, 256, 128, 16, 16
    key = jax.random.PRNGKey(0)
    kx, kp = jax.random.split(key)
    x = jax.random.normal(kx, (N, Cin, H, W), jnp.float32).astype(jnp.bfloat16)
    params = init_params(kp, Cin, Cout)                      # bf16 weights, f32 BN

    fwd = jax.jit(functools.partial(aspp_forward, row_block=8, cin_block=128,
                                    out_dtype=jnp.float32))
    out = jax.block_until_ready(fwd(x, params))

    assert out.shape == (N, 5 * Cout, H, W), out.shape
    ref = aspp_reference(x, params)
    err = float(jnp.max(jnp.abs(out - ref)))
    assert jnp.allclose(out, ref, rtol=2e-3, atol=2e-3), err

    print("KERNEL_OK")
</pallas_src>

<mosaic_0001>
module attributes {stable_mosaic.version = 11 : i64} {
  func.func @_aspp_fused_kernel(%arg0: i32, %arg1: i32, %arg2: i32, %arg3: memref<1x16x16x128xbf16, #tpu.memory_space<vmem>>, %arg4: memref<128x128xbf16, #tpu.memory_space<vmem>>, %arg5: memref<9x128x128xbf16, #tpu.memory_space<vmem>>, %arg6: memref<9x128x128xbf16, #tpu.memory_space<vmem>>, %arg7: memref<9x128x128xbf16, #tpu.memory_space<vmem>>, %arg8: memref<128x128xbf16, #tpu.memory_space<vmem>>, %arg9: memref<1x640xf32, #tpu.memory_space<vmem>>, %arg10: memref<1x640xf32, #tpu.memory_space<vmem>>, %arg11: memref<1x8x16x640xf32, #tpu.memory_space<vmem>>, %arg12: memref<64x64x128xbf16, #tpu.memory_space<vmem>>, %arg13: memref<128x512xf32, #tpu.memory_space<vmem>>, %arg14: memref<1x128xf32, #tpu.memory_space<vmem>>) attributes {dimension_semantics = [#tpu.dimension_semantics<parallel>, #tpu.dimension_semantics<parallel>, #tpu.dimension_semantics<arbitrary>], iteration_bounds = array<i64: 2, 2, 2>, scalar_prefetch = 0 : i64, scratch_operands = 3 : i64, tpu.core_type = #tpu.core_type<tc>, window_params = [{transform_indices = @transform_0, window_bounds = array<i64: 1, 16, 16, 128>}, {transform_indices = @transform_1, window_bounds = array<i64: 128, 128>}, {transform_indices = @transform_2, window_bounds = array<i64: 9, 128, 128>}, {transform_indices = @transform_3, window_bounds = array<i64: 9, 128, 128>}, {transform_indices = @transform_4, window_bounds = array<i64: 9, 128, 128>}, {transform_indices = @transform_5, window_bounds = array<i64: 128, 128>}, {pipeline_mode = #tpu.pipeline_mode<synchronous>, transform_indices = @transform_6, window_bounds = array<i64: 1, 640>}, {pipeline_mode = #tpu.pipeline_mode<synchronous>, transform_indices = @transform_7, window_bounds = array<i64: 1, 640>}, {transform_indices = @transform_8, window_bounds = array<i64: 1, 8, 16, 640>}]} {
    %c8_i32 = arith.constant 8 : i32
    %0 = arith.muli %arg1, %c8_i32 : i32
    %1 = tpu.assume_multiple %0, 8 : i32
    %c0_i32 = arith.constant 0 : i32
    %2 = arith.cmpi eq, %arg2, %c0_i32 : i32
    %3 = arith.extui %2 : i1 to i32
    %c0_i32_0 = arith.constant 0 : i32
    %4 = arith.cmpi ne, %3, %c0_i32_0 : i32
    scf.if %4 {
      %cst_218 = arith.constant 0.000000e+00 : f32
      %263 = vector.broadcast %cst_218 : f32 to vector<128x512xf32>
      %c0_219 = arith.constant 0 : index
      %c0_220 = arith.constant 0 : index
      %264 = vector.load %arg13[%c0_219, %c0_220] : memref<128x512xf32, #tpu.memory_space<vmem>>, vector<128x512xf32>
      tpu.vector_store %arg13[%c0_219, %c0_220], %263 {strides = array<i32>} : memref<128x512xf32, #tpu.memory_space<vmem>>, vector<128x512xf32>,
      %cst_221 = arith.constant 0.000000e+00 : f32
      %265 = vector.broadcast %cst_221 : f32 to vector<1x128xf32>
      %c0_222 = arith.constant 0 : index
      %c0_223 = arith.constant 0 : index
      %266 = vector.load %arg14[%c0_222, %c0_223] : memref<1x128xf32, #tpu.memory_space<vmem>>, vector<1x128xf32>
      tpu.vector_store %arg14[%c0_222, %c0_223], %265 {strides = array<i32>} : memref<1x128xf32, #tpu.memory_space<vmem>>, vector<1x128xf32>,
      %cst_224 = arith.constant 0.000000e+00 : bf16
      %267 = vector.broadcast %cst_224 : bf16 to vector<24x64x128xbf16>
      %c0_225 = arith.constant 0 : index
      %c0_226 = arith.constant 0 : index
      %c0_227 = arith.constant 0 : index
      %268 = vector.load %arg12[%c0_225, %c0_226, %c0_227] : memref<64x64x128xbf16, #tpu.memory_space<vmem>>, vector<24x64x128xbf16>
      tpu.vector_store %arg12[%c0_225, %c0_226, %c0_227], %267 {strides = array<i32>} : memref<64x64x128xbf16, #tpu.memory_space<vmem>>, vector<24x64x128xbf16>,
      %c40 = arith.constant 40 : index
      %c0_228 = arith.constant 0 : index
      %c0_229 = arith.constant 0 : index
      %269 = vector.load %arg12[%c40, %c0_228, %c0_229] : memref<64x64x128xbf16, #tpu.memory_space<vmem>>, vector<24x64x128xbf16>
      tpu.vector_store %arg12[%c40, %c0_228, %c0_229], %267 {strides = array<i32>} : memref<64x64x128xbf16, #tpu.memory_space<vmem>>, vector<24x64x128xbf16>,
      %cst_230 = arith.constant 0.000000e+00 : bf16
      %270 = vector.broadcast %cst_230 : bf16 to vector<16x24x128xbf16>
      %c24_231 = arith.constant 24 : index
      %c0_232 = arith.constant 0 : index
      %c0_233 = arith.constant 0 : index
      %271 = vector.load %arg12[%c24_231, %c0_232, %c0_233] : memref<64x64x128xbf16, #tpu.memory_space<vmem>>, vector<16x24x128xbf16>
      tpu.vector_store %arg12[%c24_231, %c0_232, %c0_233], %270 {strides = array<i32>} : memref<64x64x128xbf16, #tpu.memory_space<vmem>>, vector<16x24x128xbf16>,
      %c24_234 = arith.constant 24 : index
      %c40_235 = arith.constant 40 : index
      %c0_236 = arith.constant 0 : index
      %272 = vector.load %arg12[%c24_234, %c40_235, %c0_236] : memref<64x64x128xbf16, #tpu.memory_space<vmem>>, vector<16x24x128xbf16>
      tpu.vector_store %arg12[%c24_234, %c40_235, %c0_236], %270 {strides = array<i32>} : memref<64x64x128xbf16, #tpu.memory_space<vmem>>, vector<16x24x128xbf16>,
    } else {
    }
    %c0 = arith.constant 0 : index
    %c0_1 = arith.constant 0 : index
    %c0_2 = arith.constant 0 : index
    %c0_3 = arith.constant 0 : index
    %5 = vector.load %arg3[%c0, %c0_1, %c0_2, %c0_3] : memref<1x16x16x128xbf16, #tpu.memory_space<vmem>>, vector<1x16x16x128xbf16>
    %6 = vector.shape_cast %5 : vector<1x16x16x128xbf16> to vector<16x16x128xbf16>
    %c24 = arith.constant 24 : index
    %c24_4 = arith.constant 24 : index
    %c0_5 = arith.constant 0 : index
    %7 = vector.load %arg12[%c24, %c24_4, %c0_5] : memref<64x64x128xbf16, #tpu.memory_space<vmem>>, vector<16x16x128xbf16>
    tpu.vector_store %arg12[%c24, %c24_4, %c0_5], %6 {strides = array<i32>} : memref<64x64x128xbf16, #tpu.memory_space<vmem>>, vector<16x16x128xbf16>,
    %cst = arith.constant 1.000000e+00 : bf16
    %8 = vector.broadcast %cst : bf16 to vector<1x256xbf16>
    %9 = vector.shape_cast %6 : vector<16x16x128xbf16> to vector<256x128xbf16>
    %cst_6 = arith.constant dense<0.000000e+00> : vector<1x128xf32>
    %10 = tpu.matmul %8, %9, %cst_6 {dimension_numbers = #tpu.dot_dimension_numbers<[1], [0], [0], [1], [0, 0, 1, 1], [], []>} : vector<1x256xbf16>, vector<256x128xbf16>, vector<1x128xf32> -> vector<1x128xf32>
    %c0_7 = arith.constant 0 : index
    %c0_8 = arith.constant 0 : index
    %11 = vector.load %arg14[%c0_7, %c0_8] : memref<1x128xf32, #tpu.memory_space<vmem>>, vector<1x128xf32>
    %c0_9 = arith.constant 0 : index
    %c0_10 = arith.constant 0 : index
    %12 = vector.load %arg8[%c0_9, %c0_10] : memref<128x128xbf16, #tpu.memory_space<vmem>>, vector<128x128xbf16>
    %13 = arith.extf %12 : vector<128x128xbf16> to vector<128x128xf32>
    %cst_11 = arith.constant dense<0.000000e+00> : vector<1x128xf32>
    %14 = tpu.matmul %10, %13, %cst_11 {dimension_numbers = #tpu.dot_dimension_numbers<[1], [0], [0], [1], [0, 0, 1, 1], [], []>} : vector<1x128xf32>, vector<128x128xf32>, vector<1x128xf32> -> vector<1x128xf32>
    %15 = arith.addf %11, %14 : vector<1x128xf32>
    %c0_12 = arith.constant 0 : index
    %c0_13 = arith.constant 0 : index
    %16 = vector.load %arg14[%c0_12, %c0_13] : memref<1x128xf32, #tpu.memory_space<vmem>>, vector<1x128xf32>
    tpu.vector_store %arg14[%c0_12, %c0_13], %15 {strides = array<i32>} : memref<1x128xf32, #tpu.memory_space<vmem>>, vector<1x128xf32>,
    %c24_i32 = arith.constant 24 : i32
    %17 = arith.addi %1, %c24_i32 : i32
    %18 = arith.index_cast %17 : i32 to index
    %c24_14 = arith.constant 24 : index
    %c0_15 = arith.constant 0 : index
    %19 = vector.load %arg12[%18, %c24_14, %c0_15] : memref<64x64x128xbf16, #tpu.memory_space<vmem>>, vector<8x16x128xbf16>
    %20 = vector.shape_cast %19 : vector<8x16x128xbf16> to vector<128x128xbf16>
    %c0_16 = arith.constant 0 : index
    %c0_17 = arith.constant 0 : index
    %21 = vector.load %arg13[%c0_16, %c0_17] : memref<128x512xf32, #tpu.memory_space<vmem>>, vector<128x128xf32>
    %c0_18 = arith.constant 0 : index
    %c0_19 = arith.constant 0 : index
    %22 = vector.load %arg4[%c0_18, %c0_19] : memref<128x128xbf16, #tpu.memory_space<vmem>>, vector<128x128xbf16>
    %cst_20 = arith.constant dense<0.000000e+00> : vector<128x128xf32>
    %23 = tpu.matmul %20, %22, %cst_20 {dimension_numbers = #tpu.dot_dimension_numbers<[1], [0], [0], [1], [0, 0, 1, 1], [], []>} : vector<128x128xbf16>, vector<128x128xbf16>, vector<128x128xf32> -> vector<128x128xf32>
    %24 = arith.addf %21, %23 : vector<128x128xf32>
    %c0_21 = arith.constant 0 : index
    %c0_22 = arith.constant 0 : index
    %25 = vector.load %arg13[%c0_21, %c0_22] : memref<128x512xf32, #tpu.memory_space<vmem>>, vector<128x128xf32>
    tpu.vector_store %arg13[%c0_21, %c0_22], %24 {strides = array<i32>} : memref<128x512xf32, #tpu.memory_space<vmem>>, vector<128x128xf32>,
    %c24_i32_23 = arith.constant 24 : i32
    %26 = arith.addi %1, %c24_i32_23 : i32
    %c-6_i32 = arith.constant -6 : i32
    %27 = arith.addi %26, %c-6_i32 : i32
    %28 = arith.index_cast %27 : i32 to index
    %c18 = arith.constant 18 : index
    %c0_24 = arith.constant 0 : index
    %29 = vector.load %arg12[%28, %c18, %c0_24] : memref<64x64x128xbf16, #tpu.memory_space<vmem>>, vector<8x16x128xbf16>
    %30 = vector.shape_cast %29 : vector<8x16x128xbf16> to vector<128x128xbf16>
    %c0_25 = arith.constant 0 : index
    %c0_26 = arith.constant 0 : index
    %c0_27 = arith.constant 0 : index
    %31 = vector.load %arg5[%c0_25, %c0_26, %c0_27] : memref<9x128x128xbf16, #tpu.memory_space<vmem>>, vector<1x128x128xbf16>
    %32 = vector.shape_cast %31 : vector<1x128x128xbf16> to vector<128x128xbf16>
    %cst_28 = arith.constant dense<0.000000e+00> : vector<128x128xf32>
    %33 = tpu.matmul %30, %32, %cst_28 {dimension_numbers = #tpu.dot_dimension_numbers<[1], [0], [0], [1], [0, 0, 1, 1], [], []>} : vector<128x128xbf16>, vector<128x128xbf16>, vector<128x128xf32> -> vector<128x128xf32>
    %c24_i32_29 = arith.constant 24 : i32
    %34 = arith.addi %1, %c24_i32_29 : i32
    %c-6_i32_30 = arith.constant -6 : i32
    %35 = arith.addi %34, %c-6_i32_30 : i32
    %36 = arith.index_cast %35 : i32 to index
    %c24_31 = arith.constant 24 : index
    %c0_32 = arith.constant 0 : index
    %37 = vector.load %arg12[%36, %c24_31, %c0_32] : memref<64x64x128xbf16, #tpu.memory_space<vmem>>, vector<8x16x128xbf16>
    %38 = vector.shape_cast %37 : vector<8x16x128xbf16> to vector<128x128xbf16>
    %c1 = arith.constant 1 : index
    %c0_33 = arith.constant 0 : index
    %c0_34 = arith.constant 0 : index
    %39 = vector.load %arg5[%c1, %c0_33, %c0_34] : memref<9x128x128xbf16, #tpu.memory_space<vmem>>, vector<1x128x128xbf16>
    %40 = vector.shape_cast %39 : vector<1x128x128xbf16> to vector<128x128xbf16>
    %cst_35 = arith.constant dense<0.000000e+00> : vector<128x128xf32>
    %41 = tpu.matmul %38, %40, %cst_35 {dimension_numbers = #tpu.dot_dimension_numbers<[1], [0], [0], [1], [0, 0, 1, 1], [], []>} : vector<128x128xbf16>, vector<128x128xbf16>, vector<128x128xf32> -> vector<128x128xf32>
    %42 = arith.addf %33, %41 : vector<128x128xf32>
    %c24_i32_36 = arith.constant 24 : i32
    %43 = arith.addi %1, %c24_i32_36 : i32
    %c-6_i32_37 = arith.constant -6 : i32
    %44 = arith.addi %43, %c-6_i32_37 : i32
    %45 = arith.index_cast %44 : i32 to index
    %c30 = arith.constant 30 : index
    %c0_38 = arith.constant 0 : index
    %46 = vector.load %arg12[%45, %c30, %c0_38] : memref<64x64x128xbf16, #tpu.memory_space<vmem>>, vector<8x16x128xbf16>
    %47 = vector.shape_cast %46 : vector<8x16x128xbf16> to vector<128x128xbf16>
    %c2 = arith.constant 2 : index
    %c0_39 = arith.constant 0 : index
    %c0_40 = arith.constant 0 : index
    %48 = vector.load %arg5[%c2, %c0_39, %c0_40] : memref<9x128x128xbf16, #tpu.memory_space<vmem>>, vector<1x128x128xbf16>
    %49 = vector.shape_cast %48 : vector<1x128x128xbf16> to vector<128x128xbf16>
    %cst_41 = arith.constant dense<0.000000e+00> : vector<128x128xf32>
    %50 = tpu.matmul %47, %49, %cst_41 {dimension_numbers = #tpu.dot_dimension_numbers<[1], [0], [0], [1], [0, 0, 1, 1], [], []>} : vector<128x128xbf16>, vector<128x128xbf16>, vector<128x128xf32> -> vector<128x128xf32>
    %51 = arith.addf %42, %50 : vector<128x128xf32>
    %c24_i32_42 = arith.constant 24 : i32
    %52 = arith.addi %1, %c24_i32_42 : i32
    %c0_i32_43 = arith.constant 0 : i32
    %53 = arith.addi %52, %c0_i32_43 : i32
    %54 = arith.index_cast %53 : i32 to index
    %c18_44 = arith.constant 18 : index
    %c0_45 = arith.constant 0 : index
    %55 = vector.load %arg12[%54, %c18_44, %c0_45] : memref<64x64x128xbf16, #tpu.memory_space<vmem>>, vector<8x16x128xbf16>
    %56 = vector.shape_cast %55 : vector<8x16x128xbf16> to vector<128x128xbf16>
    %c3 = arith.constant 3 : index
    %c0_46 = arith.constant 0 : index
    %c0_47 = arith.constant 0 : index
    %57 = vector.load %arg5[%c3, %c0_46, %c0_47] : memref<9x128x128xbf16, #tpu.memory_space<vmem>>, vector<1x128x128xbf16>
    %58 = vector.shape_cast %57 : vector<1x128x128xbf16> to vector<128x128xbf16>
    %cst_48 = arith.constant dense<0.000000e+00> : vector<128x128xf32>
    %59 = tpu.matmul %56, %58, %cst_48 {dimension_numbers = #tpu.dot_dimension_numbers<[1], [0], [0], [1], [0, 0, 1, 1], [], []>} : vector<128x128xbf16>, vector<128x128xbf16>, vector<128x128xf32> -> vector<128x128xf32>
    %60 = arith.addf %51, %59 : vector<128x128xf32>
    %c4 = arith.constant 4 : index
    %c0_49 = arith.constant 0 : index
    %c0_50 = arith.constant 0 : index
    %61 = vector.load %arg5[%c4, %c0_49, %c0_50] : memref<9x128x128xbf16, #tpu.memory_space<vmem>>, vector<1x128x128xbf16>
    %62 = vector.shape_cast %61 : vector<1x128x128xbf16> to vector<128x128xbf16>
    %cst_51 = arith.constant dense<0.000000e+00> : vector<128x128xf32>
    %63 = tpu.matmul %20, %62, %cst_51 {dimension_numbers = #tpu.dot_dimension_numbers<[1], [0], [0], [1], [0, 0, 1, 1], [], []>} : vector<128x128xbf16>, vector<128x128xbf16>, vector<128x128xf32> -> vector<128x128xf32>
    %64 = arith.addf %60, %63 : vector<128x128xf32>
    %c24_i32_52 = arith.constant 24 : i32
    %65 = arith.addi %1, %c24_i32_52 : i32
    %c0_i32_53 = arith.constant 0 : i32
    %66 = arith.addi %65, %c0_i32_53 : i32
    %67 = arith.index_cast %66 : i32 to index
    %c30_54 = arith.constant 30 : index
    %c0_55 = arith.constant 0 : index
    %68 = vector.load %arg12[%67, %c30_54, %c0_55] : memref<64x64x128xbf16, #tpu.memory_space<vmem>>, vector<8x16x128xbf16>
    %69 = vector.shape_cast %68 : vector<8x16x128xbf16> to vector<128x128xbf16>
    %c5 = arith.constant 5 : index
    %c0_56 = arith.constant 0 : index
    %c0_57 = arith.constant 0 : index
    %70 = vector.load %arg5[%c5, %c0_56, %c0_57] : memref<9x128x128xbf16, #tpu.memory_space<vmem>>, vector<1x128x128xbf16>
    %71 = vector.shape_cast %70 : vector<1x128x128xbf16> to vector<128x128xbf16>
    %cst_58 = arith.constant dense<0.000000e+00> : vector<128x128xf32>
    %72 = tpu.matmul %69, %71, %cst_58 {dimension_numbers = #tpu.dot_dimension_numbers<[1], [0], [0], [1], [0, 0, 1, 1], [], []>} : vector<128x128xbf16>, vector<128x128xbf16>, vector<128x128xf32> -> vector<128x128xf32>
    %73 = arith.addf %64, %72 : vector<128x128xf32>
    %c24_i32_59 = arith.constant 24 : i32
    %74 = arith.addi %1, %c24_i32_59 : i32
    %c6_i32 = arith.constant 6 : i32
    %75 = arith.addi %74, %c6_i32 : i32
    %76 = arith.index_cast %75 : i32 to index
    %c18_60 = arith.constant 18 : index
    %c0_61 = arith.constant 0 : index
    %77 = vector.load %arg12[%76, %c18_60, %c0_61] : memref<64x64x128xbf16, #tpu.memory_space<vmem>>, vector<8x16x128xbf16>
    %78 = vector.shape_cast %77 : vector<8x16x128xbf16> to vector<128x128xbf16>
    %c6 = arith.constant 6 : index
    %c0_62 = arith.constant 0 : index
    %c0_63 = arith.constant 0 : index
    %79 = vector.load %arg5[%c6, %c0_62, %c0_63] : memref<9x128x128xbf16, #tpu.memory_space<vmem>>, vector<1x128x128xbf16>
    %80 = vector.shape_cast %79 : vector<1x128x128xbf16> to vector<128x128xbf16>
    %cst_64 = arith.constant dense<0.000000e+00> : vector<128x128xf32>
    %81 = tpu.matmul %78, %80, %cst_64 {dimension_numbers = #tpu.dot_dimension_numbers<[1], [0], [0], [1], [0, 0, 1, 1], [], []>} : vector<128x128xbf16>, vector<128x128xbf16>, vector<128x128xf32> -> vector<128x128xf32>
    %82 = arith.addf %73, %81 : vector<128x128xf32>
    %c24_i32_65 = arith.constant 24 : i32
    %83 = arith.addi %1, %c24_i32_65 : i32
    %c6_i32_66 = arith.constant 6 : i32
    %84 = arith.addi %83, %c6_i32_66 : i32
    %85 = arith.index_cast %84 : i32 to index
    %c24_67 = arith.constant 24 : index
    %c0_68 = arith.constant 0 : index
    %86 = vector.load %arg12[%85, %c24_67, %c0_68] : memref<64x64x128xbf16, #tpu.memory_space<vmem>>, vector<8x16x128xbf16>
    %87 = vector.shape_cast %86 : vector<8x16x128xbf16> to vector<128x128xbf16>
    %c7 = arith.constant 7 : index
    %c0_69 = arith.constant 0 : index
    %c0_70 = arith.constant 0 : index
    %88 = vector.load %arg5[%c7, %c0_69, %c0_70] : memref<9x128x128xbf16, #tpu.memory_space<vmem>>, vector<1x128x128xbf16>
    %89 = vector.shape_cast %88 : vector<1x128x128xbf16> to vector<128x128xbf16>
    %cst_71 = arith.constant dense<0.000000e+00> : vector<128x128xf32>
    %90 = tpu.matmul %87, %89, %cst_71 {dimension_numbers = #tpu.dot_dimension_numbers<[1], [0], [0], [1], [0, 0, 1, 1], [], []>} : vector<128x128xbf16>, vector<128x128xbf16>, vector<128x128xf32> -> vector<128x128xf32>
    %91 = arith.addf %82, %90 : vector<128x128xf32>
    %c24_i32_72 = arith.constant 24 : i32
    %92 = arith.addi %1, %c24_i32_72 : i32
    %c6_i32_73 = arith.constant 6 : i32
    %93 = arith.addi %92, %c6_i32_73 : i32
    %94 = arith.index_cast %93 : i32 to index
    %c30_74 = arith.constant 30 : index
    %c0_75 = arith.constant 0 : index
    %95 = vector.load %arg12[%94, %c30_74, %c0_75] : memref<64x64x128xbf16, #tpu.memory_space<vmem>>, vector<8x16x128xbf16>
    %96 = vector.shape_cast %95 : vector<8x16x128xbf16> to vector<128x128xbf16>
    %c8 = arith.constant 8 : index
    %c0_76 = arith.constant 0 : index
    %c0_77 = arith.constant 0 : index
    %97 = vector.load %arg5[%c8, %c0_76, %c0_77] : memref<9x128x128xbf16, #tpu.memory_space<vmem>>, vector<1x128x128xbf16>
    %98 = vector.shape_cast %97 : vector<1x128x128xbf16> to vector<128x128xbf16>
    %cst_78 = arith.constant dense<0.000000e+00> : vector<128x128xf32>
    %99 = tpu.matmul %96, %98, %cst_78 {dimension_numbers = #tpu.dot_dimension_numbers<[1], [0], [0], [1], [0, 0, 1, 1], [], []>} : vector<128x128xbf16>, vector<128x128xbf16>, vector<128x128xf32> -> vector<128x128xf32>
    %100 = arith.addf %91, %99 : vector<128x128xf32>
    %c0_79 = arith.constant 0 : index
    %c128 = arith.constant 128 : index
    %101 = vector.load %arg13[%c0_79, %c128] : memref<128x512xf32, #tpu.memory_space<vmem>>, vector<128x128xf32>
    %102 = arith.addf %101, %100 : vector<128x128xf32>
    %c0_80 = arith.constant 0 : index
    %c128_81 = arith.constant 128 : index
    %103 = vector.load %arg13[%c0_80, %c128_81] : memref<128x512xf32, #tpu.memory_space<vmem>>, vector<128x128xf32>
    tpu.vector_store %arg13[%c0_80, %c128_81], %102 {strides = array<i32>} : memref<128x512xf32, #tpu.memory_space<vmem>>, vector<128x128xf32>,
    %c24_i32_82 = arith.constant 24 : i32
    %104 = arith.addi %1, %c24_i32_82 : i32
    %c-12_i32 = arith.constant -12 : i32
    %105 = arith.addi %104, %c-12_i32 : i32
    %106 = arith.index_cast %105 : i32 to index
    %c12 = arith.constant 12 : index
    %c0_83 = arith.constant 0 : index
    %107 = vector.load %arg12[%106, %c12, %c0_83] : memref<64x64x128xbf16, #tpu.memory_space<vmem>>, vector<8x16x128xbf16>
    %108 = vector.shape_cast %107 : vector<8x16x128xbf16> to vector<128x128xbf16>
    %c0_84 = arith.constant 0 : index
    %c0_85 = arith.constant 0 : index
    %c0_86 = arith.constant 0 : index
    %109 = vector.load %arg6[%c0_84, %c0_85, %c0_86] : memref<9x128x128xbf16, #tpu.memory_space<vmem>>, vector<1x128x128xbf16>
    %110 = vector.shape_cast %109 : vector<1x128x128xbf16> to vector<128x128xbf16>
    %cst_87 = arith.constant dense<0.000000e+00> : vector<128x128xf32>
    %111 = tpu.matmul %108, %110, %cst_87 {dimension_numbers = #tpu.dot_dimension_numbers<[1], [0], [0], [1], [0, 0, 1, 1], [], []>} : vector<128x128xbf16>, vector<128x128xbf16>, vector<128x128xf32> -> vector<128x128xf32>
    %c24_i32_88 = arith.constant 24 : i32
    %112 = arith.addi %1, %c24_i32_88 : i32
    %c-12_i32_89 = arith.constant -12 : i32
    %113 = arith.addi %112, %c-12_i32_89 : i32
    %114 = arith.index_cast %113 : i32 to index
    %c24_90 = arith.constant 24 : index
    %c0_91 = arith.constant 0 : index
    %115 = vector.load %arg12[%114, %c24_90, %c0_91] : memref<64x64x128xbf16, #tpu.memory_space<vmem>>, vector<8x16x128xbf16>
    %116 = vector.shape_cast %115 : vector<8x16x128xbf16> to vector<128x128xbf16>
    %c1_92 = arith.constant 1 : index
    %c0_93 = arith.constant 0 : index
    %c0_94 = arith.constant 0 : index
    %117 = vector.load %arg6[%c1_92, %c0_93, %c0_94] : memref<9x128x128xbf16, #tpu.memory_space<vmem>>, vector<1x128x128xbf16>
    %118 = vector.shape_cast %117 : vector<1x128x128xbf16> to vector<128x128xbf16>
    %cst_95 = arith.constant dense<0.000000e+00> : vector<128x128xf32>
    %119 = tpu.matmul %116, %118, %cst_95 {dimension_numbers = #tpu.dot_dimension_numbers<[1], [0], [0], [1], [0, 0, 1, 1], [], []>} : vector<128x128xbf16>, vector<128x128xbf16>, vector<128x128xf32> -> vector<128x128xf32>
    %120 = arith.addf %111, %119 : vector<128x128xf32>
    %c24_i32_96 = arith.constant 24 : i32
    %121 = arith.addi %1, %c24_i32_96 : i32
    %c-12_i32_97 = arith.constant -12 : i32
    %122 = arith.addi %121, %c-12_i32_97 : i32
    %123 = arith.index_cast %122 : i32 to index
    %c36 = arith.constant 36 : index
    %c0_98 = arith.constant 0 : index
    %124 = vector.load %arg12[%123, %c36, %c0_98] : memref<64x64x128xbf16, #tpu.memory_space<vmem>>, vector<8x16x128xbf16>
    %125 = vector.shape_cast %124 : vector<8x16x128xbf16> to vector<128x128xbf16>
    %c2_99 = arith.constant 2 : index
    %c0_100 = arith.constant 0 : index
    %c0_101 = arith.constant 0 : index
    %126 = vector.load %arg6[%c2_99, %c0_100, %c0_101] : memref<9x128x128xbf16, #tpu.memory_space<vmem>>, vector<1x128x128xbf16>
    %127 = vector.shape_cast %126 : vector<1x128x128xbf16> to vector<128x128xbf16>
    %cst_102 = arith.constant dense<0.000000e+00> : vector<128x128xf32>
    %128 = tpu.matmul %125, %127, %cst_102 {dimension_numbers = #tpu.dot_dimension_numbers<[1], [0], [0], [1], [0, 0, 1, 1], [], []>} : vector<128x128xbf16>, vector<128x128xbf16>, vector<128x128xf32> -> vector<128x128xf32>
    %129 = arith.addf %120, %128 : vector<128x128xf32>
    %c24_i32_103 = arith.constant 24 : i32
    %130 = arith.addi %1, %c24_i32_103 : i32
    %c0_i32_104 = arith.constant 0 : i32
    %131 = arith.addi %130, %c0_i32_104 : i32
    %132 = arith.index_cast %131 : i32 to index
    %c12_105 = arith.constant 12 : index
    %c0_106 = arith.constant 0 : index
    %133 = vector.load %arg12[%132, %c12_105, %c0_106] : memref<64x64x128xbf16, #tpu.memory_space<vmem>>, vector<8x16x128xbf16>
    %134 = vector.shape_cast %133 : vector<8x16x128xbf16> to vector<128x128xbf16>
    %c3_107 = arith.constant 3 : index
    %c0_108 = arith.constant 0 : index
    %c0_109 = arith.constant 0 : index
    %135 = vector.load %arg6[%c3_107, %c0_108, %c0_109] : memref<9x128x128xbf16, #tpu.memory_space<vmem>>, vector<1x128x128xbf16>
    %136 = vector.shape_cast %135 : vector<1x128x128xbf16> to vector<128x128xbf16>
    %cst_110 = arith.constant dense<0.000000e+00> : vector<128x128xf32>
    %137 = tpu.matmul %134, %136, %cst_110 {dimension_numbers = #tpu.dot_dimension_numbers<[1], [0], [0], [1], [0, 0, 1, 1], [], []>} : vector<128x128xbf16>, vector<128x128xbf16>, vector<128x128xf32> -> vector<128x128xf32>
    %138 = arith.addf %129, %137 : vector<128x128xf32>
    %c4_111 = arith.constant 4 : index
    %c0_112 = arith.constant 0 : index
    %c0_113 = arith.constant 0 : index
    %139 = vector.load %arg6[%c4_111, %c0_112, %c0_113] : memref<9x128x128xbf16, #tpu.memory_space<vmem>>, vector<1x128x128xbf16>
    %140 = vector.shape_cast %139 : vector<1x128x128xbf16> to vector<128x128xbf16>
    %cst_114 = arith.constant dense<0.000000e+00> : vector<128x128xf32>
    %141 = tpu.matmul %20, %140, %cst_114 {dimension_numbers = #tpu.dot_dimension_numbers<[1], [0], [0], [1], [0, 0, 1, 1], [], []>} : vector<128x128xbf16>, vector<128x128xbf16>, vector<128x128xf32> -> vector<128x128xf32>
    %142 = arith.addf %138, %141 : vector<128x128xf32>
    %c24_i32_115 = arith.constant 24 : i32
    %143 = arith.addi %1, %c24_i32_115 : i32
    %c0_i32_116 = arith.constant 0 : i32
    %144 = arith.addi %143, %c0_i32_116 : i32
    %145 = arith.index_cast %144 : i32 to index
    %c36_117 = arith.constant 36 : index
    %c0_118 = arith.constant 0 : index
    %146 = vector.load %arg12[%145, %c36_117, %c0_118] : memref<64x64x128xbf16, #tpu.memory_space<vmem>>, vector<8x16x128xbf16>
    %147 = vector.shape_cast %146 : vector<8x16x128xbf16> to vector<128x128xbf16>
    %c5_119 = arith.constant 5 : index
    %c0_120 = arith.constant 0 : index
    %c0_121 = arith.constant 0 : index
    %148 = vector.load %arg6[%c5_119, %c0_120, %c0_121] : memref<9x128x128xbf16, #tpu.memory_space<vmem>>, vector<1x128x128xbf16>
    %149 = vector.shape_cast %148 : vector<1x128x128xbf16> to vector<128x128xbf16>
    %cst_122 = arith.constant dense<0.000000e+00> : vector<128x128xf32>
    %150 = tpu.matmul %147, %149, %cst_122 {dimension_numbers = #tpu.dot_dimension_numbers<[1], [0], [0], [1], [0, 0, 1, 1], [], []>} : vector<128x128xbf16>, vector<128x128xbf16>, vector<128x128xf32> -> vector<128x128xf32>
    %151 = arith.addf %142, %150 : vector<128x128xf32>
    %c24_i32_123 = arith.constant 24 : i32
    %152 = arith.addi %1, %c24_i32_123 : i32
    %c12_i32 = arith.constant 12 : i32
    %153 = arith.addi %152, %c12_i32 : i32
    %154 = arith.index_cast %153 : i32 to index
    %c12_124 = arith.constant 12 : index
    %c0_125 = arith.constant 0 : index
    %155 = vector.load %arg12[%154, %c12_124, %c0_125] : memref<64x64x128xbf16, #tpu.memory_space<vmem>>, vector<8x16x128xbf16>
    %156 = vector.shape_cast %155 : vector<8x16x128xbf16> to vector<128x128xbf16>
    %c6_126 = arith.constant 6 : index
    %c0_127 = arith.constant 0 : index
    %c0_128 = arith.constant 0 : index
    %157 = vector.load %arg6[%c6_126, %c0_127, %c0_128] : memref<9x128x128xbf16, #tpu.memory_space<vmem>>, vector<1x128x128xbf16>
    %158 = vector.shape_cast %157 : vector<1x128x128xbf16> to vector<128x128xbf16>
    %cst_129 = arith.constant dense<0.000000e+00> : vector<128x128xf32>
    %159 = tpu.matmul %156, %158, %cst_129 {dimension_numbers = #tpu.dot_dimension_numbers<[1], [0], [0], [1], [0, 0, 1, 1], [], []>} : vector<128x128xbf16>, vector<128x128xbf16>, vector<128x128xf32> -> vector<128x128xf32>
    %160 = arith.addf %151, %159 : vector<128x128xf32>
    %c24_i32_130 = arith.constant 24 : i32
    %161 = arith.addi %1, %c24_i32_130 : i32
    %c12_i32_131 = arith.constant 12 : i32
    %162 = arith.addi %161, %c12_i32_131 : i32
    %163 = arith.index_cast %162 : i32 to index
    %c24_132 = arith.constant 24 : index
    %c0_133 = arith.constant 0 : index
    %164 = vector.load %arg12[%163, %c24_132, %c0_133] : memref<64x64x128xbf16, #tpu.memory_space<vmem>>, vector<8x16x128xbf16>
    %165 = vector.shape_cast %164 : vector<8x16x128xbf16> to vector<128x128xbf16>
    %c7_134 = arith.constant 7 : index
    %c0_135 = arith.constant 0 : index
    %c0_136 = arith.constant 0 : index
    %166 = vector.load %arg6[%c7_134, %c0_135, %c0_136] : memref<9x128x128xbf16, #tpu.memory_space<vmem>>, vector<1x128x128xbf16>
    %167 = vector.shape_cast %166 : vector<1x128x128xbf16> to vector<128x128xbf16>
    %cst_137 = arith.constant dense<0.000000e+00> : vector<128x128xf32>
    %168 = tpu.matmul %165, %167, %cst_137 {dimension_numbers = #tpu.dot_dimension_numbers<[1], [0], [0], [1], [0, 0, 1, 1], [], []>} : vector<128x128xbf16>, vector<128x128xbf16>, vector<128x128xf32> -> vector<128x128xf32>
    %169 = arith.addf %160, %168 : vector<128x128xf32>
    %c24_i32_138 = arith.constant 24 : i32
    %170 = arith.addi %1, %c24_i32_138 : i32
    %c12_i32_139 = arith.constant 12 : i32
    %171 = arith.addi %170, %c12_i32_139 : i32
    %172 = arith.index_cast %171 : i32 to index
    %c36_140 = arith.constant 36 : index
    %c0_141 = arith.constant 0 : index
    %173 = vector.load %arg12[%172, %c36_140, %c0_141] : memref<64x64x128xbf16, #tpu.memory_space<vmem>>, vector<8x16x128xbf16>
    %174 = vector.shape_cast %173 : vector<8x16x128xbf16> to vector<128x128xbf16>
    %c8_142 = arith.constant 8 : index
    %c0_143 = arith.constant 0 : index
    %c0_144 = arith.constant 0 : index
    %175 = vector.load %arg6[%c8_142, %c0_143, %c0_144] : memref<9x128x128xbf16, #tpu.memory_space<vmem>>, vector<1x128x128xbf16>
    %176 = vector.shape_cast %175 : vector<1x128x128xbf16> to vector<128x128xbf16>
    %cst_145 = arith.constant dense<0.000000e+00> : vector<128x128xf32>
    %177 = tpu.matmul %174, %176, %cst_145 {dimension_numbers = #tpu.dot_dimension_numbers<[1], [0], [0], [1], [0, 0, 1, 1], [], []>} : vector<128x128xbf16>, vector<128x128xbf16>, vector<128x128xf32> -> vector<128x128xf32>
    %178 = arith.addf %169, %177 : vector<128x128xf32>
    %c0_146 = arith.constant 0 : index
    %c256 = arith.constant 256 : index
    %179 = vector.load %arg13[%c0_146, %c256] : memref<128x512xf32, #tpu.memory_space<vmem>>, vector<128x128xf32>
    %180 = arith.addf %179, %178 : vector<128x128xf32>
    %c0_147 = arith.constant 0 : index
    %c256_148 = arith.constant 256 : index
    %181 = vector.load %arg13[%c0_147, %c256_148] : memref<128x512xf32, #tpu.memory_space<vmem>>, vector<128x128xf32>
    tpu.vector_store %arg13[%c0_147, %c256_148], %180 {strides = array<i32>} : memref<128x512xf32, #tpu.memory_space<vmem>>, vector<128x128xf32>,
    %c24_i32_149 = arith.constant 24 : i32
    %182 = arith.addi %1, %c24_i32_149 : i32
    %c-18_i32 = arith.constant -18 : i32
    %183 = arith.addi %182, %c-18_i32 : i32
    %184 = arith.index_cast %183 : i32 to index
    %c6_150 = arith.constant 6 : index
    %c0_151 = arith.constant 0 : index
    %185 = vector.load %arg12[%184, %c6_150, %c0_151] : memref<64x64x128xbf16, #tpu.memory_space<vmem>>, vector<8x16x128xbf16>
    %186 = vector.shape_cast %185 : vector<8x16x128xbf16> to vector<128x128xbf16>
    %c0_152 = arith.constant 0 : index
    %c0_153 = arith.constant 0 : index
    %c0_154 = arith.constant 0 : index
    %187 = vector.load %arg7[%c0_152, %c0_153, %c0_154] : memref<9x128x128xbf16, #tpu.memory_space<vmem>>, vector<1x128x128xbf16>
    %188 = vector.shape_cast %187 : vector<1x128x128xbf16> to vector<128x128xbf16>
    %cst_155 = arith.constant dense<0.000000e+00> : vector<128x128xf32>
    %189 = tpu.matmul %186, %188, %cst_155 {dimension_numbers = #tpu.dot_dimension_numbers<[1], [0], [0], [1], [0, 0, 1, 1], [], []>} : vector<128x128xbf16>, vector<128x128xbf16>, vector<128x128xf32> -> vector<128x128xf32>
    %c24_i32_156 = arith.constant 24 : i32
    %190 = arith.addi %1, %c24_i32_156 : i32
    %c-18_i32_157 = arith.constant -18 : i32
    %191 = arith.addi %190, %c-18_i32_157 : i32
    %192 = arith.index_cast %191 : i32 to index
    %c24_158 = arith.constant 24 : index
    %c0_159 = arith.constant 0 : index
    %193 = vector.load %arg12[%192, %c24_158, %c0_159] : memref<64x64x128xbf16, #tpu.memory_space<vmem>>, vector<8x16x128xbf16>
    %194 = vector.shape_cast %193 : vector<8x16x128xbf16> to vector<128x128xbf16>
    %c1_160 = arith.constant 1 : index
    %c0_161 = arith.constant 0 : index
    %c0_162 = arith.constant 0 : index
    %195 = vector.load %arg7[%c1_160, %c0_161, %c0_162] : memref<9x128x128xbf16, #tpu.memory_space<vmem>>, vector<1x128x128xbf16>
    %196 = vector.shape_cast %195 : vector<1x128x128xbf16> to vector<128x128xbf16>
    %cst_163 = arith.constant dense<0.000000e+00> : vector<128x128xf32>
    %197 = tpu.matmul %194, %196, %cst_163 {dimension_numbers = #tpu.dot_dimension_numbers<[1], [0], [0], [1], [0, 0, 1, 1], [], []>} : vector<128x128xbf16>, vector<128x128xbf16>, vector<128x128xf32> -> vector<128x128xf32>
    %198 = arith.addf %189, %197 : vector<128x128xf32>
    %c24_i32_164 = arith.constant 24 : i32
    %199 = arith.addi %1, %c24_i32_164 : i32
    %c-18_i32_165 = arith.constant -18 : i32
    %200 = arith.addi %199, %c-18_i32_165 : i32
    %201 = arith.index_cast %200 : i32 to index
    %c42 = arith.constant 42 : index
    %c0_166 = arith.constant 0 : index
    %202 = vector.load %arg12[%201, %c42, %c0_166] : memref<64x64x128xbf16, #tpu.memory_space<vmem>>, vector<8x16x128xbf16>
    %203 = vector.shape_cast %202 : vector<8x16x128xbf16> to vector<128x128xbf16>
    %c2_167 = arith.constant 2 : index
    %c0_168 = arith.constant 0 : index
    %c0_169 = arith.constant 0 : index
    %204 = vector.load %arg7[%c2_167, %c0_168, %c0_169] : memref<9x128x128xbf16, #tpu.memory_space<vmem>>, vector<1x128x128xbf16>
    %205 = vector.shape_cast %204 : vector<1x128x128xbf16> to vector<128x128xbf16>
    %cst_170 = arith.constant dense<0.000000e+00> : vector<128x128xf32>
    %206 = tpu.matmul %203, %205, %cst_170 {dimension_numbers = #tpu.dot_dimension_numbers<[1], [0], [0], [1], [0, 0, 1, 1], [], []>} : vector<128x128xbf16>, vector<128x128xbf16>, vector<128x128xf32> -> vector<128x128xf32>
    %207 = arith.addf %198, %206 : vector<128x128xf32>
    %c24_i32_171 = arith.constant 24 : i32
    %208 = arith.addi %1, %c24_i32_171 : i32
    %c0_i32_172 = arith.constant 0 : i32
    %209 = arith.addi %208, %c0_i32_172 : i32
    %210 = arith.index_cast %209 : i32 to index
    %c6_173 = arith.constant 6 : index
    %c0_174 = arith.constant 0 : index
    %211 = vector.load %arg12[%210, %c6_173, %c0_174] : memref<64x64x128xbf16, #tpu.memory_space<vmem>>, vector<8x16x128xbf16>
    %212 = vector.shape_cast %211 : vector<8x16x128xbf16> to vector<128x128xbf16>
    %c3_175 = arith.constant 3 : index
    %c0_176 = arith.constant 0 : index
    %c0_177 = arith.constant 0 : index
    %213 = vector.load %arg7[%c3_175, %c0_176, %c0_177] : memref<9x128x128xbf16, #tpu.memory_space<vmem>>, vector<1x128x128xbf16>
    %214 = vector.shape_cast %213 : vector<1x128x128xbf16> to vector<128x128xbf16>
    %cst_178 = arith.constant dense<0.000000e+00> : vector<128x128xf32>
    %215 = tpu.matmul %212, %214, %cst_178 {dimension_numbers = #tpu.dot_dimension_numbers<[1], [0], [0], [1], [0, 0, 1, 1], [], []>} : vector<128x128xbf16>, vector<128x128xbf16>, vector<128x128xf32> -> vector<128x128xf32>
    %216 = arith.addf %207, %215 : vector<128x128xf32>
    %c4_179 = arith.constant 4 : index
    %c0_180 = arith.constant 0 : index
    %c0_181 = arith.constant 0 : index
    %217 = vector.load %arg7[%c4_179, %c0_180, %c0_181] : memref<9x128x128xbf16, #tpu.memory_space<vmem>>, vector<1x128x128xbf16>
    %218 = vector.shape_cast %217 : vector<1x128x128xbf16> to vector<128x128xbf16>
    %cst_182 = arith.constant dense<0.000000e+00> : vector<128x128xf32>
    %219 = tpu.matmul %20, %218, %cst_182 {dimension_numbers = #tpu.dot_dimension_numbers<[1], [0], [0], [1], [0, 0, 1, 1], [], []>} : vector<128x128xbf16>, vector<128x128xbf16>, vector<128x128xf32> -> vector<128x128xf32>
    %220 = arith.addf %216, %219 : vector<128x128xf32>
    %c24_i32_183 = arith.constant 24 : i32
    %221 = arith.addi %1, %c24_i32_183 : i32
    %c0_i32_184 = arith.constant 0 : i32
    %222 = arith.addi %221, %c0_i32_184 : i32
    %223 = arith.index_cast %222 : i32 to index
    %c42_185 = arith.constant 42 : index
    %c0_186 = arith.constant 0 : index
    %224 = vector.load %arg12[%223, %c42_185, %c0_186] : memref<64x64x128xbf16, #tpu.memory_space<vmem>>, vector<8x16x128xbf16>
    %225 = vector.shape_cast %224 : vector<8x16x128xbf16> to vector<128x128xbf16>
    %c5_187 = arith.constant 5 : index
    %c0_188 = arith.constant 0 : index
    %c0_189 = arith.constant 0 : index
    %226 = vector.load %arg7[%c5_187, %c0_188, %c0_189] : memref<9x128x128xbf16, #tpu.memory_space<vmem>>, vector<1x128x128xbf16>
    %227 = vector.shape_cast %226 : vector<1x128x128xbf16> to vector<128x128xbf16>
    %cst_190 = arith.constant dense<0.000000e+00> : vector<128x128xf32>
    %228 = tpu.matmul %225, %227, %cst_190 {dimension_numbers = #tpu.dot_dimension_numbers<[1], [0], [0], [1], [0, 0, 1, 1], [], []>} : vector<128x128xbf16>, vector<128x128xbf16>, vector<128x128xf32> -> vector<128x128xf32>
    %229 = arith.addf %220, %228 : vector<128x128xf32>
    %c24_i32_191 = arith.constant 24 : i32
    %230 = arith.addi %1, %c24_i32_191 : i32
    %c18_i32 = arith.constant 18 : i32
    %231 = arith.addi %230, %c18_i32 : i32
    %232 = arith.index_cast %231 : i32 to index
    %c6_192 = arith.constant 6 : index
    %c0_193 = arith.constant 0 : index
    %233 = vector.load %arg12[%232, %c6_192, %c0_193] : memref<64x64x128xbf16, #tpu.memory_space<vmem>>, vector<8x16x128xbf16>
    %234 = vector.shape_cast %233 : vector<8x16x128xbf16> to vector<128x128xbf16>
    %c6_194 = arith.constant 6 : index
    %c0_195 = arith.constant 0 : index
    %c0_196 = arith.constant 0 : index
    %235 = vector.load %arg7[%c6_194, %c0_195, %c0_196] : memref<9x128x128xbf16, #tpu.memory_space<vmem>>, vector<1x128x128xbf16>
    %236 = vector.shape_cast %235 : vector<1x128x128xbf16> to vector<128x128xbf16>
    %cst_197 = arith.constant dense<0.000000e+00> : vector<128x128xf32>
    %237 = tpu.matmul %234, %236, %cst_197 {dimension_numbers = #tpu.dot_dimension_numbers<[1], [0], [0], [1], [0, 0, 1, 1], [], []>} : vector<128x128xbf16>, vector<128x128xbf16>, vector<128x128xf32> -> vector<128x128xf32>
    %238 = arith.addf %229, %237 : vector<128x128xf32>
    %c24_i32_198 = arith.constant 24 : i32
    %239 = arith.addi %1, %c24_i32_198 : i32
    %c18_i32_199 = arith.constant 18 : i32
    %240 = arith.addi %239, %c18_i32_199 : i32
    %241 = arith.index_cast %240 : i32 to index
    %c24_200 = arith.constant 24 : index
    %c0_201 = arith.constant 0 : index
    %242 = vector.load %arg12[%241, %c24_200, %c0_201] : memref<64x64x128xbf16, #tpu.memory_space<vmem>>, vector<8x16x128xbf16>
    %243 = vector.shape_cast %242 : vector<8x16x128xbf16> to vector<128x128xbf16>
    %c7_202 = arith.constant 7 : index
    %c0_203 = arith.constant 0 : index
    %c0_204 = arith.constant 0 : index
    %244 = vector.load %arg7[%c7_202, %c0_203, %c0_204] : memref<9x128x128xbf16, #tpu.memory_space<vmem>>, vector<1x128x128xbf16>
    %245 = vector.shape_cast %244 : vector<1x128x128xbf16> to vector<128x128xbf16>
    %cst_205 = arith.constant dense<0.000000e+00> : vector<128x128xf32>
    %246 = tpu.matmul %243, %245, %cst_205 {dimension_numbers = #tpu.dot_dimension_numbers<[1], [0], [0], [1], [0, 0, 1, 1], [], []>} : vector<128x128xbf16>, vector<128x128xbf16>, vector<128x128xf32> -> vector<128x128xf32>
    %247 = arith.addf %238, %246 : vector<128x128xf32>
    %c24_i32_206 = arith.constant 24 : i32
    %248 = arith.addi %1, %c24_i32_206 : i32
    %c18_i32_207 = arith.constant 18 : i32
    %249 = arith.addi %248, %c18_i32_207 : i32
    %250 = arith.index_cast %249 : i32 to index
    %c42_208 = arith.constant 42 : index
    %c0_209 = arith.constant 0 : index
    %251 = vector.load %arg12[%250, %c42_208, %c0_209] : memref<64x64x128xbf16, #tpu.memory_space<vmem>>, vector<8x16x128xbf16>
    %252 = vector.shape_cast %251 : vector<8x16x128xbf16> to vector<128x128xbf16>
    %c8_210 = arith.constant 8 : index
    %c0_211 = arith.constant 0 : index
    %c0_212 = arith.constant 0 : index
    %253 = vector.load %arg7[%c8_210, %c0_211, %c0_212] : memref<9x128x128xbf16, #tpu.memory_space<vmem>>, vector<1x128x128xbf16>
    %254 = vector.shape_cast %253 : vector<1x128x128xbf16> to vector<128x128xbf16>
    %cst_213 = arith.constant dense<0.000000e+00> : vector<128x128xf32>
    %255 = tpu.matmul %252, %254, %cst_213 {dimension_numbers = #tpu.dot_dimension_numbers<[1], [0], [0], [1], [0, 0, 1, 1], [], []>} : vector<128x128xbf16>, vector<128x128xbf16>, vector<128x128xf32> -> vector<128x128xf32>
    %256 = arith.addf %247, %255 : vector<128x128xf32>
    %c0_214 = arith.constant 0 : index
    %c384 = arith.constant 384 : index
    %257 = vector.load %arg13[%c0_214, %c384] : memref<128x512xf32, #tpu.memory_space<vmem>>, vector<128x128xf32>
    %258 = arith.addf %257, %256 : vector<128x128xf32>
    %c0_215 = arith.constant 0 : index
    %c384_216 = arith.constant 384 : index
    %259 = vector.load %arg13[%c0_215, %c384_216] : memref<128x512xf32, #tpu.memory_space<vmem>>, vector<128x128xf32>
    tpu.vector_store %arg13[%c0_215, %c384_216], %258 {strides = array<i32>} : memref<128x512xf32, #tpu.memory_space<vmem>>, vector<128x128xf32>,
    %c1_i32 = arith.constant 1 : i32
    %260 = arith.cmpi eq, %arg2, %c1_i32 : i32
    %261 = arith.extui %260 : i1 to i32
    %c0_i32_217 = arith.constant 0 : i32
    %262 = arith.cmpi ne, %261, %c0_i32_217 : i32
    scf.if %262 {
      %c0_218 = arith.constant 0 : index
      %c0_219 = arith.constant 0 : index
      %263 = vector.load %arg9[%c0_218, %c0_219] : memref<1x640xf32, #tpu.memory_space<vmem>>, vector<1x640xf32>
      %c0_220 = arith.constant 0 : index
      %c0_221 = arith.constant 0 : index
      %264 = vector.load %arg10[%c0_220, %c0_221] : memref<1x640xf32, #tpu.memory_space<vmem>>, vector<1x640xf32>
      %c0_222 = arith.constant 0 : index
      %c0_223 = arith.constant 0 : index
      %265 = vector.load %arg13[%c0_222, %c0_223] : memref<128x512xf32, #tpu.memory_space<vmem>>, vector<128x512xf32>
      %266 = vector.extract_strided_slice %263 {offsets = [0, 0], sizes = [1, 512], strides = [1, 1]} : vector<1x640xf32> to vector<1x512xf32>
      %267 = vector.broadcast %266 : vector<1x512xf32> to vector<128x512xf32>
      %268 = arith.mulf %265, %267 : vector<128x512xf32>
      %269 = vector.extract_strided_slice %264 {offsets = [0, 0], sizes = [1, 512], strides = [1, 1]} : vector<1x640xf32> to vector<1x512xf32>
      %270 = vector.broadcast %269 : vector<1x512xf32> to vector<128x512xf32>
      %271 = arith.addf %268, %270 : vector<128x512xf32>
      %cst_224 = arith.constant 0.000000e+00 : f32
      %272 = vector.broadcast %cst_224 : f32 to vector<128x512xf32>
      %273 = arith.maximumf %271, %272 : vector<128x512xf32>
      %274 = vector.shape_cast %273 : vector<128x512xf32> to vector<8x16x512xf32>
      %c0_225 = arith.constant 0 : index
      %c0_226 = arith.constant 0 : index
      %c0_227 = arith.constant 0 : index
      %c0_228 = arith.constant 0 : index
      %275 = vector.load %arg11[%c0_225, %c0_226, %c0_227, %c0_228] : memref<1x8x16x640xf32, #tpu.memory_space<vmem>>, vector<1x8x16x512xf32>
      %276 = vector.shape_cast %275 : vector<1x8x16x512xf32> to vector<8x16x512xf32>
      %277 = vector.shape_cast %274 : vector<8x16x512xf32> to vector<1x8x16x512xf32>
      tpu.vector_store %arg11[%c0_225, %c0_226, %c0_227, %c0_228], %277 {strides = array<i32>} : memref<1x8x16x640xf32, #tpu.memory_space<vmem>>, vector<1x8x16x512xf32>,
      %c0_229 = arith.constant 0 : index
      %c0_230 = arith.constant 0 : index
      %278 = vector.load %arg14[%c0_229, %c0_230] : memref<1x128xf32, #tpu.memory_space<vmem>>, vector<1x128xf32>
      %cst_231 = arith.constant 3.906250e-03 : f32
      %279 = vector.broadcast %cst_231 : f32 to vector<1x128xf32>
      %280 = arith.mulf %278, %279 : vector<1x128xf32>
      %281 = vector.extract_strided_slice %263 {offsets = [0, 512], sizes = [1, 128], strides = [1, 1]} : vector<1x640xf32> to vector<1x128xf32>
      %282 = arith.mulf %280, %281 : vector<1x128xf32>
      %283 = vector.extract_strided_slice %264 {offsets = [0, 512], sizes = [1, 128], strides = [1, 1]} : vector<1x640xf32> to vector<1x128xf32>
      %284 = arith.addf %282, %283 : vector<1x128xf32>
      %cst_232 = arith.constant 0.000000e+00 : f32
      %285 = vector.broadcast %cst_232 : f32 to vector<1x128xf32>
      %286 = arith.maximumf %284, %285 : vector<1x128xf32>
      %287 = vector.shape_cast %286 : vector<1x128xf32> to vector<1x1x128xf32>
      %288 = vector.shape_cast %287 : vector<1x1x128xf32> to vector<1x1x128xf32>
      %289 = vector.broadcast %288 : vector<1x1x128xf32> to vector<8x16x128xf32>
      %c0_233 = arith.constant 0 : index
      %c0_234 = arith.constant 0 : index
      %c0_235 = arith.constant 0 : index
      %c512 = arith.constant 512 : index
      %290 = vector.load %arg11[%c0_233, %c0_234, %c0_235, %c512] : memref<1x8x16x640xf32, #tpu.memory_space<vmem>>, vector<1x8x16x128xf32>
      %291 = vector.shape_cast %290 : vector<1x8x16x128xf32> to vector<8x16x128xf32>
      %292 = vector.shape_cast %289 : vector<8x16x128xf32> to vector<1x8x16x128xf32>
      tpu.vector_store %arg11[%c0_233, %c0_234, %c0_235, %c512], %292 {strides = array<i32>} : memref<1x8x16x640xf32, #tpu.memory_space<vmem>>, vector<1x8x16x128xf32>,
    } else {
    }
    return
  }
  func.func @transform_0(%arg0: i32, %arg1: i32, %arg2: i32) -> (i32, i32, i32, i32) {
    %c0_i32 = arith.constant 0 : i32
    %c0_i32_0 = arith.constant 0 : i32
    %c0_i32_1 = arith.constant 0 : i32
    return %arg0, %c0_i32, %c0_i32_0, %arg2 : i32, i32, i32, i32
  }
  func.func @transform_1(%arg0: i32, %arg1: i32, %arg2: i32) -> (i32, i32) {
    %c0_i32 = arith.constant 0 : i32
    %c0_i32_0 = arith.constant 0 : i32
    return %arg2, %c0_i32 : i32, i32
  }
  func.func @transform_2(%arg0: i32, %arg1: i32, %arg2: i32) -> (i32, i32, i32) {
    %c0_i32 = arith.constant 0 : i32
    %c0_i32_0 = arith.constant 0 : i32
    %c0_i32_1 = arith.constant 0 : i32
    return %c0_i32, %arg2, %c0_i32_0 : i32, i32, i32
  }
  func.func @transform_3(%arg0: i32, %arg1: i32, %arg2: i32) -> (i32, i32, i32) {
    %c0_i32 = arith.constant 0 : i32
    %c0_i32_0 = arith.constant 0 : i32
    %c0_i32_1 = arith.constant 0 : i32
    return %c0_i32, %arg2, %c0_i32_0 : i32, i32, i32
  }
  func.func @transform_4(%arg0: i32, %arg1: i32, %arg2: i32) -> (i32, i32, i32) {
    %c0_i32 = arith.constant 0 : i32
    %c0_i32_0 = arith.constant 0 : i32
    %c0_i32_1 = arith.constant 0 : i32
    return %c0_i32, %arg2, %c0_i32_0 : i32, i32, i32
  }
  func.func @transform_5(%arg0: i32, %arg1: i32, %arg2: i32) -> (i32, i32) {
    %c0_i32 = arith.constant 0 : i32
    %c0_i32_0 = arith.constant 0 : i32
    return %arg2, %c0_i32 : i32, i32
  }
  func.func @transform_6(%arg0: i32, %arg1: i32, %arg2: i32) -> (i32, i32) {
    %c0_i32 = arith.constant 0 : i32
    %c0_i32_0 = arith.constant 0 : i32
    %c0_i32_1 = arith.constant 0 : i32
    return %c0_i32, %c0_i32_0 : i32, i32
  }
  func.func @transform_7(%arg0: i32, %arg1: i32, %arg2: i32) -> (i32, i32) {
    %c0_i32 = arith.constant 0 : i32
    %c0_i32_0 = arith.constant 0 : i32
    %c0_i32_1 = arith.constant 0 : i32
    return %c0_i32, %c0_i32_0 : i32, i32
  }
  func.func @transform_8(%arg0: i32, %arg1: i32, %arg2: i32) -> (i32, i32, i32, i32) {
    %c0_i32 = arith.constant 0 : i32
    %c0_i32_0 = arith.constant 0 : i32
    %c0_i32_1 = arith.constant 0 : i32
    return %arg0, %arg1, %c0_i32, %c0_i32_0 : i32, i32, i32, i32
  }
}

</mosaic_0001>

<llo_original>
// kernel: aspp_forward.1
$region0: #{aspp_forward.1}
  #allocation0 [shape = 'u32[]', space=smem, size = 0x4, offset = 0x4, fixed_abs, tag = 'smem constant byte address 0x4 - core index']
  #allocation1 [shape = 'u32[72,128]{1,0:T(1,128)}', space=vmem, size = 0x9000, scoped, tag = 'internal scratch']
  #allocation2 [shape = 'bf16[64,64,128]{2,1,0:T(8,128)(2,1)}', space=vmem, size = 0x100000, scoped, tag = 'scratch operand']
  #allocation3 [shape = 'f32[128,512]{1,0:T(8,128)}', space=vmem, size = 0x40000, scoped, tag = 'scratch operand']
  #allocation4 [shape = 'f32[1,128]{1,0:T(1,128)}', space=vmem, size = 0x200, scoped, tag = 'scratch operand']
  #allocation20 [shape = 's32[]', space=sflag, size = 0x4, offset = 0, fixed_abs, tag = 'sflag constant byte address 0x0 - dummy sync flag']
  #allocation22 [shape = 's32[]', space=sflag, size = 0x4, offset = 0, fixed_abs, tag = 'sflag constant byte address 0x0 - dummy sync flag']
  #allocation24 [shape = 's32[]', space=sflag, size = 0x4, offset = 0, fixed_abs, tag = 'sflag constant byte address 0x0 - dummy sync flag']
  %s0 = inlined_call_operand.hbm [shape: bf16[2,16,16,256], index: 0, kind: input, shape index: {}]
  %s1 = inlined_call_operand.hbm [shape: bf16[256,128], index: 1, kind: input, shape index: {}]
  %s2 = inlined_call_operand.hbm [shape: bf16[9,256,128], index: 2, kind: input, shape index: {}]
  %s3 = inlined_call_operand.hbm [shape: bf16[9,256,128], index: 3, kind: input, shape index: {}]
  %s4 = inlined_call_operand.hbm [shape: bf16[9,256,128], index: 4, kind: input, shape index: {}]
  %s5 = inlined_call_operand.hbm [shape: bf16[256,128], index: 5, kind: input, shape index: {}]
  %s6 = inlined_call_operand.hbm [shape: f32[1,640], index: 6, kind: input, shape index: {}]
  %s7 = inlined_call_operand.hbm [shape: f32[1,640], index: 7, kind: input, shape index: {}]
  %s8 = inlined_call_operand.hbm [shape: f32[2,16,16,640], index: 8, kind: output, shape index: {}]
  %s9 = sld [smem:[#allocation0]]
  $region105: #{aspp_forward.1} parent=0
    _
  %s11 = ssub.s32 1, %s9
  %s12 = scalar_select 0, %s11, %s9
  $region1: #{aspp_forward.1} parent=0
    #allocation5 [shape = 'u8[131072]{0}', space=vmem, size = 0x20000, scoped, tag = 'input window, operand 0']
    #allocation6 [shape = 's32[2]{0}', space=sflag, size = 0x8, scoped, tag = 'scoped memory for aspp_forward.1']
    #allocation7 [shape = 's32[2]{0}', space=sflag, size = 0x8, scoped, tag = 'scoped memory for aspp_forward.1']
    #allocation8 [shape = 'u8[65536]{0}', space=vmem, size = 0x10000, scoped, tag = 'input window, operand 1']
    #allocation9 [shape = 's32[2]{0}', space=sflag, size = 0x8, scoped, tag = 'scoped memory for aspp_forward.1']
    #allocation10 [shape = 'u8[589824]{0}', space=vmem, size = 0x90000, scoped, tag = 'input window, operand 2']
    #allocation11 [shape = 'u8[589824]{0}', space=vmem, size = 0x90000, scoped, tag = 'input window, operand 3']
    #allocation12 [shape = 's32[2]{0}', space=sflag, size = 0x8, scoped, tag = 'scoped memory for aspp_forward.1']
    #allocation13 [shape = 'u8[589824]{0}', space=vmem, size = 0x90000, scoped, tag = 'input window, operand 4']
    #allocation14 [shape = 'u8[65536]{0}', space=vmem, size = 0x10000, scoped, tag = 'input window, operand 5']
    #allocation15 [shape = 's32[2]{0}', space=sflag, size = 0x8, scoped, tag = 'scoped memory for aspp_forward.1']
    #allocation16 [shape = 'u8[2560]{0}', space=vmem, size = 0xc00, scoped, tag = 'input window, operand 6, single buffered']
    #allocation17 [shape = 'u8[2560]{0}', space=vmem, size = 0xc00, scoped, tag = 'input window, operand 7, single buffered']
    #allocation18 [shape = 's32[1]{0}', space=sflag, size = 0x4, scoped, tag = 'scoped memory for aspp_forward.1']
    #allocation19 [shape = 'u8[655360]{0}', space=vmem, size = 0xa0000, scoped, tag = 'output window, operand 0']
    %13 = vsyncpa [#allocation6], 0
    %s14 = scalar_lea.sflag [#allocation6], 1
    %15 = vsyncpa %s14, 0
    %16 = vsyncpa [#allocation9], 0
    %s17 = scalar_lea.sflag [#allocation9], 1
    %18 = vsyncpa %s17, 0
    %19 = vsyncpa [#allocation12], 0
    %s20 = scalar_lea.sflag [#allocation12], 1
    %21 = vsyncpa %s20, 0
    %22 = vsyncpa [#allocation15], 0
    %s23 = scalar_lea.sflag [#allocation15], 1
    %24 = vsyncpa %s23, 0
    %25 = vsyncpa [#allocation18], 0
    %26 = vsyncpa [#allocation7], 0
    %s27 = scalar_lea.sflag [#allocation7], 1
    %28 = vsyncpa %s27, 0
    loop: start=0, step=1, limit=10
    $region2: #{aspp_forward.1} parent=1 // loop_pre_header
      _
    $region3: #{aspp_forward.1} parent=1 // loop_header
      %s30 = sphi 0, %s34
      %p31 = scmp.ge.s32.totalorder %s30, 10
      %s37 = sphi 0, %s56
      %s38 = sphi 0, %s52
      %s39 = sphi 0, %s48
      %s40 = sphi 0, %s37
      %s41 = sphi 0, %s38
      %s42 = sphi 0, %s39
      %s43 = sphi 0, %s40
      %s44 = sphi 0, %s41
      %s45 = sphi 0, %s42
      %s61 = sphi 0, %s63
      %s64 = sphi 0, %s61
      %s65 = sphi 0, %s64
      %s81 = sphi 0, %s65
      %s87 = sphi 0, %s89
      %s90 = sphi 0, %s87
      %s91 = sphi 0, %s90
      %s107 = sphi 0, %s91
      %s113 = sphi 0, %s115
      %s116 = sphi 0, %s113
      %s117 = sphi 0, %s116
      %s133 = sphi 0, %s117
      %s139 = sphi 0, %s141
      %s142 = sphi 0, %s139
      %s143 = sphi 0, %s142
      %s159 = sphi 0, %s143
      %s165 = sphi 0, %s167
      %s168 = sphi 0, %s165
      %s169 = sphi 0, %s168
      %s185 = sphi 0, %s169
      %s191 = sphi 0, %s193
      %s194 = sphi 0, %s191
      %s195 = sphi 0, %s194
      %s211 = sphi 0, %s195
      %s215 = sphi 0, %s215
      %s217 = sphi 0, %s215
      %s218 = sphi 0, %s217
      %s232 = sphi 0, %s218
      %s236 = sphi 0, %s236
      %s238 = sphi 0, %s236
      %s239 = sphi 0, %s238
      %s253 = sphi 0, %s239
      %s261 = sphi 0, %s263
      %s264 = sphi 0, %s261
      %s265 = sphi 0, %s264
      %s281 = sphi 0, %s265
    $region4: #{aspp_forward.1} parent=1 // loop_header_branch
      %33 = sbr.rel (%p31) target = $region8
    $region5: #{aspp_forward.1} parent=1 // loop_body
      %s35 = ssub.s32 %s30, 1
      %s36 = ssub.s32 %s30, 2
      %s46 = sadd.s32 1, %s39
      %p47 = scmp.ge.s32.totalorder %s46, 2
      %s48 = scalar_select %p47, 0, %s46
      %s49 = sadd.s32 1, %s38
      %s50 = scalar_select %p47, %s49, %s38
      %p51 = scmp.ge.s32.totalorder %s50, 2
      %s52 = scalar_select %p51, 0, %s50
      %s53 = sadd.s32 1, %s37
      %s54 = scalar_select %p51, %s53, %s37
      %p55 = scmp.ge.s32.totalorder %s54, 2
      %s56 = scalar_select %p55, 0, %s54
      %s57 = ssub.s32 %s37, %s56
      %s58 = ssub.s32 %s39, %s48
      %s59 = sor.u32 %s57, %s58
      %p60 = scmp.eq.s32.totalorder %s59, 0
      %s62 = sadd.s32 %s61, 1
      %s63 = scalar_select %p60, %s61, %s62
      %p66 = pneg %p60
      %p67 = scmp.eq.s32.totalorder %s30, 7
      %p68 = por %p66, %p67
      %p69 = scmp.ne.s32.totalorder %s61, %s64
      %p70 = scmp.eq.s32.totalorder %s30, 0
      %p71 = por %p69, %p70
      %p72 = scmp.ne.s32.totalorder %s61, %s64
      %p73 = scmp.eq.s32.totalorder %s35, 7
      %p74 = por %p72, %p73
      %p75 = scmp.ne.s32.totalorder %s64, %s65
      %p76 = scmp.eq.s32.totalorder %s35, 0
      %p77 = por %p75, %p76
      %p78 = scmp.ne.s32.totalorder %s64, %s65
      %p79 = scmp.eq.s32.totalorder %s36, 7
      %p80 = por %p78, %p79
      %p82 = scmp.ne.s32.totalorder %s65, %s81
      %p83 = scmp.eq.s32.totalorder %s36, 0
      %p84 = por %p82, %p83
      %s85 = ssub.s32 %s39, %s48
      %p86 = scmp.eq.s32.totalorder %s85, 0
      %s88 = sadd.s32 %s87, 1
      %s89 = scalar_select %p86, %s87, %s88
      %p92 = pneg %p86
      %p93 = scmp.eq.s32.totalorder %s30, 7
      %p94 = por %p92, %p93
      %p95 = scmp.ne.s32.totalorder %s87, %s90
      %p96 = scmp.eq.s32.totalorder %s30, 0
      %p97 = por %p95, %p96
      %p98 = scmp.ne.s32.totalorder %s87, %s90
      %p99 = scmp.eq.s32.totalorder %s35, 7
      %p100 = por %p98, %p99
      %p101 = scmp.ne.s32.totalorder %s90, %s91
      %p102 = scmp.eq.s32.totalorder %s35, 0
      %p103 = por %p101, %p102
      %p104 = scmp.ne.s32.totalorder %s90, %s91
      %p105 = scmp.eq.s32.totalorder %s36, 7
      %p106 = por %p104, %p105
      %p108 = scmp.ne.s32.totalorder %s91, %s107
      %p109 = scmp.eq.s32.totalorder %s36, 0
      %p110 = por %p108, %p109
      %s111 = ssub.s32 %s39, %s48
      %p112 = scmp.eq.s32.totalorder %s111, 0
      %s114 = sadd.s32 %s113, 1
      %s115 = scalar_select %p112, %s113, %s114
      %p118 = pneg %p112
      %p119 = scmp.eq.s32.totalorder %s30, 7
      %p120 = por %p118, %p119
      %p121 = scmp.ne.s32.totalorder %s113, %s116
      %p122 = scmp.eq.s32.totalorder %s30, 0
      %p123 = por %p121, %p122
      %p124 = scmp.ne.s32.totalorder %s113, %s116
      %p125 = scmp.eq.s32.totalorder %s35, 7
      %p126 = por %p124, %p125
      %p127 = scmp.ne.s32.totalorder %s116, %s117
      %p128 = scmp.eq.s32.totalorder %s35, 0
      %p129 = por %p127, %p128
      %p130 = scmp.ne.s32.totalorder %s116, %s117
      %p131 = scmp.eq.s32.totalorder %s36, 7
      %p132 = por %p130, %p131
      %p134 = scmp.ne.s32.totalorder %s117, %s133
      %p135 = scmp.eq.s32.totalorder %s36, 0
      %p136 = por %p134, %p135
      %s137 = ssub.s32 %s39, %s48
      %p138 = scmp.eq.s32.totalorder %s137, 0
      %s140 = sadd.s32 %s139, 1
      %s141 = scalar_select %p138, %s139, %s140
      %p144 = pneg %p138
      %p145 = scmp.eq.s32.totalorder %s30, 7
      %p146 = por %p144, %p145
      %p147 = scmp.ne.s32.totalorder %s139, %s142
      %p148 = scmp.eq.s32.totalorder %s30, 0
      %p149 = por %p147, %p148
      %p150 = scmp.ne.s32.totalorder %s139, %s142
      %p151 = scmp.eq.s32.totalorder %s35, 7
      %p152 = por %p150, %p151
      %p153 = scmp.ne.s32.totalorder %s142, %s143
      %p154 = scmp.eq.s32.totalorder %s35, 0
      %p155 = por %p153, %p154
      %p156 = scmp.ne.s32.totalorder %s142, %s143
      %p157 = scmp.eq.s32.totalorder %s36, 7
      %p158 = por %p156, %p157
      %p160 = scmp.ne.s32.totalorder %s143, %s159
      %p161 = scmp.eq.s32.totalorder %s36, 0
      %p162 = por %p160, %p161
      %s163 = ssub.s32 %s39, %s48
      %p164 = scmp.eq.s32.totalorder %s163, 0
      %s166 = sadd.s32 %s165, 1
      %s167 = scalar_select %p164, %s165, %s166
      %p170 = pneg %p164
      %p171 = scmp.eq.s32.totalorder %s30, 7
      %p172 = por %p170, %p171
      %p173 = scmp.ne.s32.totalorder %s165, %s168
      %p174 = scmp.eq.s32.totalorder %s30, 0
      %p175 = por %p173, %p174
      %p176 = scmp.ne.s32.totalorder %s165, %s168
      %p177 = scmp.eq.s32.totalorder %s35, 7
      %p178 = por %p176, %p177
      %p179 = scmp.ne.s32.totalorder %s168, %s169
      %p180 = scmp.eq.s32.totalorder %s35, 0
      %p181 = por %p179, %p180
      %p182 = scmp.ne.s32.totalorder %s168, %s169
      %p183 = scmp.eq.s32.totalorder %s36, 7
      %p184 = por %p182, %p183
      %p186 = scmp.ne.s32.totalorder %s169, %s185
      %p187 = scmp.eq.s32.totalorder %s36, 0
      %p188 = por %p186, %p187
      %s189 = ssub.s32 %s39, %s48
      %p190 = scmp.eq.s32.totalorder %s189, 0
      %s192 = sadd.s32 %s191, 1
      %s193 = scalar_select %p190, %s191, %s192
      %p196 = pneg %p190
      %p197 = scmp.eq.s32.totalorder %s30, 7
      %p198 = por %p196, %p197
      %p199 = scmp.ne.s32.totalorder %s191, %s194
      %p200 = scmp.eq.s32.totalorder %s30, 0
      %p201 = por %p199, %p200
      %p202 = scmp.ne.s32.totalorder %s191, %s194
      %p203 = scmp.eq.s32.totalorder %s35, 7
      %p204 = por %p202, %p203
      %p205 = scmp.ne.s32.totalorder %s194, %s195
      %p206 = scmp.eq.s32.totalorder %s35, 0
      %p207 = por %p205, %p206
      %p208 = scmp.ne.s32.totalorder %s194, %s195
      %p209 = scmp.eq.s32.totalorder %s36, 7
      %p210 = por %p208, %p209
      %p212 = scmp.ne.s32.totalorder %s195, %s211
      %p213 = scmp.eq.s32.totalorder %s36, 0
      %p214 = por %p212, %p213
      %s216 = sadd.s32 %s215, 1
      %p219 = scmp.eq.s32.totalorder %s30, 7
      %p220 = scmp.ne.s32.totalorder %s215, %s217
      %p221 = scmp.eq.s32.totalorder %s30, 0
      %p222 = por %p220, %p221
      %p223 = scmp.ne.s32.totalorder %s215, %s217
      %p224 = scmp.eq.s32.totalorder %s35, 7
      %p225 = por %p223, %p224
      %p226 = scmp.ne.s32.totalorder %s217, %s218
      %p227 = scmp.eq.s32.totalorder %s35, 0
      %p228 = por %p226, %p227
      %p229 = scmp.ne.s32.totalorder %s217, %s218
      %p230 = scmp.eq.s32.totalorder %s36, 7
      %p231 = por %p229, %p230
      %p233 = scmp.ne.s32.totalorder %s218, %s232
      %p234 = scmp.eq.s32.totalorder %s36, 0
      %p235 = por %p233, %p234
      %s237 = sadd.s32 %s236, 1
      %p240 = scmp.eq.s32.totalorder %s30, 7
      %p241 = scmp.ne.s32.totalorder %s236, %s238
      %p242 = scmp.eq.s32.totalorder %s30, 0
      %p243 = por %p241, %p242
      %p244 = scmp.ne.s32.totalorder %s236, %s238
      %p245 = scmp.eq.s32.totalorder %s35, 7
      %p246 = por %p244, %p245
      %p247 = scmp.ne.s32.totalorder %s238, %s239
      %p248 = scmp.eq.s32.totalorder %s35, 0
      %p249 = por %p247, %p248
      %p250 = scmp.ne.s32.totalorder %s238, %s239
      %p251 = scmp.eq.s32.totalorder %s36, 7
      %p252 = por %p250, %p251
      %p254 = scmp.ne.s32.totalorder %s239, %s253
      %p255 = scmp.eq.s32.totalorder %s36, 0
      %p256 = por %p254, %p255
      %s257 = ssub.s32 %s37, %s56
      %s258 = ssub.s32 %s38, %s52
      %s259 = sor.u32 %s257, %s258
      %p260 = scmp.eq.s32.totalorder %s259, 0
      %s262 = sadd.s32 %s261, 1
      %s263 = scalar_select %p260, %s261, %s262
      %p266 = pneg %p260
      %p267 = scmp.eq.s32.totalorder %s30, 7
      %p268 = por %p266, %p267
      %p269 = scmp.ne.s32.totalorder %s261, %s264
      %p270 = scmp.eq.s32.totalorder %s30, 0
      %p271 = por %p269, %p270
      %p272 = scmp.ne.s32.totalorder %s261, %s264
      %p273 = scmp.eq.s32.totalorder %s35, 7
      %p274 = por %p272, %p273
      %p275 = scmp.ne.s32.totalorder %s264, %s265
      %p276 = scmp.eq.s32.totalorder %s35, 0
      %p277 = por %p275, %p276
      %p278 = scmp.ne.s32.totalorder %s264, %s265
      %p279 = scmp.eq.s32.totalorder %s36, 7
      %p280 = por %p278, %p279
      %p282 = scmp.ne.s32.totalorder %s265, %s281
      %p283 = scmp.eq.s32.totalorder %s36, 0
      %p284 = por %p282, %p283
      %p285 = scmp.le.s32.totalorder 1, %s30
      %p286 = scmp.lt.s32.totalorder %s30, 9
      %p287 = pnand %p285, %p286
      %p288 = pneg %p287
      // Predicated region
      $region9: #{aspp_forward.1} parent=5 // pred_check
        _
      $region10: #{aspp_forward.1} parent=5 // pred_check_branch
        %290 = sbr.rel (%p287) target = $region12
      $region11: #{aspp_forward.1} parent=5 // pred_region
        %s291 = ssub.s32 %s30, 1
        // Predicated region
        $region13: #{aspp_forward.1} parent=11 // pred_check
          %p292 = pneg %p228
        $region14: #{aspp_forward.1} parent=11 // pred_check_branch
          %294 = sbr.rel (%p292) target = $region16
        $region15: #{aspp_forward.1} parent=11 // pred_region
          %296 = vsyncadd [#allocation15], 0
          %s298 = sshll.u32 %s6, 4
          %s299 = int_to_ptr.hbm [resolvable:$true] %s298
          %s300 = sshll.u32 [#allocation16], 4
          %s301 = int_to_ptr.vmem [resolvable:$true] %s300
          %303 = dma.hbm_to_vmem [thread:$0]  %s299, 80, %s301, [#allocation15]
        $region16: #{aspp_forward.1} parent=11 // pred_fallthru
          _
        // Predicated region
        $region17: #{aspp_forward.1} parent=11 // pred_check
          %p304 = pneg %p249
        $region18: #{aspp_forward.1} parent=11 // pred_check_branch
          %306 = sbr.rel (%p304) target = $region20
        $region19: #{aspp_forward.1} parent=11 // pred_region
          %308 = vsyncadd [#allocation18], 0
          %s310 = sshll.u32 %s7, 4
          %s311 = int_to_ptr.hbm [resolvable:$true] %s310
          %s312 = sshll.u32 [#allocation17], 4
          %s313 = int_to_ptr.vmem [resolvable:$true] %s312
          %315 = dma.hbm_to_vmem [thread:$0]  %s311, 80, %s313, [#allocation18]
        $region20: #{aspp_forward.1} parent=11 // pred_fallthru
          _
      $region12: #{aspp_forward.1} parent=5 // pred_fallthru
        _
      %p316 = scmp.lt.s32.totalorder %s30, 8
      // Predicated region
      $region21: #{aspp_forward.1} parent=5 // pred_check
        %p317 = pneg %p316
      $region22: #{aspp_forward.1} parent=5 // pred_check_branch
        %319 = sbr.rel (%p317) target = $region24
      $region23: #{aspp_forward.1} parent=5 // pred_region
        // Predicated region
        $region25: #{aspp_forward.1} parent=23 // pred_check
          %p320 = pneg %p71
        $region26: #{aspp_forward.1} parent=23 // pred_check_branch
          %322 = sbr.rel (%p320) target = $region28
        $region27: #{aspp_forward.1} parent=23 // pred_region
          %s323 = sand.u32 %s61, 1
          %s324 = scalar_lea.sflag [#allocation6], %s323
          %s325 = sand.u32 %s61, 1
          %s326 = smul.addr %s325, 128
          %s327 = scalar_lea.vmem [#allocation5], %s326
          %329 = vsyncadd %s324, 0
          %s330 = smul.addr %s37, 64
          %s331 = sadd.s32 %s39, %s330
          %s332 = smul.addr %s331, 4
          %s333 = scalar_lea.hbm %s0, %s332
          %s334 = sshll.u32 %s333, 4
          %s335 = int_to_ptr.hbm [resolvable:$true] %s334
          %s336 = sshll.u32 %s327, 4
          %s337 = int_to_ptr.vmem [resolvable:$true] %s336
          %342 = dma.hbm_to_vmem [thread:$0]  %s335, 2048, %s337, %s324, 128, 64, 4
        $region28: #{aspp_forward.1} parent=23 // pred_fallthru
          _
        // Predicated region
        $region29: #{aspp_forward.1} parent=23 // pred_check
          %p343 = pneg %p97
        $region30: #{aspp_forward.1} parent=23 // pred_check_branch
          %345 = sbr.rel (%p343) target = $region32
        $region31: #{aspp_forward.1} parent=23 // pred_region
          %s346 = sand.u32 %s30, 1
          %s347 = scalar_lea.sflag [#allocation9], %s346
          %s348 = sand.u32 %s87, 1
          %s349 = smul.addr %s348, 64
          %s350 = scalar_lea.vmem [#allocation8], %s349
          %s351 = smul.u32 16, %s39
          %353 = vsyncadd %s347, 0
          %s354 = smul.addr %s351, 4
          %s355 = scalar_lea.hbm %s1, %s354
          %s356 = sshll.u32 %s355, 4
          %s357 = int_to_ptr.hbm [resolvable:$true] %s356
          %s358 = sshll.u32 %s350, 4
          %s359 = int_to_ptr.vmem [resolvable:$true] %s358
          %364 = dma.hbm_to_vmem [thread:$0]  %s357, 1024, %s359, %s347, 64, 64, 4
        $region32: #{aspp_forward.1} parent=23 // pred_fallthru
          _
        // Predicated region
        $region33: #{aspp_forward.1} parent=23 // pred_check
          %p365 = pneg %p123
        $region34: #{aspp_forward.1} parent=23 // pred_check_branch
          %367 = sbr.rel (%p365) target = $region36
        $region35: #{aspp_forward.1} parent=23 // pred_region
          #allocation21 [shape = 'u32[6]{0}', space=smem, size = 0x18, scoped, tag = 'DMA stride descriptor']
          %s368 = sand.u32 %s30, 1
          %s369 = scalar_lea.sflag [#allocation9], %s368
          %s370 = sand.u32 %s113, 1
          %s371 = smul.addr %s370, 576
          %s372 = scalar_lea.vmem [#allocation10], %s371
          %s373 = smul.u32 16, %s39
          %375 = vsyncadd %s369, 0
          %s376 = smul.addr %s373, 4
          %s377 = scalar_lea.hbm %s2, %s376
          %s379 = sshll.u32 1, 14
          %s380 = sxor.u32 4294967295, %s379
          %s382 = sld [smem:[#allocation0]]
          %s383 = sadd.s32 2, %s382
          %s385 = sshll.u32 7, 26
          %s386 = sxor.u32 4294967295, %s385
          %s387 = sand.u32 0, %s386
          %s388 = sshll.u32 %s383, 26
          %s389 = sor.u32 %s387, %s388
          %s390 = sshll.u32 %s377, 4
          %s391 = int_to_ptr.hbm [resolvable:$true] %s390
          %s392 = sshll.u32 %s372, 4
          %s393 = int_to_ptr.vmem [resolvable:$true] %s392
          %399 = sst [smem:[#allocation21]] 2048
          %s400 = scalar_lea.smem [#allocation21], 1
          %401 = sst [smem:[%s400]] 1024
          %s402 = scalar_lea.smem [#allocation21], 2
          %403 = sst [smem:[%s402]] 16
          %s404 = scalar_lea.smem [#allocation21], 3
          %405 = sst [smem:[%s404]] 64
          %s406 = scalar_lea.smem [#allocation21], 4
          %407 = sst [smem:[%s406]] 64
          %s408 = scalar_lea.smem [#allocation21], 5
          %409 = sst [smem:[%s408]] 4
          %411 = dma.general %s391, 9216, %s393, %s369, [#allocation20], [#allocation21], %s389, 0
        $region36: #{aspp_forward.1} parent=23 // pred_fallthru
          _
        // Predicated region
        $region37: #{aspp_forward.1} parent=23 // pred_check
          %p412 = pneg %p149
        $region38: #{aspp_forward.1} parent=23 // pred_check_branch
          %414 = sbr.rel (%p412) target = $region40
        $region39: #{aspp_forward.1} parent=23 // pred_region
          #allocation23 [shape = 'u32[6]{0}', space=smem, size = 0x18, scoped, tag = 'DMA stride descriptor']
          %s415 = sand.u32 %s30, 1
          %s416 = scalar_lea.sflag [#allocation12], %s415
          %s417 = sand.u32 %s139, 1
          %s418 = smul.addr %s417, 576
          %s419 = scalar_lea.vmem [#allocation11], %s418
          %s420 = smul.u32 16, %s39
          %422 = vsyncadd %s416, 0
          %s423 = smul.addr %s420, 4
          %s424 = scalar_lea.hbm %s3, %s423
          %s426 = sshll.u32 1, 14
          %s427 = sxor.u32 4294967295, %s426
          %s429 = sld [smem:[#allocation0]]
          %s430 = sadd.s32 2, %s429
          %s432 = sshll.u32 7, 26
          %s433 = sxor.u32 4294967295, %s432
          %s434 = sand.u32 0, %s433
          %s435 = sshll.u32 %s430, 26
          %s436 = sor.u32 %s434, %s435
          %s437 = sshll.u32 %s424, 4
          %s438 = int_to_ptr.hbm [resolvable:$true] %s437
          %s439 = sshll.u32 %s419, 4
          %s440 = int_to_ptr.vmem [resolvable:$true] %s439
          %446 = sst [smem:[#allocation23]] 2048
          %s447 = scalar_lea.smem [#allocation23], 1
          %448 = sst [smem:[%s447]] 1024
          %s449 = scalar_lea.smem [#allocation23], 2
          %450 = sst [smem:[%s449]] 16
          %s451 = scalar_lea.smem [#allocation23], 3
          %452 = sst [smem:[%s451]] 64
          %s453 = scalar_lea.smem [#allocation23], 4
          %454 = sst [smem:[%s453]] 64
          %s455 = scalar_lea.smem [#allocation23], 5
          %456 = sst [smem:[%s455]] 4
          %458 = dma.general %s438, 9216, %s440, %s416, [#allocation22], [#allocation23], %s436, 0
        $region40: #{aspp_forward.1} parent=23 // pred_fallthru
          _
        // Predicated region
        $region41: #{aspp_forward.1} parent=23 // pred_check
          %p459 = pneg %p175
        $region42: #{aspp_forward.1} parent=23 // pred_check_branch
          %461 = sbr.rel (%p459) target = $region44
        $region43: #{aspp_forward.1} parent=23 // pred_region
          #allocation25 [shape = 'u32[6]{0}', space=smem, size = 0x18, scoped, tag = 'DMA stride descriptor']
          %s462 = sand.u32 %s30, 1
          %s463 = scalar_lea.sflag [#allocation12], %s462
          %s464 = sand.u32 %s165, 1
          %s465 = smul.addr %s464, 576
          %s466 = scalar_lea.vmem [#allocation13], %s465
          %s467 = smul.u32 16, %s39
          %469 = vsyncadd %s463, 0
          %s470 = smul.addr %s467, 4
          %s471 = scalar_lea.hbm %s4, %s470
          %s473 = sshll.u32 1, 14
          %s474 = sxor.u32 4294967295, %s473
          %s476 = sld [smem:[#allocation0]]
          %s477 = sadd.s32 2, %s476
          %s479 = sshll.u32 7, 26
          %s480 = sxor.u32 4294967295, %s479
          %s481 = sand.u32 0, %s480
          %s482 = sshll.u32 %s477, 26
          %s483 = sor.u32 %s481, %s482
          %s484 = sshll.u32 %s471, 4
          %s485 = int_to_ptr.hbm [resolvable:$true] %s484
          %s486 = sshll.u32 %s466, 4
          %s487 = int_to_ptr.vmem [resolvable:$true] %s486
          %493 = sst [smem:[#allocation25]] 2048
          %s494 = scalar_lea.smem [#allocation25], 1
          %495 = sst [smem:[%s494]] 1024
          %s496 = scalar_lea.smem [#allocation25], 2
          %497 = sst [smem:[%s496]] 16
          %s498 = scalar_lea.smem [#allocation25], 3
          %499 = sst [smem:[%s498]] 64
          %s500 = scalar_lea.smem [#allocation25], 4
          %501 = sst [smem:[%s500]] 64
          %s502 = scalar_lea.smem [#allocation25], 5
          %503 = sst [smem:[%s502]] 4
          %505 = dma.general %s485, 9216, %s487, %s463, [#allocation24], [#allocation25], %s483, 0
        $region44: #{aspp_forward.1} parent=23 // pred_fallthru
          _
        // Predicated region
        $region45: #{aspp_forward.1} parent=23 // pred_check
          %p506 = pneg %p201
        $region46: #{aspp_forward.1} parent=23 // pred_check_branch
          %508 = sbr.rel (%p506) target = $region48
        $region47: #{aspp_forward.1} parent=23 // pred_region
          %s509 = sand.u32 %s30, 1
          %s510 = scalar_lea.sflag [#allocation15], %s509
          %s511 = sand.u32 %s191, 1
          %s512 = smul.addr %s511, 64
          %s513 = scalar_lea.vmem [#allocation14], %s512
          %s514 = smul.u32 16, %s39
          %516 = vsyncadd %s510, 0
          %s517 = smul.addr %s514, 4
          %s518 = scalar_lea.hbm %s5, %s517
          %s519 = sshll.u32 %s518, 4
          %s520 = int_to_ptr.hbm [resolvable:$true] %s519
          %s521 = sshll.u32 %s513, 4
          %s522 = int_to_ptr.vmem [resolvable:$true] %s521
          %527 = dma.hbm_to_vmem [thread:$0]  %s520, 1024, %s522, %s510, 64, 64, 4
        $region48: #{aspp_forward.1} parent=23 // pred_fallthru
          _
      $region24: #{aspp_forward.1} parent=5 // pred_fallthru
        _
      %p528 = scmp.le.s32.totalorder 1, %s30
      %p529 = scmp.lt.s32.totalorder %s30, 9
      %p530 = pnand %p528, %p529
      %p531 = pneg %p530
      // Predicated region
      $region49: #{aspp_forward.1} parent=5 // pred_check
        _
      $region50: #{aspp_forward.1} parent=5 // pred_check_branch
        %533 = sbr.rel (%p530) target = $region52
      $region51: #{aspp_forward.1} parent=5 // pred_region
        %s534 = ssub.s32 %s30, 1
        %s535 = sand.u32 %s64, 1
        %s536 = scalar_lea.sflag [#allocation6], %s535
        %s537 = sand.u32 %s64, 1
        %s538 = smul.addr %s537, 128
        %s539 = scalar_lea.vmem [#allocation5], %s538
        // Predicated region
        $region53: #{aspp_forward.1} parent=51 // pred_check
          %p540 = pneg %p77
        $region54: #{aspp_forward.1} parent=51 // pred_check_branch
          %542 = sbr.rel (%p540) target = $region56
        $region55: #{aspp_forward.1} parent=51 // pred_region
          %544 = dma.done %s536, 2048
        $region56: #{aspp_forward.1} parent=51 // pred_fallthru
          _
        %s545 = sand.u32 %s35, 1
        %s546 = scalar_lea.sflag [#allocation9], %s545
        %s547 = sand.u32 %s90, 1
        %s548 = smul.addr %s547, 64
        %s549 = scalar_lea.vmem [#allocation8], %s548
        // Predicated region
        $region57: #{aspp_forward.1} parent=51 // pred_check
          %p550 = pneg %p103
        $region58: #{aspp_forward.1} parent=51 // pred_check_branch
          %552 = sbr.rel (%p550) target = $region60
        $region59: #{aspp_forward.1} parent=51 // pred_region
          %554 = dma.done %s546, 1024
        $region60: #{aspp_forward.1} parent=51 // pred_fallthru
          _
        %s555 = sand.u32 %s35, 1
        %s556 = scalar_lea.sflag [#allocation9], %s555
        %s557 = sand.u32 %s116, 1
        %s558 = smul.addr %s557, 576
        %s559 = scalar_lea.vmem [#allocation10], %s558
        // Predicated region
        $region61: #{aspp_forward.1} parent=51 // pred_check
          %p560 = pneg %p129
        $region62: #{aspp_forward.1} parent=51 // pred_check_branch
          %562 = sbr.rel (%p560) target = $region64
        $region63: #{aspp_forward.1} parent=51 // pred_region
          %564 = dma.done %s556, 9216
        $region64: #{aspp_forward.1} parent=51 // pred_fallthru
          _
        %s565 = sand.u32 %s35, 1
        %s566 = scalar_lea.sflag [#allocation12], %s565
        %s567 = sand.u32 %s142, 1
        %s568 = smul.addr %s567, 576
        %s569 = scalar_lea.vmem [#allocation11], %s568
        // Predicated region
        $region65: #{aspp_forward.1} parent=51 // pred_check
          %p570 = pneg %p155
        $region66: #{aspp_forward.1} parent=51 // pred_check_branch
          %572 = sbr.rel (%p570) target = $region68
        $region67: #{aspp_forward.1} parent=51 // pred_region
          %574 = dma.done %s566, 9216
        $region68: #{aspp_forward.1} parent=51 // pred_fallthru
          _
        %s575 = sand.u32 %s35, 1
        %s576 = scalar_lea.sflag [#allocation12], %s575
        %s577 = sand.u32 %s168, 1
        %s578 = smul.addr %s577, 576
        %s579 = scalar_lea.vmem [#allocation13], %s578
        // Predicated region
        $region69: #{aspp_forward.1} parent=51 // pred_check
          %p580 = pneg %p181
        $region70: #{aspp_forward.1} parent=51 // pred_check_branch
          %582 = sbr.rel (%p580) target = $region72
        $region71: #{aspp_forward.1} parent=51 // pred_region
          %584 = dma.done %s576, 9216
        $region72: #{aspp_forward.1} parent=51 // pred_fallthru
          _
        %s585 = sand.u32 %s35, 1
        %s586 = scalar_lea.sflag [#allocation15], %s585
        %s587 = sand.u32 %s194, 1
        %s588 = smul.addr %s587, 64
        %s589 = scalar_lea.vmem [#allocation14], %s588
        // Predicated region
        $region73: #{aspp_forward.1} parent=51 // pred_check
          %p590 = pneg %p207
        $region74: #{aspp_forward.1} parent=51 // pred_check_branch
          %592 = sbr.rel (%p590) target = $region76
        $region75: #{aspp_forward.1} parent=51 // pred_region
          %594 = dma.done %s586, 1024
        $region76: #{aspp_forward.1} parent=51 // pred_fallthru
          _
        // Predicated region
        $region77: #{aspp_forward.1} parent=51 // pred_check
          %p595 = pneg %p228
        $region78: #{aspp_forward.1} parent=51 // pred_check_branch
          %597 = sbr.rel (%p595) target = $region80
        $region79: #{aspp_forward.1} parent=51 // pred_region
          %599 = dma.done [#allocation15], 80
        $region80: #{aspp_forward.1} parent=51 // pred_fallthru
          _
        // Predicated region
        $region81: #{aspp_forward.1} parent=51 // pred_check
          %p600 = pneg %p249
        $region82: #{aspp_forward.1} parent=51 // pred_check_branch
          %602 = sbr.rel (%p600) target = $region84
        $region83: #{aspp_forward.1} parent=51 // pred_region
          %604 = dma.done [#allocation18], 80
        $region84: #{aspp_forward.1} parent=51 // pred_fallthru
          _
        %s605 = sand.u32 %s64, 1
        %s606 = scalar_lea.sflag [#allocation6], %s605
        %s607 = sand.u32 %s64, 1
        %s608 = smul.addr %s607, 128
        %s609 = scalar_lea.vmem [#allocation5], %s608
        %p610 = pneg %p77
        %p611 = pneg %p74
        %s612 = sand.u32 %s35, 1
        %s613 = scalar_lea.sflag [#allocation9], %s612
        %s614 = sand.u32 %s90, 1
        %s615 = smul.addr %s614, 64
        %s616 = scalar_lea.vmem [#allocation8], %s615
        %p617 = pneg %p103
        %p618 = pneg %p100
        %s619 = sand.u32 %s35, 1
        %s620 = scalar_lea.sflag [#allocation9], %s619
        %s621 = sand.u32 %s116, 1
        %s622 = smul.addr %s621, 576
        %s623 = scalar_lea.vmem [#allocation10], %s622
        %p624 = pneg %p129
        %p625 = pneg %p126
        %s626 = sand.u32 %s35, 1
        %s627 = scalar_lea.sflag [#allocation12], %s626
        %s628 = sand.u32 %s142, 1
        %s629 = smul.addr %s628, 576
        %s630 = scalar_lea.vmem [#allocation11], %s629
        %p631 = pneg %p155
        %p632 = pneg %p152
        %s633 = sand.u32 %s35, 1
        %s634 = scalar_lea.sflag [#allocation12], %s633
        %s635 = sand.u32 %s168, 1
        %s636 = smul.addr %s635, 576
        %s637 = scalar_lea.vmem [#allocation13], %s636
        %p638 = pneg %p181
        %p639 = pneg %p178
        %s640 = sand.u32 %s35, 1
        %s641 = scalar_lea.sflag [#allocation15], %s640
        %s642 = sand.u32 %s194, 1
        %s643 = smul.addr %s642, 64
        %s644 = scalar_lea.vmem [#allocation14], %s643
        %p645 = pneg %p207
        %p646 = pneg %p204
        %p647 = pneg %p228
        %p648 = pneg %p225
        %p649 = pneg %p249
        %p650 = pneg %p246
        %p651 = pneg %p277
        %p652 = pneg %p274
        %s653 = sand.u32 %s264, 1
        %s654 = scalar_lea.sflag [#allocation7], %s653
        %s655 = sand.u32 %s264, 1
        %s656 = smul.addr %s655, 640
        %s657 = scalar_lea.vmem [#allocation19], %s656
        %s658 = smul.u32 16, %s42
        %s659 = smul.u32 16, %s42
        %s660 = smul.u32 16, %s42
        %s661 = smul.u32 16, %s42
        %s662 = smul.u32 16, %s42
        %s663 = smul.u32 8, %s41
        %s666 = smul.u32 %s41, 8
        %p667 = scmp.eq.s32.totalorder %s42, 0
        // Predicated region
        $region85: #{aspp_forward.1} parent=51 // pred_check
          %p668 = pneg %p667
        $region86: #{aspp_forward.1} parent=51 // pred_check_branch
          %670 = sbr.rel (%p668) target = $region88
        $region87: #{aspp_forward.1} parent=51 // pred_region
          %671 = vst [vmem:[#allocation3] sm:$0xff] 0.0
          %672 = vst [vmem:[#allocation3 + $0x8] sm:$0xff] 0.0
          %673 = vst [vmem:[#allocation3 + $0x10] sm:$0xff] 0.0
          %674 = vst [vmem:[#allocation3 + $0x18] sm:$0xff] 0.0
          %675 = vst [vmem:[#allocation3 + $0x20] sm:$0xff] 0.0
          %676 = vst [vmem:[#allocation3 + $0x28] sm:$0xff] 0.0
          %677 = vst [vmem:[#allocation3 + $0x30] sm:$0xff] 0.0
          %678 = vst [vmem:[#allocation3 + $0x38] sm:$0xff] 0.0
          %679 = vst [vmem:[#allocation3 + $0x40] sm:$0xff] 0.0
          %680 = vst [vmem:[#allocation3 + $0x48] sm:$0xff] 0.0
          %681 = vst [vmem:[#allocation3 + $0x50] sm:$0xff] 0.0
          %682 = vst [vmem:[#allocation3 + $0x58] sm:$0xff] 0.0
          %683 = vst [vmem:[#allocation3 + $0x60] sm:$0xff] 0.0
          %684 = vst [vmem:[#allocation3 + $0x68] sm:$0xff] 0.0
          %685 = vst [vmem:[#allocation3 + $0x70] sm:$0xff] 0.0
          %686 = vst [vmem:[#allocation3 + $0x78] sm:$0xff] 0.0
          %687 = vst [vmem:[#allocation3 + $0x80] sm:$0xff] 0.0
          %688 = vst [vmem:[#allocation3 + $0x88] sm:$0xff] 0.0
          %689 = vst [vmem:[#allocation3 + $0x90] sm:$0xff] 0.0
          %690 = vst [vmem:[#allocation3 + $0x98] sm:$0xff] 0.0
          %691 = vst [vmem:[#allocation3 + $0xa0] sm:$0xff] 0.0
          %692 = vst [vmem:[#allocation3 + $0xa8] sm:$0xff] 0.0
          %693 = vst [vmem:[#allocation3 + $0xb0] sm:$0xff] 0.0
          %694 = vst [vmem:[#allocation3 + $0xb8] sm:$0xff] 0.0
          %695 = vst [vmem:[#allocation3 + $0xc0] sm:$0xff] 0.0
          %696 = vst [vmem:[#allocation3 + $0xc8] sm:$0xff] 0.0
          %697 = vst [vmem:[#allocation3 + $0xd0] sm:$0xff] 0.0
          %698 = vst [vmem:[#allocation3 + $0xd8] sm:$0xff] 0.0
          %699 = vst [vmem:[#allocation3 + $0xe0] sm:$0xff] 0.0
          %700 = vst [vmem:[#allocation3 + $0xe8] sm:$0xff] 0.0
          %701 = vst [vmem:[#allocation3 + $0xf0] sm:$0xff] 0.0
          %702 = vst [vmem:[#allocation3 + $0xf8] sm:$0xff] 0.0
          %703 = vst [vmem:[#allocation3 + $0x100] sm:$0xff] 0.0
          %704 = vst [vmem:[#allocation3 + $0x108] sm:$0xff] 0.0
          %705 = vst [vmem:[#allocation3 + $0x110] sm:$0xff] 0.0
          %706 = vst [vmem:[#allocation3 + $0x118] sm:$0xff] 0.0
          %707 = vst [vmem:[#allocation3 + $0x120] sm:$0xff] 0.0
          %708 = vst [vmem:[#allocation3 + $0x128] sm:$0xff] 0.0
          %709 = vst [vmem:[#allocation3 + $0x130] sm:$0xff] 0.0
          %710 = vst [vmem:[#allocation3 + $0x138] sm:$0xff] 0.0
          %711 = vst [vmem:[#allocation3 + $0x140] sm:$0xff] 0.0
          %712 = vst [vmem:[#allocation3 + $0x148] sm:$0xff] 0.0
          %713 = vst [vmem:[#allocation3 + $0x150] sm:$0xff] 0.0
          %714 = vst [vmem:[#allocation3 + $0x158] sm:$0xff] 0.0
          %715 = vst [vmem:[#allocation3 + $0x160] sm:$0xff] 0.0
          %716 = vst [vmem:[#allocation3 + $0x168] sm:$0xff] 0.0
          %717 = vst [vmem:[#allocation3 + $0x170] sm:$0xff] 0.0
          %718 = vst [vmem:[#allocation3 + $0x178] sm:$0xff] 0.0
          %719 = vst [vmem:[#allocation3 + $0x180] sm:$0xff] 0.0
          %720 = vst [vmem:[#allocation3 + $0x188] sm:$0xff] 0.0
          %721 = vst [vmem:[#allocation3 + $0x190] sm:$0xff] 0.0
          %722 = vst [vmem:[#allocation3 + $0x198] sm:$0xff] 0.0
          %723 = vst [vmem:[#allocation3 + $0x1a0] sm:$0xff] 0.0
          %724 = vst [vmem:[#allocation3 + $0x1a8] sm:$0xff] 0.0
          %725 = vst [vmem:[#allocation3 + $0x1b0] sm:$0xff] 0.0
          %726 = vst [vmem:[#allocation3 + $0x1b8] sm:$0xff] 0.0
          %727 = vst [vmem:[#allocation3 + $0x1c0] sm:$0xff] 0.0
          %728 = vst [vmem:[#allocation3 + $0x1c8] sm:$0xff] 0.0
          %729 = vst [vmem:[#allocation3 + $0x1d0] sm:$0xff] 0.0
          %730 = vst [vmem:[#allocation3 + $0x1d8] sm:$0xff] 0.0
          %731 = vst [vmem:[#allocation3 + $0x1e0] sm:$0xff] 0.0
          %732 = vst [vmem:[#allocation3 + $0x1e8] sm:$0xff] 0.0
          %733 = vst [vmem:[#allocation3 + $0x1f0] sm:$0xff] 0.0
          %734 = vst [vmem:[#allocation3 + $0x1f8] sm:$0xff] 0.0
          %735 = vst [vmem:[#allocation4] sm:$0x1] 0.0
          %736 = vst [vmem:[#allocation2] sm:$0xf] 0
          %737 = vst [vmem:[#allocation2 + $0x4] sm:$0xf] 0
          %738 = vst [vmem:[#allocation2 + $0x8] sm:$0xf] 0
          %739 = vst [vmem:[#allocation2 + $0xc] sm:$0xf] 0
          %740 = vst [vmem:[#allocation2 + $0x10] sm:$0xf] 0
          %741 = vst [vmem:[#allocation2 + $0x14] sm:$0xf] 0
          %742 = vst [vmem:[#allocation2 + $0x18] sm:$0xf] 0
          %743 = vst [vmem:[#allocation2 + $0x1c] sm:$0xf] 0
          %744 = vst [vmem:[#allocation2 + $0x20] sm:$0xf] 0
          %745 = vst [vmem:[#allocation2 + $0x24] sm:$0xf] 0
          %746 = vst [vmem:[#allocation2 + $0x28] sm:$0xf] 0
          %747 = vst [vmem:[#allocation2 + $0x2c] sm:$0xf] 0
          %748 = vst [vmem:[#allocation2 + $0x30] sm:$0xf] 0
          %749 = vst [vmem:[#allocation2 + $0x34] sm:$0xf] 0
          %750 = vst [vmem:[#allocation2 + $0x38] sm:$0xf] 0
          %751 = vst [vmem:[#allocation2 + $0x3c] sm:$0xf] 0
          %752 = vst [vmem:[#allocation2 + $0x40] sm:$0xf] 0
          %753 = vst [vmem:[#allocation2 + $0x44] sm:$0xf] 0
          %754 = vst [vmem:[#allocation2 + $0x48] sm:$0xf] 0
          %755 = vst [vmem:[#allocation2 + $0x4c] sm:$0xf] 0
          %756 = vst [vmem:[#allocation2 + $0x50] sm:$0xf] 0
          %757 = vst [vmem:[#allocation2 + $0x54] sm:$0xf] 0
          %758 = vst [vmem:[#allocation2 + $0x58] sm:$0xf] 0
          %759 = vst [vmem:[#allocation2 + $0x5c] sm:$0xf] 0
          %760 = vst [vmem:[#allocation2 + $0x60] sm:$0xf] 0
          %761 = vst [vmem:[#allocation2 + $0x64] sm:$0xf] 0
          %762 = vst [vmem:[#allocation2 + $0x68] sm:$0xf] 0
          %763 = vst [vmem:[#allocation2 + $0x6c] sm:$0xf] 0
          %764 = vst [vmem:[#allocation2 + $0x70] sm:$0xf] 0
          %765 = vst [vmem:[#allocation2 + $0x74] sm:$0xf] 0
          %766 = vst [vmem:[#allocation2 + $0x78] sm:$0xf] 0
          %767 = vst [vmem:[#allocation2 + $0x7c] sm:$0xf] 0
          %768 = vst [vmem:[#allocation2 + $0x80] sm:$0xf] 0
          %769 = vst [vmem:[#allocation2 + $0x84] sm:$0xf] 0
          %770 = vst [vmem:[#allocation2 + $0x88] sm:$0xf] 0
          %771 = vst [vmem:[#allocation2 + $0x8c] sm:$0xf] 0
          %772 = vst [vmem:[#allocation2 + $0x90] sm:$0xf] 0
          %773 = vst [vmem:[#allocation2 + $0x94] sm:$0xf] 0
          %774 = vst [vmem:[#allocation2 + $0x98] sm:$0xf] 0
          %775 = vst [vmem:[#allocation2 + $0x9c] sm:$0xf] 0
          %776 = vst [vmem:[#allocation2 + $0xa0] sm:$0xf] 0
          %777 = vst [vmem:[#allocation2 + $0xa4] sm:$0xf] 0
          %778 = vst [vmem:[#allocation2 + $0xa8] sm:$0xf] 0
          %779 = vst [vmem:[#allocation2 + $0xac] sm:$0xf] 0
          %780 = vst [vmem:[#allocation2 + $0xb0] sm:$0xf] 0
          %781 = vst [vmem:[#allocation2 + $0xb4] sm:$0xf] 0
          %782 = vst [vmem:[#allocation2 + $0xb8] sm:$0xf] 0
          %783 = vst [vmem:[#allocation2 + $0xbc] sm:$0xf] 0
          %784 = vst [vmem:[#allocation2 + $0xc0] sm:$0xf] 0
          %785 = vst [vmem:[#allocation2 + $0xc4] sm:$0xf] 0
          %786 = vst [vmem:[#allocation2 + $0xc8] sm:$0xf] 0
          %787 = vst [vmem:[#allocation2 + $0xcc] sm:$0xf] 0
          %788 = vst [vmem:[#allocation2 + $0xd0] sm:$0xf] 0
          %789 = vst [vmem:[#allocation2 + $0xd4] sm:$0xf] 0
          %790 = vst [vmem:[#allocation2 + $0xd8] sm:$0xf] 0
          %791 = vst [vmem:[#allocation2 + $0xdc] sm:$0xf] 0
          %792 = vst [vmem:[#allocation2 + $0xe0] sm:$0xf] 0
          %793 = vst [vmem:[#allocation2 + $0xe4] sm:$0xf] 0
          %794 = vst [vmem:[#allocation2 + $0xe8] sm:$0xf] 0
          %795 = vst [vmem:[#allocation2 + $0xec] sm:$0xf] 0
          %796 = vst [vmem:[#allocation2 + $0xf0] sm:$0xf] 0
          %797 = vst [vmem:[#allocation2 + $0xf4] sm:$0xf] 0
          %798 = vst [vmem:[#allocation2 + $0xf8] sm:$0xf] 0
          %799 = vst [vmem:[#allocation2 + $0xfc] sm:$0xf] 0
          %800 = vst [vmem:[#allocation2 + $0x100] sm:$0xf] 0
          %801 = vst [vmem:[#allocation2 + $0x104] sm:$0xf] 0
          %802 = vst [vmem:[#allocation2 + $0x108] sm:$0xf] 0
          %803 = vst [vmem:[#allocation2 + $0x10c] sm:$0xf] 0
          %804 = vst [vmem:[#allocation2 + $0x110] sm:$0xf] 0
          %805 = vst [vmem:[#allocation2 + $0x114] sm:$0xf] 0
          %806 = vst [vmem:[#allocation2 + $0x118] sm:$0xf] 0
          %807 = vst [vmem:[#allocation2 + $0x11c] sm:$0xf] 0
          %808 = vst [vmem:[#allocation2 + $0x120] sm:$0xf] 0
          %809 = vst [vmem:[#allocation2 + $0x124] sm:$0xf] 0
          %810 = vst [vmem:[#allocation2 + $0x128] sm:$0xf] 0
          %811 = vst [vmem:[#allocation2 + $0x12c] sm:$0xf] 0
          %812 = vst [vmem:[#allocation2 + $0x130] sm:$0xf] 0
          %813 = vst [vmem:[#allocation2 + $0x134] sm:$0xf] 0
          %814 = vst [vmem:[#allocation2 + $0x138] sm:$0xf] 0
          %815 = vst [vmem:[#allocation2 + $0x13c] sm:$0xf] 0
          %816 = vst [vmem:[#allocation2 + $0x140] sm:$0xf] 0
          %817 = vst [vmem:[#allocation2 + $0x144] sm:$0xf] 0
          %818 = vst [vmem:[#allocation2 + $0x148] sm:$0xf] 0
          %819 = vst [vmem:[#allocation2 + $0x14c] sm:$0xf] 0
          %820 = vst [vmem:[#allocation2 + $0x150] sm:$0xf] 0
          %821 = vst [vmem:[#allocation2 + $0x154] sm:$0xf] 0
          %822 = vst [vmem:[#allocation2 + $0x158] sm:$0xf] 0
          %823 = vst [vmem:[#allocation2 + $0x15c] sm:$0xf] 0
          %824 = vst [vmem:[#allocation2 + $0x160] sm:$0xf] 0
          %825 = vst [vmem:[#allocation2 + $0x164] sm:$0xf] 0
          %826 = vst [vmem:[#allocation2 + $0x168] sm:$0xf] 0
          %827 = vst [vmem:[#allocation2 + $0x16c] sm:$0xf] 0
          %828 = vst [vmem:[#allocation2 + $0x170] sm:$0xf] 0
          %829 = vst [vmem:[#allocation2 + $0x174] sm:$0xf] 0
          %830 = vst [vmem:[#allocation2 + $0x178] sm:$0xf] 0
          %831 = vst [vmem:[#allocation2 + $0x17c] sm:$0xf] 0
          %832 = vst [vmem:[#allocation2 + $0x180] sm:$0xf] 0
          %833 = vst [vmem:[#allocation2 + $0x184] sm:$0xf] 0
          %834 = vst [vmem:[#allocation2 + $0x188] sm:$0xf] 0
          %835 = vst [vmem:[#allocation2 + $0x18c] sm:$0xf] 0
          %836 = vst [vmem:[#allocation2 + $0x190] sm:$0xf] 0
          %837 = vst [vmem:[#allocation2 + $0x194] sm:$0xf] 0
          %838 = vst [vmem:[#allocation2 + $0x198] sm:$0xf] 0
          %839 = vst [vmem:[#allocation2 + $0x19c] sm:$0xf] 0
          %840 = vst [vmem:[#allocation2 + $0x1a0] sm:$0xf] 0
          %841 = vst [vmem:[#allocation2 + $0x1a4] sm:$0xf] 0
          %842 = vst [vmem:[#allocation2 + $0x1a8] sm:$0xf] 0
          %843 = vst [vmem:[#allocation2 + $0x1ac] sm:$0xf] 0
          %844 = vst [vmem:[#allocation2 + $0x1b0] sm:$0xf] 0
          %845 = vst [vmem:[#allocation2 + $0x1b4] sm:$0xf] 0
          %846 = vst [vmem:[#allocation2 + $0x1b8] sm:$0xf] 0
          %847 = vst [vmem:[#allocation2 + $0x1bc] sm:$0xf] 0
          %848 = vst [vmem:[#allocation2 + $0x1c0] sm:$0xf] 0
          %849 = vst [vmem:[#allocation2 + $0x1c4] sm:$0xf] 0
          %850 = vst [vmem:[#allocation2 + $0x1c8] sm:$0xf] 0
          %851 = vst [vmem:[#allocation2 + $0x1cc] sm:$0xf] 0
          %852 = vst [vmem:[#allocation2 + $0x1d0] sm:$0xf] 0
          %853 = vst [vmem:[#allocation2 + $0x1d4] sm:$0xf] 0
          %854 = vst [vmem:[#allocation2 + $0x1d8] sm:$0xf] 0
          %855 = vst [vmem:[#allocation2 + $0x1dc] sm:$0xf] 0
          %856 = vst [vmem:[#allocation2 + $0x1e0] sm:$0xf] 0
          %857 = vst [vmem:[#allocation2 + $0x1e4] sm:$0xf] 0
          %858 = vst [vmem:[#allocation2 + $0x1e8] sm:$0xf] 0
          %859 = vst [vmem:[#allocation2 + $0x1ec] sm:$0xf] 0
          %860 = vst [vmem:[#allocation2 + $0x1f0] sm:$0xf] 0
          %861 = vst [vmem:[#allocation2 + $0x1f4] sm:$0xf] 0
          %862 = vst [vmem:[#allocation2 + $0x1f8] sm:$0xf] 0
          %863 = vst [vmem:[#allocation2 + $0x1fc] sm:$0xf] 0
          %864 = vst [vmem:[#allocation2 + $0x200] sm:$0xf] 0
          %865 = vst [vmem:[#allocation2 + $0x204] sm:$0xf] 0
          %866 = vst [vmem:[#allocation2 + $0x208] sm:$0xf] 0
          %867 = vst [vmem:[#allocation2 + $0x20c] sm:$0xf] 0
          %868 = vst [vmem:[#allocation2 + $0x210] sm:$0xf] 0
          %869 = vst [vmem:[#allocation2 + $0x214] sm:$0xf] 0
          %870 = vst [vmem:[#allocation2 + $0x218] sm:$0xf] 0
          %871 = vst [vmem:[#allocation2 + $0x21c] sm:$0xf] 0
          %872 = vst [vmem:[#allocation2 + $0x220] sm:$0xf] 0
          %873 = vst [vmem:[#allocation2 + $0x224] sm:$0xf] 0
          %874 = vst [vmem:[#allocation2 + $0x228] sm:$0xf] 0
          %875 = vst [vmem:[#allocation2 + $0x22c] sm:$0xf] 0
          %876 = vst [vmem:[#allocation2 + $0x230] sm:$0xf] 0
          %877 = vst [vmem:[#allocation2 + $0x234] sm:$0xf] 0
          %878 = vst [vmem:[#allocation2 + $0x238] sm:$0xf] 0
          %879 = vst [vmem:[#allocation2 + $0x23c] sm:$0xf] 0
          %880 = vst [vmem:[#allocation2 + $0x240] sm:$0xf] 0
          %881 = vst [vmem:[#allocation2 + $0x244] sm:$0xf] 0
          %882 = vst [vmem:[#allocation2 + $0x248] sm:$0xf] 0
          %883 = vst [vmem:[#allocation2 + $0x24c] sm:$0xf] 0
          %884 = vst [vmem:[#allocation2 + $0x250] sm:$0xf] 0
          %885 = vst [vmem:[#allocation2 + $0x254] sm:$0xf] 0
          %886 = vst [vmem:[#allocation2 + $0x258] sm:$0xf] 0
          %887 = vst [vmem:[#allocation2 + $0x25c] sm:$0xf] 0
          %888 = vst [vmem:[#allocation2 + $0x260] sm:$0xf] 0
          %889 = vst [vmem:[#allocation2 + $0x264] sm:$0xf] 0
          %890 = vst [vmem:[#allocation2 + $0x268] sm:$0xf] 0
          %891 = vst [vmem:[#allocation2 + $0x26c] sm:$0xf] 0
          %892 = vst [vmem:[#allocation2 + $0x270] sm:$0xf] 0
          %893 = vst [vmem:[#allocation2 + $0x274] sm:$0xf] 0
          %894 = vst [vmem:[#allocation2 + $0x278] sm:$0xf] 0
          %895 = vst [vmem:[#allocation2 + $0x27c] sm:$0xf] 0
          %896 = vst [vmem:[#allocation2 + $0x280] sm:$0xf] 0
          %897 = vst [vmem:[#allocation2 + $0x284] sm:$0xf] 0
          %898 = vst [vmem:[#allocation2 + $0x288] sm:$0xf] 0
          %899 = vst [vmem:[#allocation2 + $0x28c] sm:$0xf] 0
          %900 = vst [vmem:[#allocation2 + $0x290] sm:$0xf] 0
          %901 = vst [vmem:[#allocation2 + $0x294] sm:$0xf] 0
          %902 = vst [vmem:[#allocation2 + $0x298] sm:$0xf] 0
          %903 = vst [vmem:[#allocation2 + $0x29c] sm:$0xf] 0
          %904 = vst [vmem:[#allocation2 + $0x2a0] sm:$0xf] 0
          %905 = vst [vmem:[#allocation2 + $0x2a4] sm:$0xf] 0
          %906 = vst [vmem:[#allocation2 + $0x2a8] sm:$0xf] 0
          %907 = vst [vmem:[#allocation2 + $0x2ac] sm:$0xf] 0
          %908 = vst [vmem:[#allocation2 + $0x2b0] sm:$0xf] 0
          %909 = vst [vmem:[#allocation2 + $0x2b4] sm:$0xf] 0
          %910 = vst [vmem:[#allocation2 + $0x2b8] sm:$0xf] 0
          %911 = vst [vmem:[#allocation2 + $0x2bc] sm:$0xf] 0
          %912 = vst [vmem:[#allocation2 + $0x2c0] sm:$0xf] 0
          %913 = vst [vmem:[#allocation2 + $0x2c4] sm:$0xf] 0
          %914 = vst [vmem:[#allocation2 + $0x2c8] sm:$0xf] 0
          %915 = vst [vmem:[#allocation2 + $0x2cc] sm:$0xf] 0
          %916 = vst [vmem:[#allocation2 + $0x2d0] sm:$0xf] 0
          %917 = vst [vmem:[#allocation2 + $0x2d4] sm:$0xf] 0
          %918 = vst [vmem:[#allocation2 + $0x2d8] sm:$0xf] 0
          %919 = vst [vmem:[#allocation2 + $0x2dc] sm:$0xf] 0
          %920 = vst [vmem:[#allocation2 + $0x2e0] sm:$0xf] 0
          %921 = vst [vmem:[#allocation2 + $0x2e4] sm:$0xf] 0
          %922 = vst [vmem:[#allocation2 + $0x2e8] sm:$0xf] 0
          %923 = vst [vmem:[#allocation2 + $0x2ec] sm:$0xf] 0
          %924 = vst [vmem:[#allocation2 + $0x2f0] sm:$0xf] 0
          %925 = vst [vmem:[#allocation2 + $0x2f4] sm:$0xf] 0
          %926 = vst [vmem:[#allocation2 + $0x2f8] sm:$0xf] 0
          %927 = vst [vmem:[#allocation2 + $0x2fc] sm:$0xf] 0
          %s928 = scalar_lea.vmem [#allocation2], 1280
          %929 = vst [vmem:[%s928] sm:$0xf] 0
          %930 = vst [vmem:[%s928 + $0x4] sm:$0xf] 0
          %931 = vst [vmem:[%s928 + $0x8] sm:$0xf] 0
          %932 = vst [vmem:[%s928 + $0xc] sm:$0xf] 0
          %933 = vst [vmem:[%s928 + $0x10] sm:$0xf] 0
          %934 = vst [vmem:[%s928 + $0x14] sm:$0xf] 0
          %935 = vst [vmem:[%s928 + $0x18] sm:$0xf] 0
          %936 = vst [vmem:[%s928 + $0x1c] sm:$0xf] 0
          %937 = vst [vmem:[%s928 + $0x20] sm:$0xf] 0
          %938 = vst [vmem:[%s928 + $0x24] sm:$0xf] 0
          %939 = vst [vmem:[%s928 + $0x28] sm:$0xf] 0
          %940 = vst [vmem:[%s928 + $0x2c] sm:$0xf] 0
          %941 = vst [vmem:[%s928 + $0x30] sm:$0xf] 0
          %942 = vst [vmem:[%s928 + $0x34] sm:$0xf] 0
          %943 = vst [vmem:[%s928 + $0x38] sm:$0xf] 0
          %944 = vst [vmem:[%s928 + $0x3c] sm:$0xf] 0
          %945 = vst [vmem:[%s928 + $0x40] sm:$0xf] 0
          %946 = vst [vmem:[%s928 + $0x44] sm:$0xf] 0
          %947 = vst [vmem:[%s928 + $0x48] sm:$0xf] 0
          %948 = vst [vmem:[%s928 + $0x4c] sm:$0xf] 0
          %949 = vst [vmem:[%s928 + $0x50] sm:$0xf] 0
          %950 = vst [vmem:[%s928 + $0x54] sm:$0xf] 0
          %951 = vst [vmem:[%s928 + $0x58] sm:$0xf] 0
          %952 = vst [vmem:[%s928 + $0x5c] sm:$0xf] 0
          %953 = vst [vmem:[%s928 + $0x60] sm:$0xf] 0
          %954 = vst [vmem:[%s928 + $0x64] sm:$0xf] 0
          %955 = vst [vmem:[%s928 + $0x68] sm:$0xf] 0
          %956 = vst [vmem:[%s928 + $0x6c] sm:$0xf] 0
          %957 = vst [vmem:[%s928 + $0x70] sm:$0xf] 0
          %958 = vst [vmem:[%s928 + $0x74] sm:$0xf] 0
          %959 = vst [vmem:[%s928 + $0x78] sm:$0xf] 0
          %960 = vst [vmem:[%s928 + $0x7c] sm:$0xf] 0
          %961 = vst [vmem:[%s928 + $0x80] sm:$0xf] 0
          %962 = vst [vmem:[%s928 + $0x84] sm:$0xf] 0
          %963 = vst [vmem:[%s928 + $0x88] sm:$0xf] 0
          %964 = vst [vmem:[%s928 + $0x8c] sm:$0xf] 0
          %965 = vst [vmem:[%s928 + $0x90] sm:$0xf] 0
          %966 = vst [vmem:[%s928 + $0x94] sm:$0xf] 0
          %967 = vst [vmem:[%s928 + $0x98] sm:$0xf] 0
          %968 = vst [vmem:[%s928 + $0x9c] sm:$0xf] 0
          %969 = vst [vmem:[%s928 + $0xa0] sm:$0xf] 0
          %970 = vst [vmem:[%s928 + $0xa4] sm:$0xf] 0
          %971 = vst [vmem:[%s928 + $0xa8] sm:$0xf] 0
          %972 = vst [vmem:[%s928 + $0xac] sm:$0xf] 0
          %973 = vst [vmem:[%s928 + $0xb0] sm:$0xf] 0
          %974 = vst [vmem:[%s928 + $0xb4] sm:$0xf] 0
          %975 = vst [vmem:[%s928 + $0xb8] sm:$0xf] 0
          %976 = vst [vmem:[%s928 + $0xbc] sm:$0xf] 0
          %977 = vst [vmem:[%s928 + $0xc0] sm:$0xf] 0
          %978 = vst [vmem:[%s928 + $0xc4] sm:$0xf] 0
          %979 = vst [vmem:[%s928 + $0xc8] sm:$0xf] 0
          %980 = vst [vmem:[%s928 + $0xcc] sm:$0xf] 0
          %981 = vst [vmem:[%s928 + $0xd0] sm:$0xf] 0
          %982 = vst [vmem:[%s928 + $0xd4] sm:$0xf] 0
          %983 = vst [vmem:[%s928 + $0xd8] sm:$0xf] 0
          %984 = vst [vmem:[%s928 + $0xdc] sm:$0xf] 0
          %985 = vst [vmem:[%s928 + $0xe0] sm:$0xf] 0
          %986 = vst [vmem:[%s928 + $0xe4] sm:$0xf] 0
          %987 = vst [vmem:[%s928 + $0xe8] sm:$0xf] 0
          %988 = vst [vmem:[%s928 + $0xec] sm:$0xf] 0
          %989 = vst [vmem:[%s928 + $0xf0] sm:$0xf] 0
          %990 = vst [vmem:[%s928 + $0xf4] sm:$0xf] 0
          %991 = vst [vmem:[%s928 + $0xf8] sm:$0xf] 0
          %992 = vst [vmem:[%s928 + $0xfc] sm:$0xf] 0
          %993 = vst [vmem:[%s928 + $0x100] sm:$0xf] 0
          %994 = vst [vmem:[%s928 + $0x104] sm:$0xf] 0
          %995 = vst [vmem:[%s928 + $0x108] sm:$0xf] 0
          %996 = vst [vmem:[%s928 + $0x10c] sm:$0xf] 0
          %997 = vst [vmem:[%s928 + $0x110] sm:$0xf] 0
          %998 = vst [vmem:[%s928 + $0x114] sm:$0xf] 0
          %999 = vst [vmem:[%s928 + $0x118] sm:$0xf] 0
          %1000 = vst [vmem:[%s928 + $0x11c] sm:$0xf] 0
          %1001 = vst [vmem:[%s928 + $0x120] sm:$0xf] 0
          %1002 = vst [vmem:[%s928 + $0x124] sm:$0xf] 0
          %1003 = vst [vmem:[%s928 + $0x128] sm:$0xf] 0
          %1004 = vst [vmem:[%s928 + $0x12c] sm:$0xf] 0
          %1005 = vst [vmem:[%s928 + $0x130] sm:$0xf] 0
          %1006 = vst [vmem:[%s928 + $0x134] sm:$0xf] 0
          %1007 = vst [vmem:[%s928 + $0x138] sm:$0xf] 0
          %1008 = vst [vmem:[%s928 + $0x13c] sm:$0xf] 0
          %1009 = vst [vmem:[%s928 + $0x140] sm:$0xf] 0
          %1010 = vst [vmem:[%s928 + $0x144] sm:$0xf] 0
          %1011 = vst [vmem:[%s928 + $0x148] sm:$0xf] 0
          %1012 = vst [vmem:[%s928 + $0x14c] sm:$0xf] 0
          %1013 = vst [vmem:[%s928 + $0x150] sm:$0xf] 0
          %1014 = vst [vmem:[%s928 + $0x154] sm:$0xf] 0
          %1015 = vst [vmem:[%s928 + $0x158] sm:$0xf] 0
          %1016 = vst [vmem:[%s928 + $0x15c] sm:$0xf] 0
          %1017 = vst [vmem:[%s928 + $0x160] sm:$0xf] 0
          %1018 = vst [vmem:[%s928 + $0x164] sm:$0xf] 0
          %1019 = vst [vmem:[%s928 + $0x168] sm:$0xf] 0
          %1020 = vst [vmem:[%s928 + $0x16c] sm:$0xf] 0
          %1021 = vst [vmem:[%s928 + $0x170] sm:$0xf] 0
          %1022 = vst [vmem:[%s928 + $0x174] sm:$0xf] 0
          %1023 = vst [vmem:[%s928 + $0x178] sm:$0xf] 0
          %1024 = vst [vmem:[%s928 + $0x17c] sm:$0xf] 0
          %1025 = vst [vmem:[%s928 + $0x180] sm:$0xf] 0
          %1026 = vst [vmem:[%s928 + $0x184] sm:$0xf] 0
          %1027 = vst [vmem:[%s928 + $0x188] sm:$0xf] 0
          %1028 = vst [vmem:[%s928 + $0x18c] sm:$0xf] 0
          %1029 = vst [vmem:[%s928 + $0x190] sm:$0xf] 0
          %1030 = vst [vmem:[%s928 + $0x194] sm:$0xf] 0
          %1031 = vst [vmem:[%s928 + $0x198] sm:$0xf] 0
          %1032 = vst [vmem:[%s928 + $0x19c] sm:$0xf] 0
          %1033 = vst [vmem:[%s928 + $0x1a0] sm:$0xf] 0
          %1034 = vst [vmem:[%s928 + $0x1a4] sm:$0xf] 0
          %1035 = vst [vmem:[%s928 + $0x1a8] sm:$0xf] 0
          %1036 = vst [vmem:[%s928 + $0x1ac] sm:$0xf] 0
          %1037 = vst [vmem:[%s928 + $0x1b0] sm:$0xf] 0
          %1038 = vst [vmem:[%s928 + $0x1b4] sm:$0xf] 0
          %1039 = vst [vmem:[%s928 + $0x1b8] sm:$0xf] 0
          %1040 = vst [vmem:[%s928 + $0x1bc] sm:$0xf] 0
          %1041 = vst [vmem:[%s928 + $0x1c0] sm:$0xf] 0
          %1042 = vst [vmem:[%s928 + $0x1c4] sm:$0xf] 0
          %1043 = vst [vmem:[%s928 + $0x1c8] sm:$0xf] 0
          %1044 = vst [vmem:[%s928 + $0x1cc] sm:$0xf] 0
          %1045 = vst [vmem:[%s928 + $0x1d0] sm:$0xf] 0
          %1046 = vst [vmem:[%s928 + $0x1d4] sm:$0xf] 0
          %1047 = vst [vmem:[%s928 + $0x1d8] sm:$0xf] 0
          %1048 = vst [vmem:[%s928 + $0x1dc] sm:$0xf] 0
          %1049 = vst [vmem:[%s928 + $0x1e0] sm:$0xf] 0
          %1050 = vst [vmem:[%s928 + $0x1e4] sm:$0xf] 0
          %1051 = vst [vmem:[%s928 + $0x1e8] sm:$0xf] 0
          %1052 = vst [vmem:[%s928 + $0x1ec] sm:$0xf] 0
          %1053 = vst [vmem:[%s928 + $0x1f0] sm:$0xf] 0
          %1054 = vst [vmem:[%s928 + $0x1f4] sm:$0xf] 0
          %1055 = vst [vmem:[%s928 + $0x1f8] sm:$0xf] 0
          %1056 = vst [vmem:[%s928 + $0x1fc] sm:$0xf] 0
          %1057 = vst [vmem:[%s928 + $0x200] sm:$0xf] 0
          %1058 = vst [vmem:[%s928 + $0x204] sm:$0xf] 0
          %1059 = vst [vmem:[%s928 + $0x208] sm:$0xf] 0
          %1060 = vst [vmem:[%s928 + $0x20c] sm:$0xf] 0
          %1061 = vst [vmem:[%s928 + $0x210] sm:$0xf] 0
          %1062 = vst [vmem:[%s928 + $0x214] sm:$0xf] 0
          %1063 = vst [vmem:[%s928 + $0x218] sm:$0xf] 0
          %1064 = vst [vmem:[%s928 + $0x21c] sm:$0xf] 0
          %1065 = vst [vmem:[%s928 + $0x220] sm:$0xf] 0
          %1066 = vst [vmem:[%s928 + $0x224] sm:$0xf] 0
          %1067 = vst [vmem:[%s928 + $0x228] sm:$0xf] 0
          %1068 = vst [vmem:[%s928 + $0x22c] sm:$0xf] 0
          %1069 = vst [vmem:[%s928 + $0x230] sm:$0xf] 0
          %1070 = vst [vmem:[%s928 + $0x234] sm:$0xf] 0
          %1071 = vst [vmem:[%s928 + $0x238] sm:$0xf] 0
          %1072 = vst [vmem:[%s928 + $0x23c] sm:$0xf] 0
          %1073 = vst [vmem:[%s928 + $0x240] sm:$0xf] 0
          %1074 = vst [vmem:[%s928 + $0x244] sm:$0xf] 0
          %1075 = vst [vmem:[%s928 + $0x248] sm:$0xf] 0
          %1076 = vst [vmem:[%s928 + $0x24c] sm:$0xf] 0
          %1077 = vst [vmem:[%s928 + $0x250] sm:$0xf] 0
          %1078 = vst [vmem:[%s928 + $0x254] sm:$0xf] 0
          %1079 = vst [vmem:[%s928 + $0x258] sm:$0xf] 0
          %1080 = vst [vmem:[%s928 + $0x25c] sm:$0xf] 0
          %1081 = vst [vmem:[%s928 + $0x260] sm:$0xf] 0
          %1082 = vst [vmem:[%s928 + $0x264] sm:$0xf] 0
          %1083 = vst [vmem:[%s928 + $0x268] sm:$0xf] 0
          %1084 = vst [vmem:[%s928 + $0x26c] sm:$0xf] 0
          %1085 = vst [vmem:[%s928 + $0x270] sm:$0xf] 0
          %1086 = vst [vmem:[%s928 + $0x274] sm:$0xf] 0
          %1087 = vst [vmem:[%s928 + $0x278] sm:$0xf] 0
          %1088 = vst [vmem:[%s928 + $0x27c] sm:$0xf] 0
          %1089 = vst [vmem:[%s928 + $0x280] sm:$0xf] 0
          %1090 = vst [vmem:[%s928 + $0x284] sm:$0xf] 0
          %1091 = vst [vmem:[%s928 + $0x288] sm:$0xf] 0
          %1092 = vst [vmem:[%s928 + $0x28c] sm:$0xf] 0
          %1093 = vst [vmem:[%s928 + $0x290] sm:$0xf] 0
          %1094 = vst [vmem:[%s928 + $0x294] sm:$0xf] 0
          %1095 = vst [vmem:[%s928 + $0x298] sm:$0xf] 0
          %1096 = vst [vmem:[%s928 + $0x29c] sm:$0xf] 0
          %1097 = vst [vmem:[%s928 + $0x2a0] sm:$0xf] 0
          %1098 = vst [vmem:[%s928 + $0x2a4] sm:$0xf] 0
          %1099 = vst [vmem:[%s928 + $0x2a8] sm:$0xf] 0
          %1100 = vst [vmem:[%s928 + $0x2ac] sm:$0xf] 0
          %1101 = vst [vmem:[%s928 + $0x2b0] sm:$0xf] 0
          %1102 = vst [vmem:[%s928 + $0x2b4] sm:$0xf] 0
          %1103 = vst [vmem:[%s928 + $0x2b8] sm:$0xf] 0
          %1104 = vst [vmem:[%s928 + $0x2bc] sm:$0xf] 0
          %1105 = vst [vmem:[%s928 + $0x2c0] sm:$0xf] 0
          %1106 = vst [vmem:[%s928 + $0x2c4] sm:$0xf] 0
          %1107 = vst [vmem:[%s928 + $0x2c8] sm:$0xf] 0
          %1108 = vst [vmem:[%s928 + $0x2cc] sm:$0xf] 0
          %1109 = vst [vmem:[%s928 + $0x2d0] sm:$0xf] 0
          %1110 = vst [vmem:[%s928 + $0x2d4] sm:$0xf] 0
          %1111 = vst [vmem:[%s928 + $0x2d8] sm:$0xf] 0
          %1112 = vst [vmem:[%s928 + $0x2dc] sm:$0xf] 0
          %1113 = vst [vmem:[%s928 + $0x2e0] sm:$0xf] 0
          %1114 = vst [vmem:[%s928 + $0x2e4] sm:$0xf] 0
          %1115 = vst [vmem:[%s928 + $0x2e8] sm:$0xf] 0
          %1116 = vst [vmem:[%s928 + $0x2ec] sm:$0xf] 0
          %1117 = vst [vmem:[%s928 + $0x2f0] sm:$0xf] 0
          %1118 = vst [vmem:[%s928 + $0x2f4] sm:$0xf] 0
          %1119 = vst [vmem:[%s928 + $0x2f8] sm:$0xf] 0
          %1120 = vst [vmem:[%s928 + $0x2fc] sm:$0xf] 0
          %s1121 = scalar_lea.vmem [#allocation2], 768
          %1122 = vst [vmem:[%s1121] sm:$0xf] 0
          %1123 = vst [vmem:[%s1121 + $0x4] sm:$0xf] 0
          %1124 = vst [vmem:[%s1121 + $0x8] sm:$0xf] 0
          %1125 = vst [vmem:[%s1121 + $0x20] sm:$0xf] 0
          %1126 = vst [vmem:[%s1121 + $0x24] sm:$0xf] 0
          %1127 = vst [vmem:[%s1121 + $0x28] sm:$0xf] 0
          %1128 = vst [vmem:[%s1121 + $0x40] sm:$0xf] 0
          %1129 = vst [vmem:[%s1121 + $0x44] sm:$0xf] 0
          %1130 = vst [vmem:[%s1121 + $0x48] sm:$0xf] 0
          %1131 = vst [vmem:[%s1121 + $0x60] sm:$0xf] 0
          %1132 = vst [vmem:[%s1121 + $0x64] sm:$0xf] 0
          %1133 = vst [vmem:[%s1121 + $0x68] sm:$0xf] 0
          %1134 = vst [vmem:[%s1121 + $0x80] sm:$0xf] 0
          %1135 = vst [vmem:[%s1121 + $0x84] sm:$0xf] 0
          %1136 = vst [vmem:[%s1121 + $0x88] sm:$0xf] 0
          %1137 = vst [vmem:[%s1121 + $0xa0] sm:$0xf] 0
          %1138 = vst [vmem:[%s1121 + $0xa4] sm:$0xf] 0
          %1139 = vst [vmem:[%s1121 + $0xa8] sm:$0xf] 0
          %1140 = vst [vmem:[%s1121 + $0xc0] sm:$0xf] 0
          %1141 = vst [vmem:[%s1121 + $0xc4] sm:$0xf] 0
          %1142 = vst [vmem:[%s1121 + $0xc8] sm:$0xf] 0
          %1143 = vst [vmem:[%s1121 + $0xe0] sm:$0xf] 0
          %1144 = vst [vmem:[%s1121 + $0xe4] sm:$0xf] 0
          %1145 = vst [vmem:[%s1121 + $0xe8] sm:$0xf] 0
          %1146 = vst [vmem:[%s1121 + $0x100] sm:$0xf] 0
          %1147 = vst [vmem:[%s1121 + $0x104] sm:$0xf] 0
          %1148 = vst [vmem:[%s1121 + $0x108] sm:$0xf] 0
          %1149 = vst [vmem:[%s1121 + $0x120] sm:$0xf] 0
          %1150 = vst [vmem:[%s1121 + $0x124] sm:$0xf] 0
          %1151 = vst [vmem:[%s1121 + $0x128] sm:$0xf] 0
          %1152 = vst [vmem:[%s1121 + $0x140] sm:$0xf] 0
          %1153 = vst [vmem:[%s1121 + $0x144] sm:$0xf] 0
          %1154 = vst [vmem:[%s1121 + $0x148] sm:$0xf] 0
          %1155 = vst [vmem:[%s1121 + $0x160] sm:$0xf] 0
          %1156 = vst [vmem:[%s1121 + $0x164] sm:$0xf] 0
          %1157 = vst [vmem:[%s1121 + $0x168] sm:$0xf] 0
          %1158 = vst [vmem:[%s1121 + $0x180] sm:$0xf] 0
          %1159 = vst [vmem:[%s1121 + $0x184] sm:$0xf] 0
          %1160 = vst [vmem:[%s1121 + $0x188] sm:$0xf] 0
          %1161 = vst [vmem:[%s1121 + $0x1a0] sm:$0xf] 0
          %1162 = vst [vmem:[%s1121 + $0x1a4] sm:$0xf] 0
          %1163 = vst [vmem:[%s1121 + $0x1a8] sm:$0xf] 0
          %1164 = vst [vmem:[%s1121 + $0x1c0] sm:$0xf] 0
          %1165 = vst [vmem:[%s1121 + $0x1c4] sm:$0xf] 0
          %1166 = vst [vmem:[%s1121 + $0x1c8] sm:$0xf] 0
          %1167 = vst [vmem:[%s1121 + $0x1e0] sm:$0xf] 0
          %1168 = vst [vmem:[%s1121 + $0x1e4] sm:$0xf] 0
          %1169 = vst [vmem:[%s1121 + $0x1e8] sm:$0xf] 0
          %1170 = vst [vmem:[%s1121 + $0x14] sm:$0xf] 0
          %1171 = vst [vmem:[%s1121 + $0x18] sm:$0xf] 0
          %1172 = vst [vmem:[%s1121 + $0x1c] sm:$0xf] 0
          %1173 = vst [vmem:[%s1121 + $0x34] sm:$0xf] 0
          %1174 = vst [vmem:[%s1121 + $0x38] sm:$0xf] 0
          %1175 = vst [vmem:[%s1121 + $0x3c] sm:$0xf] 0
          %1176 = vst [vmem:[%s1121 + $0x54] sm:$0xf] 0
          %1177 = vst [vmem:[%s1121 + $0x58] sm:$0xf] 0
          %1178 = vst [vmem:[%s1121 + $0x5c] sm:$0xf] 0
          %1179 = vst [vmem:[%s1121 + $0x74] sm:$0xf] 0
          %1180 = vst [vmem:[%s1121 + $0x78] sm:$0xf] 0
          %1181 = vst [vmem:[%s1121 + $0x7c] sm:$0xf] 0
          %1182 = vst [vmem:[%s1121 + $0x94] sm:$0xf] 0
          %1183 = vst [vmem:[%s1121 + $0x98] sm:$0xf] 0
          %1184 = vst [vmem:[%s1121 + $0x9c] sm:$0xf] 0
          %1185 = vst [vmem:[%s1121 + $0xb4] sm:$0xf] 0
          %1186 = vst [vmem:[%s1121 + $0xb8] sm:$0xf] 0
          %1187 = vst [vmem:[%s1121 + $0xbc] sm:$0xf] 0
          %1188 = vst [vmem:[%s1121 + $0xd4] sm:$0xf] 0
          %1189 = vst [vmem:[%s1121 + $0xd8] sm:$0xf] 0
          %1190 = vst [vmem:[%s1121 + $0xdc] sm:$0xf] 0
          %1191 = vst [vmem:[%s1121 + $0xf4] sm:$0xf] 0
          %1192 = vst [vmem:[%s1121 + $0xf8] sm:$0xf] 0
          %1193 = vst [vmem:[%s1121 + $0xfc] sm:$0xf] 0
          %1194 = vst [vmem:[%s1121 + $0x114] sm:$0xf] 0
          %1195 = vst [vmem:[%s1121 + $0x118] sm:$0xf] 0
          %1196 = vst [vmem:[%s1121 + $0x11c] sm:$0xf] 0
          %1197 = vst [vmem:[%s1121 + $0x134] sm:$0xf] 0
          %1198 = vst [vmem:[%s1121 + $0x138] sm:$0xf] 0
          %1199 = vst [vmem:[%s1121 + $0x13c] sm:$0xf] 0
          %1200 = vst [vmem:[%s1121 + $0x154] sm:$0xf] 0
          %1201 = vst [vmem:[%s1121 + $0x158] sm:$0xf] 0
          %1202 = vst [vmem:[%s1121 + $0x15c] sm:$0xf] 0
          %1203 = vst [vmem:[%s1121 + $0x174] sm:$0xf] 0
          %1204 = vst [vmem:[%s1121 + $0x178] sm:$0xf] 0
          %1205 = vst [vmem:[%s1121 + $0x17c] sm:$0xf] 0
          %1206 = vst [vmem:[%s1121 + $0x194] sm:$0xf] 0
          %1207 = vst [vmem:[%s1121 + $0x198] sm:$0xf] 0
          %1208 = vst [vmem:[%s1121 + $0x19c] sm:$0xf] 0
          %1209 = vst [vmem:[%s1121 + $0x1b4] sm:$0xf] 0
          %1210 = vst [vmem:[%s1121 + $0x1b8] sm:$0xf] 0
          %1211 = vst [vmem:[%s1121 + $0x1bc] sm:$0xf] 0
          %1212 = vst [vmem:[%s1121 + $0x1d4] sm:$0xf] 0
          %1213 = vst [vmem:[%s1121 + $0x1d8] sm:$0xf] 0
          %1214 = vst [vmem:[%s1121 + $0x1dc] sm:$0xf] 0
          %1215 = vst [vmem:[%s1121 + $0x1f4] sm:$0xf] 0
          %1216 = vst [vmem:[%s1121 + $0x1f8] sm:$0xf] 0
          %1217 = vst [vmem:[%s1121 + $0x1fc] sm:$0xf] 0
        $region88: #{aspp_forward.1} parent=51 // pred_fallthru
          _
        %v1218 = vld [vmem:[%s539] sm:$0xf]
        %v1219 = vld [vmem:[%s539 + $0x4] sm:$0xf]
        %v1220 = vld [vmem:[%s539 + $0x8] sm:$0xf]
        %v1221 = vld [vmem:[%s539 + $0xc] sm:$0xf]
        %v1222 = vld [vmem:[%s539 + $0x10] sm:$0xf]
        %v1223 = vld [vmem:[%s539 + $0x14] sm:$0xf]
        %v1224 = vld [vmem:[%s539 + $0x18] sm:$0xf]
        %v1225 = vld [vmem:[%s539 + $0x1c] sm:$0xf]
        %v1226 = vld [vmem:[%s539 + $0x20] sm:$0xf]
        %v1227 = vld [vmem:[%s539 + $0x24] sm:$0xf]
        %v1228 = vld [vmem:[%s539 + $0x28] sm:$0xf]
        %v1229 = vld [vmem:[%s539 + $0x2c] sm:$0xf]
        %v1230 = vld [vmem:[%s539 + $0x30] sm:$0xf]
        %v1231 = vld [vmem:[%s539 + $0x34] sm:$0xf]
        %v1232 = vld [vmem:[%s539 + $0x38] sm:$0xf]
        %v1233 = vld [vmem:[%s539 + $0x3c] sm:$0xf]
        %v1234 = vld [vmem:[%s539 + $0x40] sm:$0xf]
        %v1235 = vld [vmem:[%s539 + $0x44] sm:$0xf]
        %v1236 = vld [vmem:[%s539 + $0x48] sm:$0xf]
        %v1237 = vld [vmem:[%s539 + $0x4c] sm:$0xf]
        %v1238 = vld [vmem:[%s539 + $0x50] sm:$0xf]
        %v1239 = vld [vmem:[%s539 + $0x54] sm:$0xf]
        %v1240 = vld [vmem:[%s539 + $0x58] sm:$0xf]
        %v1241 = vld [vmem:[%s539 + $0x5c] sm:$0xf]
        %v1242 = vld [vmem:[%s539 + $0x60] sm:$0xf]
        %v1243 = vld [vmem:[%s539 + $0x64] sm:$0xf]
        %v1244 = vld [vmem:[%s539 + $0x68] sm:$0xf]
        %v1245 = vld [vmem:[%s539 + $0x6c] sm:$0xf]
        %v1246 = vld [vmem:[%s539 + $0x70] sm:$0xf]
        %v1247 = vld [vmem:[%s539 + $0x74] sm:$0xf]
        %v1248 = vld [vmem:[%s539 + $0x78] sm:$0xf]
        %v1249 = vld [vmem:[%s539 + $0x7c] sm:$0xf]
        %s1250 = scalar_lea.vmem [#allocation2], 768
        %1251 = vst [vmem:[%s1250 + $0xc] sm:$0xf] %v1218
        %1252 = vst [vmem:[%s1250 + $0x10] sm:$0xf] %v1219
        %1253 = vst [vmem:[%s1250 + $0x2c] sm:$0xf] %v1220
        %1254 = vst [vmem:[%s1250 + $0x30] sm:$0xf] %v1221
        %1255 = vst [vmem:[%s1250 + $0x4c] sm:$0xf] %v1222
        %1256 = vst [vmem:[%s1250 + $0x50] sm:$0xf] %v1223
        %1257 = vst [vmem:[%s1250 + $0x6c] sm:$0xf] %v1224
        %1258 = vst [vmem:[%s1250 + $0x70] sm:$0xf] %v1225
        %1259 = vst [vmem:[%s1250 + $0x8c] sm:$0xf] %v1226
        %1260 = vst [vmem:[%s1250 + $0x90] sm:$0xf] %v1227
        %1261 = vst [vmem:[%s1250 + $0xac] sm:$0xf] %v1228
        %1262 = vst [vmem:[%s1250 + $0xb0] sm:$0xf] %v1229
        %1263 = vst [vmem:[%s1250 + $0xcc] sm:$0xf] %v1230
        %1264 = vst [vmem:[%s1250 + $0xd0] sm:$0xf] %v1231
        %1265 = vst [vmem:[%s1250 + $0xec] sm:$0xf] %v1232
        %1266 = vst [vmem:[%s1250 + $0xf0] sm:$0xf] %v1233
        %1267 = vst [vmem:[%s1250 + $0x10c] sm:$0xf] %v1234
        %1268 = vst [vmem:[%s1250 + $0x110] sm:$0xf] %v1235
        %1269 = vst [vmem:[%s1250 + $0x12c] sm:$0xf] %v1236
        %1270 = vst [vmem:[%s1250 + $0x130] sm:$0xf] %v1237
        %1271 = vst [vmem:[%s1250 + $0x14c] sm:$0xf] %v1238
        %1272 = vst [vmem:[%s1250 + $0x150] sm:$0xf] %v1239
        %1273 = vst [vmem:[%s1250 + $0x16c] sm:$0xf] %v1240
        %1274 = vst [vmem:[%s1250 + $0x170] sm:$0xf] %v1241
        %1275 = vst [vmem:[%s1250 + $0x18c] sm:$0xf] %v1242
        %1276 = vst [vmem:[%s1250 + $0x190] sm:$0xf] %v1243
        %1277 = vst [vmem:[%s1250 + $0x1ac] sm:$0xf] %v1244
        %1278 = vst [vmem:[%s1250 + $0x1b0] sm:$0xf] %v1245
        %1279 = vst [vmem:[%s1250 + $0x1cc] sm:$0xf] %v1246
        %1280 = vst [vmem:[%s1250 + $0x1d0] sm:$0xf] %v1247
        %1281 = vst [vmem:[%s1250 + $0x1ec] sm:$0xf] %v1248
        %1282 = vst [vmem:[%s1250 + $0x1f0] sm:$0xf] %v1249
        %v1315 = vunpack.c.l.b16 %v1218
        %v1316 = vunpack.c.l.b16 %v1219
        %v1317 = vunpack.c.l.b16 %v1220
        %v1318 = vunpack.c.l.b16 %v1221
        %v1319 = vunpack.c.l.b16 %v1222
        %v1320 = vunpack.c.l.b16 %v1223
        %v1321 = vunpack.c.l.b16 %v1224
        %v1322 = vunpack.c.l.b16 %v1225
        %v1323 = vunpack.c.l.b16 %v1226
        %v1324 = vunpack.c.l.b16 %v1227
        %v1325 = vunpack.c.l.b16 %v1228
        %v1326 = vunpack.c.l.b16 %v1229
        %v1327 = vunpack.c.l.b16 %v1230
        %v1328 = vunpack.c.l.b16 %v1231
        %v1329 = vunpack.c.l.b16 %v1232
        %v1330 = vunpack.c.l.b16 %v1233
        %v1331 = vunpack.c.l.b16 %v1234
        %v1332 = vunpack.c.l.b16 %v1235
        %v1333 = vunpack.c.l.b16 %v1236
        %v1334 = vunpack.c.l.b16 %v1237
        %v1335 = vunpack.c.l.b16 %v1238
        %v1336 = vunpack.c.l.b16 %v1239
        %v1337 = vunpack.c.l.b16 %v1240
        %v1338 = vunpack.c.l.b16 %v1241
        %v1339 = vunpack.c.l.b16 %v1242
        %v1340 = vunpack.c.l.b16 %v1243
        %v1341 = vunpack.c.l.b16 %v1244
        %v1342 = vunpack.c.l.b16 %v1245
        %v1343 = vunpack.c.l.b16 %v1246
        %v1344 = vunpack.c.l.b16 %v1247
        %v1345 = vunpack.c.l.b16 %v1248
        %v1346 = vunpack.c.l.b16 %v1249
        %v1347 = vpack.c.b16 %v1316, %v1315
        %v1348 = vpack.c.b16 %v1318, %v1317
        %v1349 = vpack.c.b16 %v1320, %v1319
        %v1350 = vpack.c.b16 %v1322, %v1321
        %v1351 = vpack.c.b16 %v1324, %v1323
        %v1352 = vpack.c.b16 %v1326, %v1325
        %v1353 = vpack.c.b16 %v1328, %v1327
        %v1354 = vpack.c.b16 %v1330, %v1329
        %v1355 = vpack.c.b16 %v1332, %v1331
        %v1356 = vpack.c.b16 %v1334, %v1333
        %v1357 = vpack.c.b16 %v1336, %v1335
        %v1358 = vpack.c.b16 %v1338, %v1337
        %v1359 = vpack.c.b16 %v1340, %v1339
        %v1360 = vpack.c.b16 %v1342, %v1341
        %v1361 = vpack.c.b16 %v1344, %v1343
        %v1362 = vpack.c.b16 %v1346, %v1345
        %1379 = vmatpush.bf16.msra.mxu0 %v1354
        %1380 = vmatpush.bf16.msra.mxu0 %v1353
        %1381 = vmatpush.bf16.msra.mxu0 %v1352
        %1382 = vmatpush.bf16.msra.mxu0 %v1351
        %1383 = vmatpush.bf16.msra.mxu0 %v1350
        %1384 = vmatpush.bf16.msra.mxu0 %v1349
        %1385 = vmatpush.bf16.msra.mxu0 %v1348
        %1386 = vmatpush.bf16.msra.mxu0 %v1347
        %1387 = vmatmul.bf16.gmra.mxu0 1065369472
        %v1388 = vpop.f32.mrf.mxu0
        %v1389 = vadd.f32 0.0, %v1388
        %v1390 = vpop.f32.mrf.mxu0
        %1391 = vdwg.mxu0
        %1392 = vmatpush.bf16.msra.mxu0 %v1362
        %1393 = vmatpush.bf16.msra.mxu0 %v1361
        %1394 = vmatpush.bf16.msra.mxu0 %v1360
        %1395 = vmatpush.bf16.msra.mxu0 %v1359
        %1396 = vmatpush.bf16.msra.mxu0 %v1358
        %1397 = vmatpush.bf16.msra.mxu0 %v1357
        %1398 = vmatpush.bf16.msra.mxu0 %v1356
        %1399 = vmatpush.bf16.msra.mxu0 %v1355
        %1400 = vmatmul.bf16.gmra.mxu0 1065369472
        %v1401 = vpop.f32.mrf.mxu0
        %v1402 = vadd.f32 %v1389, %v1401
        %v1403 = vpop.f32.mrf.mxu0
        %1404 = vdwg.mxu0
        %v1405 = vld [vmem:[#allocation4] sm:$0x1]
        %v1406 = vld [vmem:[%s589] sm:$0xf]
        %v1407 = vld [vmem:[%s589 + $0x4] sm:$0xf]
        %v1408 = vld [vmem:[%s589 + $0x8] sm:$0xf]
        %v1409 = vld [vmem:[%s589 + $0xc] sm:$0xf]
        %v1410 = vld [vmem:[%s589 + $0x10] sm:$0xf]
        %v1411 = vld [vmem:[%s589 + $0x14] sm:$0xf]
        %v1412 = vld [vmem:[%s589 + $0x18] sm:$0xf]
        %v1413 = vld [vmem:[%s589 + $0x1c] sm:$0xf]
        %v1414 = vld [vmem:[%s589 + $0x20] sm:$0xf]
        %v1415 = vld [vmem:[%s589 + $0x24] sm:$0xf]
        %v1416 = vld [vmem:[%s589 + $0x28] sm:$0xf]
        %v1417 = vld [vmem:[%s589 + $0x2c] sm:$0xf]
        %v1418 = vld [vmem:[%s589 + $0x30] sm:$0xf]
        %v1419 = vld [vmem:[%s589 + $0x34] sm:$0xf]
        %v1420 = vld [vmem:[%s589 + $0x38] sm:$0xf]
        %v1421 = vld [vmem:[%s589 + $0x3c] sm:$0xf]
        %v1422 = vunpack.c.l.bf16 %v1406
        %v1423 = vunpack.c.l.bf16 %v1407
        %v1424 = vunpack.c.l.bf16 %v1408
        %v1425 = vunpack.c.l.bf16 %v1409
        %v1426 = vunpack.c.l.bf16 %v1410
        %v1427 = vunpack.c.l.bf16 %v1411
        %v1428 = vunpack.c.l.bf16 %v1412
        %v1429 = vunpack.c.l.bf16 %v1413
        %v1430 = vunpack.c.l.bf16 %v1414
        %v1431 = vunpack.c.l.bf16 %v1415
        %v1432 = vunpack.c.l.bf16 %v1416
        %v1433 = vunpack.c.l.bf16 %v1417
        %v1434 = vunpack.c.l.bf16 %v1418
        %v1435 = vunpack.c.l.bf16 %v1419
        %v1436 = vunpack.c.l.bf16 %v1420
        %v1437 = vunpack.c.l.bf16 %v1421
        %1438 = vmatpush.msra.mxu0 %v1437
        %1439 = vmatpush.msra.mxu0 %v1436
        %1440 = vmatpush.msra.mxu0 %v1435
        %1441 = vmatpush.msra.mxu0 %v1434
        %1442 = vmatpush.msra.mxu0 %v1433
        %1443 = vmatpush.msra.mxu0 %v1432
        %1444 = vmatpush.msra.mxu0 %v1431
        %1445 = vmatpush.msra.mxu0 %v1430
        %1446 = vmatpush.msra.mxu0 %v1429
        %1447 = vmatpush.msra.mxu0 %v1428
        %1448 = vmatpush.msra.mxu0 %v1427
        %1449 = vmatpush.msra.mxu0 %v1426
        %1450 = vmatpush.msra.mxu0 %v1425
        %1451 = vmatpush.msra.mxu0 %v1424
        %1452 = vmatpush.msra.mxu0 %v1423
        %1453 = vmatpush.msra.mxu0 %v1422
        %1454 = vmatmul.f32.gmra.mxu0 %v1402
        %v1455 = vpop.f32.mrf.mxu0
        %v1456 = vadd.f32 0.0, %v1455
        %1457 = vdwg.mxu0
        %v1458 = vadd.f32 %v1405, %v1456
        %1459 = vst [vmem:[#allocation4] sm:$0x1] %v1458
        %s1460 = sadd.s32 %s666, 24
        %s1461 = smul.u32 %s1460, 8
        %s1462 = smul.addr %s1461, 4
        %s1463 = scalar_lea.vmem [#allocation2], %s1462
        %v1464 = vld [vmem:[%s1463 + $0xc] sm:$0xf]
        %v1465 = vld [vmem:[%s1463 + $0x10] sm:$0xf]
        %v1466 = vld [vmem:[%s1463 + $0x2c] sm:$0xf]
        %v1467 = vld [vmem:[%s1463 + $0x30] sm:$0xf]
        %v1468 = vld [vmem:[%s1463 + $0x4c] sm:$0xf]
        %v1469 = vld [vmem:[%s1463 + $0x50] sm:$0xf]
        %v1470 = vld [vmem:[%s1463 + $0x6c] sm:$0xf]
        %v1471 = vld [vmem:[%s1463 + $0x70] sm:$0xf]
        %v1472 = vld [vmem:[%s1463 + $0x8c] sm:$0xf]
        %v1473 = vld [vmem:[%s1463 + $0x90] sm:$0xf]
        %v1474 = vld [vmem:[%s1463 + $0xac] sm:$0xf]
        %v1475 = vld [vmem:[%s1463 + $0xb0] sm:$0xf]
        %v1476 = vld [vmem:[%s1463 + $0xcc] sm:$0xf]
        %v1477 = vld [vmem:[%s1463 + $0xd0] sm:$0xf]
        %v1478 = vld [vmem:[%s1463 + $0xec] sm:$0xf]
        %v1479 = vld [vmem:[%s1463 + $0xf0] sm:$0xf]
        %v1480 = vld [vmem:[#allocation3] sm:$0xff]
        %v1481 = vld [vmem:[#allocation3 + $0x20] sm:$0xff]
        %v1482 = vld [vmem:[#allocation3 + $0x40] sm:$0xff]
        %v1483 = vld [vmem:[#allocation3 + $0x60] sm:$0xff]
        %v1484 = vld [vmem:[#allocation3 + $0x80] sm:$0xff]
        %v1485 = vld [vmem:[#allocation3 + $0xa0] sm:$0xff]
        %v1486 = vld [vmem:[#allocation3 + $0xc0] sm:$0xff]
        %v1487 = vld [vmem:[#allocation3 + $0xe0] sm:$0xff]
        %v1488 = vld [vmem:[#allocation3 + $0x100] sm:$0xff]
        %v1489 = vld [vmem:[#allocation3 + $0x120] sm:$0xff]
        %v1490 = vld [vmem:[#allocation3 + $0x140] sm:$0xff]
        %v1491 = vld [vmem:[#allocation3 + $0x160] sm:$0xff]
        %v1492 = vld [vmem:[#allocation3 + $0x180] sm:$0xff]
        %v1493 = vld [vmem:[#allocation3 + $0x1a0] sm:$0xff]
        %v1494 = vld [vmem:[#allocation3 + $0x1c0] sm:$0xff]
        %v1495 = vld [vmem:[#allocation3 + $0x1e0] sm:$0xff]
        %v1496 = vld [vmem:[%s549] sm:$0xf]
        %v1497 = vld [vmem:[%s549 + $0x4] sm:$0xf]
        %v1498 = vld [vmem:[%s549 + $0x8] sm:$0xf]
        %v1499 = vld [vmem:[%s549 + $0xc] sm:$0xf]
        %v1500 = vld [vmem:[%s549 + $0x10] sm:$0xf]
        %v1501 = vld [vmem:[%s549 + $0x14] sm:$0xf]
        %v1502 = vld [vmem:[%s549 + $0x18] sm:$0xf]
        %v1503 = vld [vmem:[%s549 + $0x1c] sm:$0xf]
        %v1504 = vld [vmem:[%s549 + $0x20] sm:$0xf]
        %v1505 = vld [vmem:[%s549 + $0x24] sm:$0xf]
        %v1506 = vld [vmem:[%s549 + $0x28] sm:$0xf]
        %v1507 = vld [vmem:[%s549 + $0x2c] sm:$0xf]
        %v1508 = vld [vmem:[%s549 + $0x30] sm:$0xf]
        %v1509 = vld [vmem:[%s549 + $0x34] sm:$0xf]
        %v1510 = vld [vmem:[%s549 + $0x38] sm:$0xf]
        %v1511 = vld [vmem:[%s549 + $0x3c] sm:$0xf]
        %v1528 = vunpack.c.l.b16 %v1464
        %v1529 = vunpack.c.l.b16 %v1465
        %v1530 = vunpack.c.l.b16 %v1466
        %v1531 = vunpack.c.l.b16 %v1467
        %v1532 = vunpack.c.l.b16 %v1468
        %v1533 = vunpack.c.l.b16 %v1469
        %v1534 = vunpack.c.l.b16 %v1470
        %v1535 = vunpack.c.l.b16 %v1471
        %v1536 = vunpack.c.l.b16 %v1472
        %v1537 = vunpack.c.l.b16 %v1473
        %v1538 = vunpack.c.l.b16 %v1474
        %v1539 = vunpack.c.l.b16 %v1475
        %v1540 = vunpack.c.l.b16 %v1476
        %v1541 = vunpack.c.l.b16 %v1477
        %v1542 = vunpack.c.l.b16 %v1478
        %v1543 = vunpack.c.l.b16 %v1479
        %v1544 = vpack.c.b16 %v1529, %v1528
        %v1545 = vpack.c.b16 %v1531, %v1530
        %v1546 = vpack.c.b16 %v1533, %v1532
        %v1547 = vpack.c.b16 %v1535, %v1534
        %v1548 = vpack.c.b16 %v1537, %v1536
        %v1549 = vpack.c.b16 %v1539, %v1538
        %v1550 = vpack.c.b16 %v1541, %v1540
        %v1551 = vpack.c.b16 %v1543, %v1542
        %v1576 = vunpack.c.l.b16 %v1496
        %v1577 = vunpack.c.l.b16 %v1497
        %v1578 = vunpack.c.l.b16 %v1498
        %v1579 = vunpack.c.l.b16 %v1499
        %v1580 = vunpack.c.l.b16 %v1500
        %v1581 = vunpack.c.l.b16 %v1501
        %v1582 = vunpack.c.l.b16 %v1502
        %v1583 = vunpack.c.l.b16 %v1503
        %v1584 = vunpack.c.l.b16 %v1504
        %v1585 = vunpack.c.l.b16 %v1505
        %v1586 = vunpack.c.l.b16 %v1506
        %v1587 = vunpack.c.l.b16 %v1507
        %v1588 = vunpack.c.l.b16 %v1508
        %v1589 = vunpack.c.l.b16 %v1509
        %v1590 = vunpack.c.l.b16 %v1510
        %v1591 = vunpack.c.l.b16 %v1511
        %v1592 = vpack.c.b16 %v1577, %v1576
        %v1593 = vpack.c.b16 %v1579, %v1578
        %v1594 = vpack.c.b16 %v1581, %v1580
        %v1595 = vpack.c.b16 %v1583, %v1582
        %v1596 = vpack.c.b16 %v1585, %v1584
        %v1597 = vpack.c.b16 %v1587, %v1586
        %v1598 = vpack.c.b16 %v1589, %v1588
        %v1599 = vpack.c.b16 %v1591, %v1590
        %1608 = vmatpush.bf16.msra.mxu0 %v1599
        %1609 = vmatpush.bf16.msra.mxu0 %v1598
        %1610 = vmatpush.bf16.msra.mxu0 %v1597
        %1611 = vmatpush.bf16.msra.mxu0 %v1596
        %1612 = vmatpush.bf16.msra.mxu0 %v1595
        %1613 = vmatpush.bf16.msra.mxu0 %v1594
        %1614 = vmatpush.bf16.msra.mxu0 %v1593
        %1615 = vmatpush.bf16.msra.mxu0 %v1592
        %1616 = vmatmul.bf16.gmra.mxu0 %v1544
        %v1617 = vpop.f32.mrf.mxu0
        %v1618 = vadd.f32 0.0, %v1617
        %v1619 = vpop.f32.mrf.mxu0
        %v1620 = vadd.f32 0.0, %v1619
        %1621 = vmatmul.bf16.gmra.mxu0 %v1545
        %v1622 = vpop.f32.mrf.mxu0
        %v1623 = vadd.f32 0.0, %v1622
        %v1624 = vpop.f32.mrf.mxu0
        %v1625 = vadd.f32 0.0, %v1624
        %1626 = vmatmul.bf16.gmra.mxu0 %v1546
        %v1627 = vpop.f32.mrf.mxu0
        %v1628 = vadd.f32 0.0, %v1627
        %v1629 = vpop.f32.mrf.mxu0
        %v1630 = vadd.f32 0.0, %v1629
        %1631 = vmatmul.bf16.gmra.mxu0 %v1547
        %v1632 = vpop.f32.mrf.mxu0
        %v1633 = vadd.f32 0.0, %v1632
        %v1634 = vpop.f32.mrf.mxu0
        %v1635 = vadd.f32 0.0, %v1634
        %1636 = vmatmul.bf16.gmra.mxu0 %v1548
        %v1637 = vpop.f32.mrf.mxu0
        %v1638 = vadd.f32 0.0, %v1637
        %v1639 = vpop.f32.mrf.mxu0
        %v1640 = vadd.f32 0.0, %v1639
        %1641 = vmatmul.bf16.gmra.mxu0 %v1549
        %v1642 = vpop.f32.mrf.mxu0
        %v1643 = vadd.f32 0.0, %v1642
        %v1644 = vpop.f32.mrf.mxu0
        %v1645 = vadd.f32 0.0, %v1644
        %1646 = vmatmul.bf16.gmra.mxu0 %v1550
        %v1647 = vpop.f32.mrf.mxu0
        %v1648 = vadd.f32 0.0, %v1647
        %v1649 = vpop.f32.mrf.mxu0
        %v1650 = vadd.f32 0.0, %v1649
        %1651 = vmatmul.bf16.gmra.mxu0 %v1551
        %v1652 = vpop.f32.mrf.mxu0
        %v1653 = vadd.f32 0.0, %v1652
        %v1654 = vpop.f32.mrf.mxu0
        %v1655 = vadd.f32 0.0, %v1654
        %1656 = vdwg.mxu0
        %v1657 = vadd.f32 %v1480, %v1618
        %v1658 = vadd.f32 %v1481, %v1620
        %v1659 = vadd.f32 %v1482, %v1623
        %v1660 = vadd.f32 %v1483, %v1625
        %v1661 = vadd.f32 %v1484, %v1628
        %v1662 = vadd.f32 %v1485, %v1630
        %v1663 = vadd.f32 %v1486, %v1633
        %v1664 = vadd.f32 %v1487, %v1635
        %v1665 = vadd.f32 %v1488, %v1638
        %v1666 = vadd.f32 %v1489, %v1640
        %v1667 = vadd.f32 %v1490, %v1643
        %v1668 = vadd.f32 %v1491, %v1645
        %v1669 = vadd.f32 %v1492, %v1648
        %v1670 = vadd.f32 %v1493, %v1650
        %v1671 = vadd.f32 %v1494, %v1653
        %v1672 = vadd.f32 %v1495, %v1655
        %1673 = vst [vmem:[#allocation3] sm:$0xff] %v1657
        %1674 = vst [vmem:[#allocation3 + $0x20] sm:$0xff] %v1658
        %1675 = vst [vmem:[#allocation3 + $0x40] sm:$0xff] %v1659
        %1676 = vst [vmem:[#allocation3 + $0x60] sm:$0xff] %v1660
        %1677 = vst [vmem:[#allocation3 + $0x80] sm:$0xff] %v1661
        %1678 = vst [vmem:[#allocation3 + $0xa0] sm:$0xff] %v1662
        %1679 = vst [vmem:[#allocation3 + $0xc0] sm:$0xff] %v1663
        %1680 = vst [vmem:[#allocation3 + $0xe0] sm:$0xff] %v1664
        %1681 = vst [vmem:[#allocation3 + $0x100] sm:$0xff] %v1665
        %1682 = vst [vmem:[#allocation3 + $0x120] sm:$0xff] %v1666
        %1683 = vst [vmem:[#allocation3 + $0x140] sm:$0xff] %v1667
        %1684 = vst [vmem:[#allocation3 + $0x160] sm:$0xff] %v1668
        %1685 = vst [vmem:[#allocation3 + $0x180] sm:$0xff] %v1669
        %1686 = vst [vmem:[#allocation3 + $0x1a0] sm:$0xff] %v1670
        %1687 = vst [vmem:[#allocation3 + $0x1c0] sm:$0xff] %v1671
        %1688 = vst [vmem:[#allocation3 + $0x1e0] sm:$0xff] %v1672
        %s1689 = sadd.s32 %s666, 18
        %s1690 = smul.u32 %s1689, 8
        %s1691 = smul.addr %s1690, 4
        %s1692 = scalar_lea.vmem [#allocation2], %s1691
        %v1693 = vld [vmem:[%s1692 + $0x8] sm:$0xe]
        %v1694 = vld [vmem:[%s1692 + $0xc] sm:$0xf]
        %v1695 = vld [vmem:[%s1692 + $0x10] sm:$0x1]
        %v1696 = vld [vmem:[%s1692 + $0x28] sm:$0xe]
        %v1697 = vld [vmem:[%s1692 + $0x2c] sm:$0xf]
        %v1698 = vld [vmem:[%s1692 + $0x30] sm:$0x1]
        %v1699 = vld [vmem:[%s1692 + $0x48] sm:$0xe]
        %v1700 = vld [vmem:[%s1692 + $0x4c] sm:$0xf]
        %v1701 = vld [vmem:[%s1692 + $0x50] sm:$0x1]
        %v1702 = vld [vmem:[%s1692 + $0x68] sm:$0xe]
        %v1703 = vld [vmem:[%s1692 + $0x6c] sm:$0xf]
        %v1704 = vld [vmem:[%s1692 + $0x70] sm:$0x1]
        %v1705 = vld [vmem:[%s1692 + $0x88] sm:$0xe]
        %v1706 = vld [vmem:[%s1692 + $0x8c] sm:$0xf]
        %v1707 = vld [vmem:[%s1692 + $0x90] sm:$0x1]
        %v1708 = vld [vmem:[%s1692 + $0xa8] sm:$0xe]
        %v1709 = vld [vmem:[%s1692 + $0xac] sm:$0xf]
        %v1710 = vld [vmem:[%s1692 + $0xb0] sm:$0x1]
        %v1711 = vld [vmem:[%s1692 + $0xc8] sm:$0xe]
        %v1712 = vld [vmem:[%s1692 + $0xcc] sm:$0xf]
        %v1713 = vld [vmem:[%s1692 + $0xd0] sm:$0x1]
        %v1714 = vld [vmem:[%s1692 + $0xe8] sm:$0xe]
        %v1715 = vld [vmem:[%s1692 + $0xec] sm:$0xf]
        %v1716 = vld [vmem:[%s1692 + $0xf0] sm:$0x1]
        %vm1741 = vcmask 1042432
        %vm1742 = vcmask 1046532
        %vm1743 = vmor %vm1741, %vm1742
        %v1744 = vrot.slane %v1693, 5
        %v1745 = vrot.slane %v1744, 4
        %v1746 = vrot.slane %v1694, 5
        %v1747 = vsel %vm1743, %v1745, %v1746
        %v1748 = vrot.slane %v1746, 4
        %v1749 = vrot.slane %v1695, 5
        %v1750 = vsel %vm1743, %v1748, %v1749
        %v1751 = vrot.slane %v1696, 5
        %v1752 = vrot.slane %v1751, 4
        %v1753 = vrot.slane %v1697, 5
        %v1754 = vsel %vm1743, %v1752, %v1753
        %v1755 = vrot.slane %v1753, 4
        %v1756 = vrot.slane %v1698, 5
        %v1757 = vsel %vm1743, %v1755, %v1756
        %v1758 = vrot.slane %v1699, 5
        %v1759 = vrot.slane %v1758, 4
        %v1760 = vrot.slane %v1700, 5
        %v1761 = vsel %vm1743, %v1759, %v1760
        %v1762 = vrot.slane %v1760, 4
        %v1763 = vrot.slane %v1701, 5
        %v1764 = vsel %vm1743, %v1762, %v1763
        %v1765 = vrot.slane %v1702, 5
        %v1766 = vrot.slane %v1765, 4
        %v1767 = vrot.slane %v1703, 5
        %v1768 = vsel %vm1743, %v1766, %v1767
        %v1769 = vrot.slane %v1767, 4
        %v1770 = vrot.slane %v1704, 5
        %v1771 = vsel %vm1743, %v1769, %v1770
        %v1772 = vrot.slane %v1705, 5
        %v1773 = vrot.slane %v1772, 4
        %v1774 = vrot.slane %v1706, 5
        %v1775 = vsel %vm1743, %v1773, %v1774
        %v1776 = vrot.slane %v1774, 4
        %v1777 = vrot.slane %v1707, 5
        %v1778 = vsel %vm1743, %v1776, %v1777
        %v1779 = vrot.slane %v1708, 5
        %v1780 = vrot.slane %v1779, 4
        %v1781 = vrot.slane %v1709, 5
        %v1782 = vsel %vm1743, %v1780, %v1781
        %v1783 = vrot.slane %v1781, 4
        %v1784 = vrot.slane %v1710, 5
        %v1785 = vsel %vm1743, %v1783, %v1784
        %v1786 = vrot.slane %v1711, 5
        %v1787 = vrot.slane %v1786, 4
        %v1788 = vrot.slane %v1712, 5
        %v1789 = vsel %vm1743, %v1787, %v1788
        %v1790 = vrot.slane %v1788, 4
        %v1791 = vrot.slane %v1713, 5
        %v1792 = vsel %vm1743, %v1790, %v1791
        %v1793 = vrot.slane %v1714, 5
        %v1794 = vrot.slane %v1793, 4
        %v1795 = vrot.slane %v1715, 5
        %v1796 = vsel %vm1743, %v1794, %v1795
        %v1797 = vrot.slane %v1795, 4
        %v1798 = vrot.slane %v1716, 5
        %v1799 = vsel %vm1743, %v1797, %v1798
        %v1800 = vld [vmem:[%s559] sm:$0xf]
        %v1801 = vld [vmem:[%s559 + $0x4] sm:$0xf]
        %v1802 = vld [vmem:[%s559 + $0x8] sm:$0xf]
        %v1803 = vld [vmem:[%s559 + $0xc] sm:$0xf]
        %v1804 = vld [vmem:[%s559 + $0x10] sm:$0xf]
        %v1805 = vld [vmem:[%s559 + $0x14] sm:$0xf]
        %v1806 = vld [vmem:[%s559 + $0x18] sm:$0xf]
        %v1807 = vld [vmem:[%s559 + $0x1c] sm:$0xf]
        %v1808 = vld [vmem:[%s559 + $0x20] sm:$0xf]
        %v1809 = vld [vmem:[%s559 + $0x24] sm:$0xf]
        %v1810 = vld [vmem:[%s559 + $0x28] sm:$0xf]
        %v1811 = vld [vmem:[%s559 + $0x2c] sm:$0xf]
        %v1812 = vld [vmem:[%s559 + $0x30] sm:$0xf]
        %v1813 = vld [vmem:[%s559 + $0x34] sm:$0xf]
        %v1814 = vld [vmem:[%s559 + $0x38] sm:$0xf]
        %v1815 = vld [vmem:[%s559 + $0x3c] sm:$0xf]
        %v1816 = vld [vmem:[%s1692 + $0x10] sm:$0xf]
        %v1817 = vld [vmem:[%s1692 + $0x30] sm:$0xf]
        %v1818 = vld [vmem:[%s1692 + $0x50] sm:$0xf]
        %v1819 = vld [vmem:[%s1692 + $0x70] sm:$0xf]
        %v1820 = vld [vmem:[%s1692 + $0x90] sm:$0xf]
        %v1821 = vld [vmem:[%s1692 + $0xb0] sm:$0xf]
        %v1822 = vld [vmem:[%s1692 + $0xd0] sm:$0xf]
        %v1823 = vld [vmem:[%s1692 + $0xf0] sm:$0xf]
        %s1824 = scalar_lea.vmem %s559, 64 [#allocation10]
        %v1825 = vld [vmem:[%s1824] sm:$0xf]
        %v1826 = vld [vmem:[%s1824 + $0x4] sm:$0xf]
        %v1827 = vld [vmem:[%s1824 + $0x8] sm:$0xf]
        %v1828 = vld [vmem:[%s1824 + $0xc] sm:$0xf]
        %v1829 = vld [vmem:[%s1824 + $0x10] sm:$0xf]
        %v1830 = vld [vmem:[%s1824 + $0x14] sm:$0xf]
        %v1831 = vld [vmem:[%s1824 + $0x18] sm:$0xf]
        %v1832 = vld [vmem:[%s1824 + $0x1c] sm:$0xf]
        %v1833 = vld [vmem:[%s1824 + $0x20] sm:$0xf]
        %v1834 = vld [vmem:[%s1824 + $0x24] sm:$0xf]
        %v1835 = vld [vmem:[%s1824 + $0x28] sm:$0xf]
        %v1836 = vld [vmem:[%s1824 + $0x2c] sm:$0xf]
        %v1837 = vld [vmem:[%s1824 + $0x30] sm:$0xf]
        %v1838 = vld [vmem:[%s1824 + $0x34] sm:$0xf]
        %v1839 = vld [vmem:[%s1824 + $0x38] sm:$0xf]
        %v1840 = vld [vmem:[%s1824 + $0x3c] sm:$0xf]
        %v1849 = vunpack.c.l.b16 %v1694
        %v1850 = vunpack.c.l.b16 %v1816
        %v1851 = vunpack.c.l.b16 %v1697
        %v1852 = vunpack.c.l.b16 %v1817
        %v1853 = vunpack.c.l.b16 %v1700
        %v1854 = vunpack.c.l.b16 %v1818
        %v1855 = vunpack.c.l.b16 %v1703
        %v1856 = vunpack.c.l.b16 %v1819
        %v1857 = vunpack.c.l.b16 %v1706
        %v1858 = vunpack.c.l.b16 %v1820
        %v1859 = vunpack.c.l.b16 %v1709
        %v1860 = vunpack.c.l.b16 %v1821
        %v1861 = vunpack.c.l.b16 %v1712
        %v1862 = vunpack.c.l.b16 %v1822
        %v1863 = vunpack.c.l.b16 %v1715
        %v1864 = vunpack.c.l.b16 %v1823
        %v1865 = vpack.c.b16 %v1850, %v1849
        %v1866 = vpack.c.b16 %v1852, %v1851
        %v1867 = vpack.c.b16 %v1854, %v1853
        %v1868 = vpack.c.b16 %v1856, %v1855
        %v1869 = vpack.c.b16 %v1858, %v1857
        %v1870 = vpack.c.b16 %v1860, %v1859
        %v1871 = vpack.c.b16 %v1862, %v1861
        %v1872 = vpack.c.b16 %v1864, %v1863
        %v1897 = vunpack.c.l.b16 %v1825
        %v1898 = vunpack.c.l.b16 %v1826
        %v1899 = vunpack.c.l.b16 %v1827
        %v1900 = vunpack.c.l.b16 %v1828
        %v1901 = vunpack.c.l.b16 %v1829
        %v1902 = vunpack.c.l.b16 %v1830
        %v1903 = vunpack.c.l.b16 %v1831
        %v1904 = vunpack.c.l.b16 %v1832
        %v1905 = vunpack.c.l.b16 %v1833
        %v1906 = vunpack.c.l.b16 %v1834
        %v1907 = vunpack.c.l.b16 %v1835
        %v1908 = vunpack.c.l.b16 %v1836
        %v1909 = vunpack.c.l.b16 %v1837
        %v1910 = vunpack.c.l.b16 %v1838
        %v1911 = vunpack.c.l.b16 %v1839
        %v1912 = vunpack.c.l.b16 %v1840
        %v1913 = vpack.c.b16 %v1898, %v1897
        %v1914 = vpack.c.b16 %v1900, %v1899
        %v1915 = vpack.c.b16 %v1902, %v1901
        %v1916 = vpack.c.b16 %v1904, %v1903
        %v1917 = vpack.c.b16 %v1906, %v1905
        %v1918 = vpack.c.b16 %v1908, %v1907
        %v1919 = vpack.c.b16 %v1910, %v1909
        %v1920 = vpack.c.b16 %v1912, %v1911
        %1929 = vmatpush.bf16.msra.mxu0 %v1920
        %1930 = vmatpush.bf16.msra.mxu0 %v1919
        %1931 = vmatpush.bf16.msra.mxu0 %v1918
        %1932 = vmatpush.bf16.msra.mxu0 %v1917
        %1933 = vmatpush.bf16.msra.mxu0 %v1916
        %1934 = vmatpush.bf16.msra.mxu0 %v1915
        %1935 = vmatpush.bf16.msra.mxu0 %v1914
        %1936 = vmatpush.bf16.msra.mxu0 %v1913
        %1937 = vmatmul.bf16.gmra.mxu0 %v1865
        %v1938 = vpop.f32.mrf.mxu0
        %v1939 = vadd.f32 0.0, %v1938
        %v1940 = vpop.f32.mrf.mxu0
        %v1941 = vadd.f32 0.0, %v1940
        %1942 = vmatmul.bf16.gmra.mxu0 %v1866
        %v1943 = vpop.f32.mrf.mxu0
        %v1944 = vadd.f32 0.0, %v1943
        %v1945 = vpop.f32.mrf.mxu0
        %v1946 = vadd.f32 0.0, %v1945
        %1947 = vmatmul.bf16.gmra.mxu0 %v1867
        %v1948 = vpop.f32.mrf.mxu0
        %v1949 = vadd.f32 0.0, %v1948
        %v1950 = vpop.f32.mrf.mxu0
        %v1951 = vadd.f32 0.0, %v1950
        %1952 = vmatmul.bf16.gmra.mxu0 %v1868
        %v1953 = vpop.f32.mrf.mxu0
        %v1954 = vadd.f32 0.0, %v1953
        %v1955 = vpop.f32.mrf.mxu0
        %v1956 = vadd.f32 0.0, %v1955
        %1957 = vmatmul.bf16.gmra.mxu0 %v1869
        %v1958 = vpop.f32.mrf.mxu0
        %v1959 = vadd.f32 0.0, %v1958
        %v1960 = vpop.f32.mrf.mxu0
        %v1961 = vadd.f32 0.0, %v1960
        %1962 = vmatmul.bf16.gmra.mxu0 %v1870
        %v1963 = vpop.f32.mrf.mxu0
        %v1964 = vadd.f32 0.0, %v1963
        %v1965 = vpop.f32.mrf.mxu0
        %v1966 = vadd.f32 0.0, %v1965
        %1967 = vmatmul.bf16.gmra.mxu0 %v1871
        %v1968 = vpop.f32.mrf.mxu0
        %v1969 = vadd.f32 0.0, %v1968
        %v1970 = vpop.f32.mrf.mxu0
        %v1971 = vadd.f32 0.0, %v1970
        %1972 = vmatmul.bf16.gmra.mxu0 %v1872
        %v1973 = vpop.f32.mrf.mxu0
        %v1974 = vadd.f32 0.0, %v1973
        %v1975 = vpop.f32.mrf.mxu0
        %v1976 = vadd.f32 0.0, %v1975
        %1977 = vdwg.mxu0
        %v1978 = vunpack.c.l.b16 %v1747
        %v1979 = vunpack.c.l.b16 %v1750
        %v1980 = vunpack.c.l.b16 %v1754
        %v1981 = vunpack.c.l.b16 %v1757
        %v1982 = vunpack.c.l.b16 %v1761
        %v1983 = vunpack.c.l.b16 %v1764
        %v1984 = vunpack.c.l.b16 %v1768
        %v1985 = vunpack.c.l.b16 %v1771
        %v1986 = vunpack.c.l.b16 %v1775
        %v1987 = vunpack.c.l.b16 %v1778
        %v1988 = vunpack.c.l.b16 %v1782
        %v1989 = vunpack.c.l.b16 %v1785
        %v1990 = vunpack.c.l.b16 %v1789
        %v1991 = vunpack.c.l.b16 %v1792
        %v1992 = vunpack.c.l.b16 %v1796
        %v1993 = vunpack.c.l.b16 %v1799
        %v1994 = vpack.c.b16 %v1979, %v1978
        %v1995 = vpack.c.b16 %v1981, %v1980
        %v1996 = vpack.c.b16 %v1983, %v1982
        %v1997 = vpack.c.b16 %v1985, %v1984
        %v1998 = vpack.c.b16 %v1987, %v1986
        %v1999 = vpack.c.b16 %v1989, %v1988
        %v2000 = vpack.c.b16 %v1991, %v1990
        %v2001 = vpack.c.b16 %v1993, %v1992
        %v2026 = vunpack.c.l.b16 %v1800
        %v2027 = vunpack.c.l.b16 %v1801
        %v2028 = vunpack.c.l.b16 %v1802
        %v2029 = vunpack.c.l.b16 %v1803
        %v2030 = vunpack.c.l.b16 %v1804
        %v2031 = vunpack.c.l.b16 %v1805
        %v2032 = vunpack.c.l.b16 %v1806
        %v2033 = vunpack.c.l.b16 %v1807
        %v2034 = vunpack.c.l.b16 %v1808
        %v2035 = vunpack.c.l.b16 %v1809
        %v2036 = vunpack.c.l.b16 %v1810
        %v2037 = vunpack.c.l.b16 %v1811
        %v2038 = vunpack.c.l.b16 %v1812
        %v2039 = vunpack.c.l.b16 %v1813
        %v2040 = vunpack.c.l.b16 %v1814
        %v2041 = vunpack.c.l.b16 %v1815
        %v2042 = vpack.c.b16 %v2027, %v2026
        %v2043 = vpack.c.b16 %v2029, %v2028
        %v2044 = vpack.c.b16 %v2031, %v2030
        %v2045 = vpack.c.b16 %v2033, %v2032
        %v2046 = vpack.c.b16 %v2035, %v2034
        %v2047 = vpack.c.b16 %v2037, %v2036
        %v2048 = vpack.c.b16 %v2039, %v2038
        %v2049 = vpack.c.b16 %v2041, %v2040
        %2058 = vmatpush.bf16.msra.mxu0 %v2049
        %2059 = vmatpush.bf16.msra.mxu0 %v2048
        %2060 = vmatpush.bf16.msra.mxu0 %v2047
        %2061 = vmatpush.bf16.msra.mxu0 %v2046
        %2062 = vmatpush.bf16.msra.mxu0 %v2045
        %2063 = vmatpush.bf16.msra.mxu0 %v2044
        %2064 = vmatpush.bf16.msra.mxu0 %v2043
        %2065 = vmatpush.bf16.msra.mxu0 %v2042
        %2066 = vmatmul.bf16.gmra.mxu0 %v1994
        %v2067 = vpop.f32.mrf.mxu0
        %v2068 = vadd.f32 %v1939, %v2067
        %v2069 = vpop.f32.mrf.mxu0
        %v2070 = vadd.f32 %v1941, %v2069
        %2071 = vmatmul.bf16.gmra.mxu0 %v1995
        %v2072 = vpop.f32.mrf.mxu0
        %v2073 = vadd.f32 %v1944, %v2072
        %v2074 = vpop.f32.mrf.mxu0
        %v2075 = vadd.f32 %v1946, %v2074
        %2076 = vmatmul.bf16.gmra.mxu0 %v1996
        %v2077 = vpop.f32.mrf.mxu0
        %v2078 = vadd.f32 %v1949, %v2077
        %v2079 = vpop.f32.mrf.mxu0
        %v2080 = vadd.f32 %v1951, %v2079
        %2081 = vmatmul.bf16.gmra.mxu0 %v1997
        %v2082 = vpop.f32.mrf.mxu0
        %v2083 = vadd.f32 %v1954, %v2082
        %v2084 = vpop.f32.mrf.mxu0
        %v2085 = vadd.f32 %v1956, %v2084
        %2086 = vmatmul.bf16.gmra.mxu0 %v1998
        %v2087 = vpop.f32.mrf.mxu0
        %v2088 = vadd.f32 %v1959, %v2087
        %v2089 = vpop.f32.mrf.mxu0
        %v2090 = vadd.f32 %v1961, %v2089
        %2091 = vmatmul.bf16.gmra.mxu0 %v1999
        %v2092 = vpop.f32.mrf.mxu0
        %v2093 = vadd.f32 %v1964, %v2092
        %v2094 = vpop.f32.mrf.mxu0
        %v2095 = vadd.f32 %v1966, %v2094
        %2096 = vmatmul.bf16.gmra.mxu0 %v2000
        %v2097 = vpop.f32.mrf.mxu0
        %v2098 = vadd.f32 %v1969, %v2097
        %v2099 = vpop.f32.mrf.mxu0
        %v2100 = vadd.f32 %v1971, %v2099
        %2101 = vmatmul.bf16.gmra.mxu0 %v2001
        %v2102 = vpop.f32.mrf.mxu0
        %v2103 = vadd.f32 %v1974, %v2102
        %v2104 = vpop.f32.mrf.mxu0
        %v2105 = vadd.f32 %v1976, %v2104
        %2106 = vdwg.mxu0
        %v2107 = vld [vmem:[%s1692 + $0xc] sm:$0x8]
        %v2108 = vld [vmem:[%s1692 + $0x10] sm:$0xf]
        %v2109 = vld [vmem:[%s1692 + $0x14] sm:$0x7]
        %v2110 = vld [vmem:[%s1692 + $0x2c] sm:$0x8]
        %v2111 = vld [vmem:[%s1692 + $0x30] sm:$0xf]
        %v2112 = vld [vmem:[%s1692 + $0x34] sm:$0x7]
        %v2113 = vld [vmem:[%s1692 + $0x4c] sm:$0x8]
        %v2114 = vld [vmem:[%s1692 + $0x50] sm:$0xf]
        %v2115 = vld [vmem:[%s1692 + $0x54] sm:$0x7]
        %v2116 = vld [vmem:[%s1692 + $0x6c] sm:$0x8]
        %v2117 = vld [vmem:[%s1692 + $0x70] sm:$0xf]
        %v2118 = vld [vmem:[%s1692 + $0x74] sm:$0x7]
        %v2119 = vld [vmem:[%s1692 + $0x8c] sm:$0x8]
        %v2120 = vld [vmem:[%s1692 + $0x90] sm:$0xf]
        %v2121 = vld [vmem:[%s1692 + $0x94] sm:$0x7]
        %v2122 = vld [vmem:[%s1692 + $0xac] sm:$0x8]
        %v2123 = vld [vmem:[%s1692 + $0xb0] sm:$0xf]
        %v2124 = vld [vmem:[%s1692 + $0xb4] sm:$0x7]
        %v2125 = vld [vmem:[%s1692 + $0xcc] sm:$0x8]
        %v2126 = vld [vmem:[%s1692 + $0xd0] sm:$0xf]
        %v2127 = vld [vmem:[%s1692 + $0xd4] sm:$0x7]
        %v2128 = vld [vmem:[%s1692 + $0xec] sm:$0x8]
        %v2129 = vld [vmem:[%s1692 + $0xf0] sm:$0xf]
        %v2130 = vld [vmem:[%s1692 + $0xf4] sm:$0x7]
        %vm2155 = vcmask 1040384
        %vm2156 = vcmask 1044484
        %vm2157 = vmor %vm2155, %vm2156
        %v2158 = vrot.slane %v2107, 7
        %v2159 = vrot.slane %v2158, 4
        %v2160 = vrot.slane %v2108, 7
        %v2161 = vsel %vm2157, %v2159, %v2160
        %v2162 = vrot.slane %v2160, 4
        %v2163 = vrot.slane %v2109, 7
        %v2164 = vsel %vm2157, %v2162, %v2163
        %v2165 = vrot.slane %v2110, 7
        %v2166 = vrot.slane %v2165, 4
        %v2167 = vrot.slane %v2111, 7
        %v2168 = vsel %vm2157, %v2166, %v2167
        %v2169 = vrot.slane %v2167, 4
        %v2170 = vrot.slane %v2112, 7
        %v2171 = vsel %vm2157, %v2169, %v2170
        %v2172 = vrot.slane %v2113, 7
        %v2173 = vrot.slane %v2172, 4
        %v2174 = vrot.slane %v2114, 7
        %v2175 = vsel %vm2157, %v2173, %v2174
        %v2176 = vrot.slane %v2174, 4
        %v2177 = vrot.slane %v2115, 7
        %v2178 = vsel %vm2157, %v2176, %v2177
        %v2179 = vrot.slane %v2116, 7
        %v2180 = vrot.slane %v2179, 4
        %v2181 = vrot.slane %v2117, 7
        %v2182 = vsel %vm2157, %v2180, %v2181
        %v2183 = vrot.slane %v2181, 4
        %v2184 = vrot.slane %v2118, 7
        %v2185 = vsel %vm2157, %v2183, %v2184
        %v2186 = vrot.slane %v2119, 7
        %v2187 = vrot.slane %v2186, 4
        %v2188 = vrot.slane %v2120, 7
        %v2189 = vsel %vm2157, %v2187, %v2188
        %v2190 = vrot.slane %v2188, 4
        %v2191 = vrot.slane %v2121, 7
        %v2192 = vsel %vm2157, %v2190, %v2191
        %v2193 = vrot.slane %v2122, 7
        %v2194 = vrot.slane %v2193, 4
        %v2195 = vrot.slane %v2123, 7
        %v2196 = vsel %vm2157, %v2194, %v2195
        %v2197 = vrot.slane %v2195, 4
        %v2198 = vrot.slane %v2124, 7
        %v2199 = vsel %vm2157, %v2197, %v2198
        %v2200 = vrot.slane %v2125, 7
        %v2201 = vrot.slane %v2200, 4
        %v2202 = vrot.slane %v2126, 7
        %v2203 = vsel %vm2157, %v2201, %v2202
        %v2204 = vrot.slane %v2202, 4
        %v2205 = vrot.slane %v2127, 7
        %v2206 = vsel %vm2157, %v2204, %v2205
        %v2207 = vrot.slane %v2128, 7
        %v2208 = vrot.slane %v2207, 4
        %v2209 = vrot.slane %v2129, 7
        %v2210 = vsel %vm2157, %v2208, %v2209
        %v2211 = vrot.slane %v2209, 4
        %v2212 = vrot.slane %v2130, 7
        %v2213 = vsel %vm2157, %v2211, %v2212
        %s2214 = scalar_lea.vmem %s559, 128 [#allocation10]
        %v2215 = vld [vmem:[%s2214] sm:$0xf]
        %v2216 = vld [vmem:[%s2214 + $0x4] sm:$0xf]
        %v2217 = vld [vmem:[%s2214 + $0x8] sm:$0xf]
        %v2218 = vld [vmem:[%s2214 + $0xc] sm:$0xf]
        %v2219 = vld [vmem:[%s2214 + $0x10] sm:$0xf]
        %v2220 = vld [vmem:[%s2214 + $0x14] sm:$0xf]
        %v2221 = vld [vmem:[%s2214 + $0x18] sm:$0xf]
        %v2222 = vld [vmem:[%s2214 + $0x1c] sm:$0xf]
        %v2223 = vld [vmem:[%s2214 + $0x20] sm:$0xf]
        %v2224 = vld [vmem:[%s2214 + $0x24] sm:$0xf]
        %v2225 = vld [vmem:[%s2214 + $0x28] sm:$0xf]
        %v2226 = vld [vmem:[%s2214 + $0x2c] sm:$0xf]
        %v2227 = vld [vmem:[%s2214 + $0x30] sm:$0xf]
        %v2228 = vld [vmem:[%s2214 + $0x34] sm:$0xf]
        %v2229 = vld [vmem:[%s2214 + $0x38] sm:$0xf]
        %v2230 = vld [vmem:[%s2214 + $0x3c] sm:$0xf]
        %v2231 = vunpack.c.l.b16 %v2161
        %v2232 = vunpack.c.l.b16 %v2164
        %v2233 = vunpack.c.l.b16 %v2168
        %v2234 = vunpack.c.l.b16 %v2171
        %v2235 = vunpack.c.l.b16 %v2175
        %v2236 = vunpack.c.l.b16 %v2178
        %v2237 = vunpack.c.l.b16 %v2182
        %v2238 = vunpack.c.l.b16 %v2185
        %v2239 = vunpack.c.l.b16 %v2189
        %v2240 = vunpack.c.l.b16 %v2192
        %v2241 = vunpack.c.l.b16 %v2196
        %v2242 = vunpack.c.l.b16 %v2199
        %v2243 = vunpack.c.l.b16 %v2203
        %v2244 = vunpack.c.l.b16 %v2206
        %v2245 = vunpack.c.l.b16 %v2210
        %v2246 = vunpack.c.l.b16 %v2213
        %v2247 = vpack.c.b16 %v2232, %v2231
        %v2248 = vpack.c.b16 %v2234, %v2233
        %v2249 = vpack.c.b16 %v2236, %v2235
        %v2250 = vpack.c.b16 %v2238, %v2237
        %v2251 = vpack.c.b16 %v2240, %v2239
        %v2252 = vpack.c.b16 %v2242, %v2241
        %v2253 = vpack.c.b16 %v2244, %v2243
        %v2254 = vpack.c.b16 %v2246, %v2245
        %v2279 = vunpack.c.l.b16 %v2215
        %v2280 = vunpack.c.l.b16 %v2216
        %v2281 = vunpack.c.l.b16 %v2217
        %v2282 = vunpack.c.l.b16 %v2218
        %v2283 = vunpack.c.l.b16 %v2219
        %v2284 = vunpack.c.l.b16 %v2220
        %v2285 = vunpack.c.l.b16 %v2221
        %v2286 = vunpack.c.l.b16 %v2222
        %v2287 = vunpack.c.l.b16 %v2223
        %v2288 = vunpack.c.l.b16 %v2224
        %v2289 = vunpack.c.l.b16 %v2225
        %v2290 = vunpack.c.l.b16 %v2226
        %v2291 = vunpack.c.l.b16 %v2227
        %v2292 = vunpack.c.l.b16 %v2228
        %v2293 = vunpack.c.l.b16 %v2229
        %v2294 = vunpack.c.l.b16 %v2230
        %v2295 = vpack.c.b16 %v2280, %v2279
        %v2296 = vpack.c.b16 %v2282, %v2281
        %v2297 = vpack.c.b16 %v2284, %v2283
        %v2298 = vpack.c.b16 %v2286, %v2285
        %v2299 = vpack.c.b16 %v2288, %v2287
        %v2300 = vpack.c.b16 %v2290, %v2289
        %v2301 = vpack.c.b16 %v2292, %v2291
        %v2302 = vpack.c.b16 %v2294, %v2293
        %2311 = vmatpush.bf16.msra.mxu0 %v2302
        %2312 = vmatpush.bf16.msra.mxu0 %v2301
        %2313 = vmatpush.bf16.msra.mxu0 %v2300
        %2314 = vmatpush.bf16.msra.mxu0 %v2299
        %2315 = vmatpush.bf16.msra.mxu0 %v2298
        %2316 = vmatpush.bf16.msra.mxu0 %v2297
        %2317 = vmatpush.bf16.msra.mxu0 %v2296
        %2318 = vmatpush.bf16.msra.mxu0 %v2295
        %2319 = vmatmul.bf16.gmra.mxu0 %v2247
        %v2320 = vpop.f32.mrf.mxu0
        %v2321 = vadd.f32 0.0, %v2320
        %v2322 = vpop.f32.mrf.mxu0
        %v2323 = vadd.f32 0.0, %v2322
        %2324 = vmatmul.bf16.gmra.mxu0 %v2248
        %v2325 = vpop.f32.mrf.mxu0
        %v2326 = vadd.f32 0.0, %v2325
        %v2327 = vpop.f32.mrf.mxu0
        %v2328 = vadd.f32 0.0, %v2327
        %2329 = vmatmul.bf16.gmra.mxu0 %v2249
        %v2330 = vpop.f32.mrf.mxu0
        %v2331 = vadd.f32 0.0, %v2330
        %v2332 = vpop.f32.mrf.mxu0
        %v2333 = vadd.f32 0.0, %v2332
        %2334 = vmatmul.bf16.gmra.mxu0 %v2250
        %v2335 = vpop.f32.mrf.mxu0
        %v2336 = vadd.f32 0.0, %v2335
        %v2337 = vpop.f32.mrf.mxu0
        %v2338 = vadd.f32 0.0, %v2337
        %2339 = vmatmul.bf16.gmra.mxu0 %v2251
        %v2340 = vpop.f32.mrf.mxu0
        %v2341 = vadd.f32 0.0, %v2340
        %v2342 = vpop.f32.mrf.mxu0
        %v2343 = vadd.f32 0.0, %v2342
        %2344 = vmatmul.bf16.gmra.mxu0 %v2252
        %v2345 = vpop.f32.mrf.mxu0
        %v2346 = vadd.f32 0.0, %v2345
        %v2347 = vpop.f32.mrf.mxu0
        %v2348 = vadd.f32 0.0, %v2347
        %2349 = vmatmul.bf16.gmra.mxu0 %v2253
        %v2350 = vpop.f32.mrf.mxu0
        %v2351 = vadd.f32 0.0, %v2350
        %v2352 = vpop.f32.mrf.mxu0
        %v2353 = vadd.f32 0.0, %v2352
        %2354 = vmatmul.bf16.gmra.mxu0 %v2254
        %v2355 = vpop.f32.mrf.mxu0
        %v2356 = vadd.f32 0.0, %v2355
        %v2357 = vpop.f32.mrf.mxu0
        %v2358 = vadd.f32 0.0, %v2357
        %2359 = vdwg.mxu0
        %v2360 = vadd.f32 %v2068, %v2321
        %v2361 = vadd.f32 %v2070, %v2323
        %v2362 = vadd.f32 %v2073, %v2326
        %v2363 = vadd.f32 %v2075, %v2328
        %v2364 = vadd.f32 %v2078, %v2331
        %v2365 = vadd.f32 %v2080, %v2333
        %v2366 = vadd.f32 %v2083, %v2336
        %v2367 = vadd.f32 %v2085, %v2338
        %v2368 = vadd.f32 %v2088, %v2341
        %v2369 = vadd.f32 %v2090, %v2343
        %v2370 = vadd.f32 %v2093, %v2346
        %v2371 = vadd.f32 %v2095, %v2348
        %v2372 = vadd.f32 %v2098, %v2351
        %v2373 = vadd.f32 %v2100, %v2353
        %v2374 = vadd.f32 %v2103, %v2356
        %v2375 = vadd.f32 %v2105, %v2358
        %v2376 = vld [vmem:[%s1463 + $0x8] sm:$0xe]
        %v2377 = vld [vmem:[%s1463 + $0xc] sm:$0xf]
        %v2378 = vld [vmem:[%s1463 + $0x10] sm:$0x1]
        %v2379 = vld [vmem:[%s1463 + $0x28] sm:$0xe]
        %v2380 = vld [vmem:[%s1463 + $0x2c] sm:$0xf]
        %v2381 = vld [vmem:[%s1463 + $0x30] sm:$0x1]
        %v2382 = vld [vmem:[%s1463 + $0x48] sm:$0xe]
        %v2383 = vld [vmem:[%s1463 + $0x4c] sm:$0xf]
        %v2384 = vld [vmem:[%s1463 + $0x50] sm:$0x1]
        %v2385 = vld [vmem:[%s1463 + $0x68] sm:$0xe]
        %v2386 = vld [vmem:[%s1463 + $0x6c] sm:$0xf]
        %v2387 = vld [vmem:[%s1463 + $0x70] sm:$0x1]
        %v2388 = vld [vmem:[%s1463 + $0x88] sm:$0xe]
        %v2389 = vld [vmem:[%s1463 + $0x8c] sm:$0xf]
        %v2390 = vld [vmem:[%s1463 + $0x90] sm:$0x1]
        %v2391 = vld [vmem:[%s1463 + $0xa8] sm:$0xe]
        %v2392 = vld [vmem:[%s1463 + $0xac] sm:$0xf]
        %v2393 = vld [vmem:[%s1463 + $0xb0] sm:$0x1]
        %v2394 = vld [vmem:[%s1463 + $0xc8] sm:$0xe]
        %v2395 = vld [vmem:[%s1463 + $0xcc] sm:$0xf]
        %v2396 = vld [vmem:[%s1463 + $0xd0] sm:$0x1]
        %v2397 = vld [vmem:[%s1463 + $0xe8] sm:$0xe]
        %v2398 = vld [vmem:[%s1463 + $0xec] sm:$0xf]
        %v2399 = vld [vmem:[%s1463 + $0xf0] sm:$0x1]
        %v2424 = vrot.slane %v2376, 5
        %v2425 = vrot.slane %v2424, 4
        %v2426 = vrot.slane %v2377, 5
        %v2427 = vsel %vm1743, %v2425, %v2426
        %v2428 = vrot.slane %v2426, 4
        %v2429 = vrot.slane %v2378, 5
        %v2430 = vsel %vm1743, %v2428, %v2429
        %v2431 = vrot.slane %v2379, 5
        %v2432 = vrot.slane %v2431, 4
        %v2433 = vrot.slane %v2380, 5
        %v2434 = vsel %vm1743, %v2432, %v2433
        %v2435 = vrot.slane %v2433, 4
        %v2436 = vrot.slane %v2381, 5
        %v2437 = vsel %vm1743, %v2435, %v2436
        %v2438 = vrot.slane %v2382, 5
        %v2439 = vrot.slane %v2438, 4
        %v2440 = vrot.slane %v2383, 5
        %v2441 = vsel %vm1743, %v2439, %v2440
        %v2442 = vrot.slane %v2440, 4
        %v2443 = vrot.slane %v2384, 5
        %v2444 = vsel %vm1743, %v2442, %v2443
        %v2445 = vrot.slane %v2385, 5
        %v2446 = vrot.slane %v2445, 4
        %v2447 = vrot.slane %v2386, 5
        %v2448 = vsel %vm1743, %v2446, %v2447
        %v2449 = vrot.slane %v2447, 4
        %v2450 = vrot.slane %v2387, 5
        %v2451 = vsel %vm1743, %v2449, %v2450
        %v2452 = vrot.slane %v2388, 5
        %v2453 = vrot.slane %v2452, 4
        %v2454 = vrot.slane %v2389, 5
        %v2455 = vsel %vm1743, %v2453, %v2454
        %v2456 = vrot.slane %v2454, 4
        %v2457 = vrot.slane %v2390, 5
        %v2458 = vsel %vm1743, %v2456, %v2457
        %v2459 = vrot.slane %v2391, 5
        %v2460 = vrot.slane %v2459, 4
        %v2461 = vrot.slane %v2392, 5
        %v2462 = vsel %vm1743, %v2460, %v2461
        %v2463 = vrot.slane %v2461, 4
        %v2464 = vrot.slane %v2393, 5
        %v2465 = vsel %vm1743, %v2463, %v2464
        %v2466 = vrot.slane %v2394, 5
        %v2467 = vrot.slane %v2466, 4
        %v2468 = vrot.slane %v2395, 5
        %v2469 = vsel %vm1743, %v2467, %v2468
        %v2470 = vrot.slane %v2468, 4
        %v2471 = vrot.slane %v2396, 5
        %v2472 = vsel %vm1743, %v2470, %v2471
        %v2473 = vrot.slane %v2397, 5
        %v2474 = vrot.slane %v2473, 4
        %v2475 = vrot.slane %v2398, 5
        %v2476 = vsel %vm1743, %v2474, %v2475
        %v2477 = vrot.slane %v2475, 4
        %v2478 = vrot.slane %v2399, 5
        %v2479 = vsel %vm1743, %v2477, %v2478
        %s2480 = scalar_lea.vmem %s559, 192 [#allocation10]
        %v2481 = vld [vmem:[%s2480] sm:$0xf]
        %v2482 = vld [vmem:[%s2480 + $0x4] sm:$0xf]
        %v2483 = vld [vmem:[%s2480 + $0x8] sm:$0xf]
        %v2484 = vld [vmem:[%s2480 + $0xc] sm:$0xf]
        %v2485 = vld [vmem:[%s2480 + $0x10] sm:$0xf]
        %v2486 = vld [vmem:[%s2480 + $0x14] sm:$0xf]
        %v2487 = vld [vmem:[%s2480 + $0x18] sm:$0xf]
        %v2488 = vld [vmem:[%s2480 + $0x1c] sm:$0xf]
        %v2489 = vld [vmem:[%s2480 + $0x20] sm:$0xf]
        %v2490 = vld [vmem:[%s2480 + $0x24] sm:$0xf]
        %v2491 = vld [vmem:[%s2480 + $0x28] sm:$0xf]
        %v2492 = vld [vmem:[%s2480 + $0x2c] sm:$0xf]
        %v2493 = vld [vmem:[%s2480 + $0x30] sm:$0xf]
        %v2494 = vld [vmem:[%s2480 + $0x34] sm:$0xf]
        %v2495 = vld [vmem:[%s2480 + $0x38] sm:$0xf]
        %v2496 = vld [vmem:[%s2480 + $0x3c] sm:$0xf]
        %v2497 = vunpack.c.l.b16 %v2427
        %v2498 = vunpack.c.l.b16 %v2430
        %v2499 = vunpack.c.l.b16 %v2434
        %v2500 = vunpack.c.l.b16 %v2437
        %v2501 = vunpack.c.l.b16 %v2441
        %v2502 = vunpack.c.l.b16 %v2444
        %v2503 = vunpack.c.l.b16 %v2448
        %v2504 = vunpack.c.l.b16 %v2451
        %v2505 = vunpack.c.l.b16 %v2455
        %v2506 = vunpack.c.l.b16 %v2458
        %v2507 = vunpack.c.l.b16 %v2462
        %v2508 = vunpack.c.l.b16 %v2465
        %v2509 = vunpack.c.l.b16 %v2469
        %v2510 = vunpack.c.l.b16 %v2472
        %v2511 = vunpack.c.l.b16 %v2476
        %v2512 = vunpack.c.l.b16 %v2479
        %v2513 = vpack.c.b16 %v2498, %v2497
        %v2514 = vpack.c.b16 %v2500, %v2499
        %v2515 = vpack.c.b16 %v2502, %v2501
        %v2516 = vpack.c.b16 %v2504, %v2503
        %v2517 = vpack.c.b16 %v2506, %v2505
        %v2518 = vpack.c.b16 %v2508, %v2507
        %v2519 = vpack.c.b16 %v2510, %v2509
        %v2520 = vpack.c.b16 %v2512, %v2511
        %v2545 = vunpack.c.l.b16 %v2481
        %v2546 = vunpack.c.l.b16 %v2482
        %v2547 = vunpack.c.l.b16 %v2483
        %v2548 = vunpack.c.l.b16 %v2484
        %v2549 = vunpack.c.l.b16 %v2485
        %v2550 = vunpack.c.l.b16 %v2486
        %v2551 = vunpack.c.l.b16 %v2487
        %v2552 = vunpack.c.l.b16 %v2488
        %v2553 = vunpack.c.l.b16 %v2489
        %v2554 = vunpack.c.l.b16 %v2490
        %v2555 = vunpack.c.l.b16 %v2491
        %v2556 = vunpack.c.l.b16 %v2492
        %v2557 = vunpack.c.l.b16 %v2493
        %v2558 = vunpack.c.l.b16 %v2494
        %v2559 = vunpack.c.l.b16 %v2495
        %v2560 = vunpack.c.l.b16 %v2496
        %v2561 = vpack.c.b16 %v2546, %v2545
        %v2562 = vpack.c.b16 %v2548, %v2547
        %v2563 = vpack.c.b16 %v2550, %v2549
        %v2564 = vpack.c.b16 %v2552, %v2551
        %v2565 = vpack.c.b16 %v2554, %v2553
        %v2566 = vpack.c.b16 %v2556, %v2555
        %v2567 = vpack.c.b16 %v2558, %v2557
        %v2568 = vpack.c.b16 %v2560, %v2559
        %2577 = vmatpush.bf16.msra.mxu0 %v2568
        %2578 = vmatpush.bf16.msra.mxu0 %v2567
        %2579 = vmatpush.bf16.msra.mxu0 %v2566
        %2580 = vmatpush.bf16.msra.mxu0 %v2565
        %2581 = vmatpush.bf16.msra.mxu0 %v2564
        %2582 = vmatpush.bf16.msra.mxu0 %v2563
        %2583 = vmatpush.bf16.msra.mxu0 %v2562
        %2584 = vmatpush.bf16.msra.mxu0 %v2561
        %2585 = vmatmul.bf16.gmra.mxu0 %v2513
        %v2586 = vpop.f32.mrf.mxu0
        %v2587 = vadd.f32 0.0, %v2586
        %v2588 = vpop.f32.mrf.mxu0
        %v2589 = vadd.f32 0.0, %v2588
        %2590 = vmatmul.bf16.gmra.mxu0 %v2514
        %v2591 = vpop.f32.mrf.mxu0
        %v2592 = vadd.f32 0.0, %v2591
        %v2593 = vpop.f32.mrf.mxu0
        %v2594 = vadd.f32 0.0, %v2593
        %2595 = vmatmul.bf16.gmra.mxu0 %v2515
        %v2596 = vpop.f32.mrf.mxu0
        %v2597 = vadd.f32 0.0, %v2596
        %v2598 = vpop.f32.mrf.mxu0
        %v2599 = vadd.f32 0.0, %v2598
        %2600 = vmatmul.bf16.gmra.mxu0 %v2516
        %v2601 = vpop.f32.mrf.mxu0
        %v2602 = vadd.f32 0.0, %v2601
        %v2603 = vpop.f32.mrf.mxu0
        %v2604 = vadd.f32 0.0, %v2603
        %2605 = vmatmul.bf16.gmra.mxu0 %v2517
        %v2606 = vpop.f32.mrf.mxu0
        %v2607 = vadd.f32 0.0, %v2606
        %v2608 = vpop.f32.mrf.mxu0
        %v2609 = vadd.f32 0.0, %v2608
        %2610 = vmatmul.bf16.gmra.mxu0 %v2518
        %v2611 = vpop.f32.mrf.mxu0
        %v2612 = vadd.f32 0.0, %v2611
        %v2613 = vpop.f32.mrf.mxu0
        %v2614 = vadd.f32 0.0, %v2613
        %2615 = vmatmul.bf16.gmra.mxu0 %v2519
        %v2616 = vpop.f32.mrf.mxu0
        %v2617 = vadd.f32 0.0, %v2616
        %v2618 = vpop.f32.mrf.mxu0
        %v2619 = vadd.f32 0.0, %v2618
        %2620 = vmatmul.bf16.gmra.mxu0 %v2520
        %v2621 = vpop.f32.mrf.mxu0
        %v2622 = vadd.f32 0.0, %v2621
        %v2623 = vpop.f32.mrf.mxu0
        %v2624 = vadd.f32 0.0, %v2623
        %2625 = vdwg.mxu0
        %v2626 = vadd.f32 %v2360, %v2587
        %v2627 = vadd.f32 %v2361, %v2589
        %v2628 = vadd.f32 %v2362, %v2592
        %v2629 = vadd.f32 %v2363, %v2594
        %v2630 = vadd.f32 %v2364, %v2597
        %v2631 = vadd.f32 %v2365, %v2599
        %v2632 = vadd.f32 %v2366, %v2602
        %v2633 = vadd.f32 %v2367, %v2604
        %v2634 = vadd.f32 %v2368, %v2607
        %v2635 = vadd.f32 %v2369, %v2609
        %v2636 = vadd.f32 %v2370, %v2612
        %v2637 = vadd.f32 %v2371, %v2614
        %v2638 = vadd.f32 %v2372, %v2617
        %v2639 = vadd.f32 %v2373, %v2619
        %v2640 = vadd.f32 %v2374, %v2622
        %v2641 = vadd.f32 %v2375, %v2624
        %s2642 = scalar_lea.vmem %s559, 256 [#allocation10]
        %v2643 = vld [vmem:[%s2642] sm:$0xf]
        %v2644 = vld [vmem:[%s2642 + $0x4] sm:$0xf]
        %v2645 = vld [vmem:[%s2642 + $0x8] sm:$0xf]
        %v2646 = vld [vmem:[%s2642 + $0xc] sm:$0xf]
        %v2647 = vld [vmem:[%s2642 + $0x10] sm:$0xf]
        %v2648 = vld [vmem:[%s2642 + $0x14] sm:$0xf]
        %v2649 = vld [vmem:[%s2642 + $0x18] sm:$0xf]
        %v2650 = vld [vmem:[%s2642 + $0x1c] sm:$0xf]
        %v2651 = vld [vmem:[%s2642 + $0x20] sm:$0xf]
        %v2652 = vld [vmem:[%s2642 + $0x24] sm:$0xf]
        %v2653 = vld [vmem:[%s2642 + $0x28] sm:$0xf]
        %v2654 = vld [vmem:[%s2642 + $0x2c] sm:$0xf]
        %v2655 = vld [vmem:[%s2642 + $0x30] sm:$0xf]
        %v2656 = vld [vmem:[%s2642 + $0x34] sm:$0xf]
        %v2657 = vld [vmem:[%s2642 + $0x38] sm:$0xf]
        %v2658 = vld [vmem:[%s2642 + $0x3c] sm:$0xf]
        %v2675 = vunpack.c.l.b16 %v2643
        %v2676 = vunpack.c.l.b16 %v2644
        %v2677 = vunpack.c.l.b16 %v2645
        %v2678 = vunpack.c.l.b16 %v2646
        %v2679 = vunpack.c.l.b16 %v2647
        %v2680 = vunpack.c.l.b16 %v2648
        %v2681 = vunpack.c.l.b16 %v2649
        %v2682 = vunpack.c.l.b16 %v2650
        %v2683 = vunpack.c.l.b16 %v2651
        %v2684 = vunpack.c.l.b16 %v2652
        %v2685 = vunpack.c.l.b16 %v2653
        %v2686 = vunpack.c.l.b16 %v2654
        %v2687 = vunpack.c.l.b16 %v2655
        %v2688 = vunpack.c.l.b16 %v2656
        %v2689 = vunpack.c.l.b16 %v2657
        %v2690 = vunpack.c.l.b16 %v2658
        %v2691 = vpack.c.b16 %v2676, %v2675
        %v2692 = vpack.c.b16 %v2678, %v2677
        %v2693 = vpack.c.b16 %v2680, %v2679
        %v2694 = vpack.c.b16 %v2682, %v2681
        %v2695 = vpack.c.b16 %v2684, %v2683
        %v2696 = vpack.c.b16 %v2686, %v2685
        %v2697 = vpack.c.b16 %v2688, %v2687
        %v2698 = vpack.c.b16 %v2690, %v2689
        %2707 = vmatpush.bf16.msra.mxu0 %v2698
        %2708 = vmatpush.bf16.msra.mxu0 %v2697
        %2709 = vmatpush.bf16.msra.mxu0 %v2696
        %2710 = vmatpush.bf16.msra.mxu0 %v2695
        %2711 = vmatpush.bf16.msra.mxu0 %v2694
        %2712 = vmatpush.bf16.msra.mxu0 %v2693
        %2713 = vmatpush.bf16.msra.mxu0 %v2692
        %2714 = vmatpush.bf16.msra.mxu0 %v2691
        %2715 = vmatmul.bf16.gmra.mxu0 %v1544
        %v2716 = vpop.f32.mrf.mxu0
        %v2717 = vadd.f32 0.0, %v2716
        %v2718 = vpop.f32.mrf.mxu0
        %v2719 = vadd.f32 0.0, %v2718
        %2720 = vmatmul.bf16.gmra.mxu0 %v1545
        %v2721 = vpop.f32.mrf.mxu0
        %v2722 = vadd.f32 0.0, %v2721
        %v2723 = vpop.f32.mrf.mxu0
        %v2724 = vadd.f32 0.0, %v2723
        %2725 = vmatmul.bf16.gmra.mxu0 %v1546
        %v2726 = vpop.f32.mrf.mxu0
        %v2727 = vadd.f32 0.0, %v2726
        %v2728 = vpop.f32.mrf.mxu0
        %v2729 = vadd.f32 0.0, %v2728
        %2730 = vmatmul.bf16.gmra.mxu0 %v1547
        %v2731 = vpop.f32.mrf.mxu0
        %v2732 = vadd.f32 0.0, %v2731
        %v2733 = vpop.f32.mrf.mxu0
        %v2734 = vadd.f32 0.0, %v2733
        %2735 = vmatmul.bf16.gmra.mxu0 %v1548
        %v2736 = vpop.f32.mrf.mxu0
        %v2737 = vadd.f32 0.0, %v2736
        %v2738 = vpop.f32.mrf.mxu0
        %v2739 = vadd.f32 0.0, %v2738
        %2740 = vmatmul.bf16.gmra.mxu0 %v1549
        %v2741 = vpop.f32.mrf.mxu0
        %v2742 = vadd.f32 0.0, %v2741
        %v2743 = vpop.f32.mrf.mxu0
        %v2744 = vadd.f32 0.0, %v2743
        %2745 = vmatmul.bf16.gmra.mxu0 %v1550
        %v2746 = vpop.f32.mrf.mxu0
        %v2747 = vadd.f32 0.0, %v2746
        %v2748 = vpop.f32.mrf.mxu0
        %v2749 = vadd.f32 0.0, %v2748
        %2750 = vmatmul.bf16.gmra.mxu0 %v1551
        %v2751 = vpop.f32.mrf.mxu0
        %v2752 = vadd.f32 0.0, %v2751
        %v2753 = vpop.f32.mrf.mxu0
        %v2754 = vadd.f32 0.0, %v2753
        %2755 = vdwg.mxu0
        %v2756 = vadd.f32 %v2626, %v2717
        %v2757 = vadd.f32 %v2627, %v2719
        %v2758 = vadd.f32 %v2628, %v2722
        %v2759 = vadd.f32 %v2629, %v2724
        %v2760 = vadd.f32 %v2630, %v2727
        %v2761 = vadd.f32 %v2631, %v2729
        %v2762 = vadd.f32 %v2632, %v2732
        %v2763 = vadd.f32 %v2633, %v2734
        %v2764 = vadd.f32 %v2634, %v2737
        %v2765 = vadd.f32 %v2635, %v2739
        %v2766 = vadd.f32 %v2636, %v2742
        %v2767 = vadd.f32 %v2637, %v2744
        %v2768 = vadd.f32 %v2638, %v2747
        %v2769 = vadd.f32 %v2639, %v2749
        %v2770 = vadd.f32 %v2640, %v2752
        %v2771 = vadd.f32 %v2641, %v2754
        %v2772 = vld [vmem:[%s1463 + $0xc] sm:$0x8]
        %v2773 = vld [vmem:[%s1463 + $0x10] sm:$0xf]
        %v2774 = vld [vmem:[%s1463 + $0x14] sm:$0x7]
        %v2775 = vld [vmem:[%s1463 + $0x2c] sm:$0x8]
        %v2776 = vld [vmem:[%s1463 + $0x30] sm:$0xf]
        %v2777 = vld [vmem:[%s1463 + $0x34] sm:$0x7]
        %v2778 = vld [vmem:[%s1463 + $0x4c] sm:$0x8]
        %v2779 = vld [vmem:[%s1463 + $0x50] sm:$0xf]
        %v2780 = vld [vmem:[%s1463 + $0x54] sm:$0x7]
        %v2781 = vld [vmem:[%s1463 + $0x6c] sm:$0x8]
        %v2782 = vld [vmem:[%s1463 + $0x70] sm:$0xf]
        %v2783 = vld [vmem:[%s1463 + $0x74] sm:$0x7]
        %v2784 = vld [vmem:[%s1463 + $0x8c] sm:$0x8]
        %v2785 = vld [vmem:[%s1463 + $0x90] sm:$0xf]
        %v2786 = vld [vmem:[%s1463 + $0x94] sm:$0x7]
        %v2787 = vld [vmem:[%s1463 + $0xac] sm:$0x8]
        %v2788 = vld [vmem:[%s1463 + $0xb0] sm:$0xf]
        %v2789 = vld [vmem:[%s1463 + $0xb4] sm:$0x7]
        %v2790 = vld [vmem:[%s1463 + $0xcc] sm:$0x8]
        %v2791 = vld [vmem:[%s1463 + $0xd0] sm:$0xf]
        %v2792 = vld [vmem:[%s1463 + $0xd4] sm:$0x7]
        %v2793 = vld [vmem:[%s1463 + $0xec] sm:$0x8]
        %v2794 = vld [vmem:[%s1463 + $0xf0] sm:$0xf]
        %v2795 = vld [vmem:[%s1463 + $0xf4] sm:$0x7]
        %v2820 = vrot.slane %v2772, 7
        %v2821 = vrot.slane %v2820, 4
        %v2822 = vrot.slane %v2773, 7
        %v2823 = vsel %vm2157, %v2821, %v2822
        %v2824 = vrot.slane %v2822, 4
        %v2825 = vrot.slane %v2774, 7
        %v2826 = vsel %vm2157, %v2824, %v2825
        %v2827 = vrot.slane %v2775, 7
        %v2828 = vrot.slane %v2827, 4
        %v2829 = vrot.slane %v2776, 7
        %v2830 = vsel %vm2157, %v2828, %v2829
        %v2831 = vrot.slane %v2829, 4
        %v2832 = vrot.slane %v2777, 7
        %v2833 = vsel %vm2157, %v2831, %v2832
        %v2834 = vrot.slane %v2778, 7
        %v2835 = vrot.slane %v2834, 4
        %v2836 = vrot.slane %v2779, 7
        %v2837 = vsel %vm2157, %v2835, %v2836
        %v2838 = vrot.slane %v2836, 4
        %v2839 = vrot.slane %v2780, 7
        %v2840 = vsel %vm2157, %v2838, %v2839
        %v2841 = vrot.slane %v2781, 7
        %v2842 = vrot.slane %v2841, 4
        %v2843 = vrot.slane %v2782, 7
        %v2844 = vsel %vm2157, %v2842, %v2843
        %v2845 = vrot.slane %v2843, 4
        %v2846 = vrot.slane %v2783, 7
        %v2847 = vsel %vm2157, %v2845, %v2846
        %v2848 = vrot.slane %v2784, 7
        %v2849 = vrot.slane %v2848, 4
        %v2850 = vrot.slane %v2785, 7
        %v2851 = vsel %vm2157, %v2849, %v2850
        %v2852 = vrot.slane %v2850, 4
        %v2853 = vrot.slane %v2786, 7
        %v2854 = vsel %vm2157, %v2852, %v2853
        %v2855 = vrot.slane %v2787, 7
        %v2856 = vrot.slane %v2855, 4
        %v2857 = vrot.slane %v2788, 7
        %v2858 = vsel %vm2157, %v2856, %v2857
        %v2859 = vrot.slane %v2857, 4
        %v2860 = vrot.slane %v2789, 7
        %v2861 = vsel %vm2157, %v2859, %v2860
        %v2862 = vrot.slane %v2790, 7
        %v2863 = vrot.slane %v2862, 4
        %v2864 = vrot.slane %v2791, 7
        %v2865 = vsel %vm2157, %v2863, %v2864
        %v2866 = vrot.slane %v2864, 4
        %v2867 = vrot.slane %v2792, 7
        %v2868 = vsel %vm2157, %v2866, %v2867
        %v2869 = vrot.slane %v2793, 7
        %v2870 = vrot.slane %v2869, 4
        %v2871 = vrot.slane %v2794, 7
        %v2872 = vsel %vm2157, %v2870, %v2871
        %v2873 = vrot.slane %v2871, 4
        %v2874 = vrot.slane %v2795, 7
        %v2875 = vsel %vm2157, %v2873, %v2874
        %s2876 = scalar_lea.vmem %s559, 320 [#allocation10]
        %v2877 = vld [vmem:[%s2876] sm:$0xf]
        %v2878 = vld [vmem:[%s2876 + $0x4] sm:$0xf]
        %v2879 = vld [vmem:[%s2876 + $0x8] sm:$0xf]
        %v2880 = vld [vmem:[%s2876 + $0xc] sm:$0xf]
        %v2881 = vld [vmem:[%s2876 + $0x10] sm:$0xf]
        %v2882 = vld [vmem:[%s2876 + $0x14] sm:$0xf]
        %v2883 = vld [vmem:[%s2876 + $0x18] sm:$0xf]
        %v2884 = vld [vmem:[%s2876 + $0x1c] sm:$0xf]
        %v2885 = vld [vmem:[%s2876 + $0x20] sm:$0xf]
        %v2886 = vld [vmem:[%s2876 + $0x24] sm:$0xf]
        %v2887 = vld [vmem:[%s2876 + $0x28] sm:$0xf]
        %v2888 = vld [vmem:[%s2876 + $0x2c] sm:$0xf]
        %v2889 = vld [vmem:[%s2876 + $0x30] sm:$0xf]
        %v2890 = vld [vmem:[%s2876 + $0x34] sm:$0xf]
        %v2891 = vld [vmem:[%s2876 + $0x38] sm:$0xf]
        %v2892 = vld [vmem:[%s2876 + $0x3c] sm:$0xf]
        %v2893 = vunpack.c.l.b16 %v2823
        %v2894 = vunpack.c.l.b16 %v2826
        %v2895 = vunpack.c.l.b16 %v2830
        %v2896 = vunpack.c.l.b16 %v2833
        %v2897 = vunpack.c.l.b16 %v2837
        %v2898 = vunpack.c.l.b16 %v2840
        %v2899 = vunpack.c.l.b16 %v2844
        %v2900 = vunpack.c.l.b16 %v2847
        %v2901 = vunpack.c.l.b16 %v2851
        %v2902 = vunpack.c.l.b16 %v2854
        %v2903 = vunpack.c.l.b16 %v2858
        %v2904 = vunpack.c.l.b16 %v2861
        %v2905 = vunpack.c.l.b16 %v2865
        %v2906 = vunpack.c.l.b16 %v2868
        %v2907 = vunpack.c.l.b16 %v2872
        %v2908 = vunpack.c.l.b16 %v2875
        %v2909 = vpack.c.b16 %v2894, %v2893
        %v2910 = vpack.c.b16 %v2896, %v2895
        %v2911 = vpack.c.b16 %v2898, %v2897
        %v2912 = vpack.c.b16 %v2900, %v2899
        %v2913 = vpack.c.b16 %v2902, %v2901
        %v2914 = vpack.c.b16 %v2904, %v2903
        %v2915 = vpack.c.b16 %v2906, %v2905
        %v2916 = vpack.c.b16 %v2908, %v2907
        %v2941 = vunpack.c.l.b16 %v2877
        %v2942 = vunpack.c.l.b16 %v2878
        %v2943 = vunpack.c.l.b16 %v2879
        %v2944 = vunpack.c.l.b16 %v2880
        %v2945 = vunpack.c.l.b16 %v2881
        %v2946 = vunpack.c.l.b16 %v2882
        %v2947 = vunpack.c.l.b16 %v2883
        %v2948 = vunpack.c.l.b16 %v2884
        %v2949 = vunpack.c.l.b16 %v2885
        %v2950 = vunpack.c.l.b16 %v2886
        %v2951 = vunpack.c.l.b16 %v2887
        %v2952 = vunpack.c.l.b16 %v2888
        %v2953 = vunpack.c.l.b16 %v2889
        %v2954 = vunpack.c.l.b16 %v2890
        %v2955 = vunpack.c.l.b16 %v2891
        %v2956 = vunpack.c.l.b16 %v2892
        %v2957 = vpack.c.b16 %v2942, %v2941
        %v2958 = vpack.c.b16 %v2944, %v2943
        %v2959 = vpack.c.b16 %v2946, %v2945
        %v2960 = vpack.c.b16 %v2948, %v2947
        %v2961 = vpack.c.b16 %v2950, %v2949
        %v2962 = vpack.c.b16 %v2952, %v2951
        %v2963 = vpack.c.b16 %v2954, %v2953
        %v2964 = vpack.c.b16 %v2956, %v2955
        %2973 = vmatpush.bf16.msra.mxu0 %v2964
        %2974 = vmatpush.bf16.msra.mxu0 %v2963
        %2975 = vmatpush.bf16.msra.mxu0 %v2962
        %2976 = vmatpush.bf16.msra.mxu0 %v2961
        %2977 = vmatpush.bf16.msra.mxu0 %v2960
        %2978 = vmatpush.bf16.msra.mxu0 %v2959
        %2979 = vmatpush.bf16.msra.mxu0 %v2958
        %2980 = vmatpush.bf16.msra.mxu0 %v2957
        %2981 = vmatmul.bf16.gmra.mxu0 %v2909
        %v2982 = vpop.f32.mrf.mxu0
        %v2983 = vadd.f32 0.0, %v2982
        %v2984 = vpop.f32.mrf.mxu0
        %v2985 = vadd.f32 0.0, %v2984
        %2986 = vmatmul.bf16.gmra.mxu0 %v2910
        %v2987 = vpop.f32.mrf.mxu0
        %v2988 = vadd.f32 0.0, %v2987
        %v2989 = vpop.f32.mrf.mxu0
        %v2990 = vadd.f32 0.0, %v2989
        %2991 = vmatmul.bf16.gmra.mxu0 %v2911
        %v2992 = vpop.f32.mrf.mxu0
        %v2993 = vadd.f32 0.0, %v2992
        %v2994 = vpop.f32.mrf.mxu0
        %v2995 = vadd.f32 0.0, %v2994
        %2996 = vmatmul.bf16.gmra.mxu0 %v2912
        %v2997 = vpop.f32.mrf.mxu0
        %v2998 = vadd.f32 0.0, %v2997
        %v2999 = vpop.f32.mrf.mxu0
        %v3000 = vadd.f32 0.0, %v2999
        %3001 = vmatmul.bf16.gmra.mxu0 %v2913
        %v3002 = vpop.f32.mrf.mxu0
        %v3003 = vadd.f32 0.0, %v3002
        %v3004 = vpop.f32.mrf.mxu0
        %v3005 = vadd.f32 0.0, %v3004
        %3006 = vmatmul.bf16.gmra.mxu0 %v2914
        %v3007 = vpop.f32.mrf.mxu0
        %v3008 = vadd.f32 0.0, %v3007
        %v3009 = vpop.f32.mrf.mxu0
        %v3010 = vadd.f32 0.0, %v3009
        %3011 = vmatmul.bf16.gmra.mxu0 %v2915
        %v3012 = vpop.f32.mrf.mxu0
        %v3013 = vadd.f32 0.0, %v3012
        %v3014 = vpop.f32.mrf.mxu0
        %v3015 = vadd.f32 0.0, %v3014
        %3016 = vmatmul.bf16.gmra.mxu0 %v2916
        %v3017 = vpop.f32.mrf.mxu0
        %v3018 = vadd.f32 0.0, %v3017
        %v3019 = vpop.f32.mrf.mxu0
        %v3020 = vadd.f32 0.0, %v3019
        %3021 = vdwg.mxu0
        %v3022 = vadd.f32 %v2756, %v2983
        %v3023 = vadd.f32 %v2757, %v2985
        %v3024 = vadd.f32 %v2758, %v2988
        %v3025 = vadd.f32 %v2759, %v2990
        %v3026 = vadd.f32 %v2760, %v2993
        %v3027 = vadd.f32 %v2761, %v2995
        %v3028 = vadd.f32 %v2762, %v2998
        %v3029 = vadd.f32 %v2763, %v3000
        %v3030 = vadd.f32 %v2764, %v3003
        %v3031 = vadd.f32 %v2765, %v3005
        %v3032 = vadd.f32 %v2766, %v3008
        %v3033 = vadd.f32 %v2767, %v3010
        %v3034 = vadd.f32 %v2768, %v3013
        %v3035 = vadd.f32 %v2769, %v3015
        %v3036 = vadd.f32 %v2770, %v3018
        %v3037 = vadd.f32 %v2771, %v3020
        %s3038 = sadd.s32 %s666, 30
        %s3039 = smul.u32 %s3038, 8
        %s3040 = smul.addr %s3039, 4
        %s3041 = scalar_lea.vmem [#allocation2], %s3040
        %v3042 = vld [vmem:[%s3041 + $0x8] sm:$0xe]
        %v3043 = vld [vmem:[%s3041 + $0xc] sm:$0xf]
        %v3044 = vld [vmem:[%s3041 + $0x10] sm:$0x1]
        %v3045 = vld [vmem:[%s3041 + $0x28] sm:$0xe]
        %v3046 = vld [vmem:[%s3041 + $0x2c] sm:$0xf]
        %v3047 = vld [vmem:[%s3041 + $0x30] sm:$0x1]
        %v3048 = vld [vmem:[%s3041 + $0x48] sm:$0xe]
        %v3049 = vld [vmem:[%s3041 + $0x4c] sm:$0xf]
        %v3050 = vld [vmem:[%s3041 + $0x50] sm:$0x1]
        %v3051 = vld [vmem:[%s3041 + $0x68] sm:$0xe]
        %v3052 = vld [vmem:[%s3041 + $0x6c] sm:$0xf]
        %v3053 = vld [vmem:[%s3041 + $0x70] sm:$0x1]
        %v3054 = vld [vmem:[%s3041 + $0x88] sm:$0xe]
        %v3055 = vld [vmem:[%s3041 + $0x8c] sm:$0xf]
        %v3056 = vld [vmem:[%s3041 + $0x90] sm:$0x1]
        %v3057 = vld [vmem:[%s3041 + $0xa8] sm:$0xe]
        %v3058 = vld [vmem:[%s3041 + $0xac] sm:$0xf]
        %v3059 = vld [vmem:[%s3041 + $0xb0] sm:$0x1]
        %v3060 = vld [vmem:[%s3041 + $0xc8] sm:$0xe]
        %v3061 = vld [vmem:[%s3041 + $0xcc] sm:$0xf]
        %v3062 = vld [vmem:[%s3041 + $0xd0] sm:$0x1]
        %v3063 = vld [vmem:[%s3041 + $0xe8] sm:$0xe]
        %v3064 = vld [vmem:[%s3041 + $0xec] sm:$0xf]
        %v3065 = vld [vmem:[%s3041 + $0xf0] sm:$0x1]
        %v3090 = vrot.slane %v3042, 5
        %v3091 = vrot.slane %v3090, 4
        %v3092 = vrot.slane %v3043, 5
        %v3093 = vsel %vm1743, %v3091, %v3092
        %v3094 = vrot.slane %v3092, 4
        %v3095 = vrot.slane %v3044, 5
        %v3096 = vsel %vm1743, %v3094, %v3095
        %v3097 = vrot.slane %v3045, 5
        %v3098 = vrot.slane %v3097, 4
        %v3099 = vrot.slane %v3046, 5
        %v3100 = vsel %vm1743, %v3098, %v3099
        %v3101 = vrot.slane %v3099, 4
        %v3102 = vrot.slane %v3047, 5
        %v3103 = vsel %vm1743, %v3101, %v3102
        %v3104 = vrot.slane %v3048, 5
        %v3105 = vrot.slane %v3104, 4
        %v3106 = vrot.slane %v3049, 5
        %v3107 = vsel %vm1743, %v3105, %v3106
        %v3108 = vrot.slane %v3106, 4
        %v3109 = vrot.slane %v3050, 5
        %v3110 = vsel %vm1743, %v3108, %v3109
        %v3111 = vrot.slane %v3051, 5
        %v3112 = vrot.slane %v3111, 4
        %v3113 = vrot.slane %v3052, 5
        %v3114 = vsel %vm1743, %v3112, %v3113
        %v3115 = vrot.slane %v3113, 4
        %v3116 = vrot.slane %v3053, 5
        %v3117 = vsel %vm1743, %v3115, %v3116
        %v3118 = vrot.slane %v3054, 5
        %v3119 = vrot.slane %v3118, 4
        %v3120 = vrot.slane %v3055, 5
        %v3121 = vsel %vm1743, %v3119, %v3120
        %v3122 = vrot.slane %v3120, 4
        %v3123 = vrot.slane %v3056, 5
        %v3124 = vsel %vm1743, %v3122, %v3123
        %v3125 = vrot.slane %v3057, 5
        %v3126 = vrot.slane %v3125, 4
        %v3127 = vrot.slane %v3058, 5
        %v3128 = vsel %vm1743, %v3126, %v3127
        %v3129 = vrot.slane %v3127, 4
        %v3130 = vrot.slane %v3059, 5
        %v3131 = vsel %vm1743, %v3129, %v3130
        %v3132 = vrot.slane %v3060, 5
        %v3133 = vrot.slane %v3132, 4
        %v3134 = vrot.slane %v3061, 5
        %v3135 = vsel %vm1743, %v3133, %v3134
        %v3136 = vrot.slane %v3134, 4
        %v3137 = vrot.slane %v3062, 5
        %v3138 = vsel %vm1743, %v3136, %v3137
        %v3139 = vrot.slane %v3063, 5
        %v3140 = vrot.slane %v3139, 4
        %v3141 = vrot.slane %v3064, 5
        %v3142 = vsel %vm1743, %v3140, %v3141
        %v3143 = vrot.slane %v3141, 4
        %v3144 = vrot.slane %v3065, 5
        %v3145 = vsel %vm1743, %v3143, %v3144
        %s3146 = scalar_lea.vmem %s559, 384 [#allocation10]
        %v3147 = vld [vmem:[%s3146] sm:$0xf]
        %v3148 = vld [vmem:[%s3146 + $0x4] sm:$0xf]
        %v3149 = vld [vmem:[%s3146 + $0x8] sm:$0xf]
        %v3150 = vld [vmem:[%s3146 + $0xc] sm:$0xf]
        %v3151 = vld [vmem:[%s3146 + $0x10] sm:$0xf]
        %v3152 = vld [vmem:[%s3146 + $0x14] sm:$0xf]
        %v3153 = vld [vmem:[%s3146 + $0x18] sm:$0xf]
        %v3154 = vld [vmem:[%s3146 + $0x1c] sm:$0xf]
        %v3155 = vld [vmem:[%s3146 + $0x20] sm:$0xf]
        %v3156 = vld [vmem:[%s3146 + $0x24] sm:$0xf]
        %v3157 = vld [vmem:[%s3146 + $0x28] sm:$0xf]
        %v3158 = vld [vmem:[%s3146 + $0x2c] sm:$0xf]
        %v3159 = vld [vmem:[%s3146 + $0x30] sm:$0xf]
        %v3160 = vld [vmem:[%s3146 + $0x34] sm:$0xf]
        %v3161 = vld [vmem:[%s3146 + $0x38] sm:$0xf]
        %v3162 = vld [vmem:[%s3146 + $0x3c] sm:$0xf]
        %v3163 = vunpack.c.l.b16 %v3093
        %v3164 = vunpack.c.l.b16 %v3096
        %v3165 = vunpack.c.l.b16 %v3100
        %v3166 = vunpack.c.l.b16 %v3103
        %v3167 = vunpack.c.l.b16 %v3107
        %v3168 = vunpack.c.l.b16 %v3110
        %v3169 = vunpack.c.l.b16 %v3114
        %v3170 = vunpack.c.l.b16 %v3117
        %v3171 = vunpack.c.l.b16 %v3121
        %v3172 = vunpack.c.l.b16 %v3124
        %v3173 = vunpack.c.l.b16 %v3128
        %v3174 = vunpack.c.l.b16 %v3131
        %v3175 = vunpack.c.l.b16 %v3135
        %v3176 = vunpack.c.l.b16 %v3138
        %v3177 = vunpack.c.l.b16 %v3142
        %v3178 = vunpack.c.l.b16 %v3145
        %v3179 = vpack.c.b16 %v3164, %v3163
        %v3180 = vpack.c.b16 %v3166, %v3165
        %v3181 = vpack.c.b16 %v3168, %v3167
        %v3182 = vpack.c.b16 %v3170, %v3169
        %v3183 = vpack.c.b16 %v3172, %v3171
        %v3184 = vpack.c.b16 %v3174, %v3173
        %v3185 = vpack.c.b16 %v3176, %v3175
        %v3186 = vpack.c.b16 %v3178, %v3177
        %v3211 = vunpack.c.l.b16 %v3147
        %v3212 = vunpack.c.l.b16 %v3148
        %v3213 = vunpack.c.l.b16 %v3149
        %v3214 = vunpack.c.l.b16 %v3150
        %v3215 = vunpack.c.l.b16 %v3151
        %v3216 = vunpack.c.l.b16 %v3152
        %v3217 = vunpack.c.l.b16 %v3153
        %v3218 = vunpack.c.l.b16 %v3154
        %v3219 = vunpack.c.l.b16 %v3155
        %v3220 = vunpack.c.l.b16 %v3156
        %v3221 = vunpack.c.l.b16 %v3157
        %v3222 = vunpack.c.l.b16 %v3158
        %v3223 = vunpack.c.l.b16 %v3159
        %v3224 = vunpack.c.l.b16 %v3160
        %v3225 = vunpack.c.l.b16 %v3161
        %v3226 = vunpack.c.l.b16 %v3162
        %v3227 = vpack.c.b16 %v3212, %v3211
        %v3228 = vpack.c.b16 %v3214, %v3213
        %v3229 = vpack.c.b16 %v3216, %v3215
        %v3230 = vpack.c.b16 %v3218, %v3217
        %v3231 = vpack.c.b16 %v3220, %v3219
        %v3232 = vpack.c.b16 %v3222, %v3221
        %v3233 = vpack.c.b16 %v3224, %v3223
        %v3234 = vpack.c.b16 %v3226, %v3225
        %3243 = vmatpush.bf16.msra.mxu0 %v3234
        %3244 = vmatpush.bf16.msra.mxu0 %v3233
        %3245 = vmatpush.bf16.msra.mxu0 %v3232
        %3246 = vmatpush.bf16.msra.mxu0 %v3231
        %3247 = vmatpush.bf16.msra.mxu0 %v3230
        %3248 = vmatpush.bf16.msra.mxu0 %v3229
        %3249 = vmatpush.bf16.msra.mxu0 %v3228
        %3250 = vmatpush.bf16.msra.mxu0 %v3227
        %3251 = vmatmul.bf16.gmra.mxu0 %v3179
        %v3252 = vpop.f32.mrf.mxu0
        %v3253 = vadd.f32 0.0, %v3252
        %v3254 = vpop.f32.mrf.mxu0
        %v3255 = vadd.f32 0.0, %v3254
        %3256 = vmatmul.bf16.gmra.mxu0 %v3180
        %v3257 = vpop.f32.mrf.mxu0
        %v3258 = vadd.f32 0.0, %v3257
        %v3259 = vpop.f32.mrf.mxu0
        %v3260 = vadd.f32 0.0, %v3259
        %3261 = vmatmul.bf16.gmra.mxu0 %v3181
        %v3262 = vpop.f32.mrf.mxu0
        %v3263 = vadd.f32 0.0, %v3262
        %v3264 = vpop.f32.mrf.mxu0
        %v3265 = vadd.f32 0.0, %v3264
        %3266 = vmatmul.bf16.gmra.mxu0 %v3182
        %v3267 = vpop.f32.mrf.mxu0
        %v3268 = vadd.f32 0.0, %v3267
        %v3269 = vpop.f32.mrf.mxu0
        %v3270 = vadd.f32 0.0, %v3269
        %3271 = vmatmul.bf16.gmra.mxu0 %v3183
        %v3272 = vpop.f32.mrf.mxu0
        %v3273 = vadd.f32 0.0, %v3272
        %v3274 = vpop.f32.mrf.mxu0
        %v3275 = vadd.f32 0.0, %v3274
        %3276 = vmatmul.bf16.gmra.mxu0 %v3184
        %v3277 = vpop.f32.mrf.mxu0
        %v3278 = vadd.f32 0.0, %v3277
        %v3279 = vpop.f32.mrf.mxu0
        %v3280 = vadd.f32 0.0, %v3279
        %3281 = vmatmul.bf16.gmra.mxu0 %v3185
        %v3282 = vpop.f32.mrf.mxu0
        %v3283 = vadd.f32 0.0, %v3282
        %v3284 = vpop.f32.mrf.mxu0
        %v3285 = vadd.f32 0.0, %v3284
        %3286 = vmatmul.bf16.gmra.mxu0 %v3186
        %v3287 = vpop.f32.mrf.mxu0
        %v3288 = vadd.f32 0.0, %v3287
        %v3289 = vpop.f32.mrf.mxu0
        %v3290 = vadd.f32 0.0, %v3289
        %3291 = vdwg.mxu0
        %v3292 = vadd.f32 %v3022, %v3253
        %v3293 = vadd.f32 %v3023, %v3255
        %v3294 = vadd.f32 %v3024, %v3258
        %v3295 = vadd.f32 %v3025, %v3260
        %v3296 = vadd.f32 %v3026, %v3263
        %v3297 = vadd.f32 %v3027, %v3265
        %v3298 = vadd.f32 %v3028, %v3268
        %v3299 = vadd.f32 %v3029, %v3270
        %v3300 = vadd.f32 %v3030, %v3273
        %v3301 = vadd.f32 %v3031, %v3275
        %v3302 = vadd.f32 %v3032, %v3278
        %v3303 = vadd.f32 %v3033, %v3280
        %v3304 = vadd.f32 %v3034, %v3283
        %v3305 = vadd.f32 %v3035, %v3285
        %v3306 = vadd.f32 %v3036, %v3288
        %v3307 = vadd.f32 %v3037, %v3290
        %v3308 = vld [vmem:[%s3041 + $0x10] sm:$0xf]
        %v3309 = vld [vmem:[%s3041 + $0x30] sm:$0xf]
        %v3310 = vld [vmem:[%s3041 + $0x50] sm:$0xf]
        %v3311 = vld [vmem:[%s3041 + $0x70] sm:$0xf]
        %v3312 = vld [vmem:[%s3041 + $0x90] sm:$0xf]
        %v3313 = vld [vmem:[%s3041 + $0xb0] sm:$0xf]
        %v3314 = vld [vmem:[%s3041 + $0xd0] sm:$0xf]
        %v3315 = vld [vmem:[%s3041 + $0xf0] sm:$0xf]
        %s3316 = scalar_lea.vmem %s559, 448 [#allocation10]
        %v3317 = vld [vmem:[%s3316] sm:$0xf]
        %v3318 = vld [vmem:[%s3316 + $0x4] sm:$0xf]
        %v3319 = vld [vmem:[%s3316 + $0x8] sm:$0xf]
        %v3320 = vld [vmem:[%s3316 + $0xc] sm:$0xf]
        %v3321 = vld [vmem:[%s3316 + $0x10] sm:$0xf]
        %v3322 = vld [vmem:[%s3316 + $0x14] sm:$0xf]
        %v3323 = vld [vmem:[%s3316 + $0x18] sm:$0xf]
        %v3324 = vld [vmem:[%s3316 + $0x1c] sm:$0xf]
        %v3325 = vld [vmem:[%s3316 + $0x20] sm:$0xf]
        %v3326 = vld [vmem:[%s3316 + $0x24] sm:$0xf]
        %v3327 = vld [vmem:[%s3316 + $0x28] sm:$0xf]
        %v3328 = vld [vmem:[%s3316 + $0x2c] sm:$0xf]
        %v3329 = vld [vmem:[%s3316 + $0x30] sm:$0xf]
        %v3330 = vld [vmem:[%s3316 + $0x34] sm:$0xf]
        %v3331 = vld [vmem:[%s3316 + $0x38] sm:$0xf]
        %v3332 = vld [vmem:[%s3316 + $0x3c] sm:$0xf]
        %v3341 = vunpack.c.l.b16 %v3043
        %v3342 = vunpack.c.l.b16 %v3308
        %v3343 = vunpack.c.l.b16 %v3046
        %v3344 = vunpack.c.l.b16 %v3309
        %v3345 = vunpack.c.l.b16 %v3049
        %v3346 = vunpack.c.l.b16 %v3310
        %v3347 = vunpack.c.l.b16 %v3052
        %v3348 = vunpack.c.l.b16 %v3311
        %v3349 = vunpack.c.l.b16 %v3055
        %v3350 = vunpack.c.l.b16 %v3312
        %v3351 = vunpack.c.l.b16 %v3058
        %v3352 = vunpack.c.l.b16 %v3313
        %v3353 = vunpack.c.l.b16 %v3061
        %v3354 = vunpack.c.l.b16 %v3314
        %v3355 = vunpack.c.l.b16 %v3064
        %v3356 = vunpack.c.l.b16 %v3315
        %v3357 = vpack.c.b16 %v3342, %v3341
        %v3358 = vpack.c.b16 %v3344, %v3343
        %v3359 = vpack.c.b16 %v3346, %v3345
        %v3360 = vpack.c.b16 %v3348, %v3347
        %v3361 = vpack.c.b16 %v3350, %v3349
        %v3362 = vpack.c.b16 %v3352, %v3351
        %v3363 = vpack.c.b16 %v3354, %v3353
        %v3364 = vpack.c.b16 %v3356, %v3355
        %v3389 = vunpack.c.l.b16 %v3317
        %v3390 = vunpack.c.l.b16 %v3318
        %v3391 = vunpack.c.l.b16 %v3319
        %v3392 = vunpack.c.l.b16 %v3320
        %v3393 = vunpack.c.l.b16 %v3321
        %v3394 = vunpack.c.l.b16 %v3322
        %v3395 = vunpack.c.l.b16 %v3323
        %v3396 = vunpack.c.l.b16 %v3324
        %v3397 = vunpack.c.l.b16 %v3325
        %v3398 = vunpack.c.l.b16 %v3326
        %v3399 = vunpack.c.l.b16 %v3327
        %v3400 = vunpack.c.l.b16 %v3328
        %v3401 = vunpack.c.l.b16 %v3329
        %v3402 = vunpack.c.l.b16 %v3330
        %v3403 = vunpack.c.l.b16 %v3331
        %v3404 = vunpack.c.l.b16 %v3332
        %v3405 = vpack.c.b16 %v3390, %v3389
        %v3406 = vpack.c.b16 %v3392, %v3391
        %v3407 = vpack.c.b16 %v3394, %v3393
        %v3408 = vpack.c.b16 %v3396, %v3395
        %v3409 = vpack.c.b16 %v3398, %v3397
        %v3410 = vpack.c.b16 %v3400, %v3399
        %v3411 = vpack.c.b16 %v3402, %v3401
        %v3412 = vpack.c.b16 %v3404, %v3403
        %3421 = vmatpush.bf16.msra.mxu0 %v3412
        %3422 = vmatpush.bf16.msra.mxu0 %v3411
        %3423 = vmatpush.bf16.msra.mxu0 %v3410
        %3424 = vmatpush.bf16.msra.mxu0 %v3409
        %3425 = vmatpush.bf16.msra.mxu0 %v3408
        %3426 = vmatpush.bf16.msra.mxu0 %v3407
        %3427 = vmatpush.bf16.msra.mxu0 %v3406
        %3428 = vmatpush.bf16.msra.mxu0 %v3405
        %3429 = vmatmul.bf16.gmra.mxu0 %v3357
        %v3430 = vpop.f32.mrf.mxu0
        %v3431 = vadd.f32 0.0, %v3430
        %v3432 = vpop.f32.mrf.mxu0
        %v3433 = vadd.f32 0.0, %v3432
        %3434 = vmatmul.bf16.gmra.mxu0 %v3358
        %v3435 = vpop.f32.mrf.mxu0
        %v3436 = vadd.f32 0.0, %v3435
        %v3437 = vpop.f32.mrf.mxu0
        %v3438 = vadd.f32 0.0, %v3437
        %3439 = vmatmul.bf16.gmra.mxu0 %v3359
        %v3440 = vpop.f32.mrf.mxu0
        %v3441 = vadd.f32 0.0, %v3440
        %v3442 = vpop.f32.mrf.mxu0
        %v3443 = vadd.f32 0.0, %v3442
        %3444 = vmatmul.bf16.gmra.mxu0 %v3360
        %v3445 = vpop.f32.mrf.mxu0
        %v3446 = vadd.f32 0.0, %v3445
        %v3447 = vpop.f32.mrf.mxu0
        %v3448 = vadd.f32 0.0, %v3447
        %3449 = vmatmul.bf16.gmra.mxu0 %v3361
        %v3450 = vpop.f32.mrf.mxu0
        %v3451 = vadd.f32 0.0, %v3450
        %v3452 = vpop.f32.mrf.mxu0
        %v3453 = vadd.f32 0.0, %v3452
        %3454 = vmatmul.bf16.gmra.mxu0 %v3362
        %v3455 = vpop.f32.mrf.mxu0
        %v3456 = vadd.f32 0.0, %v3455
        %v3457 = vpop.f32.mrf.mxu0
        %v3458 = vadd.f32 0.0, %v3457
        %3459 = vmatmul.bf16.gmra.mxu0 %v3363
        %v3460 = vpop.f32.mrf.mxu0
        %v3461 = vadd.f32 0.0, %v3460
        %v3462 = vpop.f32.mrf.mxu0
        %v3463 = vadd.f32 0.0, %v3462
        %3464 = vmatmul.bf16.gmra.mxu0 %v3364
        %v3465 = vpop.f32.mrf.mxu0
        %v3466 = vadd.f32 0.0, %v3465
        %v3467 = vpop.f32.mrf.mxu0
        %v3468 = vadd.f32 0.0, %v3467
        %3469 = vdwg.mxu0
        %v3470 = vadd.f32 %v3292, %v3431
        %v3471 = vadd.f32 %v3293, %v3433
        %v3472 = vadd.f32 %v3294, %v3436
        %v3473 = vadd.f32 %v3295, %v3438
        %v3474 = vadd.f32 %v3296, %v3441
        %v3475 = vadd.f32 %v3297, %v3443
        %v3476 = vadd.f32 %v3298, %v3446
        %v3477 = vadd.f32 %v3299, %v3448
        %v3478 = vadd.f32 %v3300, %v3451
        %v3479 = vadd.f32 %v3301, %v3453
        %v3480 = vadd.f32 %v3302, %v3456
        %v3481 = vadd.f32 %v3303, %v3458
        %v3482 = vadd.f32 %v3304, %v3461
        %v3483 = vadd.f32 %v3305, %v3463
        %v3484 = vadd.f32 %v3306, %v3466
        %v3485 = vadd.f32 %v3307, %v3468
        %v3486 = vld [vmem:[%s3041 + $0xc] sm:$0x8]
        %v3487 = vld [vmem:[%s3041 + $0x10] sm:$0xf]
        %v3488 = vld [vmem:[%s3041 + $0x14] sm:$0x7]
        %v3489 = vld [vmem:[%s3041 + $0x2c] sm:$0x8]
        %v3490 = vld [vmem:[%s3041 + $0x30] sm:$0xf]
        %v3491 = vld [vmem:[%s3041 + $0x34] sm:$0x7]
        %v3492 = vld [vmem:[%s3041 + $0x4c] sm:$0x8]
        %v3493 = vld [vmem:[%s3041 + $0x50] sm:$0xf]
        %v3494 = vld [vmem:[%s3041 + $0x54] sm:$0x7]
        %v3495 = vld [vmem:[%s3041 + $0x6c] sm:$0x8]
        %v3496 = vld [vmem:[%s3041 + $0x70] sm:$0xf]
        %v3497 = vld [vmem:[%s3041 + $0x74] sm:$0x7]
        %v3498 = vld [vmem:[%s3041 + $0x8c] sm:$0x8]
        %v3499 = vld [vmem:[%s3041 + $0x90] sm:$0xf]
        %v3500 = vld [vmem:[%s3041 + $0x94] sm:$0x7]
        %v3501 = vld [vmem:[%s3041 + $0xac] sm:$0x8]
        %v3502 = vld [vmem:[%s3041 + $0xb0] sm:$0xf]
        %v3503 = vld [vmem:[%s3041 + $0xb4] sm:$0x7]
        %v3504 = vld [vmem:[%s3041 + $0xcc] sm:$0x8]
        %v3505 = vld [vmem:[%s3041 + $0xd0] sm:$0xf]
        %v3506 = vld [vmem:[%s3041 + $0xd4] sm:$0x7]
        %v3507 = vld [vmem:[%s3041 + $0xec] sm:$0x8]
        %v3508 = vld [vmem:[%s3041 + $0xf0] sm:$0xf]
        %v3509 = vld [vmem:[%s3041 + $0xf4] sm:$0x7]
        %v3534 = vrot.slane %v3486, 7
        %v3535 = vrot.slane %v3534, 4
        %v3536 = vrot.slane %v3487, 7
        %v3537 = vsel %vm2157, %v3535, %v3536
        %v3538 = vrot.slane %v3536, 4
        %v3539 = vrot.slane %v3488, 7
        %v3540 = vsel %vm2157, %v3538, %v3539
        %v3541 = vrot.slane %v3489, 7
        %v3542 = vrot.slane %v3541, 4
        %v3543 = vrot.slane %v3490, 7
        %v3544 = vsel %vm2157, %v3542, %v3543
        %v3545 = vrot.slane %v3543, 4
        %v3546 = vrot.slane %v3491, 7
        %v3547 = vsel %vm2157, %v3545, %v3546
        %v3548 = vrot.slane %v3492, 7
        %v3549 = vrot.slane %v3548, 4
        %v3550 = vrot.slane %v3493, 7
        %v3551 = vsel %vm2157, %v3549, %v3550
        %v3552 = vrot.slane %v3550, 4
        %v3553 = vrot.slane %v3494, 7
        %v3554 = vsel %vm2157, %v3552, %v3553
        %v3555 = vrot.slane %v3495, 7
        %v3556 = vrot.slane %v3555, 4
        %v3557 = vrot.slane %v3496, 7
        %v3558 = vsel %vm2157, %v3556, %v3557
        %v3559 = vrot.slane %v3557, 4
        %v3560 = vrot.slane %v3497, 7
        %v3561 = vsel %vm2157, %v3559, %v3560
        %v3562 = vrot.slane %v3498, 7
        %v3563 = vrot.slane %v3562, 4
        %v3564 = vrot.slane %v3499, 7
        %v3565 = vsel %vm2157, %v3563, %v3564
        %v3566 = vrot.slane %v3564, 4
        %v3567 = vrot.slane %v3500, 7
        %v3568 = vsel %vm2157, %v3566, %v3567
        %v3569 = vrot.slane %v3501, 7
        %v3570 = vrot.slane %v3569, 4
        %v3571 = vrot.slane %v3502, 7
        %v3572 = vsel %vm2157, %v3570, %v3571
        %v3573 = vrot.slane %v3571, 4
        %v3574 = vrot.slane %v3503, 7
        %v3575 = vsel %vm2157, %v3573, %v3574
        %v3576 = vrot.slane %v3504, 7
        %v3577 = vrot.slane %v3576, 4
        %v3578 = vrot.slane %v3505, 7
        %v3579 = vsel %vm2157, %v3577, %v3578
        %v3580 = vrot.slane %v3578, 4
        %v3581 = vrot.slane %v3506, 7
        %v3582 = vsel %vm2157, %v3580, %v3581
        %v3583 = vrot.slane %v3507, 7
        %v3584 = vrot.slane %v3583, 4
        %v3585 = vrot.slane %v3508, 7
        %v3586 = vsel %vm2157, %v3584, %v3585
        %v3587 = vrot.slane %v3585, 4
        %v3588 = vrot.slane %v3509, 7
        %v3589 = vsel %vm2157, %v3587, %v3588
        %s3590 = scalar_lea.vmem %s559, 512 [#allocation10]
        %v3591 = vld [vmem:[%s3590] sm:$0xf]
        %v3592 = vld [vmem:[%s3590 + $0x4] sm:$0xf]
        %v3593 = vld [vmem:[%s3590 + $0x8] sm:$0xf]
        %v3594 = vld [vmem:[%s3590 + $0xc] sm:$0xf]
        %v3595 = vld [vmem:[%s3590 + $0x10] sm:$0xf]
        %v3596 = vld [vmem:[%s3590 + $0x14] sm:$0xf]
        %v3597 = vld [vmem:[%s3590 + $0x18] sm:$0xf]
        %v3598 = vld [vmem:[%s3590 + $0x1c] sm:$0xf]
        %v3599 = vld [vmem:[%s3590 + $0x20] sm:$0xf]
        %v3600 = vld [vmem:[%s3590 + $0x24] sm:$0xf]
        %v3601 = vld [vmem:[%s3590 + $0x28] sm:$0xf]
        %v3602 = vld [vmem:[%s3590 + $0x2c] sm:$0xf]
        %v3603 = vld [vmem:[%s3590 + $0x30] sm:$0xf]
        %v3604 = vld [vmem:[%s3590 + $0x34] sm:$0xf]
        %v3605 = vld [vmem:[%s3590 + $0x38] sm:$0xf]
        %v3606 = vld [vmem:[%s3590 + $0x3c] sm:$0xf]
        %v3607 = vunpack.c.l.b16 %v3537
        %v3608 = vunpack.c.l.b16 %v3540
        %v3609 = vunpack.c.l.b16 %v3544
        %v3610 = vunpack.c.l.b16 %v3547
        %v3611 = vunpack.c.l.b16 %v3551
        %v3612 = vunpack.c.l.b16 %v3554
        %v3613 = vunpack.c.l.b16 %v3558
        %v3614 = vunpack.c.l.b16 %v3561
        %v3615 = vunpack.c.l.b16 %v3565
        %v3616 = vunpack.c.l.b16 %v3568
        %v3617 = vunpack.c.l.b16 %v3572
        %v3618 = vunpack.c.l.b16 %v3575
        %v3619 = vunpack.c.l.b16 %v3579
        %v3620 = vunpack.c.l.b16 %v3582
        %v3621 = vunpack.c.l.b16 %v3586
        %v3622 = vunpack.c.l.b16 %v3589
        %v3623 = vpack.c.b16 %v3608, %v3607
        %v3624 = vpack.c.b16 %v3610, %v3609
        %v3625 = vpack.c.b16 %v3612, %v3611
        %v3626 = vpack.c.b16 %v3614, %v3613
        %v3627 = vpack.c.b16 %v3616, %v3615
        %v3628 = vpack.c.b16 %v3618, %v3617
        %v3629 = vpack.c.b16 %v3620, %v3619
        %v3630 = vpack.c.b16 %v3622, %v3621
        %v3655 = vunpack.c.l.b16 %v3591
        %v3656 = vunpack.c.l.b16 %v3592
        %v3657 = vunpack.c.l.b16 %v3593
        %v3658 = vunpack.c.l.b16 %v3594
        %v3659 = vunpack.c.l.b16 %v3595
        %v3660 = vunpack.c.l.b16 %v3596
        %v3661 = vunpack.c.l.b16 %v3597
        %v3662 = vunpack.c.l.b16 %v3598
        %v3663 = vunpack.c.l.b16 %v3599
        %v3664 = vunpack.c.l.b16 %v3600
        %v3665 = vunpack.c.l.b16 %v3601
        %v3666 = vunpack.c.l.b16 %v3602
        %v3667 = vunpack.c.l.b16 %v3603
        %v3668 = vunpack.c.l.b16 %v3604
        %v3669 = vunpack.c.l.b16 %v3605
        %v3670 = vunpack.c.l.b16 %v3606
        %v3671 = vpack.c.b16 %v3656, %v3655
        %v3672 = vpack.c.b16 %v3658, %v3657
        %v3673 = vpack.c.b16 %v3660, %v3659
        %v3674 = vpack.c.b16 %v3662, %v3661
        %v3675 = vpack.c.b16 %v3664, %v3663
        %v3676 = vpack.c.b16 %v3666, %v3665
        %v3677 = vpack.c.b16 %v3668, %v3667
        %v3678 = vpack.c.b16 %v3670, %v3669
        %3687 = vmatpush.bf16.msra.mxu0 %v3678
        %3688 = vmatpush.bf16.msra.mxu0 %v3677
        %3689 = vmatpush.bf16.msra.mxu0 %v3676
        %3690 = vmatpush.bf16.msra.mxu0 %v3675
        %3691 = vmatpush.bf16.msra.mxu0 %v3674
        %3692 = vmatpush.bf16.msra.mxu0 %v3673
        %3693 = vmatpush.bf16.msra.mxu0 %v3672
        %3694 = vmatpush.bf16.msra.mxu0 %v3671
        %3695 = vmatmul.bf16.gmra.mxu0 %v3623
        %v3696 = vpop.f32.mrf.mxu0
        %v3697 = vadd.f32 0.0, %v3696
        %v3698 = vpop.f32.mrf.mxu0
        %v3699 = vadd.f32 0.0, %v3698
        %3700 = vmatmul.bf16.gmra.mxu0 %v3624
        %v3701 = vpop.f32.mrf.mxu0
        %v3702 = vadd.f32 0.0, %v3701
        %v3703 = vpop.f32.mrf.mxu0
        %v3704 = vadd.f32 0.0, %v3703
        %3705 = vmatmul.bf16.gmra.mxu0 %v3625
        %v3706 = vpop.f32.mrf.mxu0
        %v3707 = vadd.f32 0.0, %v3706
        %v3708 = vpop.f32.mrf.mxu0
        %v3709 = vadd.f32 0.0, %v3708
        %3710 = vmatmul.bf16.gmra.mxu0 %v3626
        %v3711 = vpop.f32.mrf.mxu0
        %v3712 = vadd.f32 0.0, %v3711
        %v3713 = vpop.f32.mrf.mxu0
        %v3714 = vadd.f32 0.0, %v3713
        %3715 = vmatmul.bf16.gmra.mxu0 %v3627
        %v3716 = vpop.f32.mrf.mxu0
        %v3717 = vadd.f32 0.0, %v3716
        %v3718 = vpop.f32.mrf.mxu0
        %v3719 = vadd.f32 0.0, %v3718
        %3720 = vmatmul.bf16.gmra.mxu0 %v3628
        %v3721 = vpop.f32.mrf.mxu0
        %v3722 = vadd.f32 0.0, %v3721
        %v3723 = vpop.f32.mrf.mxu0
        %v3724 = vadd.f32 0.0, %v3723
        %3725 = vmatmul.bf16.gmra.mxu0 %v3629
        %v3726 = vpop.f32.mrf.mxu0
        %v3727 = vadd.f32 0.0, %v3726
        %v3728 = vpop.f32.mrf.mxu0
        %v3729 = vadd.f32 0.0, %v3728
        %3730 = vmatmul.bf16.gmra.mxu0 %v3630
        %v3731 = vpop.f32.mrf.mxu0
        %v3732 = vadd.f32 0.0, %v3731
        %v3733 = vpop.f32.mrf.mxu0
        %v3734 = vadd.f32 0.0, %v3733
        %3735 = vdwg.mxu0
        %v3736 = vadd.f32 %v3470, %v3697
        %v3737 = vadd.f32 %v3471, %v3699
        %v3738 = vadd.f32 %v3472, %v3702
        %v3739 = vadd.f32 %v3473, %v3704
        %v3740 = vadd.f32 %v3474, %v3707
        %v3741 = vadd.f32 %v3475, %v3709
        %v3742 = vadd.f32 %v3476, %v3712
        %v3743 = vadd.f32 %v3477, %v3714
        %v3744 = vadd.f32 %v3478, %v3717
        %v3745 = vadd.f32 %v3479, %v3719
        %v3746 = vadd.f32 %v3480, %v3722
        %v3747 = vadd.f32 %v3481, %v3724
        %v3748 = vadd.f32 %v3482, %v3727
        %v3749 = vadd.f32 %v3483, %v3729
        %v3750 = vadd.f32 %v3484, %v3732
        %v3751 = vadd.f32 %v3485, %v3734
        %v3752 = vld [vmem:[#allocation3 + $0x8] sm:$0xff]
        %v3753 = vld [vmem:[#allocation3 + $0x28] sm:$0xff]
        %v3754 = vld [vmem:[#allocation3 + $0x48] sm:$0xff]
        %v3755 = vld [vmem:[#allocation3 + $0x68] sm:$0xff]
        %v3756 = vld [vmem:[#allocation3 + $0x88] sm:$0xff]
        %v3757 = vld [vmem:[#allocation3 + $0xa8] sm:$0xff]
        %v3758 = vld [vmem:[#allocation3 + $0xc8] sm:$0xff]
        %v3759 = vld [vmem:[#allocation3 + $0xe8] sm:$0xff]
        %v3760 = vld [vmem:[#allocation3 + $0x108] sm:$0xff]
        %v3761 = vld [vmem:[#allocation3 + $0x128] sm:$0xff]
        %v3762 = vld [vmem:[#allocation3 + $0x148] sm:$0xff]
        %v3763 = vld [vmem:[#allocation3 + $0x168] sm:$0xff]
        %v3764 = vld [vmem:[#allocation3 + $0x188] sm:$0xff]
        %v3765 = vld [vmem:[#allocation3 + $0x1a8] sm:$0xff]
        %v3766 = vld [vmem:[#allocation3 + $0x1c8] sm:$0xff]
        %v3767 = vld [vmem:[#allocation3 + $0x1e8] sm:$0xff]
        %v3768 = vadd.f32 %v3752, %v3736
        %v3769 = vadd.f32 %v3753, %v3737
        %v3770 = vadd.f32 %v3754, %v3738
        %v3771 = vadd.f32 %v3755, %v3739
        %v3772 = vadd.f32 %v3756, %v3740
        %v3773 = vadd.f32 %v3757, %v3741
        %v3774 = vadd.f32 %v3758, %v3742
        %v3775 = vadd.f32 %v3759, %v3743
        %v3776 = vadd.f32 %v3760, %v3744
        %v3777 = vadd.f32 %v3761, %v3745
        %v3778 = vadd.f32 %v3762, %v3746
        %v3779 = vadd.f32 %v3763, %v3747
        %v3780 = vadd.f32 %v3764, %v3748
        %v3781 = vadd.f32 %v3765, %v3749
        %v3782 = vadd.f32 %v3766, %v3750
        %v3783 = vadd.f32 %v3767, %v3751
        %3784 = vst [vmem:[#allocation3 + $0x8] sm:$0xff] %v3768
        %3785 = vst [vmem:[#allocation3 + $0x28] sm:$0xff] %v3769
        %3786 = vst [vmem:[#allocation3 + $0x48] sm:$0xff] %v3770
        %3787 = vst [vmem:[#allocation3 + $0x68] sm:$0xff] %v3771
        %3788 = vst [vmem:[#allocation3 + $0x88] sm:$0xff] %v3772
        %3789 = vst [vmem:[#allocation3 + $0xa8] sm:$0xff] %v3773
        %3790 = vst [vmem:[#allocation3 + $0xc8] sm:$0xff] %v3774
        %3791 = vst [vmem:[#allocation3 + $0xe8] sm:$0xff] %v3775
        %3792 = vst [vmem:[#allocation3 + $0x108] sm:$0xff] %v3776
        %3793 = vst [vmem:[#allocation3 + $0x128] sm:$0xff] %v3777
        %3794 = vst [vmem:[#allocation3 + $0x148] sm:$0xff] %v3778
        %3795 = vst [vmem:[#allocation3 + $0x168] sm:$0xff] %v3779
        %3796 = vst [vmem:[#allocation3 + $0x188] sm:$0xff] %v3780
        %3797 = vst [vmem:[#allocation3 + $0x1a8] sm:$0xff] %v3781
        %3798 = vst [vmem:[#allocation3 + $0x1c8] sm:$0xff] %v3782
        %3799 = vst [vmem:[#allocation3 + $0x1e8] sm:$0xff] %v3783
        %s3800 = sadd.s32 %s666, 12
        %s3801 = smul.u32 %s3800, 8
        %s3802 = smul.addr %s3801, 4
        %s3803 = scalar_lea.vmem [#allocation2], %s3802
        %v3804 = vld [vmem:[%s3803 + $0x4] sm:$0xc]
        %v3805 = vld [vmem:[%s3803 + $0x8] sm:$0xf]
        %v3806 = vld [vmem:[%s3803 + $0xc] sm:$0x3]
        %v3807 = vld [vmem:[%s3803 + $0x24] sm:$0xc]
        %v3808 = vld [vmem:[%s3803 + $0x28] sm:$0xf]
        %v3809 = vld [vmem:[%s3803 + $0x2c] sm:$0x3]
        %v3810 = vld [vmem:[%s3803 + $0x44] sm:$0xc]
        %v3811 = vld [vmem:[%s3803 + $0x48] sm:$0xf]
        %v3812 = vld [vmem:[%s3803 + $0x4c] sm:$0x3]
        %v3813 = vld [vmem:[%s3803 + $0x64] sm:$0xc]
        %v3814 = vld [vmem:[%s3803 + $0x68] sm:$0xf]
        %v3815 = vld [vmem:[%s3803 + $0x6c] sm:$0x3]
        %v3816 = vld [vmem:[%s3803 + $0x84] sm:$0xc]
        %v3817 = vld [vmem:[%s3803 + $0x88] sm:$0xf]
        %v3818 = vld [vmem:[%s3803 + $0x8c] sm:$0x3]
        %v3819 = vld [vmem:[%s3803 + $0xa4] sm:$0xc]
        %v3820 = vld [vmem:[%s3803 + $0xa8] sm:$0xf]
        %v3821 = vld [vmem:[%s3803 + $0xac] sm:$0x3]
        %v3822 = vld [vmem:[%s3803 + $0xc4] sm:$0xc]
        %v3823 = vld [vmem:[%s3803 + $0xc8] sm:$0xf]
        %v3824 = vld [vmem:[%s3803 + $0xcc] sm:$0x3]
        %v3825 = vld [vmem:[%s3803 + $0xe4] sm:$0xc]
        %v3826 = vld [vmem:[%s3803 + $0xe8] sm:$0xf]
        %v3827 = vld [vmem:[%s3803 + $0xec] sm:$0x3]
        %vm3852 = vcmask 1041408
        %vm3853 = vcmask 1045508
        %vm3854 = vmor %vm3852, %vm3853
        %v3855 = vrot.slane %v3804, 6
        %v3856 = vrot.slane %v3855, 4
        %v3857 = vrot.slane %v3805, 6
        %v3858 = vsel %vm3854, %v3856, %v3857
        %v3859 = vrot.slane %v3857, 4
        %v3860 = vrot.slane %v3806, 6
        %v3861 = vsel %vm3854, %v3859, %v3860
        %v3862 = vrot.slane %v3807, 6
        %v3863 = vrot.slane %v3862, 4
        %v3864 = vrot.slane %v3808, 6
        %v3865 = vsel %vm3854, %v3863, %v3864
        %v3866 = vrot.slane %v3864, 4
        %v3867 = vrot.slane %v3809, 6
        %v3868 = vsel %vm3854, %v3866, %v3867
        %v3869 = vrot.slane %v3810, 6
        %v3870 = vrot.slane %v3869, 4
        %v3871 = vrot.slane %v3811, 6
        %v3872 = vsel %vm3854, %v3870, %v3871
        %v3873 = vrot.slane %v3871, 4
        %v3874 = vrot.slane %v3812, 6
        %v3875 = vsel %vm3854, %v3873, %v3874
        %v3876 = vrot.slane %v3813, 6
        %v3877 = vrot.slane %v3876, 4
        %v3878 = vrot.slane %v3814, 6
        %v3879 = vsel %vm3854, %v3877, %v3878
        %v3880 = vrot.slane %v3878, 4
        %v3881 = vrot.slane %v3815, 6
        %v3882 = vsel %vm3854, %v3880, %v3881
        %v3883 = vrot.slane %v3816, 6
        %v3884 = vrot.slane %v3883, 4
        %v3885 = vrot.slane %v3817, 6
        %v3886 = vsel %vm3854, %v3884, %v3885
        %v3887 = vrot.slane %v3885, 4
        %v3888 = vrot.slane %v3818, 6
        %v3889 = vsel %vm3854, %v3887, %v3888
        %v3890 = vrot.slane %v3819, 6
        %v3891 = vrot.slane %v3890, 4
        %v3892 = vrot.slane %v3820, 6
        %v3893 = vsel %vm3854, %v3891, %v3892
        %v3894 = vrot.slane %v3892, 4
        %v3895 = vrot.slane %v3821, 6
        %v3896 = vsel %vm3854, %v3894, %v3895
        %v3897 = vrot.slane %v3822, 6
        %v3898 = vrot.slane %v3897, 4
        %v3899 = vrot.slane %v3823, 6
        %v3900 = vsel %vm3854, %v3898, %v3899
        %v3901 = vrot.slane %v3899, 4
        %v3902 = vrot.slane %v3824, 6
        %v3903 = vsel %vm3854, %v3901, %v3902
        %v3904 = vrot.slane %v3825, 6
        %v3905 = vrot.slane %v3904, 4
        %v3906 = vrot.slane %v3826, 6
        %v3907 = vsel %vm3854, %v3905, %v3906
        %v3908 = vrot.slane %v3906, 4
        %v3909 = vrot.slane %v3827, 6
        %v3910 = vsel %vm3854, %v3908, %v3909
        %v3911 = vld [vmem:[%s569] sm:$0xf]
        %v3912 = vld [vmem:[%s569 + $0x4] sm:$0xf]
        %v3913 = vld [vmem:[%s569 + $0x8] sm:$0xf]
        %v3914 = vld [vmem:[%s569 + $0xc] sm:$0xf]
        %v3915 = vld [vmem:[%s569 + $0x10] sm:$0xf]
        %v3916 = vld [vmem:[%s569 + $0x14] sm:$0xf]
        %v3917 = vld [vmem:[%s569 + $0x18] sm:$0xf]
        %v3918 = vld [vmem:[%s569 + $0x1c] sm:$0xf]
        %v3919 = vld [vmem:[%s569 + $0x20] sm:$0xf]
        %v3920 = vld [vmem:[%s569 + $0x24] sm:$0xf]
        %v3921 = vld [vmem:[%s569 + $0x28] sm:$0xf]
        %v3922 = vld [vmem:[%s569 + $0x2c] sm:$0xf]
        %v3923 = vld [vmem:[%s569 + $0x30] sm:$0xf]
        %v3924 = vld [vmem:[%s569 + $0x34] sm:$0xf]
        %v3925 = vld [vmem:[%s569 + $0x38] sm:$0xf]
        %v3926 = vld [vmem:[%s569 + $0x3c] sm:$0xf]
        %v3927 = vld [vmem:[%s3803 + $0xc] sm:$0xf]
        %v3928 = vld [vmem:[%s3803 + $0x10] sm:$0xf]
        %v3929 = vld [vmem:[%s3803 + $0x2c] sm:$0xf]
        %v3930 = vld [vmem:[%s3803 + $0x30] sm:$0xf]
        %v3931 = vld [vmem:[%s3803 + $0x4c] sm:$0xf]
        %v3932 = vld [vmem:[%s3803 + $0x50] sm:$0xf]
        %v3933 = vld [vmem:[%s3803 + $0x6c] sm:$0xf]
        %v3934 = vld [vmem:[%s3803 + $0x70] sm:$0xf]
        %v3935 = vld [vmem:[%s3803 + $0x8c] sm:$0xf]
        %v3936 = vld [vmem:[%s3803 + $0x90] sm:$0xf]
        %v3937 = vld [vmem:[%s3803 + $0xac] sm:$0xf]
        %v3938 = vld [vmem:[%s3803 + $0xb0] sm:$0xf]
        %v3939 = vld [vmem:[%s3803 + $0xcc] sm:$0xf]
        %v3940 = vld [vmem:[%s3803 + $0xd0] sm:$0xf]
        %v3941 = vld [vmem:[%s3803 + $0xec] sm:$0xf]
        %v3942 = vld [vmem:[%s3803 + $0xf0] sm:$0xf]
        %s3943 = scalar_lea.vmem %s569, 64 [#allocation11]
        %v3944 = vld [vmem:[%s3943] sm:$0xf]
        %v3945 = vld [vmem:[%s3943 + $0x4] sm:$0xf]
        %v3946 = vld [vmem:[%s3943 + $0x8] sm:$0xf]
        %v3947 = vld [vmem:[%s3943 + $0xc] sm:$0xf]
        %v3948 = vld [vmem:[%s3943 + $0x10] sm:$0xf]
        %v3949 = vld [vmem:[%s3943 + $0x14] sm:$0xf]
        %v3950 = vld [vmem:[%s3943 + $0x18] sm:$0xf]
        %v3951 = vld [vmem:[%s3943 + $0x1c] sm:$0xf]
        %v3952 = vld [vmem:[%s3943 + $0x20] sm:$0xf]
        %v3953 = vld [vmem:[%s3943 + $0x24] sm:$0xf]
        %v3954 = vld [vmem:[%s3943 + $0x28] sm:$0xf]
        %v3955 = vld [vmem:[%s3943 + $0x2c] sm:$0xf]
        %v3956 = vld [vmem:[%s3943 + $0x30] sm:$0xf]
        %v3957 = vld [vmem:[%s3943 + $0x34] sm:$0xf]
        %v3958 = vld [vmem:[%s3943 + $0x38] sm:$0xf]
        %v3959 = vld [vmem:[%s3943 + $0x3c] sm:$0xf]
        %v3976 = vunpack.c.l.b16 %v3927
        %v3977 = vunpack.c.l.b16 %v3928
        %v3978 = vunpack.c.l.b16 %v3929
        %v3979 = vunpack.c.l.b16 %v3930
        %v3980 = vunpack.c.l.b16 %v3931
        %v3981 = vunpack.c.l.b16 %v3932
        %v3982 = vunpack.c.l.b16 %v3933
        %v3983 = vunpack.c.l.b16 %v3934
        %v3984 = vunpack.c.l.b16 %v3935
        %v3985 = vunpack.c.l.b16 %v3936
        %v3986 = vunpack.c.l.b16 %v3937
        %v3987 = vunpack.c.l.b16 %v3938
        %v3988 = vunpack.c.l.b16 %v3939
        %v3989 = vunpack.c.l.b16 %v3940
        %v3990 = vunpack.c.l.b16 %v3941
        %v3991 = vunpack.c.l.b16 %v3942
        %v3992 = vpack.c.b16 %v3977, %v3976
        %v3993 = vpack.c.b16 %v3979, %v3978
        %v3994 = vpack.c.b16 %v3981, %v3980
        %v3995 = vpack.c.b16 %v3983, %v3982
        %v3996 = vpack.c.b16 %v3985, %v3984
        %v3997 = vpack.c.b16 %v3987, %v3986
        %v3998 = vpack.c.b16 %v3989, %v3988
        %v3999 = vpack.c.b16 %v3991, %v3990
        %v4024 = vunpack.c.l.b16 %v3944
        %v4025 = vunpack.c.l.b16 %v3945
        %v4026 = vunpack.c.l.b16 %v3946
        %v4027 = vunpack.c.l.b16 %v3947
        %v4028 = vunpack.c.l.b16 %v3948
        %v4029 = vunpack.c.l.b16 %v3949
        %v4030 = vunpack.c.l.b16 %v3950
        %v4031 = vunpack.c.l.b16 %v3951
        %v4032 = vunpack.c.l.b16 %v3952
        %v4033 = vunpack.c.l.b16 %v3953
        %v4034 = vunpack.c.l.b16 %v3954
        %v4035 = vunpack.c.l.b16 %v3955
        %v4036 = vunpack.c.l.b16 %v3956
        %v4037 = vunpack.c.l.b16 %v3957
        %v4038 = vunpack.c.l.b16 %v3958
        %v4039 = vunpack.c.l.b16 %v3959
        %v4040 = vpack.c.b16 %v4025, %v4024
        %v4041 = vpack.c.b16 %v4027, %v4026
        %v4042 = vpack.c.b16 %v4029, %v4028
        %v4043 = vpack.c.b16 %v4031, %v4030
        %v4044 = vpack.c.b16 %v4033, %v4032
        %v4045 = vpack.c.b16 %v4035, %v4034
        %v4046 = vpack.c.b16 %v4037, %v4036
        %v4047 = vpack.c.b16 %v4039, %v4038
        %4056 = vmatpush.bf16.msra.mxu0 %v4047
        %4057 = vmatpush.bf16.msra.mxu0 %v4046
        %4058 = vmatpush.bf16.msra.mxu0 %v4045
        %4059 = vmatpush.bf16.msra.mxu0 %v4044
        %4060 = vmatpush.bf16.msra.mxu0 %v4043
        %4061 = vmatpush.bf16.msra.mxu0 %v4042
        %4062 = vmatpush.bf16.msra.mxu0 %v4041
        %4063 = vmatpush.bf16.msra.mxu0 %v4040
        %4064 = vmatmul.bf16.gmra.mxu0 %v3992
        %v4065 = vpop.f32.mrf.mxu0
        %v4066 = vadd.f32 0.0, %v4065
        %v4067 = vpop.f32.mrf.mxu0
        %v4068 = vadd.f32 0.0, %v4067
        %4069 = vmatmul.bf16.gmra.mxu0 %v3993
        %v4070 = vpop.f32.mrf.mxu0
        %v4071 = vadd.f32 0.0, %v4070
        %v4072 = vpop.f32.mrf.mxu0
        %v4073 = vadd.f32 0.0, %v4072
        %4074 = vmatmul.bf16.gmra.mxu0 %v3994
        %v4075 = vpop.f32.mrf.mxu0
        %v4076 = vadd.f32 0.0, %v4075
        %v4077 = vpop.f32.mrf.mxu0
        %v4078 = vadd.f32 0.0, %v4077
        %4079 = vmatmul.bf16.gmra.mxu0 %v3995
        %v4080 = vpop.f32.mrf.mxu0
        %v4081 = vadd.f32 0.0, %v4080
        %v4082 = vpop.f32.mrf.mxu0
        %v4083 = vadd.f32 0.0, %v4082
        %4084 = vmatmul.bf16.gmra.mxu0 %v3996
        %v4085 = vpop.f32.mrf.mxu0
        %v4086 = vadd.f32 0.0, %v4085
        %v4087 = vpop.f32.mrf.mxu0
        %v4088 = vadd.f32 0.0, %v4087
        %4089 = vmatmul.bf16.gmra.mxu0 %v3997
        %v4090 = vpop.f32.mrf.mxu0
        %v4091 = vadd.f32 0.0, %v4090
        %v4092 = vpop.f32.mrf.mxu0
        %v4093 = vadd.f32 0.0, %v4092
        %4094 = vmatmul.bf16.gmra.mxu0 %v3998
        %v4095 = vpop.f32.mrf.mxu0
        %v4096 = vadd.f32 0.0, %v4095
        %v4097 = vpop.f32.mrf.mxu0
        %v4098 = vadd.f32 0.0, %v4097
        %4099 = vmatmul.bf16.gmra.mxu0 %v3999
        %v4100 = vpop.f32.mrf.mxu0
        %v4101 = vadd.f32 0.0, %v4100
        %v4102 = vpop.f32.mrf.mxu0
        %v4103 = vadd.f32 0.0, %v4102
        %4104 = vdwg.mxu0
        %v4105 = vunpack.c.l.b16 %v3858
        %v4106 = vunpack.c.l.b16 %v3861
        %v4107 = vunpack.c.l.b16 %v3865
        %v4108 = vunpack.c.l.b16 %v3868
        %v4109 = vunpack.c.l.b16 %v3872
        %v4110 = vunpack.c.l.b16 %v3875
        %v4111 = vunpack.c.l.b16 %v3879
        %v4112 = vunpack.c.l.b16 %v3882
        %v4113 = vunpack.c.l.b16 %v3886
        %v4114 = vunpack.c.l.b16 %v3889
        %v4115 = vunpack.c.l.b16 %v3893
        %v4116 = vunpack.c.l.b16 %v3896
        %v4117 = vunpack.c.l.b16 %v3900
        %v4118 = vunpack.c.l.b16 %v3903
        %v4119 = vunpack.c.l.b16 %v3907
        %v4120 = vunpack.c.l.b16 %v3910
        %v4121 = vpack.c.b16 %v4106, %v4105
        %v4122 = vpack.c.b16 %v4108, %v4107
        %v4123 = vpack.c.b16 %v4110, %v4109
        %v4124 = vpack.c.b16 %v4112, %v4111
        %v4125 = vpack.c.b16 %v4114, %v4113
        %v4126 = vpack.c.b16 %v4116, %v4115
        %v4127 = vpack.c.b16 %v4118, %v4117
        %v4128 = vpack.c.b16 %v4120, %v4119
        %v4153 = vunpack.c.l.b16 %v3911
        %v4154 = vunpack.c.l.b16 %v3912
        %v4155 = vunpack.c.l.b16 %v3913
        %v4156 = vunpack.c.l.b16 %v3914
        %v4157 = vunpack.c.l.b16 %v3915
        %v4158 = vunpack.c.l.b16 %v3916
        %v4159 = vunpack.c.l.b16 %v3917
        %v4160 = vunpack.c.l.b16 %v3918
        %v4161 = vunpack.c.l.b16 %v3919
        %v4162 = vunpack.c.l.b16 %v3920
        %v4163 = vunpack.c.l.b16 %v3921
        %v4164 = vunpack.c.l.b16 %v3922
        %v4165 = vunpack.c.l.b16 %v3923
        %v4166 = vunpack.c.l.b16 %v3924
        %v4167 = vunpack.c.l.b16 %v3925
        %v4168 = vunpack.c.l.b16 %v3926
        %v4169 = vpack.c.b16 %v4154, %v4153
        %v4170 = vpack.c.b16 %v4156, %v4155
        %v4171 = vpack.c.b16 %v4158, %v4157
        %v4172 = vpack.c.b16 %v4160, %v4159
        %v4173 = vpack.c.b16 %v4162, %v4161
        %v4174 = vpack.c.b16 %v4164, %v4163
        %v4175 = vpack.c.b16 %v4166, %v4165
        %v4176 = vpack.c.b16 %v4168, %v4167
        %4185 = vmatpush.bf16.msra.mxu0 %v4176
        %4186 = vmatpush.bf16.msra.mxu0 %v4175
        %4187 = vmatpush.bf16.msra.mxu0 %v4174
        %4188 = vmatpush.bf16.msra.mxu0 %v4173
        %4189 = vmatpush.bf16.msra.mxu0 %v4172
        %4190 = vmatpush.bf16.msra.mxu0 %v4171
        %4191 = vmatpush.bf16.msra.mxu0 %v4170
        %4192 = vmatpush.bf16.msra.mxu0 %v4169
        %4193 = vmatmul.bf16.gmra.mxu0 %v4121
        %v4194 = vpop.f32.mrf.mxu0
        %v4195 = vadd.f32 %v4066, %v4194
        %v4196 = vpop.f32.mrf.mxu0
        %v4197 = vadd.f32 %v4068, %v4196
        %4198 = vmatmul.bf16.gmra.mxu0 %v4122
        %v4199 = vpop.f32.mrf.mxu0
        %v4200 = vadd.f32 %v4071, %v4199
        %v4201 = vpop.f32.mrf.mxu0
        %v4202 = vadd.f32 %v4073, %v4201
        %4203 = vmatmul.bf16.gmra.mxu0 %v4123
        %v4204 = vpop.f32.mrf.mxu0
        %v4205 = vadd.f32 %v4076, %v4204
        %v4206 = vpop.f32.mrf.mxu0
        %v4207 = vadd.f32 %v4078, %v4206
        %4208 = vmatmul.bf16.gmra.mxu0 %v4124
        %v4209 = vpop.f32.mrf.mxu0
        %v4210 = vadd.f32 %v4081, %v4209
        %v4211 = vpop.f32.mrf.mxu0
        %v4212 = vadd.f32 %v4083, %v4211
        %4213 = vmatmul.bf16.gmra.mxu0 %v4125
        %v4214 = vpop.f32.mrf.mxu0
        %v4215 = vadd.f32 %v4086, %v4214
        %v4216 = vpop.f32.mrf.mxu0
        %v4217 = vadd.f32 %v4088, %v4216
        %4218 = vmatmul.bf16.gmra.mxu0 %v4126
        %v4219 = vpop.f32.mrf.mxu0
        %v4220 = vadd.f32 %v4091, %v4219
        %v4221 = vpop.f32.mrf.mxu0
        %v4222 = vadd.f32 %v4093, %v4221
        %4223 = vmatmul.bf16.gmra.mxu0 %v4127
        %v4224 = vpop.f32.mrf.mxu0
        %v4225 = vadd.f32 %v4096, %v4224
        %v4226 = vpop.f32.mrf.mxu0
        %v4227 = vadd.f32 %v4098, %v4226
        %4228 = vmatmul.bf16.gmra.mxu0 %v4128
        %v4229 = vpop.f32.mrf.mxu0
        %v4230 = vadd.f32 %v4101, %v4229
        %v4231 = vpop.f32.mrf.mxu0
        %v4232 = vadd.f32 %v4103, %v4231
        %4233 = vdwg.mxu0
        %v4234 = vld [vmem:[%s3803 + $0x10] sm:$0xc]
        %v4235 = vld [vmem:[%s3803 + $0x14] sm:$0xf]
        %v4236 = vld [vmem:[%s3803 + $0x18] sm:$0x3]
        %v4237 = vld [vmem:[%s3803 + $0x30] sm:$0xc]
        %v4238 = vld [vmem:[%s3803 + $0x34] sm:$0xf]
        %v4239 = vld [vmem:[%s3803 + $0x38] sm:$0x3]
        %v4240 = vld [vmem:[%s3803 + $0x50] sm:$0xc]
        %v4241 = vld [vmem:[%s3803 + $0x54] sm:$0xf]
        %v4242 = vld [vmem:[%s3803 + $0x58] sm:$0x3]
        %v4243 = vld [vmem:[%s3803 + $0x70] sm:$0xc]
        %v4244 = vld [vmem:[%s3803 + $0x74] sm:$0xf]
        %v4245 = vld [vmem:[%s3803 + $0x78] sm:$0x3]
        %v4246 = vld [vmem:[%s3803 + $0x90] sm:$0xc]
        %v4247 = vld [vmem:[%s3803 + $0x94] sm:$0xf]
        %v4248 = vld [vmem:[%s3803 + $0x98] sm:$0x3]
        %v4249 = vld [vmem:[%s3803 + $0xb0] sm:$0xc]
        %v4250 = vld [vmem:[%s3803 + $0xb4] sm:$0xf]
        %v4251 = vld [vmem:[%s3803 + $0xb8] sm:$0x3]
        %v4252 = vld [vmem:[%s3803 + $0xd0] sm:$0xc]
        %v4253 = vld [vmem:[%s3803 + $0xd4] sm:$0xf]
        %v4254 = vld [vmem:[%s3803 + $0xd8] sm:$0x3]
        %v4255 = vld [vmem:[%s3803 + $0xf0] sm:$0xc]
        %v4256 = vld [vmem:[%s3803 + $0xf4] sm:$0xf]
        %v4257 = vld [vmem:[%s3803 + $0xf8] sm:$0x3]
        %v4282 = vrot.slane %v4234, 6
        %v4283 = vrot.slane %v4282, 4
        %v4284 = vrot.slane %v4235, 6
        %v4285 = vsel %vm3854, %v4283, %v4284
        %v4286 = vrot.slane %v4284, 4
        %v4287 = vrot.slane %v4236, 6
        %v4288 = vsel %vm3854, %v4286, %v4287
        %v4289 = vrot.slane %v4237, 6
        %v4290 = vrot.slane %v4289, 4
        %v4291 = vrot.slane %v4238, 6
        %v4292 = vsel %vm3854, %v4290, %v4291
        %v4293 = vrot.slane %v4291, 4
        %v4294 = vrot.slane %v4239, 6
        %v4295 = vsel %vm3854, %v4293, %v4294
        %v4296 = vrot.slane %v4240, 6
        %v4297 = vrot.slane %v4296, 4
        %v4298 = vrot.slane %v4241, 6
        %v4299 = vsel %vm3854, %v4297, %v4298
        %v4300 = vrot.slane %v4298, 4
        %v4301 = vrot.slane %v4242, 6
        %v4302 = vsel %vm3854, %v4300, %v4301
        %v4303 = vrot.slane %v4243, 6
        %v4304 = vrot.slane %v4303, 4
        %v4305 = vrot.slane %v4244, 6
        %v4306 = vsel %vm3854, %v4304, %v4305
        %v4307 = vrot.slane %v4305, 4
        %v4308 = vrot.slane %v4245, 6
        %v4309 = vsel %vm3854, %v4307, %v4308
        %v4310 = vrot.slane %v4246, 6
        %v4311 = vrot.slane %v4310, 4
        %v4312 = vrot.slane %v4247, 6
        %v4313 = vsel %vm3854, %v4311, %v4312
        %v4314 = vrot.slane %v4312, 4
        %v4315 = vrot.slane %v4248, 6
        %v4316 = vsel %vm3854, %v4314, %v4315
        %v4317 = vrot.slane %v4249, 6
        %v4318 = vrot.slane %v4317, 4
        %v4319 = vrot.slane %v4250, 6
        %v4320 = vsel %vm3854, %v4318, %v4319
        %v4321 = vrot.slane %v4319, 4
        %v4322 = vrot.slane %v4251, 6
        %v4323 = vsel %vm3854, %v4321, %v4322
        %v4324 = vrot.slane %v4252, 6
        %v4325 = vrot.slane %v4324, 4
        %v4326 = vrot.slane %v4253, 6
        %v4327 = vsel %vm3854, %v4325, %v4326
        %v4328 = vrot.slane %v4326, 4
        %v4329 = vrot.slane %v4254, 6
        %v4330 = vsel %vm3854, %v4328, %v4329
        %v4331 = vrot.slane %v4255, 6
        %v4332 = vrot.slane %v4331, 4
        %v4333 = vrot.slane %v4256, 6
        %v4334 = vsel %vm3854, %v4332, %v4333
        %v4335 = vrot.slane %v4333, 4
        %v4336 = vrot.slane %v4257, 6
        %v4337 = vsel %vm3854, %v4335, %v4336
        %s4338 = scalar_lea.vmem %s569, 128 [#allocation11]
        %v4339 = vld [vmem:[%s4338] sm:$0xf]
        %v4340 = vld [vmem:[%s4338 + $0x4] sm:$0xf]
        %v4341 = vld [vmem:[%s4338 + $0x8] sm:$0xf]
        %v4342 = vld [vmem:[%s4338 + $0xc] sm:$0xf]
        %v4343 = vld [vmem:[%s4338 + $0x10] sm:$0xf]
        %v4344 = vld [vmem:[%s4338 + $0x14] sm:$0xf]
        %v4345 = vld [vmem:[%s4338 + $0x18] sm:$0xf]
        %v4346 = vld [vmem:[%s4338 + $0x1c] sm:$0xf]
        %v4347 = vld [vmem:[%s4338 + $0x20] sm:$0xf]
        %v4348 = vld [vmem:[%s4338 + $0x24] sm:$0xf]
        %v4349 = vld [vmem:[%s4338 + $0x28] sm:$0xf]
        %v4350 = vld [vmem:[%s4338 + $0x2c] sm:$0xf]
        %v4351 = vld [vmem:[%s4338 + $0x30] sm:$0xf]
        %v4352 = vld [vmem:[%s4338 + $0x34] sm:$0xf]
        %v4353 = vld [vmem:[%s4338 + $0x38] sm:$0xf]
        %v4354 = vld [vmem:[%s4338 + $0x3c] sm:$0xf]
        %v4355 = vunpack.c.l.b16 %v4285
        %v4356 = vunpack.c.l.b16 %v4288
        %v4357 = vunpack.c.l.b16 %v4292
        %v4358 = vunpack.c.l.b16 %v4295
        %v4359 = vunpack.c.l.b16 %v4299
        %v4360 = vunpack.c.l.b16 %v4302
        %v4361 = vunpack.c.l.b16 %v4306
        %v4362 = vunpack.c.l.b16 %v4309
        %v4363 = vunpack.c.l.b16 %v4313
        %v4364 = vunpack.c.l.b16 %v4316
        %v4365 = vunpack.c.l.b16 %v4320
        %v4366 = vunpack.c.l.b16 %v4323
        %v4367 = vunpack.c.l.b16 %v4327
        %v4368 = vunpack.c.l.b16 %v4330
        %v4369 = vunpack.c.l.b16 %v4334
        %v4370 = vunpack.c.l.b16 %v4337
        %v4371 = vpack.c.b16 %v4356, %v4355
        %v4372 = vpack.c.b16 %v4358, %v4357
        %v4373 = vpack.c.b16 %v4360, %v4359
        %v4374 = vpack.c.b16 %v4362, %v4361
        %v4375 = vpack.c.b16 %v4364, %v4363
        %v4376 = vpack.c.b16 %v4366, %v4365
        %v4377 = vpack.c.b16 %v4368, %v4367
        %v4378 = vpack.c.b16 %v4370, %v4369
        %v4403 = vunpack.c.l.b16 %v4339
        %v4404 = vunpack.c.l.b16 %v4340
        %v4405 = vunpack.c.l.b16 %v4341
        %v4406 = vunpack.c.l.b16 %v4342
        %v4407 = vunpack.c.l.b16 %v4343
        %v4408 = vunpack.c.l.b16 %v4344
        %v4409 = vunpack.c.l.b16 %v4345
        %v4410 = vunpack.c.l.b16 %v4346
        %v4411 = vunpack.c.l.b16 %v4347
        %v4412 = vunpack.c.l.b16 %v4348
        %v4413 = vunpack.c.l.b16 %v4349
        %v4414 = vunpack.c.l.b16 %v4350
        %v4415 = vunpack.c.l.b16 %v4351
        %v4416 = vunpack.c.l.b16 %v4352
        %v4417 = vunpack.c.l.b16 %v4353
        %v4418 = vunpack.c.l.b16 %v4354
        %v4419 = vpack.c.b16 %v4404, %v4403
        %v4420 = vpack.c.b16 %v4406, %v4405
        %v4421 = vpack.c.b16 %v4408, %v4407
        %v4422 = vpack.c.b16 %v4410, %v4409
        %v4423 = vpack.c.b16 %v4412, %v4411
        %v4424 = vpack.c.b16 %v4414, %v4413
        %v4425 = vpack.c.b16 %v4416, %v4415
        %v4426 = vpack.c.b16 %v4418, %v4417
        %4435 = vmatpush.bf16.msra.mxu0 %v4426
        %4436 = vmatpush.bf16.msra.mxu0 %v4425
        %4437 = vmatpush.bf16.msra.mxu0 %v4424
        %4438 = vmatpush.bf16.msra.mxu0 %v4423
        %4439 = vmatpush.bf16.msra.mxu0 %v4422
        %4440 = vmatpush.bf16.msra.mxu0 %v4421
        %4441 = vmatpush.bf16.msra.mxu0 %v4420
        %4442 = vmatpush.bf16.msra.mxu0 %v4419
        %4443 = vmatmul.bf16.gmra.mxu0 %v4371
        %v4444 = vpop.f32.mrf.mxu0
        %v4445 = vadd.f32 0.0, %v4444
        %v4446 = vpop.f32.mrf.mxu0
        %v4447 = vadd.f32 0.0, %v4446
        %4448 = vmatmul.bf16.gmra.mxu0 %v4372
        %v4449 = vpop.f32.mrf.mxu0
        %v4450 = vadd.f32 0.0, %v4449
        %v4451 = vpop.f32.mrf.mxu0
        %v4452 = vadd.f32 0.0, %v4451
        %4453 = vmatmul.bf16.gmra.mxu0 %v4373
        %v4454 = vpop.f32.mrf.mxu0
        %v4455 = vadd.f32 0.0, %v4454
        %v4456 = vpop.f32.mrf.mxu0
        %v4457 = vadd.f32 0.0, %v4456
        %4458 = vmatmul.bf16.gmra.mxu0 %v4374
        %v4459 = vpop.f32.mrf.mxu0
        %v4460 = vadd.f32 0.0, %v4459
        %v4461 = vpop.f32.mrf.mxu0
        %v4462 = vadd.f32 0.0, %v4461
        %4463 = vmatmul.bf16.gmra.mxu0 %v4375
        %v4464 = vpop.f32.mrf.mxu0
        %v4465 = vadd.f32 0.0, %v4464
        %v4466 = vpop.f32.mrf.mxu0
        %v4467 = vadd.f32 0.0, %v4466
        %4468 = vmatmul.bf16.gmra.mxu0 %v4376
        %v4469 = vpop.f32.mrf.mxu0
        %v4470 = vadd.f32 0.0, %v4469
        %v4471 = vpop.f32.mrf.mxu0
        %v4472 = vadd.f32 0.0, %v4471
        %4473 = vmatmul.bf16.gmra.mxu0 %v4377
        %v4474 = vpop.f32.mrf.mxu0
        %v4475 = vadd.f32 0.0, %v4474
        %v4476 = vpop.f32.mrf.mxu0
        %v4477 = vadd.f32 0.0, %v4476
        %4478 = vmatmul.bf16.gmra.mxu0 %v4378
        %v4479 = vpop.f32.mrf.mxu0
        %v4480 = vadd.f32 0.0, %v4479
        %v4481 = vpop.f32.mrf.mxu0
        %v4482 = vadd.f32 0.0, %v4481
        %4483 = vdwg.mxu0
        %v4484 = vadd.f32 %v4195, %v4445
        %v4485 = vadd.f32 %v4197, %v4447
        %v4486 = vadd.f32 %v4200, %v4450
        %v4487 = vadd.f32 %v4202, %v4452
        %v4488 = vadd.f32 %v4205, %v4455
        %v4489 = vadd.f32 %v4207, %v4457
        %v4490 = vadd.f32 %v4210, %v4460
        %v4491 = vadd.f32 %v4212, %v4462
        %v4492 = vadd.f32 %v4215, %v4465
        %v4493 = vadd.f32 %v4217, %v4467
        %v4494 = vadd.f32 %v4220, %v4470
        %v4495 = vadd.f32 %v4222, %v4472
        %v4496 = vadd.f32 %v4225, %v4475
        %v4497 = vadd.f32 %v4227, %v4477
        %v4498 = vadd.f32 %v4230, %v4480
        %v4499 = vadd.f32 %v4232, %v4482
        %v4500 = vld [vmem:[%s1463 + $0x4] sm:$0xc]
        %v4501 = vld [vmem:[%s1463 + $0x8] sm:$0xf]
        %v4502 = vld [vmem:[%s1463 + $0xc] sm:$0x3]
        %v4503 = vld [vmem:[%s1463 + $0x24] sm:$0xc]
        %v4504 = vld [vmem:[%s1463 + $0x28] sm:$0xf]
        %v4505 = vld [vmem:[%s1463 + $0x2c] sm:$0x3]
        %v4506 = vld [vmem:[%s1463 + $0x44] sm:$0xc]
        %v4507 = vld [vmem:[%s1463 + $0x48] sm:$0xf]
        %v4508 = vld [vmem:[%s1463 + $0x4c] sm:$0x3]
        %v4509 = vld [vmem:[%s1463 + $0x64] sm:$0xc]
        %v4510 = vld [vmem:[%s1463 + $0x68] sm:$0xf]
        %v4511 = vld [vmem:[%s1463 + $0x6c] sm:$0x3]
        %v4512 = vld [vmem:[%s1463 + $0x84] sm:$0xc]
        %v4513 = vld [vmem:[%s1463 + $0x88] sm:$0xf]
        %v4514 = vld [vmem:[%s1463 + $0x8c] sm:$0x3]
        %v4515 = vld [vmem:[%s1463 + $0xa4] sm:$0xc]
        %v4516 = vld [vmem:[%s1463 + $0xa8] sm:$0xf]
        %v4517 = vld [vmem:[%s1463 + $0xac] sm:$0x3]
        %v4518 = vld [vmem:[%s1463 + $0xc4] sm:$0xc]
        %v4519 = vld [vmem:[%s1463 + $0xc8] sm:$0xf]
        %v4520 = vld [vmem:[%s1463 + $0xcc] sm:$0x3]
        %v4521 = vld [vmem:[%s1463 + $0xe4] sm:$0xc]
        %v4522 = vld [vmem:[%s1463 + $0xe8] sm:$0xf]
        %v4523 = vld [vmem:[%s1463 + $0xec] sm:$0x3]
        %v4548 = vrot.slane %v4500, 6
        %v4549 = vrot.slane %v4548, 4
        %v4550 = vrot.slane %v4501, 6
        %v4551 = vsel %vm3854, %v4549, %v4550
        %v4552 = vrot.slane %v4550, 4
        %v4553 = vrot.slane %v4502, 6
        %v4554 = vsel %vm3854, %v4552, %v4553
        %v4555 = vrot.slane %v4503, 6
        %v4556 = vrot.slane %v4555, 4
        %v4557 = vrot.slane %v4504, 6
        %v4558 = vsel %vm3854, %v4556, %v4557
        %v4559 = vrot.slane %v4557, 4
        %v4560 = vrot.slane %v4505, 6
        %v4561 = vsel %vm3854, %v4559, %v4560
        %v4562 = vrot.slane %v4506, 6
        %v4563 = vrot.slane %v4562, 4
        %v4564 = vrot.slane %v4507, 6
        %v4565 = vsel %vm3854, %v4563, %v4564
        %v4566 = vrot.slane %v4564, 4
        %v4567 = vrot.slane %v4508, 6
        %v4568 = vsel %vm3854, %v4566, %v4567
        %v4569 = vrot.slane %v4509, 6
        %v4570 = vrot.slane %v4569, 4
        %v4571 = vrot.slane %v4510, 6
        %v4572 = vsel %vm3854, %v4570, %v4571
        %v4573 = vrot.slane %v4571, 4
        %v4574 = vrot.slane %v4511, 6
        %v4575 = vsel %vm3854, %v4573, %v4574
        %v4576 = vrot.slane %v4512, 6
        %v4577 = vrot.slane %v4576, 4
        %v4578 = vrot.slane %v4513, 6
        %v4579 = vsel %vm3854, %v4577, %v4578
        %v4580 = vrot.slane %v4578, 4
        %v4581 = vrot.slane %v4514, 6
        %v4582 = vsel %vm3854, %v4580, %v4581
        %v4583 = vrot.slane %v4515, 6
        %v4584 = vrot.slane %v4583, 4
        %v4585 = vrot.slane %v4516, 6
        %v4586 = vsel %vm3854, %v4584, %v4585
        %v4587 = vrot.slane %v4585, 4
        %v4588 = vrot.slane %v4517, 6
        %v4589 = vsel %vm3854, %v4587, %v4588
        %v4590 = vrot.slane %v4518, 6
        %v4591 = vrot.slane %v4590, 4
        %v4592 = vrot.slane %v4519, 6
        %v4593 = vsel %vm3854, %v4591, %v4592
        %v4594 = vrot.slane %v4592, 4
        %v4595 = vrot.slane %v4520, 6
        %v4596 = vsel %vm3854, %v4594, %v4595
        %v4597 = vrot.slane %v4521, 6
        %v4598 = vrot.slane %v4597, 4
        %v4599 = vrot.slane %v4522, 6
        %v4600 = vsel %vm3854, %v4598, %v4599
        %v4601 = vrot.slane %v4599, 4
        %v4602 = vrot.slane %v4523, 6
        %v4603 = vsel %vm3854, %v4601, %v4602
        %s4604 = scalar_lea.vmem %s569, 192 [#allocation11]
        %v4605 = vld [vmem:[%s4604] sm:$0xf]
        %v4606 = vld [vmem:[%s4604 + $0x4] sm:$0xf]
        %v4607 = vld [vmem:[%s4604 + $0x8] sm:$0xf]
        %v4608 = vld [vmem:[%s4604 + $0xc] sm:$0xf]
        %v4609 = vld [vmem:[%s4604 + $0x10] sm:$0xf]
        %v4610 = vld [vmem:[%s4604 + $0x14] sm:$0xf]
        %v4611 = vld [vmem:[%s4604 + $0x18] sm:$0xf]
        %v4612 = vld [vmem:[%s4604 + $0x1c] sm:$0xf]
        %v4613 = vld [vmem:[%s4604 + $0x20] sm:$0xf]
        %v4614 = vld [vmem:[%s4604 + $0x24] sm:$0xf]
        %v4615 = vld [vmem:[%s4604 + $0x28] sm:$0xf]
        %v4616 = vld [vmem:[%s4604 + $0x2c] sm:$0xf]
        %v4617 = vld [vmem:[%s4604 + $0x30] sm:$0xf]
        %v4618 = vld [vmem:[%s4604 + $0x34] sm:$0xf]
        %v4619 = vld [vmem:[%s4604 + $0x38] sm:$0xf]
        %v4620 = vld [vmem:[%s4604 + $0x3c] sm:$0xf]
        %v4621 = vunpack.c.l.b16 %v4551
        %v4622 = vunpack.c.l.b16 %v4554
        %v4623 = vunpack.c.l.b16 %v4558
        %v4624 = vunpack.c.l.b16 %v4561
        %v4625 = vunpack.c.l.b16 %v4565
        %v4626 = vunpack.c.l.b16 %v4568
        %v4627 = vunpack.c.l.b16 %v4572
        %v4628 = vunpack.c.l.b16 %v4575
        %v4629 = vunpack.c.l.b16 %v4579
        %v4630 = vunpack.c.l.b16 %v4582
        %v4631 = vunpack.c.l.b16 %v4586
        %v4632 = vunpack.c.l.b16 %v4589
        %v4633 = vunpack.c.l.b16 %v4593
        %v4634 = vunpack.c.l.b16 %v4596
        %v4635 = vunpack.c.l.b16 %v4600
        %v4636 = vunpack.c.l.b16 %v4603
        %v4637 = vpack.c.b16 %v4622, %v4621
        %v4638 = vpack.c.b16 %v4624, %v4623
        %v4639 = vpack.c.b16 %v4626, %v4625
        %v4640 = vpack.c.b16 %v4628, %v4627
        %v4641 = vpack.c.b16 %v4630, %v4629
        %v4642 = vpack.c.b16 %v4632, %v4631
        %v4643 = vpack.c.b16 %v4634, %v4633
        %v4644 = vpack.c.b16 %v4636, %v4635
        %v4669 = vunpack.c.l.b16 %v4605
        %v4670 = vunpack.c.l.b16 %v4606
        %v4671 = vunpack.c.l.b16 %v4607
        %v4672 = vunpack.c.l.b16 %v4608
        %v4673 = vunpack.c.l.b16 %v4609
        %v4674 = vunpack.c.l.b16 %v4610
        %v4675 = vunpack.c.l.b16 %v4611
        %v4676 = vunpack.c.l.b16 %v4612
        %v4677 = vunpack.c.l.b16 %v4613
        %v4678 = vunpack.c.l.b16 %v4614
        %v4679 = vunpack.c.l.b16 %v4615
        %v4680 = vunpack.c.l.b16 %v4616
        %v4681 = vunpack.c.l.b16 %v4617
        %v4682 = vunpack.c.l.b16 %v4618
        %v4683 = vunpack.c.l.b16 %v4619
        %v4684 = vunpack.c.l.b16 %v4620
        %v4685 = vpack.c.b16 %v4670, %v4669
        %v4686 = vpack.c.b16 %v4672, %v4671
        %v4687 = vpack.c.b16 %v4674, %v4673
        %v4688 = vpack.c.b16 %v4676, %v4675
        %v4689 = vpack.c.b16 %v4678, %v4677
        %v4690 = vpack.c.b16 %v4680, %v4679
        %v4691 = vpack.c.b16 %v4682, %v4681
        %v4692 = vpack.c.b16 %v4684, %v4683
        %4701 = vmatpush.bf16.msra.mxu0 %v4692
        %4702 = vmatpush.bf16.msra.mxu0 %v4691
        %4703 = vmatpush.bf16.msra.mxu0 %v4690
        %4704 = vmatpush.bf16.msra.mxu0 %v4689
        %4705 = vmatpush.bf16.msra.mxu0 %v4688
        %4706 = vmatpush.bf16.msra.mxu0 %v4687
        %4707 = vmatpush.bf16.msra.mxu0 %v4686
        %4708 = vmatpush.bf16.msra.mxu0 %v4685
        %4709 = vmatmul.bf16.gmra.mxu0 %v4637
        %v4710 = vpop.f32.mrf.mxu0
        %v4711 = vadd.f32 0.0, %v4710
        %v4712 = vpop.f32.mrf.mxu0
        %v4713 = vadd.f32 0.0, %v4712
        %4714 = vmatmul.bf16.gmra.mxu0 %v4638
        %v4715 = vpop.f32.mrf.mxu0
        %v4716 = vadd.f32 0.0, %v4715
        %v4717 = vpop.f32.mrf.mxu0
        %v4718 = vadd.f32 0.0, %v4717
        %4719 = vmatmul.bf16.gmra.mxu0 %v4639
        %v4720 = vpop.f32.mrf.mxu0
        %v4721 = vadd.f32 0.0, %v4720
        %v4722 = vpop.f32.mrf.mxu0
        %v4723 = vadd.f32 0.0, %v4722
        %4724 = vmatmul.bf16.gmra.mxu0 %v4640
        %v4725 = vpop.f32.mrf.mxu0
        %v4726 = vadd.f32 0.0, %v4725
        %v4727 = vpop.f32.mrf.mxu0
        %v4728 = vadd.f32 0.0, %v4727
        %4729 = vmatmul.bf16.gmra.mxu0 %v4641
        %v4730 = vpop.f32.mrf.mxu0
        %v4731 = vadd.f32 0.0, %v4730
        %v4732 = vpop.f32.mrf.mxu0
        %v4733 = vadd.f32 0.0, %v4732
        %4734 = vmatmul.bf16.gmra.mxu0 %v4642
        %v4735 = vpop.f32.mrf.mxu0
        %v4736 = vadd.f32 0.0, %v4735
        %v4737 = vpop.f32.mrf.mxu0
        %v4738 = vadd.f32 0.0, %v4737
        %4739 = vmatmul.bf16.gmra.mxu0 %v4643
        %v4740 = vpop.f32.mrf.mxu0
        %v4741 = vadd.f32 0.0, %v4740
        %v4742 = vpop.f32.mrf.mxu0
        %v4743 = vadd.f32 0.0, %v4742
        %4744 = vmatmul.bf16.gmra.mxu0 %v4644
        %v4745 = vpop.f32.mrf.mxu0
        %v4746 = vadd.f32 0.0, %v4745
        %v4747 = vpop.f32.mrf.mxu0
        %v4748 = vadd.f32 0.0, %v4747
        %4749 = vdwg.mxu0
        %v4750 = vadd.f32 %v4484, %v4711
        %v4751 = vadd.f32 %v4485, %v4713
        %v4752 = vadd.f32 %v4486, %v4716
        %v4753 = vadd.f32 %v4487, %v4718
        %v4754 = vadd.f32 %v4488, %v4721
        %v4755 = vadd.f32 %v4489, %v4723
        %v4756 = vadd.f32 %v4490, %v4726
        %v4757 = vadd.f32 %v4491, %v4728
        %v4758 = vadd.f32 %v4492, %v4731
        %v4759 = vadd.f32 %v4493, %v4733
        %v4760 = vadd.f32 %v4494, %v4736
        %v4761 = vadd.f32 %v4495, %v4738
        %v4762 = vadd.f32 %v4496, %v4741
        %v4763 = vadd.f32 %v4497, %v4743
        %v4764 = vadd.f32 %v4498, %v4746
        %v4765 = vadd.f32 %v4499, %v4748
        %s4766 = scalar_lea.vmem %s569, 256 [#allocation11]
        %v4767 = vld [vmem:[%s4766] sm:$0xf]
        %v4768 = vld [vmem:[%s4766 + $0x4] sm:$0xf]
        %v4769 = vld [vmem:[%s4766 + $0x8] sm:$0xf]
        %v4770 = vld [vmem:[%s4766 + $0xc] sm:$0xf]
        %v4771 = vld [vmem:[%s4766 + $0x10] sm:$0xf]
        %v4772 = vld [vmem:[%s4766 + $0x14] sm:$0xf]
        %v4773 = vld [vmem:[%s4766 + $0x18] sm:$0xf]
        %v4774 = vld [vmem:[%s4766 + $0x1c] sm:$0xf]
        %v4775 = vld [vmem:[%s4766 + $0x20] sm:$0xf]
        %v4776 = vld [vmem:[%s4766 + $0x24] sm:$0xf]
        %v4777 = vld [vmem:[%s4766 + $0x28] sm:$0xf]
        %v4778 = vld [vmem:[%s4766 + $0x2c] sm:$0xf]
        %v4779 = vld [vmem:[%s4766 + $0x30] sm:$0xf]
        %v4780 = vld [vmem:[%s4766 + $0x34] sm:$0xf]
        %v4781 = vld [vmem:[%s4766 + $0x38] sm:$0xf]
        %v4782 = vld [vmem:[%s4766 + $0x3c] sm:$0xf]
        %v4799 = vunpack.c.l.b16 %v4767
        %v4800 = vunpack.c.l.b16 %v4768
        %v4801 = vunpack.c.l.b16 %v4769
        %v4802 = vunpack.c.l.b16 %v4770
        %v4803 = vunpack.c.l.b16 %v4771
        %v4804 = vunpack.c.l.b16 %v4772
        %v4805 = vunpack.c.l.b16 %v4773
        %v4806 = vunpack.c.l.b16 %v4774
        %v4807 = vunpack.c.l.b16 %v4775
        %v4808 = vunpack.c.l.b16 %v4776
        %v4809 = vunpack.c.l.b16 %v4777
        %v4810 = vunpack.c.l.b16 %v4778
        %v4811 = vunpack.c.l.b16 %v4779
        %v4812 = vunpack.c.l.b16 %v4780
        %v4813 = vunpack.c.l.b16 %v4781
        %v4814 = vunpack.c.l.b16 %v4782
        %v4815 = vpack.c.b16 %v4800, %v4799
        %v4816 = vpack.c.b16 %v4802, %v4801
        %v4817 = vpack.c.b16 %v4804, %v4803
        %v4818 = vpack.c.b16 %v4806, %v4805
        %v4819 = vpack.c.b16 %v4808, %v4807
        %v4820 = vpack.c.b16 %v4810, %v4809
        %v4821 = vpack.c.b16 %v4812, %v4811
        %v4822 = vpack.c.b16 %v4814, %v4813
        %4831 = vmatpush.bf16.msra.mxu0 %v4822
        %4832 = vmatpush.bf16.msra.mxu0 %v4821
        %4833 = vmatpush.bf16.msra.mxu0 %v4820
        %4834 = vmatpush.bf16.msra.mxu0 %v4819
        %4835 = vmatpush.bf16.msra.mxu0 %v4818
        %4836 = vmatpush.bf16.msra.mxu0 %v4817
        %4837 = vmatpush.bf16.msra.mxu0 %v4816
        %4838 = vmatpush.bf16.msra.mxu0 %v4815
        %4839 = vmatmul.bf16.gmra.mxu0 %v1544
        %v4840 = vpop.f32.mrf.mxu0
        %v4841 = vadd.f32 0.0, %v4840
        %v4842 = vpop.f32.mrf.mxu0
        %v4843 = vadd.f32 0.0, %v4842
        %4844 = vmatmul.bf16.gmra.mxu0 %v1545
        %v4845 = vpop.f32.mrf.mxu0
        %v4846 = vadd.f32 0.0, %v4845
        %v4847 = vpop.f32.mrf.mxu0
        %v4848 = vadd.f32 0.0, %v4847
        %4849 = vmatmul.bf16.gmra.mxu0 %v1546
        %v4850 = vpop.f32.mrf.mxu0
        %v4851 = vadd.f32 0.0, %v4850
        %v4852 = vpop.f32.mrf.mxu0
        %v4853 = vadd.f32 0.0, %v4852
        %4854 = vmatmul.bf16.gmra.mxu0 %v1547
        %v4855 = vpop.f32.mrf.mxu0
        %v4856 = vadd.f32 0.0, %v4855
        %v4857 = vpop.f32.mrf.mxu0
        %v4858 = vadd.f32 0.0, %v4857
        %4859 = vmatmul.bf16.gmra.mxu0 %v1548
        %v4860 = vpop.f32.mrf.mxu0
        %v4861 = vadd.f32 0.0, %v4860
        %v4862 = vpop.f32.mrf.mxu0
        %v4863 = vadd.f32 0.0, %v4862
        %4864 = vmatmul.bf16.gmra.mxu0 %v1549
        %v4865 = vpop.f32.mrf.mxu0
        %v4866 = vadd.f32 0.0, %v4865
        %v4867 = vpop.f32.mrf.mxu0
        %v4868 = vadd.f32 0.0, %v4867
        %4869 = vmatmul.bf16.gmra.mxu0 %v1550
        %v4870 = vpop.f32.mrf.mxu0
        %v4871 = vadd.f32 0.0, %v4870
        %v4872 = vpop.f32.mrf.mxu0
        %v4873 = vadd.f32 0.0, %v4872
        %4874 = vmatmul.bf16.gmra.mxu0 %v1551
        %v4875 = vpop.f32.mrf.mxu0
        %v4876 = vadd.f32 0.0, %v4875
        %v4877 = vpop.f32.mrf.mxu0
        %v4878 = vadd.f32 0.0, %v4877
        %4879 = vdwg.mxu0
        %v4880 = vadd.f32 %v4750, %v4841
        %v4881 = vadd.f32 %v4751, %v4843
        %v4882 = vadd.f32 %v4752, %v4846
        %v4883 = vadd.f32 %v4753, %v4848
        %v4884 = vadd.f32 %v4754, %v4851
        %v4885 = vadd.f32 %v4755, %v4853
        %v4886 = vadd.f32 %v4756, %v4856
        %v4887 = vadd.f32 %v4757, %v4858
        %v4888 = vadd.f32 %v4758, %v4861
        %v4889 = vadd.f32 %v4759, %v4863
        %v4890 = vadd.f32 %v4760, %v4866
        %v4891 = vadd.f32 %v4761, %v4868
        %v4892 = vadd.f32 %v4762, %v4871
        %v4893 = vadd.f32 %v4763, %v4873
        %v4894 = vadd.f32 %v4764, %v4876
        %v4895 = vadd.f32 %v4765, %v4878
        %v4896 = vld [vmem:[%s1463 + $0x10] sm:$0xc]
        %v4897 = vld [vmem:[%s1463 + $0x14] sm:$0xf]
        %v4898 = vld [vmem:[%s1463 + $0x18] sm:$0x3]
        %v4899 = vld [vmem:[%s1463 + $0x30] sm:$0xc]
        %v4900 = vld [vmem:[%s1463 + $0x34] sm:$0xf]
        %v4901 = vld [vmem:[%s1463 + $0x38] sm:$0x3]
        %v4902 = vld [vmem:[%s1463 + $0x50] sm:$0xc]
        %v4903 = vld [vmem:[%s1463 + $0x54] sm:$0xf]
        %v4904 = vld [vmem:[%s1463 + $0x58] sm:$0x3]
        %v4905 = vld [vmem:[%s1463 + $0x70] sm:$0xc]
        %v4906 = vld [vmem:[%s1463 + $0x74] sm:$0xf]
        %v4907 = vld [vmem:[%s1463 + $0x78] sm:$0x3]
        %v4908 = vld [vmem:[%s1463 + $0x90] sm:$0xc]
        %v4909 = vld [vmem:[%s1463 + $0x94] sm:$0xf]
        %v4910 = vld [vmem:[%s1463 + $0x98] sm:$0x3]
        %v4911 = vld [vmem:[%s1463 + $0xb0] sm:$0xc]
        %v4912 = vld [vmem:[%s1463 + $0xb4] sm:$0xf]
        %v4913 = vld [vmem:[%s1463 + $0xb8] sm:$0x3]
        %v4914 = vld [vmem:[%s1463 + $0xd0] sm:$0xc]
        %v4915 = vld [vmem:[%s1463 + $0xd4] sm:$0xf]
        %v4916 = vld [vmem:[%s1463 + $0xd8] sm:$0x3]
        %v4917 = vld [vmem:[%s1463 + $0xf0] sm:$0xc]
        %v4918 = vld [vmem:[%s1463 + $0xf4] sm:$0xf]
        %v4919 = vld [vmem:[%s1463 + $0xf8] sm:$0x3]
        %v4944 = vrot.slane %v4896, 6
        %v4945 = vrot.slane %v4944, 4
        %v4946 = vrot.slane %v4897, 6
        %v4947 = vsel %vm3854, %v4945, %v4946
        %v4948 = vrot.slane %v4946, 4
        %v4949 = vrot.slane %v4898, 6
        %v4950 = vsel %vm3854, %v4948, %v4949
        %v4951 = vrot.slane %v4899, 6
        %v4952 = vrot.slane %v4951, 4
        %v4953 = vrot.slane %v4900, 6
        %v4954 = vsel %vm3854, %v4952, %v4953
        %v4955 = vrot.slane %v4953, 4
        %v4956 = vrot.slane %v4901, 6
        %v4957 = vsel %vm3854, %v4955, %v4956
        %v4958 = vrot.slane %v4902, 6
        %v4959 = vrot.slane %v4958, 4
        %v4960 = vrot.slane %v4903, 6
        %v4961 = vsel %vm3854, %v4959, %v4960
        %v4962 = vrot.slane %v4960, 4
        %v4963 = vrot.slane %v4904, 6
        %v4964 = vsel %vm3854, %v4962, %v4963
        %v4965 = vrot.slane %v4905, 6
        %v4966 = vrot.slane %v4965, 4
        %v4967 = vrot.slane %v4906, 6
        %v4968 = vsel %vm3854, %v4966, %v4967
        %v4969 = vrot.slane %v4967, 4
        %v4970 = vrot.slane %v4907, 6
        %v4971 = vsel %vm3854, %v4969, %v4970
        %v4972 = vrot.slane %v4908, 6
        %v4973 = vrot.slane %v4972, 4
        %v4974 = vrot.slane %v4909, 6
        %v4975 = vsel %vm3854, %v4973, %v4974
        %v4976 = vrot.slane %v4974, 4
        %v4977 = vrot.slane %v4910, 6
        %v4978 = vsel %vm3854, %v4976, %v4977
        %v4979 = vrot.slane %v4911, 6
        %v4980 = vrot.slane %v4979, 4
        %v4981 = vrot.slane %v4912, 6
        %v4982 = vsel %vm3854, %v4980, %v4981
        %v4983 = vrot.slane %v4981, 4
        %v4984 = vrot.slane %v4913, 6
        %v4985 = vsel %vm3854, %v4983, %v4984
        %v4986 = vrot.slane %v4914, 6
        %v4987 = vrot.slane %v4986, 4
        %v4988 = vrot.slane %v4915, 6
        %v4989 = vsel %vm3854, %v4987, %v4988
        %v4990 = vrot.slane %v4988, 4
        %v4991 = vrot.slane %v4916, 6
        %v4992 = vsel %vm3854, %v4990, %v4991
        %v4993 = vrot.slane %v4917, 6
        %v4994 = vrot.slane %v4993, 4
        %v4995 = vrot.slane %v4918, 6
        %v4996 = vsel %vm3854, %v4994, %v4995
        %v4997 = vrot.slane %v4995, 4
        %v4998 = vrot.slane %v4919, 6
        %v4999 = vsel %vm3854, %v4997, %v4998
        %s5000 = scalar_lea.vmem %s569, 320 [#allocation11]
        %v5001 = vld [vmem:[%s5000] sm:$0xf]
        %v5002 = vld [vmem:[%s5000 + $0x4] sm:$0xf]
        %v5003 = vld [vmem:[%s5000 + $0x8] sm:$0xf]
        %v5004 = vld [vmem:[%s5000 + $0xc] sm:$0xf]
        %v5005 = vld [vmem:[%s5000 + $0x10] sm:$0xf]
        %v5006 = vld [vmem:[%s5000 + $0x14] sm:$0xf]
        %v5007 = vld [vmem:[%s5000 + $0x18] sm:$0xf]
        %v5008 = vld [vmem:[%s5000 + $0x1c] sm:$0xf]
        %v5009 = vld [vmem:[%s5000 + $0x20] sm:$0xf]
        %v5010 = vld [vmem:[%s5000 + $0x24] sm:$0xf]
        %v5011 = vld [vmem:[%s5000 + $0x28] sm:$0xf]
        %v5012 = vld [vmem:[%s5000 + $0x2c] sm:$0xf]
        %v5013 = vld [vmem:[%s5000 + $0x30] sm:$0xf]
        %v5014 = vld [vmem:[%s5000 + $0x34] sm:$0xf]
        %v5015 = vld [vmem:[%s5000 + $0x38] sm:$0xf]
        %v5016 = vld [vmem:[%s5000 + $0x3c] sm:$0xf]
        %v5017 = vunpack.c.l.b16 %v4947
        %v5018 = vunpack.c.l.b16 %v4950
        %v5019 = vunpack.c.l.b16 %v4954
        %v5020 = vunpack.c.l.b16 %v4957
        %v5021 = vunpack.c.l.b16 %v4961
        %v5022 = vunpack.c.l.b16 %v4964
        %v5023 = vunpack.c.l.b16 %v4968
        %v5024 = vunpack.c.l.b16 %v4971
        %v5025 = vunpack.c.l.b16 %v4975
        %v5026 = vunpack.c.l.b16 %v4978
        %v5027 = vunpack.c.l.b16 %v4982
        %v5028 = vunpack.c.l.b16 %v4985
        %v5029 = vunpack.c.l.b16 %v4989
        %v5030 = vunpack.c.l.b16 %v4992
        %v5031 = vunpack.c.l.b16 %v4996
        %v5032 = vunpack.c.l.b16 %v4999
        %v5033 = vpack.c.b16 %v5018, %v5017
        %v5034 = vpack.c.b16 %v5020, %v5019
        %v5035 = vpack.c.b16 %v5022, %v5021
        %v5036 = vpack.c.b16 %v5024, %v5023
        %v5037 = vpack.c.b16 %v5026, %v5025
        %v5038 = vpack.c.b16 %v5028, %v5027
        %v5039 = vpack.c.b16 %v5030, %v5029
        %v5040 = vpack.c.b16 %v5032, %v5031
        %v5065 = vunpack.c.l.b16 %v5001
        %v5066 = vunpack.c.l.b16 %v5002
        %v5067 = vunpack.c.l.b16 %v5003
        %v5068 = vunpack.c.l.b16 %v5004
        %v5069 = vunpack.c.l.b16 %v5005
        %v5070 = vunpack.c.l.b16 %v5006
        %v5071 = vunpack.c.l.b16 %v5007
        %v5072 = vunpack.c.l.b16 %v5008
        %v5073 = vunpack.c.l.b16 %v5009
        %v5074 = vunpack.c.l.b16 %v5010
        %v5075 = vunpack.c.l.b16 %v5011
        %v5076 = vunpack.c.l.b16 %v5012
        %v5077 = vunpack.c.l.b16 %v5013
        %v5078 = vunpack.c.l.b16 %v5014
        %v5079 = vunpack.c.l.b16 %v5015
        %v5080 = vunpack.c.l.b16 %v5016
        %v5081 = vpack.c.b16 %v5066, %v5065
        %v5082 = vpack.c.b16 %v5068, %v5067
        %v5083 = vpack.c.b16 %v5070, %v5069
        %v5084 = vpack.c.b16 %v5072, %v5071
        %v5085 = vpack.c.b16 %v5074, %v5073
        %v5086 = vpack.c.b16 %v5076, %v5075
        %v5087 = vpack.c.b16 %v5078, %v5077
        %v5088 = vpack.c.b16 %v5080, %v5079
        %5097 = vmatpush.bf16.msra.mxu0 %v5088
        %5098 = vmatpush.bf16.msra.mxu0 %v5087
        %5099 = vmatpush.bf16.msra.mxu0 %v5086
        %5100 = vmatpush.bf16.msra.mxu0 %v5085
        %5101 = vmatpush.bf16.msra.mxu0 %v5084
        %5102 = vmatpush.bf16.msra.mxu0 %v5083
        %5103 = vmatpush.bf16.msra.mxu0 %v5082
        %5104 = vmatpush.bf16.msra.mxu0 %v5081
        %5105 = vmatmul.bf16.gmra.mxu0 %v5033
        %v5106 = vpop.f32.mrf.mxu0
        %v5107 = vadd.f32 0.0, %v5106
        %v5108 = vpop.f32.mrf.mxu0
        %v5109 = vadd.f32 0.0, %v5108
        %5110 = vmatmul.bf16.gmra.mxu0 %v5034
        %v5111 = vpop.f32.mrf.mxu0
        %v5112 = vadd.f32 0.0, %v5111
        %v5113 = vpop.f32.mrf.mxu0
        %v5114 = vadd.f32 0.0, %v5113
        %5115 = vmatmul.bf16.gmra.mxu0 %v5035
        %v5116 = vpop.f32.mrf.mxu0
        %v5117 = vadd.f32 0.0, %v5116
        %v5118 = vpop.f32.mrf.mxu0
        %v5119 = vadd.f32 0.0, %v5118
        %5120 = vmatmul.bf16.gmra.mxu0 %v5036
        %v5121 = vpop.f32.mrf.mxu0
        %v5122 = vadd.f32 0.0, %v5121
        %v5123 = vpop.f32.mrf.mxu0
        %v5124 = vadd.f32 0.0, %v5123
        %5125 = vmatmul.bf16.gmra.mxu0 %v5037
        %v5126 = vpop.f32.mrf.mxu0
        %v5127 = vadd.f32 0.0, %v5126
        %v5128 = vpop.f32.mrf.mxu0
        %v5129 = vadd.f32 0.0, %v5128
        %5130 = vmatmul.bf16.gmra.mxu0 %v5038
        %v5131 = vpop.f32.mrf.mxu0
        %v5132 = vadd.f32 0.0, %v5131
        %v5133 = vpop.f32.mrf.mxu0
        %v5134 = vadd.f32 0.0, %v5133
        %5135 = vmatmul.bf16.gmra.mxu0 %v5039
        %v5136 = vpop.f32.mrf.mxu0
        %v5137 = vadd.f32 0.0, %v5136
        %v5138 = vpop.f32.mrf.mxu0
        %v5139 = vadd.f32 0.0, %v5138
        %5140 = vmatmul.bf16.gmra.mxu0 %v5040
        %v5141 = vpop.f32.mrf.mxu0
        %v5142 = vadd.f32 0.0, %v5141
        %v5143 = vpop.f32.mrf.mxu0
        %v5144 = vadd.f32 0.0, %v5143
        %5145 = vdwg.mxu0
        %v5146 = vadd.f32 %v4880, %v5107
        %v5147 = vadd.f32 %v4881, %v5109
        %v5148 = vadd.f32 %v4882, %v5112
        %v5149 = vadd.f32 %v4883, %v5114
        %v5150 = vadd.f32 %v4884, %v5117
        %v5151 = vadd.f32 %v4885, %v5119
        %v5152 = vadd.f32 %v4886, %v5122
        %v5153 = vadd.f32 %v4887, %v5124
        %v5154 = vadd.f32 %v4888, %v5127
        %v5155 = vadd.f32 %v4889, %v5129
        %v5156 = vadd.f32 %v4890, %v5132
        %v5157 = vadd.f32 %v4891, %v5134
        %v5158 = vadd.f32 %v4892, %v5137
        %v5159 = vadd.f32 %v4893, %v5139
        %v5160 = vadd.f32 %v4894, %v5142
        %v5161 = vadd.f32 %v4895, %v5144
        %s5162 = sadd.s32 %s666, 36
        %s5163 = smul.u32 %s5162, 8
        %s5164 = smul.addr %s5163, 4
        %s5165 = scalar_lea.vmem [#allocation2], %s5164
        %v5166 = vld [vmem:[%s5165 + $0x4] sm:$0xc]
        %v5167 = vld [vmem:[%s5165 + $0x8] sm:$0xf]
        %v5168 = vld [vmem:[%s5165 + $0xc] sm:$0x3]
        %v5169 = vld [vmem:[%s5165 + $0x24] sm:$0xc]
        %v5170 = vld [vmem:[%s5165 + $0x28] sm:$0xf]
        %v5171 = vld [vmem:[%s5165 + $0x2c] sm:$0x3]
        %v5172 = vld [vmem:[%s5165 + $0x44] sm:$0xc]
        %v5173 = vld [vmem:[%s5165 + $0x48] sm:$0xf]
        %v5174 = vld [vmem:[%s5165 + $0x4c] sm:$0x3]
        %v5175 = vld [vmem:[%s5165 + $0x64] sm:$0xc]
        %v5176 = vld [vmem:[%s5165 + $0x68] sm:$0xf]
        %v5177 = vld [vmem:[%s5165 + $0x6c] sm:$0x3]
        %v5178 = vld [vmem:[%s5165 + $0x84] sm:$0xc]
        %v5179 = vld [vmem:[%s5165 + $0x88] sm:$0xf]
        %v5180 = vld [vmem:[%s5165 + $0x8c] sm:$0x3]
        %v5181 = vld [vmem:[%s5165 + $0xa4] sm:$0xc]
        %v5182 = vld [vmem:[%s5165 + $0xa8] sm:$0xf]
        %v5183 = vld [vmem:[%s5165 + $0xac] sm:$0x3]
        %v5184 = vld [vmem:[%s5165 + $0xc4] sm:$0xc]
        %v5185 = vld [vmem:[%s5165 + $0xc8] sm:$0xf]
        %v5186 = vld [vmem:[%s5165 + $0xcc] sm:$0x3]
        %v5187 = vld [vmem:[%s5165 + $0xe4] sm:$0xc]
        %v5188 = vld [vmem:[%s5165 + $0xe8] sm:$0xf]
        %v5189 = vld [vmem:[%s5165 + $0xec] sm:$0x3]
        %v5214 = vrot.slane %v5166, 6
        %v5215 = vrot.slane %v5214, 4
        %v5216 = vrot.slane %v5167, 6
        %v5217 = vsel %vm3854, %v5215, %v5216
        %v5218 = vrot.slane %v5216, 4
        %v5219 = vrot.slane %v5168, 6
        %v5220 = vsel %vm3854, %v5218, %v5219
        %v5221 = vrot.slane %v5169, 6
        %v5222 = vrot.slane %v5221, 4
        %v5223 = vrot.slane %v5170, 6
        %v5224 = vsel %vm3854, %v5222, %v5223
        %v5225 = vrot.slane %v5223, 4
        %v5226 = vrot.slane %v5171, 6
        %v5227 = vsel %vm3854, %v5225, %v5226
        %v5228 = vrot.slane %v5172, 6
        %v5229 = vrot.slane %v5228, 4
        %v5230 = vrot.slane %v5173, 6
        %v5231 = vsel %vm3854, %v5229, %v5230
        %v5232 = vrot.slane %v5230, 4
        %v5233 = vrot.slane %v5174, 6
        %v5234 = vsel %vm3854, %v5232, %v5233
        %v5235 = vrot.slane %v5175, 6
        %v5236 = vrot.slane %v5235, 4
        %v5237 = vrot.slane %v5176, 6
        %v5238 = vsel %vm3854, %v5236, %v5237
        %v5239 = vrot.slane %v5237, 4
        %v5240 = vrot.slane %v5177, 6
        %v5241 = vsel %vm3854, %v5239, %v5240
        %v5242 = vrot.slane %v5178, 6
        %v5243 = vrot.slane %v5242, 4
        %v5244 = vrot.slane %v5179, 6
        %v5245 = vsel %vm3854, %v5243, %v5244
        %v5246 = vrot.slane %v5244, 4
        %v5247 = vrot.slane %v5180, 6
        %v5248 = vsel %vm3854, %v5246, %v5247
        %v5249 = vrot.slane %v5181, 6
        %v5250 = vrot.slane %v5249, 4
        %v5251 = vrot.slane %v5182, 6
        %v5252 = vsel %vm3854, %v5250, %v5251
        %v5253 = vrot.slane %v5251, 4
        %v5254 = vrot.slane %v5183, 6
        %v5255 = vsel %vm3854, %v5253, %v5254
        %v5256 = vrot.slane %v5184, 6
        %v5257 = vrot.slane %v5256, 4
        %v5258 = vrot.slane %v5185, 6
        %v5259 = vsel %vm3854, %v5257, %v5258
        %v5260 = vrot.slane %v5258, 4
        %v5261 = vrot.slane %v5186, 6
        %v5262 = vsel %vm3854, %v5260, %v5261
        %v5263 = vrot.slane %v5187, 6
        %v5264 = vrot.slane %v5263, 4
        %v5265 = vrot.slane %v5188, 6
        %v5266 = vsel %vm3854, %v5264, %v5265
        %v5267 = vrot.slane %v5265, 4
        %v5268 = vrot.slane %v5189, 6
        %v5269 = vsel %vm3854, %v5267, %v5268
        %s5270 = scalar_lea.vmem %s569, 384 [#allocation11]
        %v5271 = vld [vmem:[%s5270] sm:$0xf]
        %v5272 = vld [vmem:[%s5270 + $0x4] sm:$0xf]
        %v5273 = vld [vmem:[%s5270 + $0x8] sm:$0xf]
        %v5274 = vld [vmem:[%s5270 + $0xc] sm:$0xf]
        %v5275 = vld [vmem:[%s5270 + $0x10] sm:$0xf]
        %v5276 = vld [vmem:[%s5270 + $0x14] sm:$0xf]
        %v5277 = vld [vmem:[%s5270 + $0x18] sm:$0xf]
        %v5278 = vld [vmem:[%s5270 + $0x1c] sm:$0xf]
        %v5279 = vld [vmem:[%s5270 + $0x20] sm:$0xf]
        %v5280 = vld [vmem:[%s5270 + $0x24] sm:$0xf]
        %v5281 = vld [vmem:[%s5270 + $0x28] sm:$0xf]
        %v5282 = vld [vmem:[%s5270 + $0x2c] sm:$0xf]
        %v5283 = vld [vmem:[%s5270 + $0x30] sm:$0xf]
        %v5284 = vld [vmem:[%s5270 + $0x34] sm:$0xf]
        %v5285 = vld [vmem:[%s5270 + $0x38] sm:$0xf]
        %v5286 = vld [vmem:[%s5270 + $0x3c] sm:$0xf]
        %v5287 = vunpack.c.l.b16 %v5217
        %v5288 = vunpack.c.l.b16 %v5220
        %v5289 = vunpack.c.l.b16 %v5224
        %v5290 = vunpack.c.l.b16 %v5227
        %v5291 = vunpack.c.l.b16 %v5231
        %v5292 = vunpack.c.l.b16 %v5234
        %v5293 = vunpack.c.l.b16 %v5238
        %v5294 = vunpack.c.l.b16 %v5241
        %v5295 = vunpack.c.l.b16 %v5245
        %v5296 = vunpack.c.l.b16 %v5248
        %v5297 = vunpack.c.l.b16 %v5252
        %v5298 = vunpack.c.l.b16 %v5255
        %v5299 = vunpack.c.l.b16 %v5259
        %v5300 = vunpack.c.l.b16 %v5262
        %v5301 = vunpack.c.l.b16 %v5266
        %v5302 = vunpack.c.l.b16 %v5269
        %v5303 = vpack.c.b16 %v5288, %v5287
        %v5304 = vpack.c.b16 %v5290, %v5289
        %v5305 = vpack.c.b16 %v5292, %v5291
        %v5306 = vpack.c.b16 %v5294, %v5293
        %v5307 = vpack.c.b16 %v5296, %v5295
        %v5308 = vpack.c.b16 %v5298, %v5297
        %v5309 = vpack.c.b16 %v5300, %v5299
        %v5310 = vpack.c.b16 %v5302, %v5301
        %v5335 = vunpack.c.l.b16 %v5271
        %v5336 = vunpack.c.l.b16 %v5272
        %v5337 = vunpack.c.l.b16 %v5273
        %v5338 = vunpack.c.l.b16 %v5274
        %v5339 = vunpack.c.l.b16 %v5275
        %v5340 = vunpack.c.l.b16 %v5276
        %v5341 = vunpack.c.l.b16 %v5277
        %v5342 = vunpack.c.l.b16 %v5278
        %v5343 = vunpack.c.l.b16 %v5279
        %v5344 = vunpack.c.l.b16 %v5280
        %v5345 = vunpack.c.l.b16 %v5281
        %v5346 = vunpack.c.l.b16 %v5282
        %v5347 = vunpack.c.l.b16 %v5283
        %v5348 = vunpack.c.l.b16 %v5284
        %v5349 = vunpack.c.l.b16 %v5285
        %v5350 = vunpack.c.l.b16 %v5286
        %v5351 = vpack.c.b16 %v5336, %v5335
        %v5352 = vpack.c.b16 %v5338, %v5337
        %v5353 = vpack.c.b16 %v5340, %v5339
        %v5354 = vpack.c.b16 %v5342, %v5341
        %v5355 = vpack.c.b16 %v5344, %v5343
        %v5356 = vpack.c.b16 %v5346, %v5345
        %v5357 = vpack.c.b16 %v5348, %v5347
        %v5358 = vpack.c.b16 %v5350, %v5349
        %5367 = vmatpush.bf16.msra.mxu0 %v5358
        %5368 = vmatpush.bf16.msra.mxu0 %v5357
        %5369 = vmatpush.bf16.msra.mxu0 %v5356
        %5370 = vmatpush.bf16.msra.mxu0 %v5355
        %5371 = vmatpush.bf16.msra.mxu0 %v5354
        %5372 = vmatpush.bf16.msra.mxu0 %v5353
        %5373 = vmatpush.bf16.msra.mxu0 %v5352
        %5374 = vmatpush.bf16.msra.mxu0 %v5351
        %5375 = vmatmul.bf16.gmra.mxu0 %v5303
        %v5376 = vpop.f32.mrf.mxu0
        %v5377 = vadd.f32 0.0, %v5376
        %v5378 = vpop.f32.mrf.mxu0
        %v5379 = vadd.f32 0.0, %v5378
        %5380 = vmatmul.bf16.gmra.mxu0 %v5304
        %v5381 = vpop.f32.mrf.mxu0
        %v5382 = vadd.f32 0.0, %v5381
        %v5383 = vpop.f32.mrf.mxu0
        %v5384 = vadd.f32 0.0, %v5383
        %5385 = vmatmul.bf16.gmra.mxu0 %v5305
        %v5386 = vpop.f32.mrf.mxu0
        %v5387 = vadd.f32 0.0, %v5386
        %v5388 = vpop.f32.mrf.mxu0
        %v5389 = vadd.f32 0.0, %v5388
        %5390 = vmatmul.bf16.gmra.mxu0 %v5306
        %v5391 = vpop.f32.mrf.mxu0
        %v5392 = vadd.f32 0.0, %v5391
        %v5393 = vpop.f32.mrf.mxu0
        %v5394 = vadd.f32 0.0, %v5393
        %5395 = vmatmul.bf16.gmra.mxu0 %v5307
        %v5396 = vpop.f32.mrf.mxu0
        %v5397 = vadd.f32 0.0, %v5396
        %v5398 = vpop.f32.mrf.mxu0
        %v5399 = vadd.f32 0.0, %v5398
        %5400 = vmatmul.bf16.gmra.mxu0 %v5308
        %v5401 = vpop.f32.mrf.mxu0
        %v5402 = vadd.f32 0.0, %v5401
        %v5403 = vpop.f32.mrf.mxu0
        %v5404 = vadd.f32 0.0, %v5403
        %5405 = vmatmul.bf16.gmra.mxu0 %v5309
        %v5406 = vpop.f32.mrf.mxu0
        %v5407 = vadd.f32 0.0, %v5406
        %v5408 = vpop.f32.mrf.mxu0
        %v5409 = vadd.f32 0.0, %v5408
        %5410 = vmatmul.bf16.gmra.mxu0 %v5310
        %v5411 = vpop.f32.mrf.mxu0
        %v5412 = vadd.f32 0.0, %v5411
        %v5413 = vpop.f32.mrf.mxu0
        %v5414 = vadd.f32 0.0, %v5413
        %5415 = vdwg.mxu0
        %v5416 = vadd.f32 %v5146, %v5377
        %v5417 = vadd.f32 %v5147, %v5379
        %v5418 = vadd.f32 %v5148, %v5382
        %v5419 = vadd.f32 %v5149, %v5384
        %v5420 = vadd.f32 %v5150, %v5387
        %v5421 = vadd.f32 %v5151, %v5389
        %v5422 = vadd.f32 %v5152, %v5392
        %v5423 = vadd.f32 %v5153, %v5394
        %v5424 = vadd.f32 %v5154, %v5397
        %v5425 = vadd.f32 %v5155, %v5399
        %v5426 = vadd.f32 %v5156, %v5402
        %v5427 = vadd.f32 %v5157, %v5404
        %v5428 = vadd.f32 %v5158, %v5407
        %v5429 = vadd.f32 %v5159, %v5409
        %v5430 = vadd.f32 %v5160, %v5412
        %v5431 = vadd.f32 %v5161, %v5414
        %v5432 = vld [vmem:[%s5165 + $0xc] sm:$0xf]
        %v5433 = vld [vmem:[%s5165 + $0x10] sm:$0xf]
        %v5434 = vld [vmem:[%s5165 + $0x2c] sm:$0xf]
        %v5435 = vld [vmem:[%s5165 + $0x30] sm:$0xf]
        %v5436 = vld [vmem:[%s5165 + $0x4c] sm:$0xf]
        %v5437 = vld [vmem:[%s5165 + $0x50] sm:$0xf]
        %v5438 = vld [vmem:[%s5165 + $0x6c] sm:$0xf]
        %v5439 = vld [vmem:[%s5165 + $0x70] sm:$0xf]
        %v5440 = vld [vmem:[%s5165 + $0x8c] sm:$0xf]
        %v5441 = vld [vmem:[%s5165 + $0x90] sm:$0xf]
        %v5442 = vld [vmem:[%s5165 + $0xac] sm:$0xf]
        %v5443 = vld [vmem:[%s5165 + $0xb0] sm:$0xf]
        %v5444 = vld [vmem:[%s5165 + $0xcc] sm:$0xf]
        %v5445 = vld [vmem:[%s5165 + $0xd0] sm:$0xf]
        %v5446 = vld [vmem:[%s5165 + $0xec] sm:$0xf]
        %v5447 = vld [vmem:[%s5165 + $0xf0] sm:$0xf]
        %s5448 = scalar_lea.vmem %s569, 448 [#allocation11]
        %v5449 = vld [vmem:[%s5448] sm:$0xf]
        %v5450 = vld [vmem:[%s5448 + $0x4] sm:$0xf]
        %v5451 = vld [vmem:[%s5448 + $0x8] sm:$0xf]
        %v5452 = vld [vmem:[%s5448 + $0xc] sm:$0xf]
        %v5453 = vld [vmem:[%s5448 + $0x10] sm:$0xf]
        %v5454 = vld [vmem:[%s5448 + $0x14] sm:$0xf]
        %v5455 = vld [vmem:[%s5448 + $0x18] sm:$0xf]
        %v5456 = vld [vmem:[%s5448 + $0x1c] sm:$0xf]
        %v5457 = vld [vmem:[%s5448 + $0x20] sm:$0xf]
        %v5458 = vld [vmem:[%s5448 + $0x24] sm:$0xf]
        %v5459 = vld [vmem:[%s5448 + $0x28] sm:$0xf]
        %v5460 = vld [vmem:[%s5448 + $0x2c] sm:$0xf]
        %v5461 = vld [vmem:[%s5448 + $0x30] sm:$0xf]
        %v5462 = vld [vmem:[%s5448 + $0x34] sm:$0xf]
        %v5463 = vld [vmem:[%s5448 + $0x38] sm:$0xf]
        %v5464 = vld [vmem:[%s5448 + $0x3c] sm:$0xf]
        %v5481 = vunpack.c.l.b16 %v5432
        %v5482 = vunpack.c.l.b16 %v5433
        %v5483 = vunpack.c.l.b16 %v5434
        %v5484 = vunpack.c.l.b16 %v5435
        %v5485 = vunpack.c.l.b16 %v5436
        %v5486 = vunpack.c.l.b16 %v5437
        %v5487 = vunpack.c.l.b16 %v5438
        %v5488 = vunpack.c.l.b16 %v5439
        %v5489 = vunpack.c.l.b16 %v5440
        %v5490 = vunpack.c.l.b16 %v5441
        %v5491 = vunpack.c.l.b16 %v5442
        %v5492 = vunpack.c.l.b16 %v5443
        %v5493 = vunpack.c.l.b16 %v5444
        %v5494 = vunpack.c.l.b16 %v5445
        %v5495 = vunpack.c.l.b16 %v5446
        %v5496 = vunpack.c.l.b16 %v5447
        %v5497 = vpack.c.b16 %v5482, %v5481
        %v5498 = vpack.c.b16 %v5484, %v5483
        %v5499 = vpack.c.b16 %v5486, %v5485
        %v5500 = vpack.c.b16 %v5488, %v5487
        %v5501 = vpack.c.b16 %v5490, %v5489
        %v5502 = vpack.c.b16 %v5492, %v5491
        %v5503 = vpack.c.b16 %v5494, %v5493
        %v5504 = vpack.c.b16 %v5496, %v5495
        %v5529 = vunpack.c.l.b16 %v5449
        %v5530 = vunpack.c.l.b16 %v5450
        %v5531 = vunpack.c.l.b16 %v5451
        %v5532 = vunpack.c.l.b16 %v5452
        %v5533 = vunpack.c.l.b16 %v5453
        %v5534 = vunpack.c.l.b16 %v5454
        %v5535 = vunpack.c.l.b16 %v5455
        %v5536 = vunpack.c.l.b16 %v5456
        %v5537 = vunpack.c.l.b16 %v5457
        %v5538 = vunpack.c.l.b16 %v5458
        %v5539 = vunpack.c.l.b16 %v5459
        %v5540 = vunpack.c.l.b16 %v5460
        %v5541 = vunpack.c.l.b16 %v5461
        %v5542 = vunpack.c.l.b16 %v5462
        %v5543 = vunpack.c.l.b16 %v5463
        %v5544 = vunpack.c.l.b16 %v5464
        %v5545 = vpack.c.b16 %v5530, %v5529
        %v5546 = vpack.c.b16 %v5532, %v5531
        %v5547 = vpack.c.b16 %v5534, %v5533
        %v5548 = vpack.c.b16 %v5536, %v5535
        %v5549 = vpack.c.b16 %v5538, %v5537
        %v5550 = vpack.c.b16 %v5540, %v5539
        %v5551 = vpack.c.b16 %v5542, %v5541
        %v5552 = vpack.c.b16 %v5544, %v5543
        %5561 = vmatpush.bf16.msra.mxu0 %v5552
        %5562 = vmatpush.bf16.msra.mxu0 %v5551
        %5563 = vmatpush.bf16.msra.mxu0 %v5550
        %5564 = vmatpush.bf16.msra.mxu0 %v5549
        %5565 = vmatpush.bf16.msra.mxu0 %v5548
        %5566 = vmatpush.bf16.msra.mxu0 %v5547
        %5567 = vmatpush.bf16.msra.mxu0 %v5546
        %5568 = vmatpush.bf16.msra.mxu0 %v5545
        %5569 = vmatmul.bf16.gmra.mxu0 %v5497
        %v5570 = vpop.f32.mrf.mxu0
        %v5571 = vadd.f32 0.0, %v5570
        %v5572 = vpop.f32.mrf.mxu0
        %v5573 = vadd.f32 0.0, %v5572
        %5574 = vmatmul.bf16.gmra.mxu0 %v5498
        %v5575 = vpop.f32.mrf.mxu0
        %v5576 = vadd.f32 0.0, %v5575
        %v5577 = vpop.f32.mrf.mxu0
        %v5578 = vadd.f32 0.0, %v5577
        %5579 = vmatmul.bf16.gmra.mxu0 %v5499
        %v5580 = vpop.f32.mrf.mxu0
        %v5581 = vadd.f32 0.0, %v5580
        %v5582 = vpop.f32.mrf.mxu0
        %v5583 = vadd.f32 0.0, %v5582
        %5584 = vmatmul.bf16.gmra.mxu0 %v5500
        %v5585 = vpop.f32.mrf.mxu0
        %v5586 = vadd.f32 0.0, %v5585
        %v5587 = vpop.f32.mrf.mxu0
        %v5588 = vadd.f32 0.0, %v5587
        %5589 = vmatmul.bf16.gmra.mxu0 %v5501
        %v5590 = vpop.f32.mrf.mxu0
        %v5591 = vadd.f32 0.0, %v5590
        %v5592 = vpop.f32.mrf.mxu0
        %v5593 = vadd.f32 0.0, %v5592
        %5594 = vmatmul.bf16.gmra.mxu0 %v5502
        %v5595 = vpop.f32.mrf.mxu0
        %v5596 = vadd.f32 0.0, %v5595
        %v5597 = vpop.f32.mrf.mxu0
        %v5598 = vadd.f32 0.0, %v5597
        %5599 = vmatmul.bf16.gmra.mxu0 %v5503
        %v5600 = vpop.f32.mrf.mxu0
        %v5601 = vadd.f32 0.0, %v5600
        %v5602 = vpop.f32.mrf.mxu0
        %v5603 = vadd.f32 0.0, %v5602
        %5604 = vmatmul.bf16.gmra.mxu0 %v5504
        %v5605 = vpop.f32.mrf.mxu0
        %v5606 = vadd.f32 0.0, %v5605
        %v5607 = vpop.f32.mrf.mxu0
        %v5608 = vadd.f32 0.0, %v5607
        %5609 = vdwg.mxu0
        %v5610 = vadd.f32 %v5416, %v5571
        %v5611 = vadd.f32 %v5417, %v5573
        %v5612 = vadd.f32 %v5418, %v5576
        %v5613 = vadd.f32 %v5419, %v5578
        %v5614 = vadd.f32 %v5420, %v5581
        %v5615 = vadd.f32 %v5421, %v5583
        %v5616 = vadd.f32 %v5422, %v5586
        %v5617 = vadd.f32 %v5423, %v5588
        %v5618 = vadd.f32 %v5424, %v5591
        %v5619 = vadd.f32 %v5425, %v5593
        %v5620 = vadd.f32 %v5426, %v5596
        %v5621 = vadd.f32 %v5427, %v5598
        %v5622 = vadd.f32 %v5428, %v5601
        %v5623 = vadd.f32 %v5429, %v5603
        %v5624 = vadd.f32 %v5430, %v5606
        %v5625 = vadd.f32 %v5431, %v5608
        %v5626 = vld [vmem:[%s5165 + $0x10] sm:$0xc]
        %v5627 = vld [vmem:[%s5165 + $0x14] sm:$0xf]
        %v5628 = vld [vmem:[%s5165 + $0x18] sm:$0x3]
        %v5629 = vld [vmem:[%s5165 + $0x30] sm:$0xc]
        %v5630 = vld [vmem:[%s5165 + $0x34] sm:$0xf]
        %v5631 = vld [vmem:[%s5165 + $0x38] sm:$0x3]
        %v5632 = vld [vmem:[%s5165 + $0x50] sm:$0xc]
        %v5633 = vld [vmem:[%s5165 + $0x54] sm:$0xf]
        %v5634 = vld [vmem:[%s5165 + $0x58] sm:$0x3]
        %v5635 = vld [vmem:[%s5165 + $0x70] sm:$0xc]
        %v5636 = vld [vmem:[%s5165 + $0x74] sm:$0xf]
        %v5637 = vld [vmem:[%s5165 + $0x78] sm:$0x3]
        %v5638 = vld [vmem:[%s5165 + $0x90] sm:$0xc]
        %v5639 = vld [vmem:[%s5165 + $0x94] sm:$0xf]
        %v5640 = vld [vmem:[%s5165 + $0x98] sm:$0x3]
        %v5641 = vld [vmem:[%s5165 + $0xb0] sm:$0xc]
        %v5642 = vld [vmem:[%s5165 + $0xb4] sm:$0xf]
        %v5643 = vld [vmem:[%s5165 + $0xb8] sm:$0x3]
        %v5644 = vld [vmem:[%s5165 + $0xd0] sm:$0xc]
        %v5645 = vld [vmem:[%s5165 + $0xd4] sm:$0xf]
        %v5646 = vld [vmem:[%s5165 + $0xd8] sm:$0x3]
        %v5647 = vld [vmem:[%s5165 + $0xf0] sm:$0xc]
        %v5648 = vld [vmem:[%s5165 + $0xf4] sm:$0xf]
        %v5649 = vld [vmem:[%s5165 + $0xf8] sm:$0x3]
        %v5674 = vrot.slane %v5626, 6
        %v5675 = vrot.slane %v5674, 4
        %v5676 = vrot.slane %v5627, 6
        %v5677 = vsel %vm3854, %v5675, %v5676
        %v5678 = vrot.slane %v5676, 4
        %v5679 = vrot.slane %v5628, 6
        %v5680 = vsel %vm3854, %v5678, %v5679
        %v5681 = vrot.slane %v5629, 6
        %v5682 = vrot.slane %v5681, 4
        %v5683 = vrot.slane %v5630, 6
        %v5684 = vsel %vm3854, %v5682, %v5683
        %v5685 = vrot.slane %v5683, 4
        %v5686 = vrot.slane %v5631, 6
        %v5687 = vsel %vm3854, %v5685, %v5686
        %v5688 = vrot.slane %v5632, 6
        %v5689 = vrot.slane %v5688, 4
        %v5690 = vrot.slane %v5633, 6
        %v5691 = vsel %vm3854, %v5689, %v5690
        %v5692 = vrot.slane %v5690, 4
        %v5693 = vrot.slane %v5634, 6
        %v5694 = vsel %vm3854, %v5692, %v5693
        %v5695 = vrot.slane %v5635, 6
        %v5696 = vrot.slane %v5695, 4
        %v5697 = vrot.slane %v5636, 6
        %v5698 = vsel %vm3854, %v5696, %v5697
        %v5699 = vrot.slane %v5697, 4
        %v5700 = vrot.slane %v5637, 6
        %v5701 = vsel %vm3854, %v5699, %v5700
        %v5702 = vrot.slane %v5638, 6
        %v5703 = vrot.slane %v5702, 4
        %v5704 = vrot.slane %v5639, 6
        %v5705 = vsel %vm3854, %v5703, %v5704
        %v5706 = vrot.slane %v5704, 4
        %v5707 = vrot.slane %v5640, 6
        %v5708 = vsel %vm3854, %v5706, %v5707
        %v5709 = vrot.slane %v5641, 6
        %v5710 = vrot.slane %v5709, 4
        %v5711 = vrot.slane %v5642, 6
        %v5712 = vsel %vm3854, %v5710, %v5711
        %v5713 = vrot.slane %v5711, 4
        %v5714 = vrot.slane %v5643, 6
        %v5715 = vsel %vm3854, %v5713, %v5714
        %v5716 = vrot.slane %v5644, 6
        %v5717 = vrot.slane %v5716, 4
        %v5718 = vrot.slane %v5645, 6
        %v5719 = vsel %vm3854, %v5717, %v5718
        %v5720 = vrot.slane %v5718, 4
        %v5721 = vrot.slane %v5646, 6
        %v5722 = vsel %vm3854, %v5720, %v5721
        %v5723 = vrot.slane %v5647, 6
        %v5724 = vrot.slane %v5723, 4
        %v5725 = vrot.slane %v5648, 6
        %v5726 = vsel %vm3854, %v5724, %v5725
        %v5727 = vrot.slane %v5725, 4
        %v5728 = vrot.slane %v5649, 6
        %v5729 = vsel %vm3854, %v5727, %v5728
        %s5730 = scalar_lea.vmem %s569, 512 [#allocation11]
        %v5731 = vld [vmem:[%s5730] sm:$0xf]
        %v5732 = vld [vmem:[%s5730 + $0x4] sm:$0xf]
        %v5733 = vld [vmem:[%s5730 + $0x8] sm:$0xf]
        %v5734 = vld [vmem:[%s5730 + $0xc] sm:$0xf]
        %v5735 = vld [vmem:[%s5730 + $0x10] sm:$0xf]
        %v5736 = vld [vmem:[%s5730 + $0x14] sm:$0xf]
        %v5737 = vld [vmem:[%s5730 + $0x18] sm:$0xf]
        %v5738 = vld [vmem:[%s5730 + $0x1c] sm:$0xf]
        %v5739 = vld [vmem:[%s5730 + $0x20] sm:$0xf]
        %v5740 = vld [vmem:[%s5730 + $0x24] sm:$0xf]
        %v5741 = vld [vmem:[%s5730 + $0x28] sm:$0xf]
        %v5742 = vld [vmem:[%s5730 + $0x2c] sm:$0xf]
        %v5743 = vld [vmem:[%s5730 + $0x30] sm:$0xf]
        %v5744 = vld [vmem:[%s5730 + $0x34] sm:$0xf]
        %v5745 = vld [vmem:[%s5730 + $0x38] sm:$0xf]
        %v5746 = vld [vmem:[%s5730 + $0x3c] sm:$0xf]
        %v5747 = vunpack.c.l.b16 %v5677
        %v5748 = vunpack.c.l.b16 %v5680
        %v5749 = vunpack.c.l.b16 %v5684
        %v5750 = vunpack.c.l.b16 %v5687
        %v5751 = vunpack.c.l.b16 %v5691
        %v5752 = vunpack.c.l.b16 %v5694
        %v5753 = vunpack.c.l.b16 %v5698
        %v5754 = vunpack.c.l.b16 %v5701
        %v5755 = vunpack.c.l.b16 %v5705
        %v5756 = vunpack.c.l.b16 %v5708
        %v5757 = vunpack.c.l.b16 %v5712
        %v5758 = vunpack.c.l.b16 %v5715
        %v5759 = vunpack.c.l.b16 %v5719
        %v5760 = vunpack.c.l.b16 %v5722
        %v5761 = vunpack.c.l.b16 %v5726
        %v5762 = vunpack.c.l.b16 %v5729
        %v5763 = vpack.c.b16 %v5748, %v5747
        %v5764 = vpack.c.b16 %v5750, %v5749
        %v5765 = vpack.c.b16 %v5752, %v5751
        %v5766 = vpack.c.b16 %v5754, %v5753
        %v5767 = vpack.c.b16 %v5756, %v5755
        %v5768 = vpack.c.b16 %v5758, %v5757
        %v5769 = vpack.c.b16 %v5760, %v5759
        %v5770 = vpack.c.b16 %v5762, %v5761
        %v5795 = vunpack.c.l.b16 %v5731
        %v5796 = vunpack.c.l.b16 %v5732
        %v5797 = vunpack.c.l.b16 %v5733
        %v5798 = vunpack.c.l.b16 %v5734
        %v5799 = vunpack.c.l.b16 %v5735
        %v5800 = vunpack.c.l.b16 %v5736
        %v5801 = vunpack.c.l.b16 %v5737
        %v5802 = vunpack.c.l.b16 %v5738
        %v5803 = vunpack.c.l.b16 %v5739
        %v5804 = vunpack.c.l.b16 %v5740
        %v5805 = vunpack.c.l.b16 %v5741
        %v5806 = vunpack.c.l.b16 %v5742
        %v5807 = vunpack.c.l.b16 %v5743
        %v5808 = vunpack.c.l.b16 %v5744
        %v5809 = vunpack.c.l.b16 %v5745
        %v5810 = vunpack.c.l.b16 %v5746
        %v5811 = vpack.c.b16 %v5796, %v5795
        %v5812 = vpack.c.b16 %v5798, %v5797
        %v5813 = vpack.c.b16 %v5800, %v5799
        %v5814 = vpack.c.b16 %v5802, %v5801
        %v5815 = vpack.c.b16 %v5804, %v5803
        %v5816 = vpack.c.b16 %v5806, %v5805
        %v5817 = vpack.c.b16 %v5808, %v5807
        %v5818 = vpack.c.b16 %v5810, %v5809
        %5827 = vmatpush.bf16.msra.mxu0 %v5818
        %5828 = vmatpush.bf16.msra.mxu0 %v5817
        %5829 = vmatpush.bf16.msra.mxu0 %v5816
        %5830 = vmatpush.bf16.msra.mxu0 %v5815
        %5831 = vmatpush.bf16.msra.mxu0 %v5814
        %5832 = vmatpush.bf16.msra.mxu0 %v5813
        %5833 = vmatpush.bf16.msra.mxu0 %v5812
        %5834 = vmatpush.bf16.msra.mxu0 %v5811
        %5835 = vmatmul.bf16.gmra.mxu0 %v5763
        %v5836 = vpop.f32.mrf.mxu0
        %v5837 = vadd.f32 0.0, %v5836
        %v5838 = vpop.f32.mrf.mxu0
        %v5839 = vadd.f32 0.0, %v5838
        %5840 = vmatmul.bf16.gmra.mxu0 %v5764
        %v5841 = vpop.f32.mrf.mxu0
        %v5842 = vadd.f32 0.0, %v5841
        %v5843 = vpop.f32.mrf.mxu0
        %v5844 = vadd.f32 0.0, %v5843
        %5845 = vmatmul.bf16.gmra.mxu0 %v5765
        %v5846 = vpop.f32.mrf.mxu0
        %v5847 = vadd.f32 0.0, %v5846
        %v5848 = vpop.f32.mrf.mxu0
        %v5849 = vadd.f32 0.0, %v5848
        %5850 = vmatmul.bf16.gmra.mxu0 %v5766
        %v5851 = vpop.f32.mrf.mxu0
        %v5852 = vadd.f32 0.0, %v5851
        %v5853 = vpop.f32.mrf.mxu0
        %v5854 = vadd.f32 0.0, %v5853
        %5855 = vmatmul.bf16.gmra.mxu0 %v5767
        %v5856 = vpop.f32.mrf.mxu0
        %v5857 = vadd.f32 0.0, %v5856
        %v5858 = vpop.f32.mrf.mxu0
        %v5859 = vadd.f32 0.0, %v5858
        %5860 = vmatmul.bf16.gmra.mxu0 %v5768
        %v5861 = vpop.f32.mrf.mxu0
        %v5862 = vadd.f32 0.0, %v5861
        %v5863 = vpop.f32.mrf.mxu0
        %v5864 = vadd.f32 0.0, %v5863
        %5865 = vmatmul.bf16.gmra.mxu0 %v5769
        %v5866 = vpop.f32.mrf.mxu0
        %v5867 = vadd.f32 0.0, %v5866
        %v5868 = vpop.f32.mrf.mxu0
        %v5869 = vadd.f32 0.0, %v5868
        %5870 = vmatmul.bf16.gmra.mxu0 %v5770
        %v5871 = vpop.f32.mrf.mxu0
        %v5872 = vadd.f32 0.0, %v5871
        %v5873 = vpop.f32.mrf.mxu0
        %v5874 = vadd.f32 0.0, %v5873
        %5875 = vdwg.mxu0
        %v5876 = vadd.f32 %v5610, %v5837
        %v5877 = vadd.f32 %v5611, %v5839
        %v5878 = vadd.f32 %v5612, %v5842
        %v5879 = vadd.f32 %v5613, %v5844
        %v5880 = vadd.f32 %v5614, %v5847
        %v5881 = vadd.f32 %v5615, %v5849
        %v5882 = vadd.f32 %v5616, %v5852
        %v5883 = vadd.f32 %v5617, %v5854
        %v5884 = vadd.f32 %v5618, %v5857
        %v5885 = vadd.f32 %v5619, %v5859
        %v5886 = vadd.f32 %v5620, %v5862
        %v5887 = vadd.f32 %v5621, %v5864
        %v5888 = vadd.f32 %v5622, %v5867
        %v5889 = vadd.f32 %v5623, %v5869
        %v5890 = vadd.f32 %v5624, %v5872
        %v5891 = vadd.f32 %v5625, %v5874
        %v5892 = vld [vmem:[#allocation3 + $0x10] sm:$0xff]
        %v5893 = vld [vmem:[#allocation3 + $0x30] sm:$0xff]
        %v5894 = vld [vmem:[#allocation3 + $0x50] sm:$0xff]
        %v5895 = vld [vmem:[#allocation3 + $0x70] sm:$0xff]
        %v5896 = vld [vmem:[#allocation3 + $0x90] sm:$0xff]
        %v5897 = vld [vmem:[#allocation3 + $0xb0] sm:$0xff]
        %v5898 = vld [vmem:[#allocation3 + $0xd0] sm:$0xff]
        %v5899 = vld [vmem:[#allocation3 + $0xf0] sm:$0xff]
        %v5900 = vld [vmem:[#allocation3 + $0x110] sm:$0xff]
        %v5901 = vld [vmem:[#allocation3 + $0x130] sm:$0xff]
        %v5902 = vld [vmem:[#allocation3 + $0x150] sm:$0xff]
        %v5903 = vld [vmem:[#allocation3 + $0x170] sm:$0xff]
        %v5904 = vld [vmem:[#allocation3 + $0x190] sm:$0xff]
        %v5905 = vld [vmem:[#allocation3 + $0x1b0] sm:$0xff]
        %v5906 = vld [vmem:[#allocation3 + $0x1d0] sm:$0xff]
        %v5907 = vld [vmem:[#allocation3 + $0x1f0] sm:$0xff]
        %v5908 = vadd.f32 %v5892, %v5876
        %v5909 = vadd.f32 %v5893, %v5877
        %v5910 = vadd.f32 %v5894, %v5878
        %v5911 = vadd.f32 %v5895, %v5879
        %v5912 = vadd.f32 %v5896, %v5880
        %v5913 = vadd.f32 %v5897, %v5881
        %v5914 = vadd.f32 %v5898, %v5882
        %v5915 = vadd.f32 %v5899, %v5883
        %v5916 = vadd.f32 %v5900, %v5884
        %v5917 = vadd.f32 %v5901, %v5885
        %v5918 = vadd.f32 %v5902, %v5886
        %v5919 = vadd.f32 %v5903, %v5887
        %v5920 = vadd.f32 %v5904, %v5888
        %v5921 = vadd.f32 %v5905, %v5889
        %v5922 = vadd.f32 %v5906, %v5890
        %v5923 = vadd.f32 %v5907, %v5891
        %5924 = vst [vmem:[#allocation3 + $0x10] sm:$0xff] %v5908
        %5925 = vst [vmem:[#allocation3 + $0x30] sm:$0xff] %v5909
        %5926 = vst [vmem:[#allocation3 + $0x50] sm:$0xff] %v5910
        %5927 = vst [vmem:[#allocation3 + $0x70] sm:$0xff] %v5911
        %5928 = vst [vmem:[#allocation3 + $0x90] sm:$0xff] %v5912
        %5929 = vst [vmem:[#allocation3 + $0xb0] sm:$0xff] %v5913
        %5930 = vst [vmem:[#allocation3 + $0xd0] sm:$0xff] %v5914
        %5931 = vst [vmem:[#allocation3 + $0xf0] sm:$0xff] %v5915
        %5932 = vst [vmem:[#allocation3 + $0x110] sm:$0xff] %v5916
        %5933 = vst [vmem:[#allocation3 + $0x130] sm:$0xff] %v5917
        %5934 = vst [vmem:[#allocation3 + $0x150] sm:$0xff] %v5918
        %5935 = vst [vmem:[#allocation3 + $0x170] sm:$0xff] %v5919
        %5936 = vst [vmem:[#allocation3 + $0x190] sm:$0xff] %v5920
        %5937 = vst [vmem:[#allocation3 + $0x1b0] sm:$0xff] %v5921
        %5938 = vst [vmem:[#allocation3 + $0x1d0] sm:$0xff] %v5922
        %5939 = vst [vmem:[#allocation3 + $0x1f0] sm:$0xff] %v5923
        %s5940 = sadd.s32 %s666, 6
        %s5941 = smul.u32 %s5940, 8
        %s5942 = smul.addr %s5941, 4
        %s5943 = scalar_lea.vmem [#allocation2], %s5942
        %v5944 = vld [vmem:[%s5943] sm:$0x8]
        %v5945 = vld [vmem:[%s5943 + $0x4] sm:$0xf]
        %v5946 = vld [vmem:[%s5943 + $0x8] sm:$0x7]
        %v5947 = vld [vmem:[%s5943 + $0x20] sm:$0x8]
        %v5948 = vld [vmem:[%s5943 + $0x24] sm:$0xf]
        %v5949 = vld [vmem:[%s5943 + $0x28] sm:$0x7]
        %v5950 = vld [vmem:[%s5943 + $0x40] sm:$0x8]
        %v5951 = vld [vmem:[%s5943 + $0x44] sm:$0xf]
        %v5952 = vld [vmem:[%s5943 + $0x48] sm:$0x7]
        %v5953 = vld [vmem:[%s5943 + $0x60] sm:$0x8]
        %v5954 = vld [vmem:[%s5943 + $0x64] sm:$0xf]
        %v5955 = vld [vmem:[%s5943 + $0x68] sm:$0x7]
        %v5956 = vld [vmem:[%s5943 + $0x80] sm:$0x8]
        %v5957 = vld [vmem:[%s5943 + $0x84] sm:$0xf]
        %v5958 = vld [vmem:[%s5943 + $0x88] sm:$0x7]
        %v5959 = vld [vmem:[%s5943 + $0xa0] sm:$0x8]
        %v5960 = vld [vmem:[%s5943 + $0xa4] sm:$0xf]
        %v5961 = vld [vmem:[%s5943 + $0xa8] sm:$0x7]
        %v5962 = vld [vmem:[%s5943 + $0xc0] sm:$0x8]
        %v5963 = vld [vmem:[%s5943 + $0xc4] sm:$0xf]
        %v5964 = vld [vmem:[%s5943 + $0xc8] sm:$0x7]
        %v5965 = vld [vmem:[%s5943 + $0xe0] sm:$0x8]
        %v5966 = vld [vmem:[%s5943 + $0xe4] sm:$0xf]
        %v5967 = vld [vmem:[%s5943 + $0xe8] sm:$0x7]
        %v5992 = vrot.slane %v5944, 7
        %v5993 = vrot.slane %v5992, 4
        %v5994 = vrot.slane %v5945, 7
        %v5995 = vsel %vm2157, %v5993, %v5994
        %v5996 = vrot.slane %v5994, 4
        %v5997 = vrot.slane %v5946, 7
        %v5998 = vsel %vm2157, %v5996, %v5997
        %v5999 = vrot.slane %v5947, 7
        %v6000 = vrot.slane %v5999, 4
        %v6001 = vrot.slane %v5948, 7
        %v6002 = vsel %vm2157, %v6000, %v6001
        %v6003 = vrot.slane %v6001, 4
        %v6004 = vrot.slane %v5949, 7
        %v6005 = vsel %vm2157, %v6003, %v6004
        %v6006 = vrot.slane %v5950, 7
        %v6007 = vrot.slane %v6006, 4
        %v6008 = vrot.slane %v5951, 7
        %v6009 = vsel %vm2157, %v6007, %v6008
        %v6010 = vrot.slane %v6008, 4
        %v6011 = vrot.slane %v5952, 7
        %v6012 = vsel %vm2157, %v6010, %v6011
        %v6013 = vrot.slane %v5953, 7
        %v6014 = vrot.slane %v6013, 4
        %v6015 = vrot.slane %v5954, 7
        %v6016 = vsel %vm2157, %v6014, %v6015
        %v6017 = vrot.slane %v6015, 4
        %v6018 = vrot.slane %v5955, 7
        %v6019 = vsel %vm2157, %v6017, %v6018
        %v6020 = vrot.slane %v5956, 7
        %v6021 = vrot.slane %v6020, 4
        %v6022 = vrot.slane %v5957, 7
        %v6023 = vsel %vm2157, %v6021, %v6022
        %v6024 = vrot.slane %v6022, 4
        %v6025 = vrot.slane %v5958, 7
        %v6026 = vsel %vm2157, %v6024, %v6025
        %v6027 = vrot.slane %v5959, 7
        %v6028 = vrot.slane %v6027, 4
        %v6029 = vrot.slane %v5960, 7
        %v6030 = vsel %vm2157, %v6028, %v6029
        %v6031 = vrot.slane %v6029, 4
        %v6032 = vrot.slane %v5961, 7
        %v6033 = vsel %vm2157, %v6031, %v6032
        %v6034 = vrot.slane %v5962, 7
        %v6035 = vrot.slane %v6034, 4
        %v6036 = vrot.slane %v5963, 7
        %v6037 = vsel %vm2157, %v6035, %v6036
        %v6038 = vrot.slane %v6036, 4
        %v6039 = vrot.slane %v5964, 7
        %v6040 = vsel %vm2157, %v6038, %v6039
        %v6041 = vrot.slane %v5965, 7
        %v6042 = vrot.slane %v6041, 4
        %v6043 = vrot.slane %v5966, 7
        %v6044 = vsel %vm2157, %v6042, %v6043
        %v6045 = vrot.slane %v6043, 4
        %v6046 = vrot.slane %v5967, 7
        %v6047 = vsel %vm2157, %v6045, %v6046
        %v6048 = vld [vmem:[%s579] sm:$0xf]
        %v6049 = vld [vmem:[%s579 + $0x4] sm:$0xf]
        %v6050 = vld [vmem:[%s579 + $0x8] sm:$0xf]
        %v6051 = vld [vmem:[%s579 + $0xc] sm:$0xf]
        %v6052 = vld [vmem:[%s579 + $0x10] sm:$0xf]
        %v6053 = vld [vmem:[%s579 + $0x14] sm:$0xf]
        %v6054 = vld [vmem:[%s579 + $0x18] sm:$0xf]
        %v6055 = vld [vmem:[%s579 + $0x1c] sm:$0xf]
        %v6056 = vld [vmem:[%s579 + $0x20] sm:$0xf]
        %v6057 = vld [vmem:[%s579 + $0x24] sm:$0xf]
        %v6058 = vld [vmem:[%s579 + $0x28] sm:$0xf]
        %v6059 = vld [vmem:[%s579 + $0x2c] sm:$0xf]
        %v6060 = vld [vmem:[%s579 + $0x30] sm:$0xf]
        %v6061 = vld [vmem:[%s579 + $0x34] sm:$0xf]
        %v6062 = vld [vmem:[%s579 + $0x38] sm:$0xf]
        %v6063 = vld [vmem:[%s579 + $0x3c] sm:$0xf]
        %v6064 = vld [vmem:[%s5943 + $0xc] sm:$0xf]
        %v6065 = vld [vmem:[%s5943 + $0x10] sm:$0xf]
        %v6066 = vld [vmem:[%s5943 + $0x2c] sm:$0xf]
        %v6067 = vld [vmem:[%s5943 + $0x30] sm:$0xf]
        %v6068 = vld [vmem:[%s5943 + $0x4c] sm:$0xf]
        %v6069 = vld [vmem:[%s5943 + $0x50] sm:$0xf]
        %v6070 = vld [vmem:[%s5943 + $0x6c] sm:$0xf]
        %v6071 = vld [vmem:[%s5943 + $0x70] sm:$0xf]
        %v6072 = vld [vmem:[%s5943 + $0x8c] sm:$0xf]
        %v6073 = vld [vmem:[%s5943 + $0x90] sm:$0xf]
        %v6074 = vld [vmem:[%s5943 + $0xac] sm:$0xf]
        %v6075 = vld [vmem:[%s5943 + $0xb0] sm:$0xf]
        %v6076 = vld [vmem:[%s5943 + $0xcc] sm:$0xf]
        %v6077 = vld [vmem:[%s5943 + $0xd0] sm:$0xf]
        %v6078 = vld [vmem:[%s5943 + $0xec] sm:$0xf]
        %v6079 = vld [vmem:[%s5943 + $0xf0] sm:$0xf]
        %s6080 = scalar_lea.vmem %s579, 64 [#allocation13]
        %v6081 = vld [vmem:[%s6080] sm:$0xf]
        %v6082 = vld [vmem:[%s6080 + $0x4] sm:$0xf]
        %v6083 = vld [vmem:[%s6080 + $0x8] sm:$0xf]
        %v6084 = vld [vmem:[%s6080 + $0xc] sm:$0xf]
        %v6085 = vld [vmem:[%s6080 + $0x10] sm:$0xf]
        %v6086 = vld [vmem:[%s6080 + $0x14] sm:$0xf]
        %v6087 = vld [vmem:[%s6080 + $0x18] sm:$0xf]
        %v6088 = vld [vmem:[%s6080 + $0x1c] sm:$0xf]
        %v6089 = vld [vmem:[%s6080 + $0x20] sm:$0xf]
        %v6090 = vld [vmem:[%s6080 + $0x24] sm:$0xf]
        %v6091 = vld [vmem:[%s6080 + $0x28] sm:$0xf]
        %v6092 = vld [vmem:[%s6080 + $0x2c] sm:$0xf]
        %v6093 = vld [vmem:[%s6080 + $0x30] sm:$0xf]
        %v6094 = vld [vmem:[%s6080 + $0x34] sm:$0xf]
        %v6095 = vld [vmem:[%s6080 + $0x38] sm:$0xf]
        %v6096 = vld [vmem:[%s6080 + $0x3c] sm:$0xf]
        %v6113 = vunpack.c.l.b16 %v6064
        %v6114 = vunpack.c.l.b16 %v6065
        %v6115 = vunpack.c.l.b16 %v6066
        %v6116 = vunpack.c.l.b16 %v6067
        %v6117 = vunpack.c.l.b16 %v6068
        %v6118 = vunpack.c.l.b16 %v6069
        %v6119 = vunpack.c.l.b16 %v6070
        %v6120 = vunpack.c.l.b16 %v6071
        %v6121 = vunpack.c.l.b16 %v6072
        %v6122 = vunpack.c.l.b16 %v6073
        %v6123 = vunpack.c.l.b16 %v6074
        %v6124 = vunpack.c.l.b16 %v6075
        %v6125 = vunpack.c.l.b16 %v6076
        %v6126 = vunpack.c.l.b16 %v6077
        %v6127 = vunpack.c.l.b16 %v6078
        %v6128 = vunpack.c.l.b16 %v6079
        %v6129 = vpack.c.b16 %v6114, %v6113
        %v6130 = vpack.c.b16 %v6116, %v6115
        %v6131 = vpack.c.b16 %v6118, %v6117
        %v6132 = vpack.c.b16 %v6120, %v6119
        %v6133 = vpack.c.b16 %v6122, %v6121
        %v6134 = vpack.c.b16 %v6124, %v6123
        %v6135 = vpack.c.b16 %v6126, %v6125
        %v6136 = vpack.c.b16 %v6128, %v6127
        %v6161 = vunpack.c.l.b16 %v6081
        %v6162 = vunpack.c.l.b16 %v6082
        %v6163 = vunpack.c.l.b16 %v6083
        %v6164 = vunpack.c.l.b16 %v6084
        %v6165 = vunpack.c.l.b16 %v6085
        %v6166 = vunpack.c.l.b16 %v6086
        %v6167 = vunpack.c.l.b16 %v6087
        %v6168 = vunpack.c.l.b16 %v6088
        %v6169 = vunpack.c.l.b16 %v6089
        %v6170 = vunpack.c.l.b16 %v6090
        %v6171 = vunpack.c.l.b16 %v6091
        %v6172 = vunpack.c.l.b16 %v6092
        %v6173 = vunpack.c.l.b16 %v6093
        %v6174 = vunpack.c.l.b16 %v6094
        %v6175 = vunpack.c.l.b16 %v6095
        %v6176 = vunpack.c.l.b16 %v6096
        %v6177 = vpack.c.b16 %v6162, %v6161
        %v6178 = vpack.c.b16 %v6164, %v6163
        %v6179 = vpack.c.b16 %v6166, %v6165
        %v6180 = vpack.c.b16 %v6168, %v6167
        %v6181 = vpack.c.b16 %v6170, %v6169
        %v6182 = vpack.c.b16 %v6172, %v6171
        %v6183 = vpack.c.b16 %v6174, %v6173
        %v6184 = vpack.c.b16 %v6176, %v6175
        %6193 = vmatpush.bf16.msra.mxu0 %v6184
        %6194 = vmatpush.bf16.msra.mxu0 %v6183
        %6195 = vmatpush.bf16.msra.mxu0 %v6182
        %6196 = vmatpush.bf16.msra.mxu0 %v6181
        %6197 = vmatpush.bf16.msra.mxu0 %v6180
        %6198 = vmatpush.bf16.msra.mxu0 %v6179
        %6199 = vmatpush.bf16.msra.mxu0 %v6178
        %6200 = vmatpush.bf16.msra.mxu0 %v6177
        %6201 = vmatmul.bf16.gmra.mxu0 %v6129
        %v6202 = vpop.f32.mrf.mxu0
        %v6203 = vadd.f32 0.0, %v6202
        %v6204 = vpop.f32.mrf.mxu0
        %v6205 = vadd.f32 0.0, %v6204
        %6206 = vmatmul.bf16.gmra.mxu0 %v6130
        %v6207 = vpop.f32.mrf.mxu0
        %v6208 = vadd.f32 0.0, %v6207
        %v6209 = vpop.f32.mrf.mxu0
        %v6210 = vadd.f32 0.0, %v6209
        %6211 = vmatmul.bf16.gmra.mxu0 %v6131
        %v6212 = vpop.f32.mrf.mxu0
        %v6213 = vadd.f32 0.0, %v6212
        %v6214 = vpop.f32.mrf.mxu0
        %v6215 = vadd.f32 0.0, %v6214
        %6216 = vmatmul.bf16.gmra.mxu0 %v6132
        %v6217 = vpop.f32.mrf.mxu0
        %v6218 = vadd.f32 0.0, %v6217
        %v6219 = vpop.f32.mrf.mxu0
        %v6220 = vadd.f32 0.0, %v6219
        %6221 = vmatmul.bf16.gmra.mxu0 %v6133
        %v6222 = vpop.f32.mrf.mxu0
        %v6223 = vadd.f32 0.0, %v6222
        %v6224 = vpop.f32.mrf.mxu0
        %v6225 = vadd.f32 0.0, %v6224
        %6226 = vmatmul.bf16.gmra.mxu0 %v6134
        %v6227 = vpop.f32.mrf.mxu0
        %v6228 = vadd.f32 0.0, %v6227
        %v6229 = vpop.f32.mrf.mxu0
        %v6230 = vadd.f32 0.0, %v6229
        %6231 = vmatmul.bf16.gmra.mxu0 %v6135
        %v6232 = vpop.f32.mrf.mxu0
        %v6233 = vadd.f32 0.0, %v6232
        %v6234 = vpop.f32.mrf.mxu0
        %v6235 = vadd.f32 0.0, %v6234
        %6236 = vmatmul.bf16.gmra.mxu0 %v6136
        %v6237 = vpop.f32.mrf.mxu0
        %v6238 = vadd.f32 0.0, %v6237
        %v6239 = vpop.f32.mrf.mxu0
        %v6240 = vadd.f32 0.0, %v6239
        %6241 = vdwg.mxu0
        %v6242 = vunpack.c.l.b16 %v5995
        %v6243 = vunpack.c.l.b16 %v5998
        %v6244 = vunpack.c.l.b16 %v6002
        %v6245 = vunpack.c.l.b16 %v6005
        %v6246 = vunpack.c.l.b16 %v6009
        %v6247 = vunpack.c.l.b16 %v6012
        %v6248 = vunpack.c.l.b16 %v6016
        %v6249 = vunpack.c.l.b16 %v6019
        %v6250 = vunpack.c.l.b16 %v6023
        %v6251 = vunpack.c.l.b16 %v6026
        %v6252 = vunpack.c.l.b16 %v6030
        %v6253 = vunpack.c.l.b16 %v6033
        %v6254 = vunpack.c.l.b16 %v6037
        %v6255 = vunpack.c.l.b16 %v6040
        %v6256 = vunpack.c.l.b16 %v6044
        %v6257 = vunpack.c.l.b16 %v6047
        %v6258 = vpack.c.b16 %v6243, %v6242
        %v6259 = vpack.c.b16 %v6245, %v6244
        %v6260 = vpack.c.b16 %v6247, %v6246
        %v6261 = vpack.c.b16 %v6249, %v6248
        %v6262 = vpack.c.b16 %v6251, %v6250
        %v6263 = vpack.c.b16 %v6253, %v6252
        %v6264 = vpack.c.b16 %v6255, %v6254
        %v6265 = vpack.c.b16 %v6257, %v6256
        %v6290 = vunpack.c.l.b16 %v6048
        %v6291 = vunpack.c.l.b16 %v6049
        %v6292 = vunpack.c.l.b16 %v6050
        %v6293 = vunpack.c.l.b16 %v6051
        %v6294 = vunpack.c.l.b16 %v6052
        %v6295 = vunpack.c.l.b16 %v6053
        %v6296 = vunpack.c.l.b16 %v6054
        %v6297 = vunpack.c.l.b16 %v6055
        %v6298 = vunpack.c.l.b16 %v6056
        %v6299 = vunpack.c.l.b16 %v6057
        %v6300 = vunpack.c.l.b16 %v6058
        %v6301 = vunpack.c.l.b16 %v6059
        %v6302 = vunpack.c.l.b16 %v6060
        %v6303 = vunpack.c.l.b16 %v6061
        %v6304 = vunpack.c.l.b16 %v6062
        %v6305 = vunpack.c.l.b16 %v6063
        %v6306 = vpack.c.b16 %v6291, %v6290
        %v6307 = vpack.c.b16 %v6293, %v6292
        %v6308 = vpack.c.b16 %v6295, %v6294
        %v6309 = vpack.c.b16 %v6297, %v6296
        %v6310 = vpack.c.b16 %v6299, %v6298
        %v6311 = vpack.c.b16 %v6301, %v6300
        %v6312 = vpack.c.b16 %v6303, %v6302
        %v6313 = vpack.c.b16 %v6305, %v6304
        %6322 = vmatpush.bf16.msra.mxu0 %v6313
        %6323 = vmatpush.bf16.msra.mxu0 %v6312
        %6324 = vmatpush.bf16.msra.mxu0 %v6311
        %6325 = vmatpush.bf16.msra.mxu0 %v6310
        %6326 = vmatpush.bf16.msra.mxu0 %v6309
        %6327 = vmatpush.bf16.msra.mxu0 %v6308
        %6328 = vmatpush.bf16.msra.mxu0 %v6307
        %6329 = vmatpush.bf16.msra.mxu0 %v6306
        %6330 = vmatmul.bf16.gmra.mxu0 %v6258
        %v6331 = vpop.f32.mrf.mxu0
        %v6332 = vadd.f32 %v6203, %v6331
        %v6333 = vpop.f32.mrf.mxu0
        %v6334 = vadd.f32 %v6205, %v6333
        %6335 = vmatmul.bf16.gmra.mxu0 %v6259
        %v6336 = vpop.f32.mrf.mxu0
        %v6337 = vadd.f32 %v6208, %v6336
        %v6338 = vpop.f32.mrf.mxu0
        %v6339 = vadd.f32 %v6210, %v6338
        %6340 = vmatmul.bf16.gmra.mxu0 %v6260
        %v6341 = vpop.f32.mrf.mxu0
        %v6342 = vadd.f32 %v6213, %v6341
        %v6343 = vpop.f32.mrf.mxu0
        %v6344 = vadd.f32 %v6215, %v6343
        %6345 = vmatmul.bf16.gmra.mxu0 %v6261
        %v6346 = vpop.f32.mrf.mxu0
        %v6347 = vadd.f32 %v6218, %v6346
        %v6348 = vpop.f32.mrf.mxu0
        %v6349 = vadd.f32 %v6220, %v6348
        %6350 = vmatmul.bf16.gmra.mxu0 %v6262
        %v6351 = vpop.f32.mrf.mxu0
        %v6352 = vadd.f32 %v6223, %v6351
        %v6353 = vpop.f32.mrf.mxu0
        %v6354 = vadd.f32 %v6225, %v6353
        %6355 = vmatmul.bf16.gmra.mxu0 %v6263
        %v6356 = vpop.f32.mrf.mxu0
        %v6357 = vadd.f32 %v6228, %v6356
        %v6358 = vpop.f32.mrf.mxu0
        %v6359 = vadd.f32 %v6230, %v6358
        %6360 = vmatmul.bf16.gmra.mxu0 %v6264
        %v6361 = vpop.f32.mrf.mxu0
        %v6362 = vadd.f32 %v6233, %v6361
        %v6363 = vpop.f32.mrf.mxu0
        %v6364 = vadd.f32 %v6235, %v6363
        %6365 = vmatmul.bf16.gmra.mxu0 %v6265
        %v6366 = vpop.f32.mrf.mxu0
        %v6367 = vadd.f32 %v6238, %v6366
        %v6368 = vpop.f32.mrf.mxu0
        %v6369 = vadd.f32 %v6240, %v6368
        %6370 = vdwg.mxu0
        %v6371 = vld [vmem:[%s5943 + $0x14] sm:$0xe]
        %v6372 = vld [vmem:[%s5943 + $0x18] sm:$0xf]
        %v6373 = vld [vmem:[%s5943 + $0x1c] sm:$0x1]
        %v6374 = vld [vmem:[%s5943 + $0x34] sm:$0xe]
        %v6375 = vld [vmem:[%s5943 + $0x38] sm:$0xf]
        %v6376 = vld [vmem:[%s5943 + $0x3c] sm:$0x1]
        %v6377 = vld [vmem:[%s5943 + $0x54] sm:$0xe]
        %v6378 = vld [vmem:[%s5943 + $0x58] sm:$0xf]
        %v6379 = vld [vmem:[%s5943 + $0x5c] sm:$0x1]
        %v6380 = vld [vmem:[%s5943 + $0x74] sm:$0xe]
        %v6381 = vld [vmem:[%s5943 + $0x78] sm:$0xf]
        %v6382 = vld [vmem:[%s5943 + $0x7c] sm:$0x1]
        %v6383 = vld [vmem:[%s5943 + $0x94] sm:$0xe]
        %v6384 = vld [vmem:[%s5943 + $0x98] sm:$0xf]
        %v6385 = vld [vmem:[%s5943 + $0x9c] sm:$0x1]
        %v6386 = vld [vmem:[%s5943 + $0xb4] sm:$0xe]
        %v6387 = vld [vmem:[%s5943 + $0xb8] sm:$0xf]
        %v6388 = vld [vmem:[%s5943 + $0xbc] sm:$0x1]
        %v6389 = vld [vmem:[%s5943 + $0xd4] sm:$0xe]
        %v6390 = vld [vmem:[%s5943 + $0xd8] sm:$0xf]
        %v6391 = vld [vmem:[%s5943 + $0xdc] sm:$0x1]
        %v6392 = vld [vmem:[%s5943 + $0xf4] sm:$0xe]
        %v6393 = vld [vmem:[%s5943 + $0xf8] sm:$0xf]
        %v6394 = vld [vmem:[%s5943 + $0xfc] sm:$0x1]
        %v6419 = vrot.slane %v6371, 5
        %v6420 = vrot.slane %v6419, 4
        %v6421 = vrot.slane %v6372, 5
        %v6422 = vsel %vm1743, %v6420, %v6421
        %v6423 = vrot.slane %v6421, 4
        %v6424 = vrot.slane %v6373, 5
        %v6425 = vsel %vm1743, %v6423, %v6424
        %v6426 = vrot.slane %v6374, 5
        %v6427 = vrot.slane %v6426, 4
        %v6428 = vrot.slane %v6375, 5
        %v6429 = vsel %vm1743, %v6427, %v6428
        %v6430 = vrot.slane %v6428, 4
        %v6431 = vrot.slane %v6376, 5
        %v6432 = vsel %vm1743, %v6430, %v6431
        %v6433 = vrot.slane %v6377, 5
        %v6434 = vrot.slane %v6433, 4
        %v6435 = vrot.slane %v6378, 5
        %v6436 = vsel %vm1743, %v6434, %v6435
        %v6437 = vrot.slane %v6435, 4
        %v6438 = vrot.slane %v6379, 5
        %v6439 = vsel %vm1743, %v6437, %v6438
        %v6440 = vrot.slane %v6380, 5
        %v6441 = vrot.slane %v6440, 4
        %v6442 = vrot.slane %v6381, 5
        %v6443 = vsel %vm1743, %v6441, %v6442
        %v6444 = vrot.slane %v6442, 4
        %v6445 = vrot.slane %v6382, 5
        %v6446 = vsel %vm1743, %v6444, %v6445
        %v6447 = vrot.slane %v6383, 5
        %v6448 = vrot.slane %v6447, 4
        %v6449 = vrot.slane %v6384, 5
        %v6450 = vsel %vm1743, %v6448, %v6449
        %v6451 = vrot.slane %v6449, 4
        %v6452 = vrot.slane %v6385, 5
        %v6453 = vsel %vm1743, %v6451, %v6452
        %v6454 = vrot.slane %v6386, 5
        %v6455 = vrot.slane %v6454, 4
        %v6456 = vrot.slane %v6387, 5
        %v6457 = vsel %vm1743, %v6455, %v6456
        %v6458 = vrot.slane %v6456, 4
        %v6459 = vrot.slane %v6388, 5
        %v6460 = vsel %vm1743, %v6458, %v6459
        %v6461 = vrot.slane %v6389, 5
        %v6462 = vrot.slane %v6461, 4
        %v6463 = vrot.slane %v6390, 5
        %v6464 = vsel %vm1743, %v6462, %v6463
        %v6465 = vrot.slane %v6463, 4
        %v6466 = vrot.slane %v6391, 5
        %v6467 = vsel %vm1743, %v6465, %v6466
        %v6468 = vrot.slane %v6392, 5
        %v6469 = vrot.slane %v6468, 4
        %v6470 = vrot.slane %v6393, 5
        %v6471 = vsel %vm1743, %v6469, %v6470
        %v6472 = vrot.slane %v6470, 4
        %v6473 = vrot.slane %v6394, 5
        %v6474 = vsel %vm1743, %v6472, %v6473
        %s6475 = scalar_lea.vmem %s579, 128 [#allocation13]
        %v6476 = vld [vmem:[%s6475] sm:$0xf]
        %v6477 = vld [vmem:[%s6475 + $0x4] sm:$0xf]
        %v6478 = vld [vmem:[%s6475 + $0x8] sm:$0xf]
        %v6479 = vld [vmem:[%s6475 + $0xc] sm:$0xf]
        %v6480 = vld [vmem:[%s6475 + $0x10] sm:$0xf]
        %v6481 = vld [vmem:[%s6475 + $0x14] sm:$0xf]
        %v6482 = vld [vmem:[%s6475 + $0x18] sm:$0xf]
        %v6483 = vld [vmem:[%s6475 + $0x1c] sm:$0xf]
        %v6484 = vld [vmem:[%s6475 + $0x20] sm:$0xf]
        %v6485 = vld [vmem:[%s6475 + $0x24] sm:$0xf]
        %v6486 = vld [vmem:[%s6475 + $0x28] sm:$0xf]
        %v6487 = vld [vmem:[%s6475 + $0x2c] sm:$0xf]
        %v6488 = vld [vmem:[%s6475 + $0x30] sm:$0xf]
        %v6489 = vld [vmem:[%s6475 + $0x34] sm:$0xf]
        %v6490 = vld [vmem:[%s6475 + $0x38] sm:$0xf]
        %v6491 = vld [vmem:[%s6475 + $0x3c] sm:$0xf]
        %v6492 = vunpack.c.l.b16 %v6422
        %v6493 = vunpack.c.l.b16 %v6425
        %v6494 = vunpack.c.l.b16 %v6429
        %v6495 = vunpack.c.l.b16 %v6432
        %v6496 = vunpack.c.l.b16 %v6436
        %v6497 = vunpack.c.l.b16 %v6439
        %v6498 = vunpack.c.l.b16 %v6443
        %v6499 = vunpack.c.l.b16 %v6446
        %v6500 = vunpack.c.l.b16 %v6450
        %v6501 = vunpack.c.l.b16 %v6453
        %v6502 = vunpack.c.l.b16 %v6457
        %v6503 = vunpack.c.l.b16 %v6460
        %v6504 = vunpack.c.l.b16 %v6464
        %v6505 = vunpack.c.l.b16 %v6467
        %v6506 = vunpack.c.l.b16 %v6471
        %v6507 = vunpack.c.l.b16 %v6474
        %v6508 = vpack.c.b16 %v6493, %v6492
        %v6509 = vpack.c.b16 %v6495, %v6494
        %v6510 = vpack.c.b16 %v6497, %v6496
        %v6511 = vpack.c.b16 %v6499, %v6498
        %v6512 = vpack.c.b16 %v6501, %v6500
        %v6513 = vpack.c.b16 %v6503, %v6502
        %v6514 = vpack.c.b16 %v6505, %v6504
        %v6515 = vpack.c.b16 %v6507, %v6506
        %v6540 = vunpack.c.l.b16 %v6476
        %v6541 = vunpack.c.l.b16 %v6477
        %v6542 = vunpack.c.l.b16 %v6478
        %v6543 = vunpack.c.l.b16 %v6479
        %v6544 = vunpack.c.l.b16 %v6480
        %v6545 = vunpack.c.l.b16 %v6481
        %v6546 = vunpack.c.l.b16 %v6482
        %v6547 = vunpack.c.l.b16 %v6483
        %v6548 = vunpack.c.l.b16 %v6484
        %v6549 = vunpack.c.l.b16 %v6485
        %v6550 = vunpack.c.l.b16 %v6486
        %v6551 = vunpack.c.l.b16 %v6487
        %v6552 = vunpack.c.l.b16 %v6488
        %v6553 = vunpack.c.l.b16 %v6489
        %v6554 = vunpack.c.l.b16 %v6490
        %v6555 = vunpack.c.l.b16 %v6491
        %v6556 = vpack.c.b16 %v6541, %v6540
        %v6557 = vpack.c.b16 %v6543, %v6542
        %v6558 = vpack.c.b16 %v6545, %v6544
        %v6559 = vpack.c.b16 %v6547, %v6546
        %v6560 = vpack.c.b16 %v6549, %v6548
        %v6561 = vpack.c.b16 %v6551, %v6550
        %v6562 = vpack.c.b16 %v6553, %v6552
        %v6563 = vpack.c.b16 %v6555, %v6554
        %6572 = vmatpush.bf16.msra.mxu0 %v6563
        %6573 = vmatpush.bf16.msra.mxu0 %v6562
        %6574 = vmatpush.bf16.msra.mxu0 %v6561
        %6575 = vmatpush.bf16.msra.mxu0 %v6560
        %6576 = vmatpush.bf16.msra.mxu0 %v6559
        %6577 = vmatpush.bf16.msra.mxu0 %v6558
        %6578 = vmatpush.bf16.msra.mxu0 %v6557
        %6579 = vmatpush.bf16.msra.mxu0 %v6556
        %6580 = vmatmul.bf16.gmra.mxu0 %v6508
        %v6581 = vpop.f32.mrf.mxu0
        %v6582 = vadd.f32 0.0, %v6581
        %v6583 = vpop.f32.mrf.mxu0
        %v6584 = vadd.f32 0.0, %v6583
        %6585 = vmatmul.bf16.gmra.mxu0 %v6509
        %v6586 = vpop.f32.mrf.mxu0
        %v6587 = vadd.f32 0.0, %v6586
        %v6588 = vpop.f32.mrf.mxu0
        %v6589 = vadd.f32 0.0, %v6588
        %6590 = vmatmul.bf16.gmra.mxu0 %v6510
        %v6591 = vpop.f32.mrf.mxu0
        %v6592 = vadd.f32 0.0, %v6591
        %v6593 = vpop.f32.mrf.mxu0
        %v6594 = vadd.f32 0.0, %v6593
        %6595 = vmatmul.bf16.gmra.mxu0 %v6511
        %v6596 = vpop.f32.mrf.mxu0
        %v6597 = vadd.f32 0.0, %v6596
        %v6598 = vpop.f32.mrf.mxu0
        %v6599 = vadd.f32 0.0, %v6598
        %6600 = vmatmul.bf16.gmra.mxu0 %v6512
        %v6601 = vpop.f32.mrf.mxu0
        %v6602 = vadd.f32 0.0, %v6601
        %v6603 = vpop.f32.mrf.mxu0
        %v6604 = vadd.f32 0.0, %v6603
        %6605 = vmatmul.bf16.gmra.mxu0 %v6513
        %v6606 = vpop.f32.mrf.mxu0
        %v6607 = vadd.f32 0.0, %v6606
        %v6608 = vpop.f32.mrf.mxu0
        %v6609 = vadd.f32 0.0, %v6608
        %6610 = vmatmul.bf16.gmra.mxu0 %v6514
        %v6611 = vpop.f32.mrf.mxu0
        %v6612 = vadd.f32 0.0, %v6611
        %v6613 = vpop.f32.mrf.mxu0
        %v6614 = vadd.f32 0.0, %v6613
        %6615 = vmatmul.bf16.gmra.mxu0 %v6515
        %v6616 = vpop.f32.mrf.mxu0
        %v6617 = vadd.f32 0.0, %v6616
        %v6618 = vpop.f32.mrf.mxu0
        %v6619 = vadd.f32 0.0, %v6618
        %6620 = vdwg.mxu0
        %v6621 = vadd.f32 %v6332, %v6582
        %v6622 = vadd.f32 %v6334, %v6584
        %v6623 = vadd.f32 %v6337, %v6587
        %v6624 = vadd.f32 %v6339, %v6589
        %v6625 = vadd.f32 %v6342, %v6592
        %v6626 = vadd.f32 %v6344, %v6594
        %v6627 = vadd.f32 %v6347, %v6597
        %v6628 = vadd.f32 %v6349, %v6599
        %v6629 = vadd.f32 %v6352, %v6602
        %v6630 = vadd.f32 %v6354, %v6604
        %v6631 = vadd.f32 %v6357, %v6607
        %v6632 = vadd.f32 %v6359, %v6609
        %v6633 = vadd.f32 %v6362, %v6612
        %v6634 = vadd.f32 %v6364, %v6614
        %v6635 = vadd.f32 %v6367, %v6617
        %v6636 = vadd.f32 %v6369, %v6619
        %v6637 = vld [vmem:[%s1463] sm:$0x8]
        %v6638 = vld [vmem:[%s1463 + $0x4] sm:$0xf]
        %v6639 = vld [vmem:[%s1463 + $0x8] sm:$0x7]
        %v6640 = vld [vmem:[%s1463 + $0x20] sm:$0x8]
        %v6641 = vld [vmem:[%s1463 + $0x24] sm:$0xf]
        %v6642 = vld [vmem:[%s1463 + $0x28] sm:$0x7]
        %v6643 = vld [vmem:[%s1463 + $0x40] sm:$0x8]
        %v6644 = vld [vmem:[%s1463 + $0x44] sm:$0xf]
        %v6645 = vld [vmem:[%s1463 + $0x48] sm:$0x7]
        %v6646 = vld [vmem:[%s1463 + $0x60] sm:$0x8]
        %v6647 = vld [vmem:[%s1463 + $0x64] sm:$0xf]
        %v6648 = vld [vmem:[%s1463 + $0x68] sm:$0x7]
        %v6649 = vld [vmem:[%s1463 + $0x80] sm:$0x8]
        %v6650 = vld [vmem:[%s1463 + $0x84] sm:$0xf]
        %v6651 = vld [vmem:[%s1463 + $0x88] sm:$0x7]
        %v6652 = vld [vmem:[%s1463 + $0xa0] sm:$0x8]
        %v6653 = vld [vmem:[%s1463 + $0xa4] sm:$0xf]
        %v6654 = vld [vmem:[%s1463 + $0xa8] sm:$0x7]
        %v6655 = vld [vmem:[%s1463 + $0xc0] sm:$0x8]
        %v6656 = vld [vmem:[%s1463 + $0xc4] sm:$0xf]
        %v6657 = vld [vmem:[%s1463 + $0xc8] sm:$0x7]
        %v6658 = vld [vmem:[%s1463 + $0xe0] sm:$0x8]
        %v6659 = vld [vmem:[%s1463 + $0xe4] sm:$0xf]
        %v6660 = vld [vmem:[%s1463 + $0xe8] sm:$0x7]
        %v6685 = vrot.slane %v6637, 7
        %v6686 = vrot.slane %v6685, 4
        %v6687 = vrot.slane %v6638, 7
        %v6688 = vsel %vm2157, %v6686, %v6687
        %v6689 = vrot.slane %v6687, 4
        %v6690 = vrot.slane %v6639, 7
        %v6691 = vsel %vm2157, %v6689, %v6690
        %v6692 = vrot.slane %v6640, 7
        %v6693 = vrot.slane %v6692, 4
        %v6694 = vrot.slane %v6641, 7
        %v6695 = vsel %vm2157, %v6693, %v6694
        %v6696 = vrot.slane %v6694, 4
        %v6697 = vrot.slane %v6642, 7
        %v6698 = vsel %vm2157, %v6696, %v6697
        %v6699 = vrot.slane %v6643, 7
        %v6700 = vrot.slane %v6699, 4
        %v6701 = vrot.slane %v6644, 7
        %v6702 = vsel %vm2157, %v6700, %v6701
        %v6703 = vrot.slane %v6701, 4
        %v6704 = vrot.slane %v6645, 7
        %v6705 = vsel %vm2157, %v6703, %v6704
        %v6706 = vrot.slane %v6646, 7
        %v6707 = vrot.slane %v6706, 4
        %v6708 = vrot.slane %v6647, 7
        %v6709 = vsel %vm2157, %v6707, %v6708
        %v6710 = vrot.slane %v6708, 4
        %v6711 = vrot.slane %v6648, 7
        %v6712 = vsel %vm2157, %v6710, %v6711
        %v6713 = vrot.slane %v6649, 7
        %v6714 = vrot.slane %v6713, 4
        %v6715 = vrot.slane %v6650, 7
        %v6716 = vsel %vm2157, %v6714, %v6715
        %v6717 = vrot.slane %v6715, 4
        %v6718 = vrot.slane %v6651, 7
        %v6719 = vsel %vm2157, %v6717, %v6718
        %v6720 = vrot.slane %v6652, 7
        %v6721 = vrot.slane %v6720, 4
        %v6722 = vrot.slane %v6653, 7
        %v6723 = vsel %vm2157, %v6721, %v6722
        %v6724 = vrot.slane %v6722, 4
        %v6725 = vrot.slane %v6654, 7
        %v6726 = vsel %vm2157, %v6724, %v6725
        %v6727 = vrot.slane %v6655, 7
        %v6728 = vrot.slane %v6727, 4
        %v6729 = vrot.slane %v6656, 7
        %v6730 = vsel %vm2157, %v6728, %v6729
        %v6731 = vrot.slane %v6729, 4
        %v6732 = vrot.slane %v6657, 7
        %v6733 = vsel %vm2157, %v6731, %v6732
        %v6734 = vrot.slane %v6658, 7
        %v6735 = vrot.slane %v6734, 4
        %v6736 = vrot.slane %v6659, 7
        %v6737 = vsel %vm2157, %v6735, %v6736
        %v6738 = vrot.slane %v6736, 4
        %v6739 = vrot.slane %v6660, 7
        %v6740 = vsel %vm2157, %v6738, %v6739
        %s6741 = scalar_lea.vmem %s579, 192 [#allocation13]
        %v6742 = vld [vmem:[%s6741] sm:$0xf]
        %v6743 = vld [vmem:[%s6741 + $0x4] sm:$0xf]
        %v6744 = vld [vmem:[%s6741 + $0x8] sm:$0xf]
        %v6745 = vld [vmem:[%s6741 + $0xc] sm:$0xf]
        %v6746 = vld [vmem:[%s6741 + $0x10] sm:$0xf]
        %v6747 = vld [vmem:[%s6741 + $0x14] sm:$0xf]
        %v6748 = vld [vmem:[%s6741 + $0x18] sm:$0xf]
        %v6749 = vld [vmem:[%s6741 + $0x1c] sm:$0xf]
        %v6750 = vld [vmem:[%s6741 + $0x20] sm:$0xf]
        %v6751 = vld [vmem:[%s6741 + $0x24] sm:$0xf]
        %v6752 = vld [vmem:[%s6741 + $0x28] sm:$0xf]
        %v6753 = vld [vmem:[%s6741 + $0x2c] sm:$0xf]
        %v6754 = vld [vmem:[%s6741 + $0x30] sm:$0xf]
        %v6755 = vld [vmem:[%s6741 + $0x34] sm:$0xf]
        %v6756 = vld [vmem:[%s6741 + $0x38] sm:$0xf]
        %v6757 = vld [vmem:[%s6741 + $0x3c] sm:$0xf]
        %v6758 = vunpack.c.l.b16 %v6688
        %v6759 = vunpack.c.l.b16 %v6691
        %v6760 = vunpack.c.l.b16 %v6695
        %v6761 = vunpack.c.l.b16 %v6698
        %v6762 = vunpack.c.l.b16 %v6702
        %v6763 = vunpack.c.l.b16 %v6705
        %v6764 = vunpack.c.l.b16 %v6709
        %v6765 = vunpack.c.l.b16 %v6712
        %v6766 = vunpack.c.l.b16 %v6716
        %v6767 = vunpack.c.l.b16 %v6719
        %v6768 = vunpack.c.l.b16 %v6723
        %v6769 = vunpack.c.l.b16 %v6726
        %v6770 = vunpack.c.l.b16 %v6730
        %v6771 = vunpack.c.l.b16 %v6733
        %v6772 = vunpack.c.l.b16 %v6737
        %v6773 = vunpack.c.l.b16 %v6740
        %v6774 = vpack.c.b16 %v6759, %v6758
        %v6775 = vpack.c.b16 %v6761, %v6760
        %v6776 = vpack.c.b16 %v6763, %v6762
        %v6777 = vpack.c.b16 %v6765, %v6764
        %v6778 = vpack.c.b16 %v6767, %v6766
        %v6779 = vpack.c.b16 %v6769, %v6768
        %v6780 = vpack.c.b16 %v6771, %v6770
        %v6781 = vpack.c.b16 %v6773, %v6772
        %v6806 = vunpack.c.l.b16 %v6742
        %v6807 = vunpack.c.l.b16 %v6743
        %v6808 = vunpack.c.l.b16 %v6744
        %v6809 = vunpack.c.l.b16 %v6745
        %v6810 = vunpack.c.l.b16 %v6746
        %v6811 = vunpack.c.l.b16 %v6747
        %v6812 = vunpack.c.l.b16 %v6748
        %v6813 = vunpack.c.l.b16 %v6749
        %v6814 = vunpack.c.l.b16 %v6750
        %v6815 = vunpack.c.l.b16 %v6751
        %v6816 = vunpack.c.l.b16 %v6752
        %v6817 = vunpack.c.l.b16 %v6753
        %v6818 = vunpack.c.l.b16 %v6754
        %v6819 = vunpack.c.l.b16 %v6755
        %v6820 = vunpack.c.l.b16 %v6756
        %v6821 = vunpack.c.l.b16 %v6757
        %v6822 = vpack.c.b16 %v6807, %v6806
        %v6823 = vpack.c.b16 %v6809, %v6808
        %v6824 = vpack.c.b16 %v6811, %v6810
        %v6825 = vpack.c.b16 %v6813, %v6812
        %v6826 = vpack.c.b16 %v6815, %v6814
        %v6827 = vpack.c.b16 %v6817, %v6816
        %v6828 = vpack.c.b16 %v6819, %v6818
        %v6829 = vpack.c.b16 %v6821, %v6820
        %6838 = vmatpush.bf16.msra.mxu0 %v6829
        %6839 = vmatpush.bf16.msra.mxu0 %v6828
        %6840 = vmatpush.bf16.msra.mxu0 %v6827
        %6841 = vmatpush.bf16.msra.mxu0 %v6826
        %6842 = vmatpush.bf16.msra.mxu0 %v6825
        %6843 = vmatpush.bf16.msra.mxu0 %v6824
        %6844 = vmatpush.bf16.msra.mxu0 %v6823
        %6845 = vmatpush.bf16.msra.mxu0 %v6822
        %6846 = vmatmul.bf16.gmra.mxu0 %v6774
        %v6847 = vpop.f32.mrf.mxu0
        %v6848 = vadd.f32 0.0, %v6847
        %v6849 = vpop.f32.mrf.mxu0
        %v6850 = vadd.f32 0.0, %v6849
        %6851 = vmatmul.bf16.gmra.mxu0 %v6775
        %v6852 = vpop.f32.mrf.mxu0
        %v6853 = vadd.f32 0.0, %v6852
        %v6854 = vpop.f32.mrf.mxu0
        %v6855 = vadd.f32 0.0, %v6854
        %6856 = vmatmul.bf16.gmra.mxu0 %v6776
        %v6857 = vpop.f32.mrf.mxu0
        %v6858 = vadd.f32 0.0, %v6857
        %v6859 = vpop.f32.mrf.mxu0
        %v6860 = vadd.f32 0.0, %v6859
        %6861 = vmatmul.bf16.gmra.mxu0 %v6777
        %v6862 = vpop.f32.mrf.mxu0
        %v6863 = vadd.f32 0.0, %v6862
        %v6864 = vpop.f32.mrf.mxu0
        %v6865 = vadd.f32 0.0, %v6864
        %6866 = vmatmul.bf16.gmra.mxu0 %v6778
        %v6867 = vpop.f32.mrf.mxu0
        %v6868 = vadd.f32 0.0, %v6867
        %v6869 = vpop.f32.mrf.mxu0
        %v6870 = vadd.f32 0.0, %v6869
        %6871 = vmatmul.bf16.gmra.mxu0 %v6779
        %v6872 = vpop.f32.mrf.mxu0
        %v6873 = vadd.f32 0.0, %v6872
        %v6874 = vpop.f32.mrf.mxu0
        %v6875 = vadd.f32 0.0, %v6874
        %6876 = vmatmul.bf16.gmra.mxu0 %v6780
        %v6877 = vpop.f32.mrf.mxu0
        %v6878 = vadd.f32 0.0, %v6877
        %v6879 = vpop.f32.mrf.mxu0
        %v6880 = vadd.f32 0.0, %v6879
        %6881 = vmatmul.bf16.gmra.mxu0 %v6781
        %v6882 = vpop.f32.mrf.mxu0
        %v6883 = vadd.f32 0.0, %v6882
        %v6884 = vpop.f32.mrf.mxu0
        %v6885 = vadd.f32 0.0, %v6884
        %6886 = vdwg.mxu0
        %v6887 = vadd.f32 %v6621, %v6848
        %v6888 = vadd.f32 %v6622, %v6850
        %v6889 = vadd.f32 %v6623, %v6853
        %v6890 = vadd.f32 %v6624, %v6855
        %v6891 = vadd.f32 %v6625, %v6858
        %v6892 = vadd.f32 %v6626, %v6860
        %v6893 = vadd.f32 %v6627, %v6863
        %v6894 = vadd.f32 %v6628, %v6865
        %v6895 = vadd.f32 %v6629, %v6868
        %v6896 = vadd.f32 %v6630, %v6870
        %v6897 = vadd.f32 %v6631, %v6873
        %v6898 = vadd.f32 %v6632, %v6875
        %v6899 = vadd.f32 %v6633, %v6878
        %v6900 = vadd.f32 %v6634, %v6880
        %v6901 = vadd.f32 %v6635, %v6883
        %v6902 = vadd.f32 %v6636, %v6885
        %s6903 = scalar_lea.vmem %s579, 256 [#allocation13]
        %v6904 = vld [vmem:[%s6903] sm:$0xf]
        %v6905 = vld [vmem:[%s6903 + $0x4] sm:$0xf]
        %v6906 = vld [vmem:[%s6903 + $0x8] sm:$0xf]
        %v6907 = vld [vmem:[%s6903 + $0xc] sm:$0xf]
        %v6908 = vld [vmem:[%s6903 + $0x10] sm:$0xf]
        %v6909 = vld [vmem:[%s6903 + $0x14] sm:$0xf]
        %v6910 = vld [vmem:[%s6903 + $0x18] sm:$0xf]
        %v6911 = vld [vmem:[%s6903 + $0x1c] sm:$0xf]
        %v6912 = vld [vmem:[%s6903 + $0x20] sm:$0xf]
        %v6913 = vld [vmem:[%s6903 + $0x24] sm:$0xf]
        %v6914 = vld [vmem:[%s6903 + $0x28] sm:$0xf]
        %v6915 = vld [vmem:[%s6903 + $0x2c] sm:$0xf]
        %v6916 = vld [vmem:[%s6903 + $0x30] sm:$0xf]
        %v6917 = vld [vmem:[%s6903 + $0x34] sm:$0xf]
        %v6918 = vld [vmem:[%s6903 + $0x38] sm:$0xf]
        %v6919 = vld [vmem:[%s6903 + $0x3c] sm:$0xf]
        %v6936 = vunpack.c.l.b16 %v6904
        %v6937 = vunpack.c.l.b16 %v6905
        %v6938 = vunpack.c.l.b16 %v6906
        %v6939 = vunpack.c.l.b16 %v6907
        %v6940 = vunpack.c.l.b16 %v6908
        %v6941 = vunpack.c.l.b16 %v6909
        %v6942 = vunpack.c.l.b16 %v6910
        %v6943 = vunpack.c.l.b16 %v6911
        %v6944 = vunpack.c.l.b16 %v6912
        %v6945 = vunpack.c.l.b16 %v6913
        %v6946 = vunpack.c.l.b16 %v6914
        %v6947 = vunpack.c.l.b16 %v6915
        %v6948 = vunpack.c.l.b16 %v6916
        %v6949 = vunpack.c.l.b16 %v6917
        %v6950 = vunpack.c.l.b16 %v6918
        %v6951 = vunpack.c.l.b16 %v6919
        %v6952 = vpack.c.b16 %v6937, %v6936
        %v6953 = vpack.c.b16 %v6939, %v6938
        %v6954 = vpack.c.b16 %v6941, %v6940
        %v6955 = vpack.c.b16 %v6943, %v6942
        %v6956 = vpack.c.b16 %v6945, %v6944
        %v6957 = vpack.c.b16 %v6947, %v6946
        %v6958 = vpack.c.b16 %v6949, %v6948
        %v6959 = vpack.c.b16 %v6951, %v6950
        %6968 = vmatpush.bf16.msra.mxu0 %v6959
        %6969 = vmatpush.bf16.msra.mxu0 %v6958
        %6970 = vmatpush.bf16.msra.mxu0 %v6957
        %6971 = vmatpush.bf16.msra.mxu0 %v6956
        %6972 = vmatpush.bf16.msra.mxu0 %v6955
        %6973 = vmatpush.bf16.msra.mxu0 %v6954
        %6974 = vmatpush.bf16.msra.mxu0 %v6953
        %6975 = vmatpush.bf16.msra.mxu0 %v6952
        %6976 = vmatmul.bf16.gmra.mxu0 %v1544
        %v6977 = vpop.f32.mrf.mxu0
        %v6978 = vadd.f32 0.0, %v6977
        %v6979 = vpop.f32.mrf.mxu0
        %v6980 = vadd.f32 0.0, %v6979
        %6981 = vmatmul.bf16.gmra.mxu0 %v1545
        %v6982 = vpop.f32.mrf.mxu0
        %v6983 = vadd.f32 0.0, %v6982
        %v6984 = vpop.f32.mrf.mxu0
        %v6985 = vadd.f32 0.0, %v6984
        %6986 = vmatmul.bf16.gmra.mxu0 %v1546
        %v6987 = vpop.f32.mrf.mxu0
        %v6988 = vadd.f32 0.0, %v6987
        %v6989 = vpop.f32.mrf.mxu0
        %v6990 = vadd.f32 0.0, %v6989
        %6991 = vmatmul.bf16.gmra.mxu0 %v1547
        %v6992 = vpop.f32.mrf.mxu0
        %v6993 = vadd.f32 0.0, %v6992
        %v6994 = vpop.f32.mrf.mxu0
        %v6995 = vadd.f32 0.0, %v6994
        %6996 = vmatmul.bf16.gmra.mxu0 %v1548
        %v6997 = vpop.f32.mrf.mxu0
        %v6998 = vadd.f32 0.0, %v6997
        %v6999 = vpop.f32.mrf.mxu0
        %v7000 = vadd.f32 0.0, %v6999
        %7001 = vmatmul.bf16.gmra.mxu0 %v1549
        %v7002 = vpop.f32.mrf.mxu0
        %v7003 = vadd.f32 0.0, %v7002
        %v7004 = vpop.f32.mrf.mxu0
        %v7005 = vadd.f32 0.0, %v7004
        %7006 = vmatmul.bf16.gmra.mxu0 %v1550
        %v7007 = vpop.f32.mrf.mxu0
        %v7008 = vadd.f32 0.0, %v7007
        %v7009 = vpop.f32.mrf.mxu0
        %v7010 = vadd.f32 0.0, %v7009
        %7011 = vmatmul.bf16.gmra.mxu0 %v1551
        %v7012 = vpop.f32.mrf.mxu0
        %v7013 = vadd.f32 0.0, %v7012
        %v7014 = vpop.f32.mrf.mxu0
        %v7015 = vadd.f32 0.0, %v7014
        %7016 = vdwg.mxu0
        %v7017 = vadd.f32 %v6887, %v6978
        %v7018 = vadd.f32 %v6888, %v6980
        %v7019 = vadd.f32 %v6889, %v6983
        %v7020 = vadd.f32 %v6890, %v6985
        %v7021 = vadd.f32 %v6891, %v6988
        %v7022 = vadd.f32 %v6892, %v6990
        %v7023 = vadd.f32 %v6893, %v6993
        %v7024 = vadd.f32 %v6894, %v6995
        %v7025 = vadd.f32 %v6895, %v6998
        %v7026 = vadd.f32 %v6896, %v7000
        %v7027 = vadd.f32 %v6897, %v7003
        %v7028 = vadd.f32 %v6898, %v7005
        %v7029 = vadd.f32 %v6899, %v7008
        %v7030 = vadd.f32 %v6900, %v7010
        %v7031 = vadd.f32 %v6901, %v7013
        %v7032 = vadd.f32 %v6902, %v7015
        %v7033 = vld [vmem:[%s1463 + $0x14] sm:$0xe]
        %v7034 = vld [vmem:[%s1463 + $0x18] sm:$0xf]
        %v7035 = vld [vmem:[%s1463 + $0x1c] sm:$0x1]
        %v7036 = vld [vmem:[%s1463 + $0x34] sm:$0xe]
        %v7037 = vld [vmem:[%s1463 + $0x38] sm:$0xf]
        %v7038 = vld [vmem:[%s1463 + $0x3c] sm:$0x1]
        %v7039 = vld [vmem:[%s1463 + $0x54] sm:$0xe]
        %v7040 = vld [vmem:[%s1463 + $0x58] sm:$0xf]
        %v7041 = vld [vmem:[%s1463 + $0x5c] sm:$0x1]
        %v7042 = vld [vmem:[%s1463 + $0x74] sm:$0xe]
        %v7043 = vld [vmem:[%s1463 + $0x78] sm:$0xf]
        %v7044 = vld [vmem:[%s1463 + $0x7c] sm:$0x1]
        %v7045 = vld [vmem:[%s1463 + $0x94] sm:$0xe]
        %v7046 = vld [vmem:[%s1463 + $0x98] sm:$0xf]
        %v7047 = vld [vmem:[%s1463 + $0x9c] sm:$0x1]
        %v7048 = vld [vmem:[%s1463 + $0xb4] sm:$0xe]
        %v7049 = vld [vmem:[%s1463 + $0xb8] sm:$0xf]
        %v7050 = vld [vmem:[%s1463 + $0xbc] sm:$0x1]
        %v7051 = vld [vmem:[%s1463 + $0xd4] sm:$0xe]
        %v7052 = vld [vmem:[%s1463 + $0xd8] sm:$0xf]
        %v7053 = vld [vmem:[%s1463 + $0xdc] sm:$0x1]
        %v7054 = vld [vmem:[%s1463 + $0xf4] sm:$0xe]
        %v7055 = vld [vmem:[%s1463 + $0xf8] sm:$0xf]
        %v7056 = vld [vmem:[%s1463 + $0xfc] sm:$0x1]
        %v7081 = vrot.slane %v7033, 5
        %v7082 = vrot.slane %v7081, 4
        %v7083 = vrot.slane %v7034, 5
        %v7084 = vsel %vm1743, %v7082, %v7083
        %v7085 = vrot.slane %v7083, 4
        %v7086 = vrot.slane %v7035, 5
        %v7087 = vsel %vm1743, %v7085, %v7086
        %v7088 = vrot.slane %v7036, 5
        %v7089 = vrot.slane %v7088, 4
        %v7090 = vrot.slane %v7037, 5
        %v7091 = vsel %vm1743, %v7089, %v7090
        %v7092 = vrot.slane %v7090, 4
        %v7093 = vrot.slane %v7038, 5
        %v7094 = vsel %vm1743, %v7092, %v7093
        %v7095 = vrot.slane %v7039, 5
        %v7096 = vrot.slane %v7095, 4
        %v7097 = vrot.slane %v7040, 5
        %v7098 = vsel %vm1743, %v7096, %v7097
        %v7099 = vrot.slane %v7097, 4
        %v7100 = vrot.slane %v7041, 5
        %v7101 = vsel %vm1743, %v7099, %v7100
        %v7102 = vrot.slane %v7042, 5
        %v7103 = vrot.slane %v7102, 4
        %v7104 = vrot.slane %v7043, 5
        %v7105 = vsel %vm1743, %v7103, %v7104
        %v7106 = vrot.slane %v7104, 4
        %v7107 = vrot.slane %v7044, 5
        %v7108 = vsel %vm1743, %v7106, %v7107
        %v7109 = vrot.slane %v7045, 5
        %v7110 = vrot.slane %v7109, 4
        %v7111 = vrot.slane %v7046, 5
        %v7112 = vsel %vm1743, %v7110, %v7111
        %v7113 = vrot.slane %v7111, 4
        %v7114 = vrot.slane %v7047, 5
        %v7115 = vsel %vm1743, %v7113, %v7114
        %v7116 = vrot.slane %v7048, 5
        %v7117 = vrot.slane %v7116, 4
        %v7118 = vrot.slane %v7049, 5
        %v7119 = vsel %vm1743, %v7117, %v7118
        %v7120 = vrot.slane %v7118, 4
        %v7121 = vrot.slane %v7050, 5
        %v7122 = vsel %vm1743, %v7120, %v7121
        %v7123 = vrot.slane %v7051, 5
        %v7124 = vrot.slane %v7123, 4
        %v7125 = vrot.slane %v7052, 5
        %v7126 = vsel %vm1743, %v7124, %v7125
        %v7127 = vrot.slane %v7125, 4
        %v7128 = vrot.slane %v7053, 5
        %v7129 = vsel %vm1743, %v7127, %v7128
        %v7130 = vrot.slane %v7054, 5
        %v7131 = vrot.slane %v7130, 4
        %v7132 = vrot.slane %v7055, 5
        %v7133 = vsel %vm1743, %v7131, %v7132
        %v7134 = vrot.slane %v7132, 4
        %v7135 = vrot.slane %v7056, 5
        %v7136 = vsel %vm1743, %v7134, %v7135
        %s7137 = scalar_lea.vmem %s579, 320 [#allocation13]
        %v7138 = vld [vmem:[%s7137] sm:$0xf]
        %v7139 = vld [vmem:[%s7137 + $0x4] sm:$0xf]
        %v7140 = vld [vmem:[%s7137 + $0x8] sm:$0xf]
        %v7141 = vld [vmem:[%s7137 + $0xc] sm:$0xf]
        %v7142 = vld [vmem:[%s7137 + $0x10] sm:$0xf]
        %v7143 = vld [vmem:[%s7137 + $0x14] sm:$0xf]
        %v7144 = vld [vmem:[%s7137 + $0x18] sm:$0xf]
        %v7145 = vld [vmem:[%s7137 + $0x1c] sm:$0xf]
        %v7146 = vld [vmem:[%s7137 + $0x20] sm:$0xf]
        %v7147 = vld [vmem:[%s7137 + $0x24] sm:$0xf]
        %v7148 = vld [vmem:[%s7137 + $0x28] sm:$0xf]
        %v7149 = vld [vmem:[%s7137 + $0x2c] sm:$0xf]
        %v7150 = vld [vmem:[%s7137 + $0x30] sm:$0xf]
        %v7151 = vld [vmem:[%s7137 + $0x34] sm:$0xf]
        %v7152 = vld [vmem:[%s7137 + $0x38] sm:$0xf]
        %v7153 = vld [vmem:[%s7137 + $0x3c] sm:$0xf]
        %v7154 = vunpack.c.l.b16 %v7084
        %v7155 = vunpack.c.l.b16 %v7087
        %v7156 = vunpack.c.l.b16 %v7091
        %v7157 = vunpack.c.l.b16 %v7094
        %v7158 = vunpack.c.l.b16 %v7098
        %v7159 = vunpack.c.l.b16 %v7101
        %v7160 = vunpack.c.l.b16 %v7105
        %v7161 = vunpack.c.l.b16 %v7108
        %v7162 = vunpack.c.l.b16 %v7112
        %v7163 = vunpack.c.l.b16 %v7115
        %v7164 = vunpack.c.l.b16 %v7119
        %v7165 = vunpack.c.l.b16 %v7122
        %v7166 = vunpack.c.l.b16 %v7126
        %v7167 = vunpack.c.l.b16 %v7129
        %v7168 = vunpack.c.l.b16 %v7133
        %v7169 = vunpack.c.l.b16 %v7136
        %v7170 = vpack.c.b16 %v7155, %v7154
        %v7171 = vpack.c.b16 %v7157, %v7156
        %v7172 = vpack.c.b16 %v7159, %v7158
        %v7173 = vpack.c.b16 %v7161, %v7160
        %v7174 = vpack.c.b16 %v7163, %v7162
        %v7175 = vpack.c.b16 %v7165, %v7164
        %v7176 = vpack.c.b16 %v7167, %v7166
        %v7177 = vpack.c.b16 %v7169, %v7168
        %v7202 = vunpack.c.l.b16 %v7138
        %v7203 = vunpack.c.l.b16 %v7139
        %v7204 = vunpack.c.l.b16 %v7140
        %v7205 = vunpack.c.l.b16 %v7141
        %v7206 = vunpack.c.l.b16 %v7142
        %v7207 = vunpack.c.l.b16 %v7143
        %v7208 = vunpack.c.l.b16 %v7144
        %v7209 = vunpack.c.l.b16 %v7145
        %v7210 = vunpack.c.l.b16 %v7146
        %v7211 = vunpack.c.l.b16 %v7147
        %v7212 = vunpack.c.l.b16 %v7148
        %v7213 = vunpack.c.l.b16 %v7149
        %v7214 = vunpack.c.l.b16 %v7150
        %v7215 = vunpack.c.l.b16 %v7151
        %v7216 = vunpack.c.l.b16 %v7152
        %v7217 = vunpack.c.l.b16 %v7153
        %v7218 = vpack.c.b16 %v7203, %v7202
        %v7219 = vpack.c.b16 %v7205, %v7204
        %v7220 = vpack.c.b16 %v7207, %v7206
        %v7221 = vpack.c.b16 %v7209, %v7208
        %v7222 = vpack.c.b16 %v7211, %v7210
        %v7223 = vpack.c.b16 %v7213, %v7212
        %v7224 = vpack.c.b16 %v7215, %v7214
        %v7225 = vpack.c.b16 %v7217, %v7216
        %7234 = vmatpush.bf16.msra.mxu0 %v7225
        %7235 = vmatpush.bf16.msra.mxu0 %v7224
        %7236 = vmatpush.bf16.msra.mxu0 %v7223
        %7237 = vmatpush.bf16.msra.mxu0 %v7222
        %7238 = vmatpush.bf16.msra.mxu0 %v7221
        %7239 = vmatpush.bf16.msra.mxu0 %v7220
        %7240 = vmatpush.bf16.msra.mxu0 %v7219
        %7241 = vmatpush.bf16.msra.mxu0 %v7218
        %7242 = vmatmul.bf16.gmra.mxu0 %v7170
        %v7243 = vpop.f32.mrf.mxu0
        %v7244 = vadd.f32 0.0, %v7243
        %v7245 = vpop.f32.mrf.mxu0
        %v7246 = vadd.f32 0.0, %v7245
        %7247 = vmatmul.bf16.gmra.mxu0 %v7171
        %v7248 = vpop.f32.mrf.mxu0
        %v7249 = vadd.f32 0.0, %v7248
        %v7250 = vpop.f32.mrf.mxu0
        %v7251 = vadd.f32 0.0, %v7250
        %7252 = vmatmul.bf16.gmra.mxu0 %v7172
        %v7253 = vpop.f32.mrf.mxu0
        %v7254 = vadd.f32 0.0, %v7253
        %v7255 = vpop.f32.mrf.mxu0
        %v7256 = vadd.f32 0.0, %v7255
        %7257 = vmatmul.bf16.gmra.mxu0 %v7173
        %v7258 = vpop.f32.mrf.mxu0
        %v7259 = vadd.f32 0.0, %v7258
        %v7260 = vpop.f32.mrf.mxu0
        %v7261 = vadd.f32 0.0, %v7260
        %7262 = vmatmul.bf16.gmra.mxu0 %v7174
        %v7263 = vpop.f32.mrf.mxu0
        %v7264 = vadd.f32 0.0, %v7263
        %v7265 = vpop.f32.mrf.mxu0
        %v7266 = vadd.f32 0.0, %v7265
        %7267 = vmatmul.bf16.gmra.mxu0 %v7175
        %v7268 = vpop.f32.mrf.mxu0
        %v7269 = vadd.f32 0.0, %v7268
        %v7270 = vpop.f32.mrf.mxu0
        %v7271 = vadd.f32 0.0, %v7270
        %7272 = vmatmul.bf16.gmra.mxu0 %v7176
        %v7273 = vpop.f32.mrf.mxu0
        %v7274 = vadd.f32 0.0, %v7273
        %v7275 = vpop.f32.mrf.mxu0
        %v7276 = vadd.f32 0.0, %v7275
        %7277 = vmatmul.bf16.gmra.mxu0 %v7177
        %v7278 = vpop.f32.mrf.mxu0
        %v7279 = vadd.f32 0.0, %v7278
        %v7280 = vpop.f32.mrf.mxu0
        %v7281 = vadd.f32 0.0, %v7280
        %7282 = vdwg.mxu0
        %v7283 = vadd.f32 %v7017, %v7244
        %v7284 = vadd.f32 %v7018, %v7246
        %v7285 = vadd.f32 %v7019, %v7249
        %v7286 = vadd.f32 %v7020, %v7251
        %v7287 = vadd.f32 %v7021, %v7254
        %v7288 = vadd.f32 %v7022, %v7256
        %v7289 = vadd.f32 %v7023, %v7259
        %v7290 = vadd.f32 %v7024, %v7261
        %v7291 = vadd.f32 %v7025, %v7264
        %v7292 = vadd.f32 %v7026, %v7266
        %v7293 = vadd.f32 %v7027, %v7269
        %v7294 = vadd.f32 %v7028, %v7271
        %v7295 = vadd.f32 %v7029, %v7274
        %v7296 = vadd.f32 %v7030, %v7276
        %v7297 = vadd.f32 %v7031, %v7279
        %v7298 = vadd.f32 %v7032, %v7281
        %s7299 = sadd.s32 %s666, 42
        %s7300 = smul.u32 %s7299, 8
        %s7301 = smul.addr %s7300, 4
        %s7302 = scalar_lea.vmem [#allocation2], %s7301
        %v7303 = vld [vmem:[%s7302] sm:$0x8]
        %v7304 = vld [vmem:[%s7302 + $0x4] sm:$0xf]
        %v7305 = vld [vmem:[%s7302 + $0x8] sm:$0x7]
        %v7306 = vld [vmem:[%s7302 + $0x20] sm:$0x8]
        %v7307 = vld [vmem:[%s7302 + $0x24] sm:$0xf]
        %v7308 = vld [vmem:[%s7302 + $0x28] sm:$0x7]
        %v7309 = vld [vmem:[%s7302 + $0x40] sm:$0x8]
        %v7310 = vld [vmem:[%s7302 + $0x44] sm:$0xf]
        %v7311 = vld [vmem:[%s7302 + $0x48] sm:$0x7]
        %v7312 = vld [vmem:[%s7302 + $0x60] sm:$0x8]
        %v7313 = vld [vmem:[%s7302 + $0x64] sm:$0xf]
        %v7314 = vld [vmem:[%s7302 + $0x68] sm:$0x7]
        %v7315 = vld [vmem:[%s7302 + $0x80] sm:$0x8]
        %v7316 = vld [vmem:[%s7302 + $0x84] sm:$0xf]
        %v7317 = vld [vmem:[%s7302 + $0x88] sm:$0x7]
        %v7318 = vld [vmem:[%s7302 + $0xa0] sm:$0x8]
        %v7319 = vld [vmem:[%s7302 + $0xa4] sm:$0xf]
        %v7320 = vld [vmem:[%s7302 + $0xa8] sm:$0x7]
        %v7321 = vld [vmem:[%s7302 + $0xc0] sm:$0x8]
        %v7322 = vld [vmem:[%s7302 + $0xc4] sm:$0xf]
        %v7323 = vld [vmem:[%s7302 + $0xc8] sm:$0x7]
        %v7324 = vld [vmem:[%s7302 + $0xe0] sm:$0x8]
        %v7325 = vld [vmem:[%s7302 + $0xe4] sm:$0xf]
        %v7326 = vld [vmem:[%s7302 + $0xe8] sm:$0x7]
        %v7351 = vrot.slane %v7303, 7
        %v7352 = vrot.slane %v7351, 4
        %v7353 = vrot.slane %v7304, 7
        %v7354 = vsel %vm2157, %v7352, %v7353
        %v7355 = vrot.slane %v7353, 4
        %v7356 = vrot.slane %v7305, 7
        %v7357 = vsel %vm2157, %v7355, %v7356
        %v7358 = vrot.slane %v7306, 7
        %v7359 = vrot.slane %v7358, 4
        %v7360 = vrot.slane %v7307, 7
        %v7361 = vsel %vm2157, %v7359, %v7360
        %v7362 = vrot.slane %v7360, 4
        %v7363 = vrot.slane %v7308, 7
        %v7364 = vsel %vm2157, %v7362, %v7363
        %v7365 = vrot.slane %v7309, 7
        %v7366 = vrot.slane %v7365, 4
        %v7367 = vrot.slane %v7310, 7
        %v7368 = vsel %vm2157, %v7366, %v7367
        %v7369 = vrot.slane %v7367, 4
        %v7370 = vrot.slane %v7311, 7
        %v7371 = vsel %vm2157, %v7369, %v7370
        %v7372 = vrot.slane %v7312, 7
        %v7373 = vrot.slane %v7372, 4
        %v7374 = vrot.slane %v7313, 7
        %v7375 = vsel %vm2157, %v7373, %v7374
        %v7376 = vrot.slane %v7374, 4
        %v7377 = vrot.slane %v7314, 7
        %v7378 = vsel %vm2157, %v7376, %v7377
        %v7379 = vrot.slane %v7315, 7
        %v7380 = vrot.slane %v7379, 4
        %v7381 = vrot.slane %v7316, 7
        %v7382 = vsel %vm2157, %v7380, %v7381
        %v7383 = vrot.slane %v7381, 4
        %v7384 = vrot.slane %v7317, 7
        %v7385 = vsel %vm2157, %v7383, %v7384
        %v7386 = vrot.slane %v7318, 7
        %v7387 = vrot.slane %v7386, 4
        %v7388 = vrot.slane %v7319, 7
        %v7389 = vsel %vm2157, %v7387, %v7388
        %v7390 = vrot.slane %v7388, 4
        %v7391 = vrot.slane %v7320, 7
        %v7392 = vsel %vm2157, %v7390, %v7391
        %v7393 = vrot.slane %v7321, 7
        %v7394 = vrot.slane %v7393, 4
        %v7395 = vrot.slane %v7322, 7
        %v7396 = vsel %vm2157, %v7394, %v7395
        %v7397 = vrot.slane %v7395, 4
        %v7398 = vrot.slane %v7323, 7
        %v7399 = vsel %vm2157, %v7397, %v7398
        %v7400 = vrot.slane %v7324, 7
        %v7401 = vrot.slane %v7400, 4
        %v7402 = vrot.slane %v7325, 7
        %v7403 = vsel %vm2157, %v7401, %v7402
        %v7404 = vrot.slane %v7402, 4
        %v7405 = vrot.slane %v7326, 7
        %v7406 = vsel %vm2157, %v7404, %v7405
        %s7407 = scalar_lea.vmem %s579, 384 [#allocation13]
        %v7408 = vld [vmem:[%s7407] sm:$0xf]
        %v7409 = vld [vmem:[%s7407 + $0x4] sm:$0xf]
        %v7410 = vld [vmem:[%s7407 + $0x8] sm:$0xf]
        %v7411 = vld [vmem:[%s7407 + $0xc] sm:$0xf]
        %v7412 = vld [vmem:[%s7407 + $0x10] sm:$0xf]
        %v7413 = vld [vmem:[%s7407 + $0x14] sm:$0xf]
        %v7414 = vld [vmem:[%s7407 + $0x18] sm:$0xf]
        %v7415 = vld [vmem:[%s7407 + $0x1c] sm:$0xf]
        %v7416 = vld [vmem:[%s7407 + $0x20] sm:$0xf]
        %v7417 = vld [vmem:[%s7407 + $0x24] sm:$0xf]
        %v7418 = vld [vmem:[%s7407 + $0x28] sm:$0xf]
        %v7419 = vld [vmem:[%s7407 + $0x2c] sm:$0xf]
        %v7420 = vld [vmem:[%s7407 + $0x30] sm:$0xf]
        %v7421 = vld [vmem:[%s7407 + $0x34] sm:$0xf]
        %v7422 = vld [vmem:[%s7407 + $0x38] sm:$0xf]
        %v7423 = vld [vmem:[%s7407 + $0x3c] sm:$0xf]
        %v7424 = vunpack.c.l.b16 %v7354
        %v7425 = vunpack.c.l.b16 %v7357
        %v7426 = vunpack.c.l.b16 %v7361
        %v7427 = vunpack.c.l.b16 %v7364
        %v7428 = vunpack.c.l.b16 %v7368
        %v7429 = vunpack.c.l.b16 %v7371
        %v7430 = vunpack.c.l.b16 %v7375
        %v7431 = vunpack.c.l.b16 %v7378
        %v7432 = vunpack.c.l.b16 %v7382
        %v7433 = vunpack.c.l.b16 %v7385
        %v7434 = vunpack.c.l.b16 %v7389
        %v7435 = vunpack.c.l.b16 %v7392
        %v7436 = vunpack.c.l.b16 %v7396
        %v7437 = vunpack.c.l.b16 %v7399
        %v7438 = vunpack.c.l.b16 %v7403
        %v7439 = vunpack.c.l.b16 %v7406
        %v7440 = vpack.c.b16 %v7425, %v7424
        %v7441 = vpack.c.b16 %v7427, %v7426
        %v7442 = vpack.c.b16 %v7429, %v7428
        %v7443 = vpack.c.b16 %v7431, %v7430
        %v7444 = vpack.c.b16 %v7433, %v7432
        %v7445 = vpack.c.b16 %v7435, %v7434
        %v7446 = vpack.c.b16 %v7437, %v7436
        %v7447 = vpack.c.b16 %v7439, %v7438
        %v7472 = vunpack.c.l.b16 %v7408
        %v7473 = vunpack.c.l.b16 %v7409
        %v7474 = vunpack.c.l.b16 %v7410
        %v7475 = vunpack.c.l.b16 %v7411
        %v7476 = vunpack.c.l.b16 %v7412
        %v7477 = vunpack.c.l.b16 %v7413
        %v7478 = vunpack.c.l.b16 %v7414
        %v7479 = vunpack.c.l.b16 %v7415
        %v7480 = vunpack.c.l.b16 %v7416
        %v7481 = vunpack.c.l.b16 %v7417
        %v7482 = vunpack.c.l.b16 %v7418
        %v7483 = vunpack.c.l.b16 %v7419
        %v7484 = vunpack.c.l.b16 %v7420
        %v7485 = vunpack.c.l.b16 %v7421
        %v7486 = vunpack.c.l.b16 %v7422
        %v7487 = vunpack.c.l.b16 %v7423
        %v7488 = vpack.c.b16 %v7473, %v7472
        %v7489 = vpack.c.b16 %v7475, %v7474
        %v7490 = vpack.c.b16 %v7477, %v7476
        %v7491 = vpack.c.b16 %v7479, %v7478
        %v7492 = vpack.c.b16 %v7481, %v7480
        %v7493 = vpack.c.b16 %v7483, %v7482
        %v7494 = vpack.c.b16 %v7485, %v7484
        %v7495 = vpack.c.b16 %v7487, %v7486
        %7504 = vmatpush.bf16.msra.mxu0 %v7495
        %7505 = vmatpush.bf16.msra.mxu0 %v7494
        %7506 = vmatpush.bf16.msra.mxu0 %v7493
        %7507 = vmatpush.bf16.msra.mxu0 %v7492
        %7508 = vmatpush.bf16.msra.mxu0 %v7491
        %7509 = vmatpush.bf16.msra.mxu0 %v7490
        %7510 = vmatpush.bf16.msra.mxu0 %v7489
        %7511 = vmatpush.bf16.msra.mxu0 %v7488
        %7512 = vmatmul.bf16.gmra.mxu0 %v7440
        %v7513 = vpop.f32.mrf.mxu0
        %v7514 = vadd.f32 0.0, %v7513
        %v7515 = vpop.f32.mrf.mxu0
        %v7516 = vadd.f32 0.0, %v7515
        %7517 = vmatmul.bf16.gmra.mxu0 %v7441
        %v7518 = vpop.f32.mrf.mxu0
        %v7519 = vadd.f32 0.0, %v7518
        %v7520 = vpop.f32.mrf.mxu0
        %v7521 = vadd.f32 0.0, %v7520
        %7522 = vmatmul.bf16.gmra.mxu0 %v7442
        %v7523 = vpop.f32.mrf.mxu0
        %v7524 = vadd.f32 0.0, %v7523
        %v7525 = vpop.f32.mrf.mxu0
        %v7526 = vadd.f32 0.0, %v7525
        %7527 = vmatmul.bf16.gmra.mxu0 %v7443
        %v7528 = vpop.f32.mrf.mxu0
        %v7529 = vadd.f32 0.0, %v7528
        %v7530 = vpop.f32.mrf.mxu0
        %v7531 = vadd.f32 0.0, %v7530
        %7532 = vmatmul.bf16.gmra.mxu0 %v7444
        %v7533 = vpop.f32.mrf.mxu0
        %v7534 = vadd.f32 0.0, %v7533
        %v7535 = vpop.f32.mrf.mxu0
        %v7536 = vadd.f32 0.0, %v7535
        %7537 = vmatmul.bf16.gmra.mxu0 %v7445
        %v7538 = vpop.f32.mrf.mxu0
        %v7539 = vadd.f32 0.0, %v7538
        %v7540 = vpop.f32.mrf.mxu0
        %v7541 = vadd.f32 0.0, %v7540
        %7542 = vmatmul.bf16.gmra.mxu0 %v7446
        %v7543 = vpop.f32.mrf.mxu0
        %v7544 = vadd.f32 0.0, %v7543
        %v7545 = vpop.f32.mrf.mxu0
        %v7546 = vadd.f32 0.0, %v7545
        %7547 = vmatmul.bf16.gmra.mxu0 %v7447
        %v7548 = vpop.f32.mrf.mxu0
        %v7549 = vadd.f32 0.0, %v7548
        %v7550 = vpop.f32.mrf.mxu0
        %v7551 = vadd.f32 0.0, %v7550
        %7552 = vdwg.mxu0
        %v7553 = vadd.f32 %v7283, %v7514
        %v7554 = vadd.f32 %v7284, %v7516
        %v7555 = vadd.f32 %v7285, %v7519
        %v7556 = vadd.f32 %v7286, %v7521
        %v7557 = vadd.f32 %v7287, %v7524
        %v7558 = vadd.f32 %v7288, %v7526
        %v7559 = vadd.f32 %v7289, %v7529
        %v7560 = vadd.f32 %v7290, %v7531
        %v7561 = vadd.f32 %v7291, %v7534
        %v7562 = vadd.f32 %v7292, %v7536
        %v7563 = vadd.f32 %v7293, %v7539
        %v7564 = vadd.f32 %v7294, %v7541
        %v7565 = vadd.f32 %v7295, %v7544
        %v7566 = vadd.f32 %v7296, %v7546
        %v7567 = vadd.f32 %v7297, %v7549
        %v7568 = vadd.f32 %v7298, %v7551
        %v7569 = vld [vmem:[%s7302 + $0xc] sm:$0xf]
        %v7570 = vld [vmem:[%s7302 + $0x10] sm:$0xf]
        %v7571 = vld [vmem:[%s7302 + $0x2c] sm:$0xf]
        %v7572 = vld [vmem:[%s7302 + $0x30] sm:$0xf]
        %v7573 = vld [vmem:[%s7302 + $0x4c] sm:$0xf]
        %v7574 = vld [vmem:[%s7302 + $0x50] sm:$0xf]
        %v7575 = vld [vmem:[%s7302 + $0x6c] sm:$0xf]
        %v7576 = vld [vmem:[%s7302 + $0x70] sm:$0xf]
        %v7577 = vld [vmem:[%s7302 + $0x8c] sm:$0xf]
        %v7578 = vld [vmem:[%s7302 + $0x90] sm:$0xf]
        %v7579 = vld [vmem:[%s7302 + $0xac] sm:$0xf]
        %v7580 = vld [vmem:[%s7302 + $0xb0] sm:$0xf]
        %v7581 = vld [vmem:[%s7302 + $0xcc] sm:$0xf]
        %v7582 = vld [vmem:[%s7302 + $0xd0] sm:$0xf]
        %v7583 = vld [vmem:[%s7302 + $0xec] sm:$0xf]
        %v7584 = vld [vmem:[%s7302 + $0xf0] sm:$0xf]
        %s7585 = scalar_lea.vmem %s579, 448 [#allocation13]
        %v7586 = vld [vmem:[%s7585] sm:$0xf]
        %v7587 = vld [vmem:[%s7585 + $0x4] sm:$0xf]
        %v7588 = vld [vmem:[%s7585 + $0x8] sm:$0xf]
        %v7589 = vld [vmem:[%s7585 + $0xc] sm:$0xf]
        %v7590 = vld [vmem:[%s7585 + $0x10] sm:$0xf]
        %v7591 = vld [vmem:[%s7585 + $0x14] sm:$0xf]
        %v7592 = vld [vmem:[%s7585 + $0x18] sm:$0xf]
        %v7593 = vld [vmem:[%s7585 + $0x1c] sm:$0xf]
        %v7594 = vld [vmem:[%s7585 + $0x20] sm:$0xf]
        %v7595 = vld [vmem:[%s7585 + $0x24] sm:$0xf]
        %v7596 = vld [vmem:[%s7585 + $0x28] sm:$0xf]
        %v7597 = vld [vmem:[%s7585 + $0x2c] sm:$0xf]
        %v7598 = vld [vmem:[%s7585 + $0x30] sm:$0xf]
        %v7599 = vld [vmem:[%s7585 + $0x34] sm:$0xf]
        %v7600 = vld [vmem:[%s7585 + $0x38] sm:$0xf]
        %v7601 = vld [vmem:[%s7585 + $0x3c] sm:$0xf]
        %v7618 = vunpack.c.l.b16 %v7569
        %v7619 = vunpack.c.l.b16 %v7570
        %v7620 = vunpack.c.l.b16 %v7571
        %v7621 = vunpack.c.l.b16 %v7572
        %v7622 = vunpack.c.l.b16 %v7573
        %v7623 = vunpack.c.l.b16 %v7574
        %v7624 = vunpack.c.l.b16 %v7575
        %v7625 = vunpack.c.l.b16 %v7576
        %v7626 = vunpack.c.l.b16 %v7577
        %v7627 = vunpack.c.l.b16 %v7578
        %v7628 = vunpack.c.l.b16 %v7579
        %v7629 = vunpack.c.l.b16 %v7580
        %v7630 = vunpack.c.l.b16 %v7581
        %v7631 = vunpack.c.l.b16 %v7582
        %v7632 = vunpack.c.l.b16 %v7583
        %v7633 = vunpack.c.l.b16 %v7584
        %v7634 = vpack.c.b16 %v7619, %v7618
        %v7635 = vpack.c.b16 %v7621, %v7620
        %v7636 = vpack.c.b16 %v7623, %v7622
        %v7637 = vpack.c.b16 %v7625, %v7624
        %v7638 = vpack.c.b16 %v7627, %v7626
        %v7639 = vpack.c.b16 %v7629, %v7628
        %v7640 = vpack.c.b16 %v7631, %v7630
        %v7641 = vpack.c.b16 %v7633, %v7632
        %v7666 = vunpack.c.l.b16 %v7586
        %v7667 = vunpack.c.l.b16 %v7587
        %v7668 = vunpack.c.l.b16 %v7588
        %v7669 = vunpack.c.l.b16 %v7589
        %v7670 = vunpack.c.l.b16 %v7590
        %v7671 = vunpack.c.l.b16 %v7591
        %v7672 = vunpack.c.l.b16 %v7592
        %v7673 = vunpack.c.l.b16 %v7593
        %v7674 = vunpack.c.l.b16 %v7594
        %v7675 = vunpack.c.l.b16 %v7595
        %v7676 = vunpack.c.l.b16 %v7596
        %v7677 = vunpack.c.l.b16 %v7597
        %v7678 = vunpack.c.l.b16 %v7598
        %v7679 = vunpack.c.l.b16 %v7599
        %v7680 = vunpack.c.l.b16 %v7600
        %v7681 = vunpack.c.l.b16 %v7601
        %v7682 = vpack.c.b16 %v7667, %v7666
        %v7683 = vpack.c.b16 %v7669, %v7668
        %v7684 = vpack.c.b16 %v7671, %v7670
        %v7685 = vpack.c.b16 %v7673, %v7672
        %v7686 = vpack.c.b16 %v7675, %v7674
        %v7687 = vpack.c.b16 %v7677, %v7676
        %v7688 = vpack.c.b16 %v7679, %v7678
        %v7689 = vpack.c.b16 %v7681, %v7680
        %7698 = vmatpush.bf16.msra.mxu0 %v7689
        %7699 = vmatpush.bf16.msra.mxu0 %v7688
        %7700 = vmatpush.bf16.msra.mxu0 %v7687
        %7701 = vmatpush.bf16.msra.mxu0 %v7686
        %7702 = vmatpush.bf16.msra.mxu0 %v7685
        %7703 = vmatpush.bf16.msra.mxu0 %v7684
        %7704 = vmatpush.bf16.msra.mxu0 %v7683
        %7705 = vmatpush.bf16.msra.mxu0 %v7682
        %7706 = vmatmul.bf16.gmra.mxu0 %v7634
        %v7707 = vpop.f32.mrf.mxu0
        %v7708 = vadd.f32 0.0, %v7707
        %v7709 = vpop.f32.mrf.mxu0
        %v7710 = vadd.f32 0.0, %v7709
        %7711 = vmatmul.bf16.gmra.mxu0 %v7635
        %v7712 = vpop.f32.mrf.mxu0
        %v7713 = vadd.f32 0.0, %v7712
        %v7714 = vpop.f32.mrf.mxu0
        %v7715 = vadd.f32 0.0, %v7714
        %7716 = vmatmul.bf16.gmra.mxu0 %v7636
        %v7717 = vpop.f32.mrf.mxu0
        %v7718 = vadd.f32 0.0, %v7717
        %v7719 = vpop.f32.mrf.mxu0
        %v7720 = vadd.f32 0.0, %v7719
        %7721 = vmatmul.bf16.gmra.mxu0 %v7637
        %v7722 = vpop.f32.mrf.mxu0
        %v7723 = vadd.f32 0.0, %v7722
        %v7724 = vpop.f32.mrf.mxu0
        %v7725 = vadd.f32 0.0, %v7724
        %7726 = vmatmul.bf16.gmra.mxu0 %v7638
        %v7727 = vpop.f32.mrf.mxu0
        %v7728 = vadd.f32 0.0, %v7727
        %v7729 = vpop.f32.mrf.mxu0
        %v7730 = vadd.f32 0.0, %v7729
        %7731 = vmatmul.bf16.gmra.mxu0 %v7639
        %v7732 = vpop.f32.mrf.mxu0
        %v7733 = vadd.f32 0.0, %v7732
        %v7734 = vpop.f32.mrf.mxu0
        %v7735 = vadd.f32 0.0, %v7734
        %7736 = vmatmul.bf16.gmra.mxu0 %v7640
        %v7737 = vpop.f32.mrf.mxu0
        %v7738 = vadd.f32 0.0, %v7737
        %v7739 = vpop.f32.mrf.mxu0
        %v7740 = vadd.f32 0.0, %v7739
        %7741 = vmatmul.bf16.gmra.mxu0 %v7641
        %v7742 = vpop.f32.mrf.mxu0
        %v7743 = vadd.f32 0.0, %v7742
        %v7744 = vpop.f32.mrf.mxu0
        %v7745 = vadd.f32 0.0, %v7744
        %7746 = vdwg.mxu0
        %v7747 = vadd.f32 %v7553, %v7708
        %v7748 = vadd.f32 %v7554, %v7710
        %v7749 = vadd.f32 %v7555, %v7713
        %v7750 = vadd.f32 %v7556, %v7715
        %v7751 = vadd.f32 %v7557, %v7718
        %v7752 = vadd.f32 %v7558, %v7720
        %v7753 = vadd.f32 %v7559, %v7723
        %v7754 = vadd.f32 %v7560, %v7725
        %v7755 = vadd.f32 %v7561, %v7728
        %v7756 = vadd.f32 %v7562, %v7730
        %v7757 = vadd.f32 %v7563, %v7733
        %v7758 = vadd.f32 %v7564, %v7735
        %v7759 = vadd.f32 %v7565, %v7738
        %v7760 = vadd.f32 %v7566, %v7740
        %v7761 = vadd.f32 %v7567, %v7743
        %v7762 = vadd.f32 %v7568, %v7745
        %v7763 = vld [vmem:[%s7302 + $0x14] sm:$0xe]
        %v7764 = vld [vmem:[%s7302 + $0x18] sm:$0xf]
        %v7765 = vld [vmem:[%s7302 + $0x1c] sm:$0x1]
        %v7766 = vld [vmem:[%s7302 + $0x34] sm:$0xe]
        %v7767 = vld [vmem:[%s7302 + $0x38] sm:$0xf]
        %v7768 = vld [vmem:[%s7302 + $0x3c] sm:$0x1]
        %v7769 = vld [vmem:[%s7302 + $0x54] sm:$0xe]
        %v7770 = vld [vmem:[%s7302 + $0x58] sm:$0xf]
        %v7771 = vld [vmem:[%s7302 + $0x5c] sm:$0x1]
        %v7772 = vld [vmem:[%s7302 + $0x74] sm:$0xe]
        %v7773 = vld [vmem:[%s7302 + $0x78] sm:$0xf]
        %v7774 = vld [vmem:[%s7302 + $0x7c] sm:$0x1]
        %v7775 = vld [vmem:[%s7302 + $0x94] sm:$0xe]
        %v7776 = vld [vmem:[%s7302 + $0x98] sm:$0xf]
        %v7777 = vld [vmem:[%s7302 + $0x9c] sm:$0x1]
        %v7778 = vld [vmem:[%s7302 + $0xb4] sm:$0xe]
        %v7779 = vld [vmem:[%s7302 + $0xb8] sm:$0xf]
        %v7780 = vld [vmem:[%s7302 + $0xbc] sm:$0x1]
        %v7781 = vld [vmem:[%s7302 + $0xd4] sm:$0xe]
        %v7782 = vld [vmem:[%s7302 + $0xd8] sm:$0xf]
        %v7783 = vld [vmem:[%s7302 + $0xdc] sm:$0x1]
        %v7784 = vld [vmem:[%s7302 + $0xf4] sm:$0xe]
        %v7785 = vld [vmem:[%s7302 + $0xf8] sm:$0xf]
        %v7786 = vld [vmem:[%s7302 + $0xfc] sm:$0x1]
        %v7811 = vrot.slane %v7763, 5
        %v7812 = vrot.slane %v7811, 4
        %v7813 = vrot.slane %v7764, 5
        %v7814 = vsel %vm1743, %v7812, %v7813
        %v7815 = vrot.slane %v7813, 4
        %v7816 = vrot.slane %v7765, 5
        %v7817 = vsel %vm1743, %v7815, %v7816
        %v7818 = vrot.slane %v7766, 5
        %v7819 = vrot.slane %v7818, 4
        %v7820 = vrot.slane %v7767, 5
        %v7821 = vsel %vm1743, %v7819, %v7820
        %v7822 = vrot.slane %v7820, 4
        %v7823 = vrot.slane %v7768, 5
        %v7824 = vsel %vm1743, %v7822, %v7823
        %v7825 = vrot.slane %v7769, 5
        %v7826 = vrot.slane %v7825, 4
        %v7827 = vrot.slane %v7770, 5
        %v7828 = vsel %vm1743, %v7826, %v7827
        %v7829 = vrot.slane %v7827, 4
        %v7830 = vrot.slane %v7771, 5
        %v7831 = vsel %vm1743, %v7829, %v7830
        %v7832 = vrot.slane %v7772, 5
        %v7833 = vrot.slane %v7832, 4
        %v7834 = vrot.slane %v7773, 5
        %v7835 = vsel %vm1743, %v7833, %v7834
        %v7836 = vrot.slane %v7834, 4
        %v7837 = vrot.slane %v7774, 5
        %v7838 = vsel %vm1743, %v7836, %v7837
        %v7839 = vrot.slane %v7775, 5
        %v7840 = vrot.slane %v7839, 4
        %v7841 = vrot.slane %v7776, 5
        %v7842 = vsel %vm1743, %v7840, %v7841
        %v7843 = vrot.slane %v7841, 4
        %v7844 = vrot.slane %v7777, 5
        %v7845 = vsel %vm1743, %v7843, %v7844
        %v7846 = vrot.slane %v7778, 5
        %v7847 = vrot.slane %v7846, 4
        %v7848 = vrot.slane %v7779, 5
        %v7849 = vsel %vm1743, %v7847, %v7848
        %v7850 = vrot.slane %v7848, 4
        %v7851 = vrot.slane %v7780, 5
        %v7852 = vsel %vm1743, %v7850, %v7851
        %v7853 = vrot.slane %v7781, 5
        %v7854 = vrot.slane %v7853, 4
        %v7855 = vrot.slane %v7782, 5
        %v7856 = vsel %vm1743, %v7854, %v7855
        %v7857 = vrot.slane %v7855, 4
        %v7858 = vrot.slane %v7783, 5
        %v7859 = vsel %vm1743, %v7857, %v7858
        %v7860 = vrot.slane %v7784, 5
        %v7861 = vrot.slane %v7860, 4
        %v7862 = vrot.slane %v7785, 5
        %v7863 = vsel %vm1743, %v7861, %v7862
        %v7864 = vrot.slane %v7862, 4
        %v7865 = vrot.slane %v7786, 5
        %v7866 = vsel %vm1743, %v7864, %v7865
        %s7867 = scalar_lea.vmem %s579, 512 [#allocation13]
        %v7868 = vld [vmem:[%s7867] sm:$0xf]
        %v7869 = vld [vmem:[%s7867 + $0x4] sm:$0xf]
        %v7870 = vld [vmem:[%s7867 + $0x8] sm:$0xf]
        %v7871 = vld [vmem:[%s7867 + $0xc] sm:$0xf]
        %v7872 = vld [vmem:[%s7867 + $0x10] sm:$0xf]
        %v7873 = vld [vmem:[%s7867 + $0x14] sm:$0xf]
        %v7874 = vld [vmem:[%s7867 + $0x18] sm:$0xf]
        %v7875 = vld [vmem:[%s7867 + $0x1c] sm:$0xf]
        %v7876 = vld [vmem:[%s7867 + $0x20] sm:$0xf]
        %v7877 = vld [vmem:[%s7867 + $0x24] sm:$0xf]
        %v7878 = vld [vmem:[%s7867 + $0x28] sm:$0xf]
        %v7879 = vld [vmem:[%s7867 + $0x2c] sm:$0xf]
        %v7880 = vld [vmem:[%s7867 + $0x30] sm:$0xf]
        %v7881 = vld [vmem:[%s7867 + $0x34] sm:$0xf]
        %v7882 = vld [vmem:[%s7867 + $0x38] sm:$0xf]
        %v7883 = vld [vmem:[%s7867 + $0x3c] sm:$0xf]
        %v7884 = vunpack.c.l.b16 %v7814
        %v7885 = vunpack.c.l.b16 %v7817
        %v7886 = vunpack.c.l.b16 %v7821
        %v7887 = vunpack.c.l.b16 %v7824
        %v7888 = vunpack.c.l.b16 %v7828
        %v7889 = vunpack.c.l.b16 %v7831
        %v7890 = vunpack.c.l.b16 %v7835
        %v7891 = vunpack.c.l.b16 %v7838
        %v7892 = vunpack.c.l.b16 %v7842
        %v7893 = vunpack.c.l.b16 %v7845
        %v7894 = vunpack.c.l.b16 %v7849
        %v7895 = vunpack.c.l.b16 %v7852
        %v7896 = vunpack.c.l.b16 %v7856
        %v7897 = vunpack.c.l.b16 %v7859
        %v7898 = vunpack.c.l.b16 %v7863
        %v7899 = vunpack.c.l.b16 %v7866
        %v7900 = vpack.c.b16 %v7885, %v7884
        %v7901 = vpack.c.b16 %v7887, %v7886
        %v7902 = vpack.c.b16 %v7889, %v7888
        %v7903 = vpack.c.b16 %v7891, %v7890
        %v7904 = vpack.c.b16 %v7893, %v7892
        %v7905 = vpack.c.b16 %v7895, %v7894
        %v7906 = vpack.c.b16 %v7897, %v7896
        %v7907 = vpack.c.b16 %v7899, %v7898
        %v7932 = vunpack.c.l.b16 %v7868
        %v7933 = vunpack.c.l.b16 %v7869
        %v7934 = vunpack.c.l.b16 %v7870
        %v7935 = vunpack.c.l.b16 %v7871
        %v7936 = vunpack.c.l.b16 %v7872
        %v7937 = vunpack.c.l.b16 %v7873
        %v7938 = vunpack.c.l.b16 %v7874
        %v7939 = vunpack.c.l.b16 %v7875
        %v7940 = vunpack.c.l.b16 %v7876
        %v7941 = vunpack.c.l.b16 %v7877
        %v7942 = vunpack.c.l.b16 %v7878
        %v7943 = vunpack.c.l.b16 %v7879
        %v7944 = vunpack.c.l.b16 %v7880
        %v7945 = vunpack.c.l.b16 %v7881
        %v7946 = vunpack.c.l.b16 %v7882
        %v7947 = vunpack.c.l.b16 %v7883
        %v7948 = vpack.c.b16 %v7933, %v7932
        %v7949 = vpack.c.b16 %v7935, %v7934
        %v7950 = vpack.c.b16 %v7937, %v7936
        %v7951 = vpack.c.b16 %v7939, %v7938
        %v7952 = vpack.c.b16 %v7941, %v7940
        %v7953 = vpack.c.b16 %v7943, %v7942
        %v7954 = vpack.c.b16 %v7945, %v7944
        %v7955 = vpack.c.b16 %v7947, %v7946
        %7964 = vmatpush.bf16.msra.mxu0 %v7955
        %7965 = vmatpush.bf16.msra.mxu0 %v7954
        %7966 = vmatpush.bf16.msra.mxu0 %v7953
        %7967 = vmatpush.bf16.msra.mxu0 %v7952
        %7968 = vmatpush.bf16.msra.mxu0 %v7951
        %7969 = vmatpush.bf16.msra.mxu0 %v7950
        %7970 = vmatpush.bf16.msra.mxu0 %v7949
        %7971 = vmatpush.bf16.msra.mxu0 %v7948
        %7972 = vmatmul.bf16.gmra.mxu0 %v7900
        %v7973 = vpop.f32.mrf.mxu0
        %v7974 = vadd.f32 0.0, %v7973
        %v7975 = vpop.f32.mrf.mxu0
        %v7976 = vadd.f32 0.0, %v7975
        %7977 = vmatmul.bf16.gmra.mxu0 %v7901
        %v7978 = vpop.f32.mrf.mxu0
        %v7979 = vadd.f32 0.0, %v7978
        %v7980 = vpop.f32.mrf.mxu0
        %v7981 = vadd.f32 0.0, %v7980
        %7982 = vmatmul.bf16.gmra.mxu0 %v7902
        %v7983 = vpop.f32.mrf.mxu0
        %v7984 = vadd.f32 0.0, %v7983
        %v7985 = vpop.f32.mrf.mxu0
        %v7986 = vadd.f32 0.0, %v7985
        %7987 = vmatmul.bf16.gmra.mxu0 %v7903
        %v7988 = vpop.f32.mrf.mxu0
        %v7989 = vadd.f32 0.0, %v7988
        %v7990 = vpop.f32.mrf.mxu0
        %v7991 = vadd.f32 0.0, %v7990
        %7992 = vmatmul.bf16.gmra.mxu0 %v7904
        %v7993 = vpop.f32.mrf.mxu0
        %v7994 = vadd.f32 0.0, %v7993
        %v7995 = vpop.f32.mrf.mxu0
        %v7996 = vadd.f32 0.0, %v7995
        %7997 = vmatmul.bf16.gmra.mxu0 %v7905
        %v7998 = vpop.f32.mrf.mxu0
        %v7999 = vadd.f32 0.0, %v7998
        %v8000 = vpop.f32.mrf.mxu0
        %v8001 = vadd.f32 0.0, %v8000
        %8002 = vmatmul.bf16.gmra.mxu0 %v7906
        %v8003 = vpop.f32.mrf.mxu0
        %v8004 = vadd.f32 0.0, %v8003
        %v8005 = vpop.f32.mrf.mxu0
        %v8006 = vadd.f32 0.0, %v8005
        %8007 = vmatmul.bf16.gmra.mxu0 %v7907
        %v8008 = vpop.f32.mrf.mxu0
        %v8009 = vadd.f32 0.0, %v8008
        %v8010 = vpop.f32.mrf.mxu0
        %v8011 = vadd.f32 0.0, %v8010
        %8012 = vdwg.mxu0
        %v8013 = vadd.f32 %v7747, %v7974
        %v8014 = vadd.f32 %v7748, %v7976
        %v8015 = vadd.f32 %v7749, %v7979
        %v8016 = vadd.f32 %v7750, %v7981
        %v8017 = vadd.f32 %v7751, %v7984
        %v8018 = vadd.f32 %v7752, %v7986
        %v8019 = vadd.f32 %v7753, %v7989
        %v8020 = vadd.f32 %v7754, %v7991
        %v8021 = vadd.f32 %v7755, %v7994
        %v8022 = vadd.f32 %v7756, %v7996
        %v8023 = vadd.f32 %v7757, %v7999
        %v8024 = vadd.f32 %v7758, %v8001
        %v8025 = vadd.f32 %v7759, %v8004
        %v8026 = vadd.f32 %v7760, %v8006
        %v8027 = vadd.f32 %v7761, %v8009
        %v8028 = vadd.f32 %v7762, %v8011
        %v8029 = vld [vmem:[#allocation3 + $0x18] sm:$0xff]
        %v8030 = vld [vmem:[#allocation3 + $0x38] sm:$0xff]
        %v8031 = vld [vmem:[#allocation3 + $0x58] sm:$0xff]
        %v8032 = vld [vmem:[#allocation3 + $0x78] sm:$0xff]
        %v8033 = vld [vmem:[#allocation3 + $0x98] sm:$0xff]
        %v8034 = vld [vmem:[#allocation3 + $0xb8] sm:$0xff]
        %v8035 = vld [vmem:[#allocation3 + $0xd8] sm:$0xff]
        %v8036 = vld [vmem:[#allocation3 + $0xf8] sm:$0xff]
        %v8037 = vld [vmem:[#allocation3 + $0x118] sm:$0xff]
        %v8038 = vld [vmem:[#allocation3 + $0x138] sm:$0xff]
        %v8039 = vld [vmem:[#allocation3 + $0x158] sm:$0xff]
        %v8040 = vld [vmem:[#allocation3 + $0x178] sm:$0xff]
        %v8041 = vld [vmem:[#allocation3 + $0x198] sm:$0xff]
        %v8042 = vld [vmem:[#allocation3 + $0x1b8] sm:$0xff]
        %v8043 = vld [vmem:[#allocation3 + $0x1d8] sm:$0xff]
        %v8044 = vld [vmem:[#allocation3 + $0x1f8] sm:$0xff]
        %v8045 = vadd.f32 %v8029, %v8013
        %v8046 = vadd.f32 %v8030, %v8014
        %v8047 = vadd.f32 %v8031, %v8015
        %v8048 = vadd.f32 %v8032, %v8016
        %v8049 = vadd.f32 %v8033, %v8017
        %v8050 = vadd.f32 %v8034, %v8018
        %v8051 = vadd.f32 %v8035, %v8019
        %v8052 = vadd.f32 %v8036, %v8020
        %v8053 = vadd.f32 %v8037, %v8021
        %v8054 = vadd.f32 %v8038, %v8022
        %v8055 = vadd.f32 %v8039, %v8023
        %v8056 = vadd.f32 %v8040, %v8024
        %v8057 = vadd.f32 %v8041, %v8025
        %v8058 = vadd.f32 %v8042, %v8026
        %v8059 = vadd.f32 %v8043, %v8027
        %v8060 = vadd.f32 %v8044, %v8028
        %8061 = vst [vmem:[#allocation3 + $0x18] sm:$0xff] %v8045
        %8062 = vst [vmem:[#allocation3 + $0x38] sm:$0xff] %v8046
        %8063 = vst [vmem:[#allocation3 + $0x58] sm:$0xff] %v8047
        %8064 = vst [vmem:[#allocation3 + $0x78] sm:$0xff] %v8048
        %8065 = vst [vmem:[#allocation3 + $0x98] sm:$0xff] %v8049
        %8066 = vst [vmem:[#allocation3 + $0xb8] sm:$0xff] %v8050
        %8067 = vst [vmem:[#allocation3 + $0xd8] sm:$0xff] %v8051
        %8068 = vst [vmem:[#allocation3 + $0xf8] sm:$0xff] %v8052
        %8069 = vst [vmem:[#allocation3 + $0x118] sm:$0xff] %v8053
        %8070 = vst [vmem:[#allocation3 + $0x138] sm:$0xff] %v8054
        %8071 = vst [vmem:[#allocation3 + $0x158] sm:$0xff] %v8055
        %8072 = vst [vmem:[#allocation3 + $0x178] sm:$0xff] %v8056
        %8073 = vst [vmem:[#allocation3 + $0x198] sm:$0xff] %v8057
        %8074 = vst [vmem:[#allocation3 + $0x1b8] sm:$0xff] %v8058
        %8075 = vst [vmem:[#allocation3 + $0x1d8] sm:$0xff] %v8059
        %8076 = vst [vmem:[#allocation3 + $0x1f8] sm:$0xff] %v8060
        %p8077 = scmp.eq.s32.totalorder %s42, 1
        // Predicated region
        $region89: #{aspp_forward.1} parent=51 // pred_check
          %p8078 = pneg %p8077
        $region90: #{aspp_forward.1} parent=51 // pred_check_branch
          %8080 = sbr.rel (%p8078) target = $region92
        $region91: #{aspp_forward.1} parent=51 // pred_region
          %v8081 = vld [vmem:[#allocation16] sm:$0x1f]
          %v8082 = vld [vmem:[#allocation17] sm:$0x1f]
          %v8083 = vld [vmem:[#allocation3] sm:$0xff]
          %v8084 = vld [vmem:[#allocation3 + $0x8] sm:$0xff]
          %v8085 = vld [vmem:[#allocation3 + $0x10] sm:$0xff]
          %v8086 = vld [vmem:[#allocation3 + $0x18] sm:$0xff]
          %v8087 = vld [vmem:[#allocation3 + $0x20] sm:$0xff]
          %v8088 = vld [vmem:[#allocation3 + $0x28] sm:$0xff]
          %v8089 = vld [vmem:[#allocation3 + $0x30] sm:$0xff]
          %v8090 = vld [vmem:[#allocation3 + $0x38] sm:$0xff]
          %v8091 = vld [vmem:[#allocation3 + $0x40] sm:$0xff]
          %v8092 = vld [vmem:[#allocation3 + $0x48] sm:$0xff]
          %v8093 = vld [vmem:[#allocation3 + $0x50] sm:$0xff]
          %v8094 = vld [vmem:[#allocation3 + $0x58] sm:$0xff]
          %v8095 = vld [vmem:[#allocation3 + $0x60] sm:$0xff]
          %v8096 = vld [vmem:[#allocation3 + $0x68] sm:$0xff]
          %v8097 = vld [vmem:[#allocation3 + $0x70] sm:$0xff]
          %v8098 = vld [vmem:[#allocation3 + $0x78] sm:$0xff]
          %v8099 = vld [vmem:[#allocation3 + $0x80] sm:$0xff]
          %v8100 = vld [vmem:[#allocation3 + $0x88] sm:$0xff]
          %v8101 = vld [vmem:[#allocation3 + $0x90] sm:$0xff]
          %v8102 = vld [vmem:[#allocation3 + $0x98] sm:$0xff]
          %v8103 = vld [vmem:[#allocation3 + $0xa0] sm:$0xff]
          %v8104 = vld [vmem:[#allocation3 + $0xa8] sm:$0xff]
          %v8105 = vld [vmem:[#allocation3 + $0xb0] sm:$0xff]
          %v8106 = vld [vmem:[#allocation3 + $0xb8] sm:$0xff]
          %v8107 = vld [vmem:[#allocation3 + $0xc0] sm:$0xff]
          %v8108 = vld [vmem:[#allocation3 + $0xc8] sm:$0xff]
          %v8109 = vld [vmem:[#allocation3 + $0xd0] sm:$0xff]
          %v8110 = vld [vmem:[#allocation3 + $0xd8] sm:$0xff]
          %v8111 = vld [vmem:[#allocation3 + $0xe0] sm:$0xff]
          %v8112 = vld [vmem:[#allocation3 + $0xe8] sm:$0xff]
          %v8113 = vld [vmem:[#allocation3 + $0xf0] sm:$0xff]
          %v8114 = vld [vmem:[#allocation3 + $0xf8] sm:$0xff]
          %v8115 = vld [vmem:[#allocation3 + $0x100] sm:$0xff]
          %v8116 = vld [vmem:[#allocation3 + $0x108] sm:$0xff]
          %v8117 = vld [vmem:[#allocation3 + $0x110] sm:$0xff]
          %v8118 = vld [vmem:[#allocation3 + $0x118] sm:$0xff]
          %v8119 = vld [vmem:[#allocation3 + $0x120] sm:$0xff]
          %v8120 = vld [vmem:[#allocation3 + $0x128] sm:$0xff]
          %v8121 = vld [vmem:[#allocation3 + $0x130] sm:$0xff]
          %v8122 = vld [vmem:[#allocation3 + $0x138] sm:$0xff]
          %v8123 = vld [vmem:[#allocation3 + $0x140] sm:$0xff]
          %v8124 = vld [vmem:[#allocation3 + $0x148] sm:$0xff]
          %v8125 = vld [vmem:[#allocation3 + $0x150] sm:$0xff]
          %v8126 = vld [vmem:[#allocation3 + $0x158] sm:$0xff]
          %v8127 = vld [vmem:[#allocation3 + $0x160] sm:$0xff]
          %v8128 = vld [vmem:[#allocation3 + $0x168] sm:$0xff]
          %v8129 = vld [vmem:[#allocation3 + $0x170] sm:$0xff]
          %v8130 = vld [vmem:[#allocation3 + $0x178] sm:$0xff]
          %v8131 = vld [vmem:[#allocation3 + $0x180] sm:$0xff]
          %v8132 = vld [vmem:[#allocation3 + $0x188] sm:$0xff]
          %v8133 = vld [vmem:[#allocation3 + $0x190] sm:$0xff]
          %v8134 = vld [vmem:[#allocation3 + $0x198] sm:$0xff]
          %v8135 = vld [vmem:[#allocation3 + $0x1a0] sm:$0xff]
          %v8136 = vld [vmem:[#allocation3 + $0x1a8] sm:$0xff]
          %v8137 = vld [vmem:[#allocation3 + $0x1b0] sm:$0xff]
          %v8138 = vld [vmem:[#allocation3 + $0x1b8] sm:$0xff]
          %v8139 = vld [vmem:[#allocation3 + $0x1c0] sm:$0xff]
          %v8140 = vld [vmem:[#allocation3 + $0x1c8] sm:$0xff]
          %v8141 = vld [vmem:[#allocation3 + $0x1d0] sm:$0xff]
          %v8142 = vld [vmem:[#allocation3 + $0x1d8] sm:$0xff]
          %v8143 = vld [vmem:[#allocation3 + $0x1e0] sm:$0xff]
          %v8144 = vld [vmem:[#allocation3 + $0x1e8] sm:$0xff]
          %v8145 = vld [vmem:[#allocation3 + $0x1f0] sm:$0xff]
          %v8146 = vld [vmem:[#allocation3 + $0x1f8] sm:$0xff]
          %v8148 = vperm.slane %v8081, 0
          %v8149 = vperm.slane %v8081, 1
          %v8150 = vperm.slane %v8081, 2
          %v8151 = vperm.slane %v8081, 3
          %v8156 = vmul.f32 %v8083, %v8148
          %v8157 = vmul.f32 %v8084, %v8149
          %v8158 = vmul.f32 %v8085, %v8150
          %v8159 = vmul.f32 %v8086, %v8151
          %v8160 = vmul.f32 %v8087, %v8148
          %v8161 = vmul.f32 %v8088, %v8149
          %v8162 = vmul.f32 %v8089, %v8150
          %v8163 = vmul.f32 %v8090, %v8151
          %v8164 = vmul.f32 %v8091, %v8148
          %v8165 = vmul.f32 %v8092, %v8149
          %v8166 = vmul.f32 %v8093, %v8150
          %v8167 = vmul.f32 %v8094, %v8151
          %v8168 = vmul.f32 %v8095, %v8148
          %v8169 = vmul.f32 %v8096, %v8149
          %v8170 = vmul.f32 %v8097, %v8150
          %v8171 = vmul.f32 %v8098, %v8151
          %v8172 = vmul.f32 %v8099, %v8148
          %v8173 = vmul.f32 %v8100, %v8149
          %v8174 = vmul.f32 %v8101, %v8150
          %v8175 = vmul.f32 %v8102, %v8151
          %v8176 = vmul.f32 %v8103, %v8148
          %v8177 = vmul.f32 %v8104, %v8149
          %v8178 = vmul.f32 %v8105, %v8150
          %v8179 = vmul.f32 %v8106, %v8151
          %v8180 = vmul.f32 %v8107, %v8148
          %v8181 = vmul.f32 %v8108, %v8149
          %v8182 = vmul.f32 %v8109, %v8150
          %v8183 = vmul.f32 %v8110, %v8151
          %v8184 = vmul.f32 %v8111, %v8148
          %v8185 = vmul.f32 %v8112, %v8149
          %v8186 = vmul.f32 %v8113, %v8150
          %v8187 = vmul.f32 %v8114, %v8151
          %v8188 = vmul.f32 %v8115, %v8148
          %v8189 = vmul.f32 %v8116, %v8149
          %v8190 = vmul.f32 %v8117, %v8150
          %v8191 = vmul.f32 %v8118, %v8151
          %v8192 = vmul.f32 %v8119, %v8148
          %v8193 = vmul.f32 %v8120, %v8149
          %v8194 = vmul.f32 %v8121, %v8150
          %v8195 = vmul.f32 %v8122, %v8151
          %v8196 = vmul.f32 %v8123, %v8148
          %v8197 = vmul.f32 %v8124, %v8149
          %v8198 = vmul.f32 %v8125, %v8150
          %v8199 = vmul.f32 %v8126, %v8151
          %v8200 = vmul.f32 %v8127, %v8148
          %v8201 = vmul.f32 %v8128, %v8149
          %v8202 = vmul.f32 %v8129, %v8150
          %v8203 = vmul.f32 %v8130, %v8151
          %v8204 = vmul.f32 %v8131, %v8148
          %v8205 = vmul.f32 %v8132, %v8149
          %v8206 = vmul.f32 %v8133, %v8150
          %v8207 = vmul.f32 %v8134, %v8151
          %v8208 = vmul.f32 %v8135, %v8148
          %v8209 = vmul.f32 %v8136, %v8149
          %v8210 = vmul.f32 %v8137, %v8150
          %v8211 = vmul.f32 %v8138, %v8151
          %v8212 = vmul.f32 %v8139, %v8148
          %v8213 = vmul.f32 %v8140, %v8149
          %v8214 = vmul.f32 %v8141, %v8150
          %v8215 = vmul.f32 %v8142, %v8151
          %v8216 = vmul.f32 %v8143, %v8148
          %v8217 = vmul.f32 %v8144, %v8149
          %v8218 = vmul.f32 %v8145, %v8150
          %v8219 = vmul.f32 %v8146, %v8151
          %v8221 = vperm.slane %v8082, 0
          %v8222 = vperm.slane %v8082, 1
          %v8223 = vperm.slane %v8082, 2
          %v8224 = vperm.slane %v8082, 3
          %v8229 = vadd.f32 %v8156, %v8221
          %v8230 = vadd.f32 %v8157, %v8222
          %v8231 = vadd.f32 %v8158, %v8223
          %v8232 = vadd.f32 %v8159, %v8224
          %v8233 = vadd.f32 %v8160, %v8221
          %v8234 = vadd.f32 %v8161, %v8222
          %v8235 = vadd.f32 %v8162, %v8223
          %v8236 = vadd.f32 %v8163, %v8224
          %v8237 = vadd.f32 %v8164, %v8221
          %v8238 = vadd.f32 %v8165, %v8222
          %v8239 = vadd.f32 %v8166, %v8223
          %v8240 = vadd.f32 %v8167, %v8224
          %v8241 = vadd.f32 %v8168, %v8221
          %v8242 = vadd.f32 %v8169, %v8222
          %v8243 = vadd.f32 %v8170, %v8223
          %v8244 = vadd.f32 %v8171, %v8224
          %v8245 = vadd.f32 %v8172, %v8221
          %v8246 = vadd.f32 %v8173, %v8222
          %v8247 = vadd.f32 %v8174, %v8223
          %v8248 = vadd.f32 %v8175, %v8224
          %v8249 = vadd.f32 %v8176, %v8221
          %v8250 = vadd.f32 %v8177, %v8222
          %v8251 = vadd.f32 %v8178, %v8223
          %v8252 = vadd.f32 %v8179, %v8224
          %v8253 = vadd.f32 %v8180, %v8221
          %v8254 = vadd.f32 %v8181, %v8222
          %v8255 = vadd.f32 %v8182, %v8223
          %v8256 = vadd.f32 %v8183, %v8224
          %v8257 = vadd.f32 %v8184, %v8221
          %v8258 = vadd.f32 %v8185, %v8222
          %v8259 = vadd.f32 %v8186, %v8223
          %v8260 = vadd.f32 %v8187, %v8224
          %v8261 = vadd.f32 %v8188, %v8221
          %v8262 = vadd.f32 %v8189, %v8222
          %v8263 = vadd.f32 %v8190, %v8223
          %v8264 = vadd.f32 %v8191, %v8224
          %v8265 = vadd.f32 %v8192, %v8221
          %v8266 = vadd.f32 %v8193, %v8222
          %v8267 = vadd.f32 %v8194, %v8223
          %v8268 = vadd.f32 %v8195, %v8224
          %v8269 = vadd.f32 %v8196, %v8221
          %v8270 = vadd.f32 %v8197, %v8222
          %v8271 = vadd.f32 %v8198, %v8223
          %v8272 = vadd.f32 %v8199, %v8224
          %v8273 = vadd.f32 %v8200, %v8221
          %v8274 = vadd.f32 %v8201, %v8222
          %v8275 = vadd.f32 %v8202, %v8223
          %v8276 = vadd.f32 %v8203, %v8224
          %v8277 = vadd.f32 %v8204, %v8221
          %v8278 = vadd.f32 %v8205, %v8222
          %v8279 = vadd.f32 %v8206, %v8223
          %v8280 = vadd.f32 %v8207, %v8224
          %v8281 = vadd.f32 %v8208, %v8221
          %v8282 = vadd.f32 %v8209, %v8222
          %v8283 = vadd.f32 %v8210, %v8223
          %v8284 = vadd.f32 %v8211, %v8224
          %v8285 = vadd.f32 %v8212, %v8221
          %v8286 = vadd.f32 %v8213, %v8222
          %v8287 = vadd.f32 %v8214, %v8223
          %v8288 = vadd.f32 %v8215, %v8224
          %v8289 = vadd.f32 %v8216, %v8221
          %v8290 = vadd.f32 %v8217, %v8222
          %v8291 = vadd.f32 %v8218, %v8223
          %v8292 = vadd.f32 %v8219, %v8224
          %v8293 = vmax.f32 %v8229, 0.0
          %v8294 = vmax.f32 %v8230, 0.0
          %v8295 = vmax.f32 %v8231, 0.0
          %v8296 = vmax.f32 %v8232, 0.0
          %v8297 = vmax.f32 %v8233, 0.0
          %v8298 = vmax.f32 %v8234, 0.0
          %v8299 = vmax.f32 %v8235, 0.0
          %v8300 = vmax.f32 %v8236, 0.0
          %v8301 = vmax.f32 %v8237, 0.0
          %v8302 = vmax.f32 %v8238, 0.0
          %v8303 = vmax.f32 %v8239, 0.0
          %v8304 = vmax.f32 %v8240, 0.0
          %v8305 = vmax.f32 %v8241, 0.0
          %v8306 = vmax.f32 %v8242, 0.0
          %v8307 = vmax.f32 %v8243, 0.0
          %v8308 = vmax.f32 %v8244, 0.0
          %v8309 = vmax.f32 %v8245, 0.0
          %v8310 = vmax.f32 %v8246, 0.0
          %v8311 = vmax.f32 %v8247, 0.0
          %v8312 = vmax.f32 %v8248, 0.0
          %v8313 = vmax.f32 %v8249, 0.0
          %v8314 = vmax.f32 %v8250, 0.0
          %v8315 = vmax.f32 %v8251, 0.0
          %v8316 = vmax.f32 %v8252, 0.0
          %v8317 = vmax.f32 %v8253, 0.0
          %v8318 = vmax.f32 %v8254, 0.0
          %v8319 = vmax.f32 %v8255, 0.0
          %v8320 = vmax.f32 %v8256, 0.0
          %v8321 = vmax.f32 %v8257, 0.0
          %v8322 = vmax.f32 %v8258, 0.0
          %v8323 = vmax.f32 %v8259, 0.0
          %v8324 = vmax.f32 %v8260, 0.0
          %v8325 = vmax.f32 %v8261, 0.0
          %v8326 = vmax.f32 %v8262, 0.0
          %v8327 = vmax.f32 %v8263, 0.0
          %v8328 = vmax.f32 %v8264, 0.0
          %v8329 = vmax.f32 %v8265, 0.0
          %v8330 = vmax.f32 %v8266, 0.0
          %v8331 = vmax.f32 %v8267, 0.0
          %v8332 = vmax.f32 %v8268, 0.0
          %v8333 = vmax.f32 %v8269, 0.0
          %v8334 = vmax.f32 %v8270, 0.0
          %v8335 = vmax.f32 %v8271, 0.0
          %v8336 = vmax.f32 %v8272, 0.0
          %v8337 = vmax.f32 %v8273, 0.0
          %v8338 = vmax.f32 %v8274, 0.0
          %v8339 = vmax.f32 %v8275, 0.0
          %v8340 = vmax.f32 %v8276, 0.0
          %v8341 = vmax.f32 %v8277, 0.0
          %v8342 = vmax.f32 %v8278, 0.0
          %v8343 = vmax.f32 %v8279, 0.0
          %v8344 = vmax.f32 %v8280, 0.0
          %v8345 = vmax.f32 %v8281, 0.0
          %v8346 = vmax.f32 %v8282, 0.0
          %v8347 = vmax.f32 %v8283, 0.0
          %v8348 = vmax.f32 %v8284, 0.0
          %v8349 = vmax.f32 %v8285, 0.0
          %v8350 = vmax.f32 %v8286, 0.0
          %v8351 = vmax.f32 %v8287, 0.0
          %v8352 = vmax.f32 %v8288, 0.0
          %v8353 = vmax.f32 %v8289, 0.0
          %v8354 = vmax.f32 %v8290, 0.0
          %v8355 = vmax.f32 %v8291, 0.0
          %v8356 = vmax.f32 %v8292, 0.0
          %8357 = vst [vmem:[%s657] sm:$0xff] %v8293
          %8358 = vst [vmem:[%s657 + $0x8] sm:$0xff] %v8294
          %8359 = vst [vmem:[%s657 + $0x10] sm:$0xff] %v8295
          %8360 = vst [vmem:[%s657 + $0x18] sm:$0xff] %v8296
          %8361 = vst [vmem:[%s657 + $0x28] sm:$0xff] %v8297
          %8362 = vst [vmem:[%s657 + $0x30] sm:$0xff] %v8298
          %8363 = vst [vmem:[%s657 + $0x38] sm:$0xff] %v8299
          %8364 = vst [vmem:[%s657 + $0x40] sm:$0xff] %v8300
          %8365 = vst [vmem:[%s657 + $0x50] sm:$0xff] %v8301
          %8366 = vst [vmem:[%s657 + $0x58] sm:$0xff] %v8302
          %8367 = vst [vmem:[%s657 + $0x60] sm:$0xff] %v8303
          %8368 = vst [vmem:[%s657 + $0x68] sm:$0xff] %v8304
          %8369 = vst [vmem:[%s657 + $0x78] sm:$0xff] %v8305
          %8370 = vst [vmem:[%s657 + $0x80] sm:$0xff] %v8306
          %8371 = vst [vmem:[%s657 + $0x88] sm:$0xff] %v8307
          %8372 = vst [vmem:[%s657 + $0x90] sm:$0xff] %v8308
          %8373 = vst [vmem:[%s657 + $0xa0] sm:$0xff] %v8309
          %8374 = vst [vmem:[%s657 + $0xa8] sm:$0xff] %v8310
          %8375 = vst [vmem:[%s657 + $0xb0] sm:$0xff] %v8311
          %8376 = vst [vmem:[%s657 + $0xb8] sm:$0xff] %v8312
          %8377 = vst [vmem:[%s657 + $0xc8] sm:$0xff] %v8313
          %8378 = vst [vmem:[%s657 + $0xd0] sm:$0xff] %v8314
          %8379 = vst [vmem:[%s657 + $0xd8] sm:$0xff] %v8315
          %8380 = vst [vmem:[%s657 + $0xe0] sm:$0xff] %v8316
          %8381 = vst [vmem:[%s657 + $0xf0] sm:$0xff] %v8317
          %8382 = vst [vmem:[%s657 + $0xf8] sm:$0xff] %v8318
          %8383 = vst [vmem:[%s657 + $0x100] sm:$0xff] %v8319
          %8384 = vst [vmem:[%s657 + $0x108] sm:$0xff] %v8320
          %8385 = vst [vmem:[%s657 + $0x118] sm:$0xff] %v8321
          %8386 = vst [vmem:[%s657 + $0x120] sm:$0xff] %v8322
          %8387 = vst [vmem:[%s657 + $0x128] sm:$0xff] %v8323
          %8388 = vst [vmem:[%s657 + $0x130] sm:$0xff] %v8324
          %8389 = vst [vmem:[%s657 + $0x140] sm:$0xff] %v8325
          %8390 = vst [vmem:[%s657 + $0x148] sm:$0xff] %v8326
          %8391 = vst [vmem:[%s657 + $0x150] sm:$0xff] %v8327
          %8392 = vst [vmem:[%s657 + $0x158] sm:$0xff] %v8328
          %8393 = vst [vmem:[%s657 + $0x168] sm:$0xff] %v8329
          %8394 = vst [vmem:[%s657 + $0x170] sm:$0xff] %v8330
          %8395 = vst [vmem:[%s657 + $0x178] sm:$0xff] %v8331
          %8396 = vst [vmem:[%s657 + $0x180] sm:$0xff] %v8332
          %8397 = vst [vmem:[%s657 + $0x190] sm:$0xff] %v8333
          %8398 = vst [vmem:[%s657 + $0x198] sm:$0xff] %v8334
          %8399 = vst [vmem:[%s657 + $0x1a0] sm:$0xff] %v8335
          %8400 = vst [vmem:[%s657 + $0x1a8] sm:$0xff] %v8336
          %8401 = vst [vmem:[%s657 + $0x1b8] sm:$0xff] %v8337
          %8402 = vst [vmem:[%s657 + $0x1c0] sm:$0xff] %v8338
          %8403 = vst [vmem:[%s657 + $0x1c8] sm:$0xff] %v8339
          %8404 = vst [vmem:[%s657 + $0x1d0] sm:$0xff] %v8340
          %8405 = vst [vmem:[%s657 + $0x1e0] sm:$0xff] %v8341
          %8406 = vst [vmem:[%s657 + $0x1e8] sm:$0xff] %v8342
          %8407 = vst [vmem:[%s657 + $0x1f0] sm:$0xff] %v8343
          %8408 = vst [vmem:[%s657 + $0x1f8] sm:$0xff] %v8344
          %8409 = vst [vmem:[%s657 + $0x208] sm:$0xff] %v8345
          %8410 = vst [vmem:[%s657 + $0x210] sm:$0xff] %v8346
          %8411 = vst [vmem:[%s657 + $0x218] sm:$0xff] %v8347
          %8412 = vst [vmem:[%s657 + $0x220] sm:$0xff] %v8348
          %8413 = vst [vmem:[%s657 + $0x230] sm:$0xff] %v8349
          %8414 = vst [vmem:[%s657 + $0x238] sm:$0xff] %v8350
          %8415 = vst [vmem:[%s657 + $0x240] sm:$0xff] %v8351
          %8416 = vst [vmem:[%s657 + $0x248] sm:$0xff] %v8352
          %8417 = vst [vmem:[%s657 + $0x258] sm:$0xff] %v8353
          %8418 = vst [vmem:[%s657 + $0x260] sm:$0xff] %v8354
          %8419 = vst [vmem:[%s657 + $0x268] sm:$0xff] %v8355
          %8420 = vst [vmem:[%s657 + $0x270] sm:$0xff] %v8356
          %v8421 = vld [vmem:[#allocation4] sm:$0x1]
          %v8422 = vmul.f32 %v8421, 0.00390625
          %v8423 = vrot.slane %v8081, 4
          %v8425 = vmul.f32 %v8422, %v8423
          %v8426 = vrot.slane %v8082, 4
          %v8428 = vadd.f32 %v8425, %v8426
          %v8429 = vmax.f32 %v8428, 0.0
          %v8431 = vperm.slane %v8429, 0
          %8433 = vst [vmem:[%s657 + $0x20] sm:$0xff] %v8431
          %8434 = vst [vmem:[%s657 + $0x48] sm:$0xff] %v8431
          %8435 = vst [vmem:[%s657 + $0x70] sm:$0xff] %v8431
          %8436 = vst [vmem:[%s657 + $0x98] sm:$0xff] %v8431
          %8437 = vst [vmem:[%s657 + $0xc0] sm:$0xff] %v8431
          %8438 = vst [vmem:[%s657 + $0xe8] sm:$0xff] %v8431
          %8439 = vst [vmem:[%s657 + $0x110] sm:$0xff] %v8431
          %8440 = vst [vmem:[%s657 + $0x138] sm:$0xff] %v8431
          %8441 = vst [vmem:[%s657 + $0x160] sm:$0xff] %v8431
          %8442 = vst [vmem:[%s657 + $0x188] sm:$0xff] %v8431
          %8443 = vst [vmem:[%s657 + $0x1b0] sm:$0xff] %v8431
          %8444 = vst [vmem:[%s657 + $0x1d8] sm:$0xff] %v8431
          %8445 = vst [vmem:[%s657 + $0x200] sm:$0xff] %v8431
          %8446 = vst [vmem:[%s657 + $0x228] sm:$0xff] %v8431
          %8447 = vst [vmem:[%s657 + $0x250] sm:$0xff] %v8431
          %8448 = vst [vmem:[%s657 + $0x278] sm:$0xff] %v8431
        $region92: #{aspp_forward.1} parent=51 // pred_fallthru
          _
        %s8449 = sand.u32 %s264, 1
        %s8450 = scalar_lea.sflag [#allocation7], %s8449
        %s8451 = sand.u32 %s264, 1
        %s8452 = smul.addr %s8451, 640
        %s8453 = scalar_lea.vmem [#allocation19], %s8452
        // Predicated region
        $region93: #{aspp_forward.1} parent=51 // pred_check
          %p8454 = pneg %p274
        $region94: #{aspp_forward.1} parent=51 // pred_check_branch
          %8456 = sbr.rel (%p8454) target = $region96
        $region95: #{aspp_forward.1} parent=51 // pred_region
          %s8457 = smul.u32 8, %s41
          %8459 = vsyncadd %s8450, 0
          %s8460 = smul.addr %s8457, 10
          %s8461 = smul.addr %s40, 160
          %s8462 = sadd.s32 %s8460, %s8461
          %s8463 = smul.addr %s8462, 8
          %s8464 = scalar_lea.hbm %s8, %s8463
          %s8465 = sshll.u32 %s8453, 4
          %s8466 = int_to_ptr.vmem [resolvable:$true] %s8465
          %s8467 = sshll.u32 %s8464, 4
          %s8468 = int_to_ptr.hbm [resolvable:$true] %s8467
          %8473 = dma.vmem_to_hbm [thread:$0]  %s8466, 10240, %s8468, %s8450, 640, 640, 40
        $region96: #{aspp_forward.1} parent=51 // pred_fallthru
          _
      $region52: #{aspp_forward.1} parent=5 // pred_fallthru
        _
      %p8474 = scmp.le.s32.totalorder 2, %s30
      // Predicated region
      $region97: #{aspp_forward.1} parent=5 // pred_check
        %p8475 = pneg %p8474
      $region98: #{aspp_forward.1} parent=5 // pred_check_branch
        %8477 = sbr.rel (%p8475) target = $region100
      $region99: #{aspp_forward.1} parent=5 // pred_region
        %s8478 = ssub.s32 %s30, 2
        // Predicated region
        $region101: #{aspp_forward.1} parent=99 // pred_check
          %p8479 = pneg %p280
        $region102: #{aspp_forward.1} parent=99 // pred_check_branch
          %8481 = sbr.rel (%p8479) target = $region104
        $region103: #{aspp_forward.1} parent=99 // pred_region
          %s8482 = sand.u32 %s265, 1
          %s8483 = scalar_lea.sflag [#allocation7], %s8482
          %s8484 = sand.u32 %s265, 1
          %s8485 = smul.addr %s8484, 640
          %s8486 = scalar_lea.vmem [#allocation19], %s8485
          %8488 = dma.done %s8483, 10240
        $region104: #{aspp_forward.1} parent=99 // pred_fallthru
          _
      $region100: #{aspp_forward.1} parent=5 // pred_fallthru
        _
    $region6: #{aspp_forward.1} parent=1 // loop_footer
      %s34 = sadd.s32 1, %s30
    $region7: #{aspp_forward.1} parent=1 // loop_footer_branch
      %29 = sbr.rel target = $region3
    $region8: #{aspp_forward.1} parent=1 // loop_exit
      _
    %8489 = vsyncpa [#allocation6], 1
    %s8490 = scalar_lea.sflag [#allocation6], 1
    %8491 = vsyncpa %s8490, 1
    %8492 = vsyncpa [#allocation9], 1
    %s8493 = scalar_lea.sflag [#allocation9], 1
    %8494 = vsyncpa %s8493, 1
    %8495 = vsyncpa [#allocation12], 1
    %s8496 = scalar_lea.sflag [#allocation12], 1
    %8497 = vsyncpa %s8496, 1
    %8498 = vsyncpa [#allocation15], 1
    %s8499 = scalar_lea.sflag [#allocation15], 1
    %8500 = vsyncpa %s8499, 1
    %8501 = vsyncpa [#allocation18], 1
    %8502 = vsyncpa [#allocation7], 1
    %s8503 = scalar_lea.sflag [#allocation7], 1
    %8504 = vsyncpa %s8503, 1

</llo_original>
